<compile_context>
chip_gen: v5e
topology: v5e:2x2
jax: 0.10.0
libtpu: 0.0.40
codegen_flags: <defaults>
</compile_context>

<pallas_src>
import jax
import jax.numpy as jnp
from jax import lax
from jax.experimental import pallas as pl
from jax.experimental.pallas import tpu as pltpu


# --------------------------------------------------------------------------- #
# Pallas kernel (one batch element per grid step)
# --------------------------------------------------------------------------- #
def _tcn_gcn_unit_kernel(
    x_ref, xt_ref, pa_ref, alpha_ref,
    wat_ref, ba_ref, wb_ref, bb_ref, wd_ref, bgcn_ref,
    wdown_ref, bdown_ref,
    mavg_ref, wsa_ref, bsa_ref, mta_ref, bta_ref,
    wfc1_ref, bfc1_ref, wfc2_ref, bfc2_ref,
    wtcn_ref, btcn_ref, wres_ref, bres_ref,
    o_ref,
    sa_pad_ref,
):
    f32 = jnp.float32
    x = x_ref[0]                       # (C_in*T, V)
    x_t = xt_ref[0]                    # (V, C_in*T)
    v_dim = x.shape[1]
    n_subset = wd_ref.shape[0]
    inter_t = wb_ref.shape[1]          # inter_channels * T
    c_out, ksa = wsa_ref.shape
    cout_t = wd_ref.shape[1]           # out_channels * T
    pad_s = (ksa - 1) // 2

    def sigmoid(z):
        return 1.0 / (1.0 + jnp.exp(-z))

    # ---- Unit_GCN: adaptive graph convolution over the num_subset subsets ----
    y = jnp.zeros((cout_t, v_dim), dtype=f32)
    for i in range(n_subset):
        # 1x1 channel convs expressed as kron-expanded matmuls in (rows, V) layout
        xa_t = jnp.dot(x_t, wat_ref[i], preferred_element_type=f32) + ba_ref[i]  # (V, inter*T)
        xb = jnp.dot(wb_ref[i], x, preferred_element_type=f32) + bb_ref[i]       # (inter*T, V)
        # data-dependent adjacency: PA[i] + alpha * tanh(A1 @ A2 / (inter*T))
        ck = jnp.tanh(jnp.dot(xa_t, xb, preferred_element_type=f32) * (1.0 / inter_t))
        a_i = pa_ref[i] + alpha_ref[...] * ck                                     # (V, V)
        m = jnp.dot(x, a_i, preferred_element_type=f32)                           # (C_in*T, V)
        y = y + jnp.dot(wd_ref[i], m, preferred_element_type=f32)                 # (C_out*T, V)
    # folded BatchNorm (eval) bias, "down" branch (1x1 conv + BN folded), ReLU
    y = y + bgcn_ref[...]
    y = y + jnp.dot(wdown_ref[...], x, preferred_element_type=f32) + bdown_ref[...]
    y = jnp.maximum(y, 0.0)

    # ---- spatial (joint) attention: 1-D conv over V on the T-mean ----
    se_s = jnp.dot(mavg_ref[...], y, preferred_element_type=f32)                  # (C_out, V)
    sa_pad_ref[...] = jnp.zeros(sa_pad_ref.shape, dtype=f32)
    sa_pad_ref[:, pad_s:pad_s + v_dim] = se_s
    wsa = wsa_ref[...]
    prod = jnp.zeros((c_out, v_dim), dtype=f32)
    for k in range(ksa):
        prod = prod + wsa[:, k:k + 1] * sa_pad_ref[:, k:k + v_dim]
    se1_s = sigmoid(jnp.sum(prod, axis=0, keepdims=True) + bsa_ref[...])          # (1, V)
    y = y * (1.0 + se1_s)

    # ---- temporal attention: 1-D conv over T on the V-mean (resident matmul) ----
    pre_t = jnp.sum(jnp.dot(mta_ref[...], y, preferred_element_type=f32),
                    axis=1, keepdims=True) * (1.0 / v_dim) + bta_ref[...]         # (C_out*T, 1)
    y = y * (1.0 + sigmoid(pre_t))

    # ---- channel (squeeze-excite) attention ----
    tmp_c = jnp.dot(mavg_ref[...], y, preferred_element_type=f32)                 # (C_out, V)
    pre1 = jnp.dot(wfc1_ref[...], tmp_c, preferred_element_type=f32)              # (C_mid, V)
    h = jnp.maximum(jnp.sum(pre1, axis=1, keepdims=True) * (1.0 / v_dim)
                    + bfc1_ref[...], 0.0)                                         # (C_mid, 1)
    h_wide = jnp.broadcast_to(h, (h.shape[0], v_dim))                             # (C_mid, V)
    pre2 = jnp.dot(wfc2_ref[...], h_wide, preferred_element_type=f32) + bfc2_ref[...]
    y = y * (1.0 + sigmoid(pre2))

    # ---- Unit_TCN (temporal conv + BN folded) + residual Unit_TCN (1x1 + BN) ----
    out = jnp.dot(wtcn_ref[...], y, preferred_element_type=f32) + btcn_ref[...]
    res = jnp.dot(wres_ref[...], x, preferred_element_type=f32) + bres_ref[...]
    o_ref[0] = jnp.maximum(out + res, 0.0)


# --------------------------------------------------------------------------- #
# Wrapper: parameter folding / expansion (pure JAX, runs once under XLA)
# --------------------------------------------------------------------------- #
def _fold_bn(gamma, beta, mean, var, eps=1e-5):
    s = gamma / jnp.sqrt(var + eps)
    t = beta - mean * s
    return s, t


def _temporal_conv_matrix(w, T):
    # w: (O, I, K) temporal conv with 'same' zero padding (K odd)
    # -> (O*T, I*T) operator acting on (I*T, V) slabs (padding baked in).
    O, I, K = w.shape
    pad = (K - 1) // 2
    t_idx = jnp.arange(T)
    off = t_idx[None, :] - t_idx[:, None] + pad            # off[t_out, t_in]
    valid = ((off >= 0) & (off < K)).astype(w.dtype)
    blk = w[:, :, jnp.clip(off, 0, K - 1)] * valid[None, None]   # (O, I, T, T)
    return jnp.transpose(blk, (0, 2, 1, 3)).reshape(O * T, I * T)


def _col(v):
    return v.reshape(-1, 1)


def _rep_col(v, T):
    return jnp.repeat(v, T).reshape(-1, 1)


def tcn_gcn_unit_forward(x, p):
    """x: (N, C_in, T, V); p: dict of raw (PyTorch-layout) parameters."""
    f32 = jnp.float32
    N, C_in, T, V = x.shape
    n_subset, C_out, _ = p["conv_d_w"].shape
    Ksa = p["conv_sa_w"].shape[-1]
    pad_s = (Ksa - 1) // 2

    x = x.astype(f32)
    x_ct = x.reshape(N, C_in * T, V)                # row index = c*T + t
    x_t = jnp.swapaxes(x_ct, 1, 2)                  # (N, V, C_in*T)

    eyeT = jnp.eye(T, dtype=f32)

    # adaptive-branch 1x1 convs (kron-expanded over T)
    wa_t_big = jnp.stack([jnp.kron(p["conv_a_w"][i].T, eyeT) for i in range(n_subset)])
    ba_row = jnp.repeat(p["conv_a_b"], T, axis=-1)[:, None, :]          # (S, 1, inter*T)
    wb_big = jnp.stack([jnp.kron(p["conv_b_w"][i], eyeT) for i in range(n_subset)])
    bb_col = jnp.repeat(p["conv_b_b"], T, axis=-1)[:, :, None]          # (S, inter*T, 1)

    # conv_d with the GCN BatchNorm (eval) folded in
    s_gcn, t_gcn = _fold_bn(*p["bn_gcn"])
    wd_big = jnp.stack([jnp.kron(p["conv_d_w"][i] * s_gcn[:, None], eyeT)
                        for i in range(n_subset)])
    bgcn_col = _rep_col(s_gcn * jnp.sum(p["conv_d_b"], axis=0) + t_gcn, T)

    # "down" branch (1x1 conv + BN) folded
    s_dn, t_dn = _fold_bn(*p["bn_down"])
    wdown_big = jnp.kron(p["down_w"] * s_dn[:, None], eyeT)
    bdown_col = _rep_col(s_dn * p["down_b"] + t_dn, T)

    # attention helpers
    mavg = jnp.kron(jnp.eye(C_out, dtype=f32), jnp.ones((1, T), f32)) / T   # T-mean operator
    wsa = p["conv_sa_w"][0]                                                 # (C_out, Ksa)
    bsa = p["conv_sa_b"].reshape(1, 1)
    mta = _temporal_conv_matrix(p["conv_ta_w"], T)                          # (T, C_out*T)
    mta_big = jnp.tile(mta, (C_out, 1))                                     # (C_out*T, C_out*T)
    bta = p["conv_ta_b"].reshape(1, 1)
    wfc1 = p["fc1_w"]
    bfc1_col = _col(p["fc1_b"])
    wfc2_big = jnp.repeat(p["fc2_w"], T, axis=0)                            # (C_out*T, C_mid)
    bfc2_col = _rep_col(p["fc2_b"], T)

    # Unit_TCN temporal conv (+BN) as one (C_out*T, C_out*T) operator
    s_tcn, t_tcn = _fold_bn(*p["bn_tcn"])
    wtcn_big = _temporal_conv_matrix(p["tcn_w"] * s_tcn[:, None, None], T)
    btcn_col = _rep_col(s_tcn * p["tcn_b"] + t_tcn, T)

    # residual Unit_TCN (1x1 conv + BN) folded
    s_res, t_res = _fold_bn(*p["bn_res"])
    wres_big = jnp.kron(p["res_w"] * s_res[:, None], eyeT)
    bres_col = _rep_col(s_res * p["res_b"] + t_res, T)

    alpha2 = p["alpha"].reshape(1, 1)
    pa = p["PA"]

    operands = [x_ct, x_t, pa, alpha2, wa_t_big, ba_row, wb_big, bb_col, wd_big,
                bgcn_col, wdown_big, bdown_col, mavg, wsa, bsa, mta_big, bta,
                wfc1, bfc1_col, wfc2_big, bfc2_col, wtcn_big, btcn_col,
                wres_big, bres_col]
    operands = [jnp.asarray(a, f32) for a in operands]

    def _resident(a):
        nd = a.ndim
        return pl.BlockSpec(a.shape, lambda n, _nd=nd: (0,) * _nd)

    in_specs = [
        pl.BlockSpec((1, C_in * T, V), lambda n: (n, 0, 0)),
        pl.BlockSpec((1, V, C_in * T), lambda n: (n, 0, 0)),
    ] + [_resident(a) for a in operands[2:]]

    out = pl.pallas_call(
        _tcn_gcn_unit_kernel,
        out_shape=jax.ShapeDtypeStruct((N, C_out * T, V), f32),
        grid_spec=pltpu.PrefetchScalarGridSpec(
            num_scalar_prefetch=0,
            grid=(N,),
            in_specs=in_specs,
            out_specs=pl.BlockSpec((1, C_out * T, V), lambda n: (n, 0, 0)),
            scratch_shapes=[pltpu.VMEM((C_out, V + 2 * pad_s), f32)],
        ),
        compiler_params=pltpu.CompilerParams(dimension_semantics=("parallel",)),
    )(*operands)
    return out.reshape(N, C_out, T, V)


# --------------------------------------------------------------------------- #
# Pure-JAX reference (unfolded parameters, eval-mode BatchNorm)
# --------------------------------------------------------------------------- #
def _bn_eval(z, gamma, beta, mean, var, eps=1e-5):
    shp = (1, -1) + (1,) * (z.ndim - 2)
    return ((z - mean.reshape(shp)) / jnp.sqrt(var.reshape(shp) + eps)
            * gamma.reshape(shp) + beta.reshape(shp))


def reference_forward(x, p):
    HI = lax.Precision.HIGHEST
    N, C_in, T, V = x.shape
    n_subset, inter, _ = p["conv_a_w"].shape
    C_out = p["conv_d_w"].shape[1]

    def conv1x1(w, b, inp):
        return jnp.einsum("oi,nitv->notv", w, inp, precision=HI) + b[None, :, None, None]

    y = None
    for i in range(n_subset):
        xa = conv1x1(p["conv_a_w"][i], p["conv_a_b"][i], x)
        xb = conv1x1(p["conv_b_w"][i], p["conv_b_b"][i], x)
        A1 = xa.transpose(0, 3, 1, 2).reshape(N, V, inter * T)
        A2 = xb.reshape(N, inter * T, V)
        Ck = jnp.tanh(jnp.matmul(A1, A2, precision=HI) / (inter * T))
        Ai = p["PA"][i][None] + p["alpha"] * Ck
        m = jnp.matmul(x.reshape(N, C_in * T, V), Ai, precision=HI).reshape(N, C_in, T, V)
        z = conv1x1(p["conv_d_w"][i], p["conv_d_b"][i], m)
        y = z if y is None else y + z
    y = _bn_eval(y, *p["bn_gcn"])
    down = _bn_eval(conv1x1(p["down_w"], p["down_b"], x), *p["bn_down"])
    y = jnp.maximum(y + down, 0.0)

    # spatial attention
    se = y.mean(axis=2)
    pad_s = (p["conv_sa_w"].shape[-1] - 1) // 2
    c_s = lax.conv_general_dilated(se, p["conv_sa_w"], (1,), [(pad_s, pad_s)],
                                   dimension_numbers=("NCH", "OIH", "NCH"),
                                   precision=HI) + p["conv_sa_b"].reshape(1, 1, 1)
    y = y * jax.nn.sigmoid(c_s)[:, :, None, :] + y
    # temporal attention
    se = y.mean(axis=3)
    c_t = lax.conv_general_dilated(se, p["conv_ta_w"], (1,), [(4, 4)],
                                   dimension_numbers=("NCH", "OIH", "NCH"),
                                   precision=HI) + p["conv_ta_b"].reshape(1, 1, 1)
    y = y * jax.nn.sigmoid(c_t)[:, :, :, None] + y
    # channel attention
    se = y.mean(axis=(2, 3))
    h = jnp.maximum(jnp.matmul(se, p["fc1_w"].T, precision=HI) + p["fc1_b"], 0.0)
    se2 = jax.nn.sigmoid(jnp.matmul(h, p["fc2_w"].T, precision=HI) + p["fc2_b"])
    y = y * se2[:, :, None, None] + y

    # tcn1
    w4 = p["tcn_w"][:, :, :, None]
    yt = lax.conv_general_dilated(y, w4, (1, 1), [(4, 4), (0, 0)],
                                  dimension_numbers=("NCHW", "OIHW", "NCHW"),
                                  precision=HI) + p["tcn_b"][None, :, None, None]
    yt = _bn_eval(yt, *p["bn_tcn"])
    # residual
    res = _bn_eval(conv1x1(p["res_w"], p["res_b"], x), *p["bn_res"])
    return jnp.maximum(yt + res, 0.0)


# --------------------------------------------------------------------------- #
if __name__ == "__main__":
    N, C_in, C_out, T, V = 2, 4, 32, 8, 16
    num_subset = 3
    inter = C_out // 4
    C_mid = C_out // 2
    Ksa = V - 1 if V % 2 == 0 else V
    Kta, Ktcn = 9, 9

    _key = [jax.random.PRNGKey(0)]

    def rnd(shape, scale=1.0):
        _key[0], sub = jax.random.split(_key[0])
        return jax.random.normal(sub, shape, dtype=jnp.float32) * scale

    def bn(c):
        return (1.0 + rnd((c,), 0.1),              # gamma
                rnd((c,), 0.1),                    # beta
                rnd((c,), 0.1),                    # running_mean
                jnp.abs(rnd((c,), 0.3)) + 0.5)     # running_var

    params = {
        "PA": rnd((num_subset, V, V), 0.2),
        "alpha": jnp.array([0.5], dtype=jnp.float32),
        "conv_a_w": rnd((num_subset, inter, C_in), 0.5),
        "conv_a_b": rnd((num_subset, inter), 0.1),
        "conv_b_w": rnd((num_subset, inter, C_in), 0.5),
        "conv_b_b": rnd((num_subset, inter), 0.1),
        "conv_d_w": rnd((num_subset, C_out, C_in), 0.3),
        "conv_d_b": rnd((num_subset, C_out), 0.1),
        "bn_gcn": bn(C_out),
        "down_w": rnd((C_out, C_in), 0.5),
        "down_b": rnd((C_out,), 0.1),
        "bn_down": bn(C_out),
        "conv_sa_w": rnd((1, C_out, Ksa), 0.1),
        "conv_sa_b": rnd((1,), 0.1),
        "conv_ta_w": rnd((1, C_out, Kta), 0.1),
        "conv_ta_b": rnd((1,), 0.1),
        "fc1_w": rnd((C_mid, C_out), 0.25),
        "fc1_b": rnd((C_mid,), 0.1),
        "fc2_w": rnd((C_out, C_mid), 0.25),
        "fc2_b": rnd((C_out,), 0.1),
        "tcn_w": rnd((C_out, C_out, Ktcn), 0.08),
        "tcn_b": rnd((C_out,), 0.1),
        "bn_tcn": bn(C_out),
        "res_w": rnd((C_out, C_in), 0.5),
        "res_b": rnd((C_out,), 0.1),
        "bn_res": bn(C_out),
    }

    x = rnd((N, C_in, T, V), 1.0)

    out = tcn_gcn_unit_forward(x, params)
    out = jax.block_until_ready(out)

    ref = reference_forward(x, params)
    assert out.shape == (N, C_out, T, V)
    assert jnp.allclose(out, ref, atol=1e-2, rtol=1e-2), float(jnp.max(jnp.abs(out - ref)))

    print("KERNEL_OK")
</pallas_src>

<mosaic_0001>
module attributes {stable_mosaic.version = 11 : i64} {
  func.func @_tcn_gcn_unit_kernel(%arg0: i32, %arg1: memref<1x32x16xf32, #tpu.memory_space<vmem>>, %arg2: memref<1x16x32xf32, #tpu.memory_space<vmem>>, %arg3: memref<3x16x16xf32, #tpu.memory_space<vmem>>, %arg4: memref<1x1xf32, #tpu.memory_space<vmem>>, %arg5: memref<3x32x64xf32, #tpu.memory_space<vmem>>, %arg6: memref<3x1x64xf32, #tpu.memory_space<vmem>>, %arg7: memref<3x64x32xf32, #tpu.memory_space<vmem>>, %arg8: memref<3x64x1xf32, #tpu.memory_space<vmem>>, %arg9: memref<3x256x32xf32, #tpu.memory_space<vmem>>, %arg10: memref<256x1xf32, #tpu.memory_space<vmem>>, %arg11: memref<256x32xf32, #tpu.memory_space<vmem>>, %arg12: memref<256x1xf32, #tpu.memory_space<vmem>>, %arg13: memref<32x256xf32, #tpu.memory_space<vmem>>, %arg14: memref<32x15xf32, #tpu.memory_space<vmem>>, %arg15: memref<1x1xf32, #tpu.memory_space<vmem>>, %arg16: memref<256x256xf32, #tpu.memory_space<vmem>>, %arg17: memref<1x1xf32, #tpu.memory_space<vmem>>, %arg18: memref<16x32xf32, #tpu.memory_space<vmem>>, %arg19: memref<16x1xf32, #tpu.memory_space<vmem>>, %arg20: memref<256x16xf32, #tpu.memory_space<vmem>>, %arg21: memref<256x1xf32, #tpu.memory_space<vmem>>, %arg22: memref<256x256xf32, #tpu.memory_space<vmem>>, %arg23: memref<256x1xf32, #tpu.memory_space<vmem>>, %arg24: memref<256x32xf32, #tpu.memory_space<vmem>>, %arg25: memref<256x1xf32, #tpu.memory_space<vmem>>, %arg26: memref<1x256x16xf32, #tpu.memory_space<vmem>>, %arg27: memref<32x30xf32, #tpu.memory_space<vmem>>) attributes {dimension_semantics = [#tpu.dimension_semantics<parallel>], iteration_bounds = array<i64: 2>, scalar_prefetch = 0 : i64, scratch_operands = 1 : i64, tpu.core_type = #tpu.core_type<tc>, window_params = [{transform_indices = @transform_0, window_bounds = array<i64: 1, 32, 16>}, {transform_indices = @transform_1, window_bounds = array<i64: 1, 16, 32>}, {pipeline_mode = #tpu.pipeline_mode<synchronous>, transform_indices = @transform_2, window_bounds = array<i64: 3, 16, 16>}, {pipeline_mode = #tpu.pipeline_mode<synchronous>, transform_indices = @transform_3, window_bounds = array<i64: 1, 1>}, {pipeline_mode = #tpu.pipeline_mode<synchronous>, transform_indices = @transform_4, window_bounds = array<i64: 3, 32, 64>}, {pipeline_mode = #tpu.pipeline_mode<synchronous>, transform_indices = @transform_5, window_bounds = array<i64: 3, 1, 64>}, {pipeline_mode = #tpu.pipeline_mode<synchronous>, transform_indices = @transform_6, window_bounds = array<i64: 3, 64, 32>}, {pipeline_mode = #tpu.pipeline_mode<synchronous>, transform_indices = @transform_7, window_bounds = array<i64: 3, 64, 1>}, {pipeline_mode = #tpu.pipeline_mode<synchronous>, transform_indices = @transform_8, window_bounds = array<i64: 3, 256, 32>}, {pipeline_mode = #tpu.pipeline_mode<synchronous>, transform_indices = @transform_9, window_bounds = array<i64: 256, 1>}, {pipeline_mode = #tpu.pipeline_mode<synchronous>, transform_indices = @transform_10, window_bounds = array<i64: 256, 32>}, {pipeline_mode = #tpu.pipeline_mode<synchronous>, transform_indices = @transform_11, window_bounds = array<i64: 256, 1>}, {pipeline_mode = #tpu.pipeline_mode<synchronous>, transform_indices = @transform_12, window_bounds = array<i64: 32, 256>}, {pipeline_mode = #tpu.pipeline_mode<synchronous>, transform_indices = @transform_13, window_bounds = array<i64: 32, 15>}, {pipeline_mode = #tpu.pipeline_mode<synchronous>, transform_indices = @transform_14, window_bounds = array<i64: 1, 1>}, {pipeline_mode = #tpu.pipeline_mode<synchronous>, transform_indices = @transform_15, window_bounds = array<i64: 256, 256>}, {pipeline_mode = #tpu.pipeline_mode<synchronous>, transform_indices = @transform_16, window_bounds = array<i64: 1, 1>}, {pipeline_mode = #tpu.pipeline_mode<synchronous>, transform_indices = @transform_17, window_bounds = array<i64: 16, 32>}, {pipeline_mode = #tpu.pipeline_mode<synchronous>, transform_indices = @transform_18, window_bounds = array<i64: 16, 1>}, {pipeline_mode = #tpu.pipeline_mode<synchronous>, transform_indices = @transform_19, window_bounds = array<i64: 256, 16>}, {pipeline_mode = #tpu.pipeline_mode<synchronous>, transform_indices = @transform_20, window_bounds = array<i64: 256, 1>}, {pipeline_mode = #tpu.pipeline_mode<synchronous>, transform_indices = @transform_21, window_bounds = array<i64: 256, 256>}, {pipeline_mode = #tpu.pipeline_mode<synchronous>, transform_indices = @transform_22, window_bounds = array<i64: 256, 1>}, {pipeline_mode = #tpu.pipeline_mode<synchronous>, transform_indices = @transform_23, window_bounds = array<i64: 256, 32>}, {pipeline_mode = #tpu.pipeline_mode<synchronous>, transform_indices = @transform_24, window_bounds = array<i64: 256, 1>}, {transform_indices = @transform_25, window_bounds = array<i64: 1, 256, 16>}]} {
    %c0 = arith.constant 0 : index
    %c0_0 = arith.constant 0 : index
    %c0_1 = arith.constant 0 : index
    %0 = vector.load %arg1[%c0, %c0_0, %c0_1] : memref<1x32x16xf32, #tpu.memory_space<vmem>>, vector<1x32x16xf32>
    %1 = vector.shape_cast %0 : vector<1x32x16xf32> to vector<32x16xf32>
    %c0_2 = arith.constant 0 : index
    %c0_3 = arith.constant 0 : index
    %c0_4 = arith.constant 0 : index
    %2 = vector.load %arg2[%c0_2, %c0_3, %c0_4] : memref<1x16x32xf32, #tpu.memory_space<vmem>>, vector<1x16x32xf32>
    %3 = vector.shape_cast %2 : vector<1x16x32xf32> to vector<16x32xf32>
    %cst = arith.constant 0.000000e+00 : f32
    %4 = vector.broadcast %cst : f32 to vector<256x16xf32>
    %c0_5 = arith.constant 0 : index
    %c0_6 = arith.constant 0 : index
    %c0_7 = arith.constant 0 : index
    %5 = vector.load %arg5[%c0_5, %c0_6, %c0_7] : memref<3x32x64xf32, #tpu.memory_space<vmem>>, vector<1x32x64xf32>
    %6 = vector.shape_cast %5 : vector<1x32x64xf32> to vector<32x64xf32>
    %cst_8 = arith.constant dense<0.000000e+00> : vector<16x64xf32>
    %7 = tpu.matmul %3, %6, %cst_8 {dimension_numbers = #tpu.dot_dimension_numbers<[1], [0], [0], [1], [0, 0, 1, 1], [], []>} : vector<16x32xf32>, vector<32x64xf32>, vector<16x64xf32> -> vector<16x64xf32>
    %c0_9 = arith.constant 0 : index
    %c0_10 = arith.constant 0 : index
    %c0_11 = arith.constant 0 : index
    %8 = vector.load %arg6[%c0_9, %c0_10, %c0_11] : memref<3x1x64xf32, #tpu.memory_space<vmem>>, vector<1x1x64xf32>
    %9 = vector.shape_cast %8 : vector<1x1x64xf32> to vector<1x64xf32>
    %10 = vector.broadcast %9 : vector<1x64xf32> to vector<16x64xf32>
    %11 = arith.addf %7, %10 : vector<16x64xf32>
    %c0_12 = arith.constant 0 : index
    %c0_13 = arith.constant 0 : index
    %c0_14 = arith.constant 0 : index
    %12 = vector.load %arg7[%c0_12, %c0_13, %c0_14] : memref<3x64x32xf32, #tpu.memory_space<vmem>>, vector<1x64x32xf32>
    %13 = vector.shape_cast %12 : vector<1x64x32xf32> to vector<64x32xf32>
    %cst_15 = arith.constant dense<0.000000e+00> : vector<64x16xf32>
    %14 = tpu.matmul %13, %1, %cst_15 {dimension_numbers = #tpu.dot_dimension_numbers<[1], [0], [0], [1], [0, 0, 1, 1], [], []>} : vector<64x32xf32>, vector<32x16xf32>, vector<64x16xf32> -> vector<64x16xf32>
    %c0_16 = arith.constant 0 : index
    %c0_17 = arith.constant 0 : index
    %c0_18 = arith.constant 0 : index
    %15 = vector.load %arg8[%c0_16, %c0_17, %c0_18] : memref<3x64x1xf32, #tpu.memory_space<vmem>>, vector<1x64x1xf32>
    %16 = vector.shape_cast %15 : vector<1x64x1xf32> to vector<64x1xf32>
    %17 = vector.broadcast %16 : vector<64x1xf32> to vector<64x16xf32>
    %18 = arith.addf %14, %17 : vector<64x16xf32>
    %cst_19 = arith.constant dense<0.000000e+00> : vector<16x16xf32>
    %19 = tpu.matmul %11, %18, %cst_19 {dimension_numbers = #tpu.dot_dimension_numbers<[1], [0], [0], [1], [0, 0, 1, 1], [], []>} : vector<16x64xf32>, vector<64x16xf32>, vector<16x16xf32> -> vector<16x16xf32>
    %cst_20 = arith.constant 1.562500e-02 : f32
    %20 = vector.broadcast %cst_20 : f32 to vector<16x16xf32>
    %21 = arith.mulf %19, %20 : vector<16x16xf32>
    %22 = math.tanh %21 : vector<16x16xf32>
    %c0_21 = arith.constant 0 : index
    %c0_22 = arith.constant 0 : index
    %c0_23 = arith.constant 0 : index
    %23 = vector.load %arg3[%c0_21, %c0_22, %c0_23] : memref<3x16x16xf32, #tpu.memory_space<vmem>>, vector<1x16x16xf32>
    %24 = vector.shape_cast %23 : vector<1x16x16xf32> to vector<16x16xf32>
    %c0_24 = arith.constant 0 : index
    %c0_25 = arith.constant 0 : index
    %25 = vector.load %arg4[%c0_24, %c0_25] : memref<1x1xf32, #tpu.memory_space<vmem>>, vector<1x1xf32>
    %26 = vector.broadcast %25 : vector<1x1xf32> to vector<16x16xf32>
    %27 = arith.mulf %26, %22 : vector<16x16xf32>
    %28 = arith.addf %24, %27 : vector<16x16xf32>
    %cst_26 = arith.constant dense<0.000000e+00> : vector<32x16xf32>
    %29 = tpu.matmul %1, %28, %cst_26 {dimension_numbers = #tpu.dot_dimension_numbers<[1], [0], [0], [1], [0, 0, 1, 1], [], []>} : vector<32x16xf32>, vector<16x16xf32>, vector<32x16xf32> -> vector<32x16xf32>
    %c0_27 = arith.constant 0 : index
    %c0_28 = arith.constant 0 : index
    %c0_29 = arith.constant 0 : index
    %30 = vector.load %arg9[%c0_27, %c0_28, %c0_29] : memref<3x256x32xf32, #tpu.memory_space<vmem>>, vector<1x256x32xf32>
    %31 = vector.shape_cast %30 : vector<1x256x32xf32> to vector<256x32xf32>
    %cst_30 = arith.constant dense<0.000000e+00> : vector<256x16xf32>
    %32 = tpu.matmul %31, %29, %cst_30 {dimension_numbers = #tpu.dot_dimension_numbers<[1], [0], [0], [1], [0, 0, 1, 1], [], []>} : vector<256x32xf32>, vector<32x16xf32>, vector<256x16xf32> -> vector<256x16xf32>
    %33 = arith.addf %4, %32 : vector<256x16xf32>
    %c1 = arith.constant 1 : index
    %c0_31 = arith.constant 0 : index
    %c0_32 = arith.constant 0 : index
    %34 = vector.load %arg5[%c1, %c0_31, %c0_32] : memref<3x32x64xf32, #tpu.memory_space<vmem>>, vector<1x32x64xf32>
    %35 = vector.shape_cast %34 : vector<1x32x64xf32> to vector<32x64xf32>
    %cst_33 = arith.constant dense<0.000000e+00> : vector<16x64xf32>
    %36 = tpu.matmul %3, %35, %cst_33 {dimension_numbers = #tpu.dot_dimension_numbers<[1], [0], [0], [1], [0, 0, 1, 1], [], []>} : vector<16x32xf32>, vector<32x64xf32>, vector<16x64xf32> -> vector<16x64xf32>
    %c1_34 = arith.constant 1 : index
    %c0_35 = arith.constant 0 : index
    %c0_36 = arith.constant 0 : index
    %37 = vector.load %arg6[%c1_34, %c0_35, %c0_36] : memref<3x1x64xf32, #tpu.memory_space<vmem>>, vector<1x1x64xf32>
    %38 = vector.shape_cast %37 : vector<1x1x64xf32> to vector<1x64xf32>
    %39 = vector.broadcast %38 : vector<1x64xf32> to vector<16x64xf32>
    %40 = arith.addf %36, %39 : vector<16x64xf32>
    %c1_37 = arith.constant 1 : index
    %c0_38 = arith.constant 0 : index
    %c0_39 = arith.constant 0 : index
    %41 = vector.load %arg7[%c1_37, %c0_38, %c0_39] : memref<3x64x32xf32, #tpu.memory_space<vmem>>, vector<1x64x32xf32>
    %42 = vector.shape_cast %41 : vector<1x64x32xf32> to vector<64x32xf32>
    %cst_40 = arith.constant dense<0.000000e+00> : vector<64x16xf32>
    %43 = tpu.matmul %42, %1, %cst_40 {dimension_numbers = #tpu.dot_dimension_numbers<[1], [0], [0], [1], [0, 0, 1, 1], [], []>} : vector<64x32xf32>, vector<32x16xf32>, vector<64x16xf32> -> vector<64x16xf32>
    %c1_41 = arith.constant 1 : index
    %c0_42 = arith.constant 0 : index
    %c0_43 = arith.constant 0 : index
    %44 = vector.load %arg8[%c1_41, %c0_42, %c0_43] : memref<3x64x1xf32, #tpu.memory_space<vmem>>, vector<1x64x1xf32>
    %45 = vector.shape_cast %44 : vector<1x64x1xf32> to vector<64x1xf32>
    %46 = vector.broadcast %45 : vector<64x1xf32> to vector<64x16xf32>
    %47 = arith.addf %43, %46 : vector<64x16xf32>
    %cst_44 = arith.constant dense<0.000000e+00> : vector<16x16xf32>
    %48 = tpu.matmul %40, %47, %cst_44 {dimension_numbers = #tpu.dot_dimension_numbers<[1], [0], [0], [1], [0, 0, 1, 1], [], []>} : vector<16x64xf32>, vector<64x16xf32>, vector<16x16xf32> -> vector<16x16xf32>
    %cst_45 = arith.constant 1.562500e-02 : f32
    %49 = vector.broadcast %cst_45 : f32 to vector<16x16xf32>
    %50 = arith.mulf %48, %49 : vector<16x16xf32>
    %51 = math.tanh %50 : vector<16x16xf32>
    %c1_46 = arith.constant 1 : index
    %c0_47 = arith.constant 0 : index
    %c0_48 = arith.constant 0 : index
    %52 = vector.load %arg3[%c1_46, %c0_47, %c0_48] : memref<3x16x16xf32, #tpu.memory_space<vmem>>, vector<1x16x16xf32>
    %53 = vector.shape_cast %52 : vector<1x16x16xf32> to vector<16x16xf32>
    %c0_49 = arith.constant 0 : index
    %c0_50 = arith.constant 0 : index
    %54 = vector.load %arg4[%c0_49, %c0_50] : memref<1x1xf32, #tpu.memory_space<vmem>>, vector<1x1xf32>
    %55 = vector.broadcast %54 : vector<1x1xf32> to vector<16x16xf32>
    %56 = arith.mulf %55, %51 : vector<16x16xf32>
    %57 = arith.addf %53, %56 : vector<16x16xf32>
    %cst_51 = arith.constant dense<0.000000e+00> : vector<32x16xf32>
    %58 = tpu.matmul %1, %57, %cst_51 {dimension_numbers = #tpu.dot_dimension_numbers<[1], [0], [0], [1], [0, 0, 1, 1], [], []>} : vector<32x16xf32>, vector<16x16xf32>, vector<32x16xf32> -> vector<32x16xf32>
    %c1_52 = arith.constant 1 : index
    %c0_53 = arith.constant 0 : index
    %c0_54 = arith.constant 0 : index
    %59 = vector.load %arg9[%c1_52, %c0_53, %c0_54] : memref<3x256x32xf32, #tpu.memory_space<vmem>>, vector<1x256x32xf32>
    %60 = vector.shape_cast %59 : vector<1x256x32xf32> to vector<256x32xf32>
    %cst_55 = arith.constant dense<0.000000e+00> : vector<256x16xf32>
    %61 = tpu.matmul %60, %58, %cst_55 {dimension_numbers = #tpu.dot_dimension_numbers<[1], [0], [0], [1], [0, 0, 1, 1], [], []>} : vector<256x32xf32>, vector<32x16xf32>, vector<256x16xf32> -> vector<256x16xf32>
    %62 = arith.addf %33, %61 : vector<256x16xf32>
    %c2 = arith.constant 2 : index
    %c0_56 = arith.constant 0 : index
    %c0_57 = arith.constant 0 : index
    %63 = vector.load %arg5[%c2, %c0_56, %c0_57] : memref<3x32x64xf32, #tpu.memory_space<vmem>>, vector<1x32x64xf32>
    %64 = vector.shape_cast %63 : vector<1x32x64xf32> to vector<32x64xf32>
    %cst_58 = arith.constant dense<0.000000e+00> : vector<16x64xf32>
    %65 = tpu.matmul %3, %64, %cst_58 {dimension_numbers = #tpu.dot_dimension_numbers<[1], [0], [0], [1], [0, 0, 1, 1], [], []>} : vector<16x32xf32>, vector<32x64xf32>, vector<16x64xf32> -> vector<16x64xf32>
    %c2_59 = arith.constant 2 : index
    %c0_60 = arith.constant 0 : index
    %c0_61 = arith.constant 0 : index
    %66 = vector.load %arg6[%c2_59, %c0_60, %c0_61] : memref<3x1x64xf32, #tpu.memory_space<vmem>>, vector<1x1x64xf32>
    %67 = vector.shape_cast %66 : vector<1x1x64xf32> to vector<1x64xf32>
    %68 = vector.broadcast %67 : vector<1x64xf32> to vector<16x64xf32>
    %69 = arith.addf %65, %68 : vector<16x64xf32>
    %c2_62 = arith.constant 2 : index
    %c0_63 = arith.constant 0 : index
    %c0_64 = arith.constant 0 : index
    %70 = vector.load %arg7[%c2_62, %c0_63, %c0_64] : memref<3x64x32xf32, #tpu.memory_space<vmem>>, vector<1x64x32xf32>
    %71 = vector.shape_cast %70 : vector<1x64x32xf32> to vector<64x32xf32>
    %cst_65 = arith.constant dense<0.000000e+00> : vector<64x16xf32>
    %72 = tpu.matmul %71, %1, %cst_65 {dimension_numbers = #tpu.dot_dimension_numbers<[1], [0], [0], [1], [0, 0, 1, 1], [], []>} : vector<64x32xf32>, vector<32x16xf32>, vector<64x16xf32> -> vector<64x16xf32>
    %c2_66 = arith.constant 2 : index
    %c0_67 = arith.constant 0 : index
    %c0_68 = arith.constant 0 : index
    %73 = vector.load %arg8[%c2_66, %c0_67, %c0_68] : memref<3x64x1xf32, #tpu.memory_space<vmem>>, vector<1x64x1xf32>
    %74 = vector.shape_cast %73 : vector<1x64x1xf32> to vector<64x1xf32>
    %75 = vector.broadcast %74 : vector<64x1xf32> to vector<64x16xf32>
    %76 = arith.addf %72, %75 : vector<64x16xf32>
    %cst_69 = arith.constant dense<0.000000e+00> : vector<16x16xf32>
    %77 = tpu.matmul %69, %76, %cst_69 {dimension_numbers = #tpu.dot_dimension_numbers<[1], [0], [0], [1], [0, 0, 1, 1], [], []>} : vector<16x64xf32>, vector<64x16xf32>, vector<16x16xf32> -> vector<16x16xf32>
    %cst_70 = arith.constant 1.562500e-02 : f32
    %78 = vector.broadcast %cst_70 : f32 to vector<16x16xf32>
    %79 = arith.mulf %77, %78 : vector<16x16xf32>
    %80 = math.tanh %79 : vector<16x16xf32>
    %c2_71 = arith.constant 2 : index
    %c0_72 = arith.constant 0 : index
    %c0_73 = arith.constant 0 : index
    %81 = vector.load %arg3[%c2_71, %c0_72, %c0_73] : memref<3x16x16xf32, #tpu.memory_space<vmem>>, vector<1x16x16xf32>
    %82 = vector.shape_cast %81 : vector<1x16x16xf32> to vector<16x16xf32>
    %c0_74 = arith.constant 0 : index
    %c0_75 = arith.constant 0 : index
    %83 = vector.load %arg4[%c0_74, %c0_75] : memref<1x1xf32, #tpu.memory_space<vmem>>, vector<1x1xf32>
    %84 = vector.broadcast %83 : vector<1x1xf32> to vector<16x16xf32>
    %85 = arith.mulf %84, %80 : vector<16x16xf32>
    %86 = arith.addf %82, %85 : vector<16x16xf32>
    %cst_76 = arith.constant dense<0.000000e+00> : vector<32x16xf32>
    %87 = tpu.matmul %1, %86, %cst_76 {dimension_numbers = #tpu.dot_dimension_numbers<[1], [0], [0], [1], [0, 0, 1, 1], [], []>} : vector<32x16xf32>, vector<16x16xf32>, vector<32x16xf32> -> vector<32x16xf32>
    %c2_77 = arith.constant 2 : index
    %c0_78 = arith.constant 0 : index
    %c0_79 = arith.constant 0 : index
    %88 = vector.load %arg9[%c2_77, %c0_78, %c0_79] : memref<3x256x32xf32, #tpu.memory_space<vmem>>, vector<1x256x32xf32>
    %89 = vector.shape_cast %88 : vector<1x256x32xf32> to vector<256x32xf32>
    %cst_80 = arith.constant dense<0.000000e+00> : vector<256x16xf32>
    %90 = tpu.matmul %89, %87, %cst_80 {dimension_numbers = #tpu.dot_dimension_numbers<[1], [0], [0], [1], [0, 0, 1, 1], [], []>} : vector<256x32xf32>, vector<32x16xf32>, vector<256x16xf32> -> vector<256x16xf32>
    %91 = arith.addf %62, %90 : vector<256x16xf32>
    %c0_81 = arith.constant 0 : index
    %c0_82 = arith.constant 0 : index
    %92 = vector.load %arg10[%c0_81, %c0_82] : memref<256x1xf32, #tpu.memory_space<vmem>>, vector<256x1xf32>
    %93 = vector.broadcast %92 : vector<256x1xf32> to vector<256x16xf32>
    %94 = arith.addf %91, %93 : vector<256x16xf32>
    %c0_83 = arith.constant 0 : index
    %c0_84 = arith.constant 0 : index
    %95 = vector.load %arg11[%c0_83, %c0_84] : memref<256x32xf32, #tpu.memory_space<vmem>>, vector<256x32xf32>
    %cst_85 = arith.constant dense<0.000000e+00> : vector<256x16xf32>
    %96 = tpu.matmul %95, %1, %cst_85 {dimension_numbers = #tpu.dot_dimension_numbers<[1], [0], [0], [1], [0, 0, 1, 1], [], []>} : vector<256x32xf32>, vector<32x16xf32>, vector<256x16xf32> -> vector<256x16xf32>
    %97 = arith.addf %94, %96 : vector<256x16xf32>
    %c0_86 = arith.constant 0 : index
    %c0_87 = arith.constant 0 : index
    %98 = vector.load %arg12[%c0_86, %c0_87] : memref<256x1xf32, #tpu.memory_space<vmem>>, vector<256x1xf32>
    %99 = vector.broadcast %98 : vector<256x1xf32> to vector<256x16xf32>
    %100 = arith.addf %97, %99 : vector<256x16xf32>
    %cst_88 = arith.constant 0.000000e+00 : f32
    %101 = vector.broadcast %cst_88 : f32 to vector<256x16xf32>
    %102 = arith.maximumf %100, %101 : vector<256x16xf32>
    %c0_89 = arith.constant 0 : index
    %c0_90 = arith.constant 0 : index
    %103 = vector.load %arg13[%c0_89, %c0_90] : memref<32x256xf32, #tpu.memory_space<vmem>>, vector<32x256xf32>
    %cst_91 = arith.constant dense<0.000000e+00> : vector<32x16xf32>
    %104 = tpu.matmul %103, %102, %cst_91 {dimension_numbers = #tpu.dot_dimension_numbers<[1], [0], [0], [1], [0, 0, 1, 1], [], []>} : vector<32x256xf32>, vector<256x16xf32>, vector<32x16xf32> -> vector<32x16xf32>
    %cst_92 = arith.constant 0.000000e+00 : f32
    %105 = vector.broadcast %cst_92 : f32 to vector<32x30xf32>
    %c0_93 = arith.constant 0 : index
    %c0_94 = arith.constant 0 : index
    %106 = vector.load %arg27[%c0_93, %c0_94] : memref<32x30xf32, #tpu.memory_space<vmem>>, vector<32x30xf32>
    tpu.vector_store %arg27[%c0_93, %c0_94], %105 {strides = array<i32>} : memref<32x30xf32, #tpu.memory_space<vmem>>, vector<32x30xf32>,
    %c0_95 = arith.constant 0 : index
    %c7 = arith.constant 7 : index
    %107 = vector.load %arg27[%c0_95, %c7] : memref<32x30xf32, #tpu.memory_space<vmem>>, vector<32x16xf32>
    tpu.vector_store %arg27[%c0_95, %c7], %104 {strides = array<i32>} : memref<32x30xf32, #tpu.memory_space<vmem>>, vector<32x16xf32>,
    %c0_96 = arith.constant 0 : index
    %c0_97 = arith.constant 0 : index
    %108 = vector.load %arg14[%c0_96, %c0_97] : memref<32x15xf32, #tpu.memory_space<vmem>>, vector<32x15xf32>
    %cst_98 = arith.constant 0.000000e+00 : f32
    %109 = vector.broadcast %cst_98 : f32 to vector<32x16xf32>
    %110 = vector.extract_strided_slice %108 {offsets = [0, 0], sizes = [32, 1], strides = [1, 1]} : vector<32x15xf32> to vector<32x1xf32>
    %c0_99 = arith.constant 0 : index
    %c0_100 = arith.constant 0 : index
    %111 = vector.load %arg27[%c0_99, %c0_100] : memref<32x30xf32, #tpu.memory_space<vmem>>, vector<32x16xf32>
    %112 = vector.broadcast %110 : vector<32x1xf32> to vector<32x16xf32>
    %113 = arith.mulf %112, %111 : vector<32x16xf32>
    %114 = arith.addf %109, %113 : vector<32x16xf32>
    %115 = vector.extract_strided_slice %108 {offsets = [0, 1], sizes = [32, 1], strides = [1, 1]} : vector<32x15xf32> to vector<32x1xf32>
    %c0_101 = arith.constant 0 : index
    %c1_102 = arith.constant 1 : index
    %116 = vector.load %arg27[%c0_101, %c1_102] : memref<32x30xf32, #tpu.memory_space<vmem>>, vector<32x16xf32>
    %117 = vector.broadcast %115 : vector<32x1xf32> to vector<32x16xf32>
    %118 = arith.mulf %117, %116 : vector<32x16xf32>
    %119 = arith.addf %114, %118 : vector<32x16xf32>
    %120 = vector.extract_strided_slice %108 {offsets = [0, 2], sizes = [32, 1], strides = [1, 1]} : vector<32x15xf32> to vector<32x1xf32>
    %c0_103 = arith.constant 0 : index
    %c2_104 = arith.constant 2 : index
    %121 = vector.load %arg27[%c0_103, %c2_104] : memref<32x30xf32, #tpu.memory_space<vmem>>, vector<32x16xf32>
    %122 = vector.broadcast %120 : vector<32x1xf32> to vector<32x16xf32>
    %123 = arith.mulf %122, %121 : vector<32x16xf32>
    %124 = arith.addf %119, %123 : vector<32x16xf32>
    %125 = vector.extract_strided_slice %108 {offsets = [0, 3], sizes = [32, 1], strides = [1, 1]} : vector<32x15xf32> to vector<32x1xf32>
    %c0_105 = arith.constant 0 : index
    %c3 = arith.constant 3 : index
    %126 = vector.load %arg27[%c0_105, %c3] : memref<32x30xf32, #tpu.memory_space<vmem>>, vector<32x16xf32>
    %127 = vector.broadcast %125 : vector<32x1xf32> to vector<32x16xf32>
    %128 = arith.mulf %127, %126 : vector<32x16xf32>
    %129 = arith.addf %124, %128 : vector<32x16xf32>
    %130 = vector.extract_strided_slice %108 {offsets = [0, 4], sizes = [32, 1], strides = [1, 1]} : vector<32x15xf32> to vector<32x1xf32>
    %c0_106 = arith.constant 0 : index
    %c4 = arith.constant 4 : index
    %131 = vector.load %arg27[%c0_106, %c4] : memref<32x30xf32, #tpu.memory_space<vmem>>, vector<32x16xf32>
    %132 = vector.broadcast %130 : vector<32x1xf32> to vector<32x16xf32>
    %133 = arith.mulf %132, %131 : vector<32x16xf32>
    %134 = arith.addf %129, %133 : vector<32x16xf32>
    %135 = vector.extract_strided_slice %108 {offsets = [0, 5], sizes = [32, 1], strides = [1, 1]} : vector<32x15xf32> to vector<32x1xf32>
    %c0_107 = arith.constant 0 : index
    %c5 = arith.constant 5 : index
    %136 = vector.load %arg27[%c0_107, %c5] : memref<32x30xf32, #tpu.memory_space<vmem>>, vector<32x16xf32>
    %137 = vector.broadcast %135 : vector<32x1xf32> to vector<32x16xf32>
    %138 = arith.mulf %137, %136 : vector<32x16xf32>
    %139 = arith.addf %134, %138 : vector<32x16xf32>
    %140 = vector.extract_strided_slice %108 {offsets = [0, 6], sizes = [32, 1], strides = [1, 1]} : vector<32x15xf32> to vector<32x1xf32>
    %c0_108 = arith.constant 0 : index
    %c6 = arith.constant 6 : index
    %141 = vector.load %arg27[%c0_108, %c6] : memref<32x30xf32, #tpu.memory_space<vmem>>, vector<32x16xf32>
    %142 = vector.broadcast %140 : vector<32x1xf32> to vector<32x16xf32>
    %143 = arith.mulf %142, %141 : vector<32x16xf32>
    %144 = arith.addf %139, %143 : vector<32x16xf32>
    %145 = vector.extract_strided_slice %108 {offsets = [0, 7], sizes = [32, 1], strides = [1, 1]} : vector<32x15xf32> to vector<32x1xf32>
    %c0_109 = arith.constant 0 : index
    %c7_110 = arith.constant 7 : index
    %146 = vector.load %arg27[%c0_109, %c7_110] : memref<32x30xf32, #tpu.memory_space<vmem>>, vector<32x16xf32>
    %147 = vector.broadcast %145 : vector<32x1xf32> to vector<32x16xf32>
    %148 = arith.mulf %147, %146 : vector<32x16xf32>
    %149 = arith.addf %144, %148 : vector<32x16xf32>
    %150 = vector.extract_strided_slice %108 {offsets = [0, 8], sizes = [32, 1], strides = [1, 1]} : vector<32x15xf32> to vector<32x1xf32>
    %c0_111 = arith.constant 0 : index
    %c8 = arith.constant 8 : index
    %151 = vector.load %arg27[%c0_111, %c8] : memref<32x30xf32, #tpu.memory_space<vmem>>, vector<32x16xf32>
    %152 = vector.broadcast %150 : vector<32x1xf32> to vector<32x16xf32>
    %153 = arith.mulf %152, %151 : vector<32x16xf32>
    %154 = arith.addf %149, %153 : vector<32x16xf32>
    %155 = vector.extract_strided_slice %108 {offsets = [0, 9], sizes = [32, 1], strides = [1, 1]} : vector<32x15xf32> to vector<32x1xf32>
    %c0_112 = arith.constant 0 : index
    %c9 = arith.constant 9 : index
    %156 = vector.load %arg27[%c0_112, %c9] : memref<32x30xf32, #tpu.memory_space<vmem>>, vector<32x16xf32>
    %157 = vector.broadcast %155 : vector<32x1xf32> to vector<32x16xf32>
    %158 = arith.mulf %157, %156 : vector<32x16xf32>
    %159 = arith.addf %154, %158 : vector<32x16xf32>
    %160 = vector.extract_strided_slice %108 {offsets = [0, 10], sizes = [32, 1], strides = [1, 1]} : vector<32x15xf32> to vector<32x1xf32>
    %c0_113 = arith.constant 0 : index
    %c10 = arith.constant 10 : index
    %161 = vector.load %arg27[%c0_113, %c10] : memref<32x30xf32, #tpu.memory_space<vmem>>, vector<32x16xf32>
    %162 = vector.broadcast %160 : vector<32x1xf32> to vector<32x16xf32>
    %163 = arith.mulf %162, %161 : vector<32x16xf32>
    %164 = arith.addf %159, %163 : vector<32x16xf32>
    %165 = vector.extract_strided_slice %108 {offsets = [0, 11], sizes = [32, 1], strides = [1, 1]} : vector<32x15xf32> to vector<32x1xf32>
    %c0_114 = arith.constant 0 : index
    %c11 = arith.constant 11 : index
    %166 = vector.load %arg27[%c0_114, %c11] : memref<32x30xf32, #tpu.memory_space<vmem>>, vector<32x16xf32>
    %167 = vector.broadcast %165 : vector<32x1xf32> to vector<32x16xf32>
    %168 = arith.mulf %167, %166 : vector<32x16xf32>
    %169 = arith.addf %164, %168 : vector<32x16xf32>
    %170 = vector.extract_strided_slice %108 {offsets = [0, 12], sizes = [32, 1], strides = [1, 1]} : vector<32x15xf32> to vector<32x1xf32>
    %c0_115 = arith.constant 0 : index
    %c12 = arith.constant 12 : index
    %171 = vector.load %arg27[%c0_115, %c12] : memref<32x30xf32, #tpu.memory_space<vmem>>, vector<32x16xf32>
    %172 = vector.broadcast %170 : vector<32x1xf32> to vector<32x16xf32>
    %173 = arith.mulf %172, %171 : vector<32x16xf32>
    %174 = arith.addf %169, %173 : vector<32x16xf32>
    %175 = vector.extract_strided_slice %108 {offsets = [0, 13], sizes = [32, 1], strides = [1, 1]} : vector<32x15xf32> to vector<32x1xf32>
    %c0_116 = arith.constant 0 : index
    %c13 = arith.constant 13 : index
    %176 = vector.load %arg27[%c0_116, %c13] : memref<32x30xf32, #tpu.memory_space<vmem>>, vector<32x16xf32>
    %177 = vector.broadcast %175 : vector<32x1xf32> to vector<32x16xf32>
    %178 = arith.mulf %177, %176 : vector<32x16xf32>
    %179 = arith.addf %174, %178 : vector<32x16xf32>
    %180 = vector.extract_strided_slice %108 {offsets = [0, 14], sizes = [32, 1], strides = [1, 1]} : vector<32x15xf32> to vector<32x1xf32>
    %c0_117 = arith.constant 0 : index
    %c14 = arith.constant 14 : index
    %181 = vector.load %arg27[%c0_117, %c14] : memref<32x30xf32, #tpu.memory_space<vmem>>, vector<32x16xf32>
    %182 = vector.broadcast %180 : vector<32x1xf32> to vector<32x16xf32>
    %183 = arith.mulf %182, %181 : vector<32x16xf32>
    %184 = arith.addf %179, %183 : vector<32x16xf32>
    %cst_118 = arith.constant dense<0.000000e+00> : vector<16xf32>
    %185 = vector.multi_reduction <add>, %184, %cst_118 [0] : vector<32x16xf32> to vector<16xf32>
    %186 = vector.shape_cast %185 : vector<16xf32> to vector<1x16xf32>
    %c0_119 = arith.constant 0 : index
    %c0_120 = arith.constant 0 : index
    %187 = vector.load %arg15[%c0_119, %c0_120] : memref<1x1xf32, #tpu.memory_space<vmem>>, vector<1x1xf32>
    %188 = vector.broadcast %187 : vector<1x1xf32> to vector<1x16xf32>
    %189 = arith.addf %186, %188 : vector<1x16xf32>
    %cst_121 = arith.constant 0.000000e+00 : f32
    %190 = vector.broadcast %cst_121 : f32 to vector<1x16xf32>
    %191 = arith.subf %190, %189 : vector<1x16xf32>
    %192 = math.exp %191 : vector<1x16xf32>
    %cst_122 = arith.constant 1.000000e+00 : f32
    %193 = vector.broadcast %cst_122 : f32 to vector<1x16xf32>
    %194 = arith.addf %193, %192 : vector<1x16xf32>
    %cst_123 = arith.constant 1.000000e+00 : f32
    %195 = vector.broadcast %cst_123 : f32 to vector<1x16xf32>
    %196 = arith.divf %195, %194 : vector<1x16xf32>
    %cst_124 = arith.constant 1.000000e+00 : f32
    %197 = vector.broadcast %cst_124 : f32 to vector<1x16xf32>
    %198 = arith.addf %197, %196 : vector<1x16xf32>
    %199 = vector.broadcast %198 : vector<1x16xf32> to vector<256x16xf32>
    %200 = arith.mulf %102, %199 : vector<256x16xf32>
    %c0_125 = arith.constant 0 : index
    %c0_126 = arith.constant 0 : index
    %201 = vector.load %arg16[%c0_125, %c0_126] : memref<256x256xf32, #tpu.memory_space<vmem>>, vector<256x256xf32>
    %cst_127 = arith.constant dense<0.000000e+00> : vector<256x16xf32>
    %202 = tpu.matmul %201, %200, %cst_127 {dimension_numbers = #tpu.dot_dimension_numbers<[1], [0], [0], [1], [0, 0, 1, 1], [], []>} : vector<256x256xf32>, vector<256x16xf32>, vector<256x16xf32> -> vector<256x16xf32>
    %cst_128 = arith.constant dense<0.000000e+00> : vector<256xf32>
    %203 = vector.multi_reduction <add>, %202, %cst_128 [1] : vector<256x16xf32> to vector<256xf32>
    %204 = vector.shape_cast %203 : vector<256xf32> to vector<256x1xf32>
    %cst_129 = arith.constant 6.250000e-02 : f32
    %205 = vector.broadcast %cst_129 : f32 to vector<256x1xf32>
    %206 = arith.mulf %204, %205 : vector<256x1xf32>
    %c0_130 = arith.constant 0 : index
    %c0_131 = arith.constant 0 : index
    %207 = vector.load %arg17[%c0_130, %c0_131] : memref<1x1xf32, #tpu.memory_space<vmem>>, vector<1x1xf32>
    %208 = vector.broadcast %207 : vector<1x1xf32> to vector<256x1xf32>
    %209 = arith.addf %206, %208 : vector<256x1xf32>
    %cst_132 = arith.constant 0.000000e+00 : f32
    %210 = vector.broadcast %cst_132 : f32 to vector<256x1xf32>
    %211 = arith.subf %210, %209 : vector<256x1xf32>
    %212 = math.exp %211 : vector<256x1xf32>
    %cst_133 = arith.constant 1.000000e+00 : f32
    %213 = vector.broadcast %cst_133 : f32 to vector<256x1xf32>
    %214 = arith.addf %213, %212 : vector<256x1xf32>
    %cst_134 = arith.constant 1.000000e+00 : f32
    %215 = vector.broadcast %cst_134 : f32 to vector<256x1xf32>
    %216 = arith.divf %215, %214 : vector<256x1xf32>
    %cst_135 = arith.constant 1.000000e+00 : f32
    %217 = vector.broadcast %cst_135 : f32 to vector<256x1xf32>
    %218 = arith.addf %217, %216 : vector<256x1xf32>
    %219 = vector.broadcast %218 : vector<256x1xf32> to vector<256x16xf32>
    %220 = arith.mulf %200, %219 : vector<256x16xf32>
    %c0_136 = arith.constant 0 : index
    %c0_137 = arith.constant 0 : index
    %221 = vector.load %arg13[%c0_136, %c0_137] : memref<32x256xf32, #tpu.memory_space<vmem>>, vector<32x256xf32>
    %cst_138 = arith.constant dense<0.000000e+00> : vector<32x16xf32>
    %222 = tpu.matmul %221, %220, %cst_138 {dimension_numbers = #tpu.dot_dimension_numbers<[1], [0], [0], [1], [0, 0, 1, 1], [], []>} : vector<32x256xf32>, vector<256x16xf32>, vector<32x16xf32> -> vector<32x16xf32>
    %c0_139 = arith.constant 0 : index
    %c0_140 = arith.constant 0 : index
    %223 = vector.load %arg18[%c0_139, %c0_140] : memref<16x32xf32, #tpu.memory_space<vmem>>, vector<16x32xf32>
    %cst_141 = arith.constant dense<0.000000e+00> : vector<16x16xf32>
    %224 = tpu.matmul %223, %222, %cst_141 {dimension_numbers = #tpu.dot_dimension_numbers<[1], [0], [0], [1], [0, 0, 1, 1], [], []>} : vector<16x32xf32>, vector<32x16xf32>, vector<16x16xf32> -> vector<16x16xf32>
    %cst_142 = arith.constant dense<0.000000e+00> : vector<16xf32>
    %225 = vector.multi_reduction <add>, %224, %cst_142 [1] : vector<16x16xf32> to vector<16xf32>
    %226 = vector.shape_cast %225 : vector<16xf32> to vector<16x1xf32>
    %cst_143 = arith.constant 6.250000e-02 : f32
    %227 = vector.broadcast %cst_143 : f32 to vector<16x1xf32>
    %228 = arith.mulf %226, %227 : vector<16x1xf32>
    %c0_144 = arith.constant 0 : index
    %c0_145 = arith.constant 0 : index
    %229 = vector.load %arg19[%c0_144, %c0_145] : memref<16x1xf32, #tpu.memory_space<vmem>>, vector<16x1xf32>
    %230 = arith.addf %228, %229 : vector<16x1xf32>
    %cst_146 = arith.constant 0.000000e+00 : f32
    %231 = vector.broadcast %cst_146 : f32 to vector<16x1xf32>
    %232 = arith.maximumf %230, %231 : vector<16x1xf32>
    %233 = vector.shape_cast %232 : vector<16x1xf32> to vector<16x1xf32>
    %234 = vector.broadcast %233 : vector<16x1xf32> to vector<16x16xf32>
    %c0_147 = arith.constant 0 : index
    %c0_148 = arith.constant 0 : index
    %235 = vector.load %arg20[%c0_147, %c0_148] : memref<256x16xf32, #tpu.memory_space<vmem>>, vector<256x16xf32>
    %cst_149 = arith.constant dense<0.000000e+00> : vector<256x16xf32>
    %236 = tpu.matmul %235, %234, %cst_149 {dimension_numbers = #tpu.dot_dimension_numbers<[1], [0], [0], [1], [0, 0, 1, 1], [], []>} : vector<256x16xf32>, vector<16x16xf32>, vector<256x16xf32> -> vector<256x16xf32>
    %c0_150 = arith.constant 0 : index
    %c0_151 = arith.constant 0 : index
    %237 = vector.load %arg21[%c0_150, %c0_151] : memref<256x1xf32, #tpu.memory_space<vmem>>, vector<256x1xf32>
    %238 = vector.broadcast %237 : vector<256x1xf32> to vector<256x16xf32>
    %239 = arith.addf %236, %238 : vector<256x16xf32>
    %cst_152 = arith.constant 0.000000e+00 : f32
    %240 = vector.broadcast %cst_152 : f32 to vector<256x16xf32>
    %241 = arith.subf %240, %239 : vector<256x16xf32>
    %242 = math.exp %241 : vector<256x16xf32>
    %cst_153 = arith.constant 1.000000e+00 : f32
    %243 = vector.broadcast %cst_153 : f32 to vector<256x16xf32>
    %244 = arith.addf %243, %242 : vector<256x16xf32>
    %cst_154 = arith.constant 1.000000e+00 : f32
    %245 = vector.broadcast %cst_154 : f32 to vector<256x16xf32>
    %246 = arith.divf %245, %244 : vector<256x16xf32>
    %cst_155 = arith.constant 1.000000e+00 : f32
    %247 = vector.broadcast %cst_155 : f32 to vector<256x16xf32>
    %248 = arith.addf %247, %246 : vector<256x16xf32>
    %249 = arith.mulf %220, %248 : vector<256x16xf32>
    %c0_156 = arith.constant 0 : index
    %c0_157 = arith.constant 0 : index
    %250 = vector.load %arg22[%c0_156, %c0_157] : memref<256x256xf32, #tpu.memory_space<vmem>>, vector<256x256xf32>
    %cst_158 = arith.constant dense<0.000000e+00> : vector<256x16xf32>
    %251 = tpu.matmul %250, %249, %cst_158 {dimension_numbers = #tpu.dot_dimension_numbers<[1], [0], [0], [1], [0, 0, 1, 1], [], []>} : vector<256x256xf32>, vector<256x16xf32>, vector<256x16xf32> -> vector<256x16xf32>
    %c0_159 = arith.constant 0 : index
    %c0_160 = arith.constant 0 : index
    %252 = vector.load %arg23[%c0_159, %c0_160] : memref<256x1xf32, #tpu.memory_space<vmem>>, vector<256x1xf32>
    %253 = vector.broadcast %252 : vector<256x1xf32> to vector<256x16xf32>
    %254 = arith.addf %251, %253 : vector<256x16xf32>
    %c0_161 = arith.constant 0 : index
    %c0_162 = arith.constant 0 : index
    %255 = vector.load %arg24[%c0_161, %c0_162] : memref<256x32xf32, #tpu.memory_space<vmem>>, vector<256x32xf32>
    %cst_163 = arith.constant dense<0.000000e+00> : vector<256x16xf32>
    %256 = tpu.matmul %255, %1, %cst_163 {dimension_numbers = #tpu.dot_dimension_numbers<[1], [0], [0], [1], [0, 0, 1, 1], [], []>} : vector<256x32xf32>, vector<32x16xf32>, vector<256x16xf32> -> vector<256x16xf32>
    %c0_164 = arith.constant 0 : index
    %c0_165 = arith.constant 0 : index
    %257 = vector.load %arg25[%c0_164, %c0_165] : memref<256x1xf32, #tpu.memory_space<vmem>>, vector<256x1xf32>
    %258 = vector.broadcast %257 : vector<256x1xf32> to vector<256x16xf32>
    %259 = arith.addf %256, %258 : vector<256x16xf32>
    %260 = arith.addf %254, %259 : vector<256x16xf32>
    %cst_166 = arith.constant 0.000000e+00 : f32
    %261 = vector.broadcast %cst_166 : f32 to vector<256x16xf32>
    %262 = arith.maximumf %260, %261 : vector<256x16xf32>
    %c0_167 = arith.constant 0 : index
    %c0_168 = arith.constant 0 : index
    %c0_169 = arith.constant 0 : index
    %263 = vector.load %arg26[%c0_167, %c0_168, %c0_169] : memref<1x256x16xf32, #tpu.memory_space<vmem>>, vector<1x256x16xf32>
    %264 = vector.shape_cast %263 : vector<1x256x16xf32> to vector<256x16xf32>
    %265 = vector.shape_cast %262 : vector<256x16xf32> to vector<1x256x16xf32>
    tpu.vector_store %arg26[%c0_167, %c0_168, %c0_169], %265 {strides = array<i32>} : memref<1x256x16xf32, #tpu.memory_space<vmem>>, vector<1x256x16xf32>,
    return
  }
  func.func @transform_0(%arg0: i32) -> (i32, i32, i32) {
    %c0_i32 = arith.constant 0 : i32
    %c0_i32_0 = arith.constant 0 : i32
    %c0_i32_1 = arith.constant 0 : i32
    return %arg0, %c0_i32, %c0_i32_0 : i32, i32, i32
  }
  func.func @transform_1(%arg0: i32) -> (i32, i32, i32) {
    %c0_i32 = arith.constant 0 : i32
    %c0_i32_0 = arith.constant 0 : i32
    %c0_i32_1 = arith.constant 0 : i32
    return %arg0, %c0_i32, %c0_i32_0 : i32, i32, i32
  }
  func.func @transform_2(%arg0: i32) -> (i32, i32, i32) {
    %c0_i32 = arith.constant 0 : i32
    %c0_i32_0 = arith.constant 0 : i32
    %c0_i32_1 = arith.constant 0 : i32
    %c0_i32_2 = arith.constant 0 : i32
    return %c0_i32, %c0_i32_0, %c0_i32_1 : i32, i32, i32
  }
  func.func @transform_3(%arg0: i32) -> (i32, i32) {
    %c0_i32 = arith.constant 0 : i32
    %c0_i32_0 = arith.constant 0 : i32
    %c0_i32_1 = arith.constant 0 : i32
    return %c0_i32, %c0_i32_0 : i32, i32
  }
  func.func @transform_4(%arg0: i32) -> (i32, i32, i32) {
    %c0_i32 = arith.constant 0 : i32
    %c0_i32_0 = arith.constant 0 : i32
    %c0_i32_1 = arith.constant 0 : i32
    %c0_i32_2 = arith.constant 0 : i32
    return %c0_i32, %c0_i32_0, %c0_i32_1 : i32, i32, i32
  }
  func.func @transform_5(%arg0: i32) -> (i32, i32, i32) {
    %c0_i32 = arith.constant 0 : i32
    %c0_i32_0 = arith.constant 0 : i32
    %c0_i32_1 = arith.constant 0 : i32
    %c0_i32_2 = arith.constant 0 : i32
    return %c0_i32, %c0_i32_0, %c0_i32_1 : i32, i32, i32
  }
  func.func @transform_6(%arg0: i32) -> (i32, i32, i32) {
    %c0_i32 = arith.constant 0 : i32
    %c0_i32_0 = arith.constant 0 : i32
    %c0_i32_1 = arith.constant 0 : i32
    %c0_i32_2 = arith.constant 0 : i32
    return %c0_i32, %c0_i32_0, %c0_i32_1 : i32, i32, i32
  }
  func.func @transform_7(%arg0: i32) -> (i32, i32, i32) {
    %c0_i32 = arith.constant 0 : i32
    %c0_i32_0 = arith.constant 0 : i32
    %c0_i32_1 = arith.constant 0 : i32
    %c0_i32_2 = arith.constant 0 : i32
    return %c0_i32, %c0_i32_0, %c0_i32_1 : i32, i32, i32
  }
  func.func @transform_8(%arg0: i32) -> (i32, i32, i32) {
    %c0_i32 = arith.constant 0 : i32
    %c0_i32_0 = arith.constant 0 : i32
    %c0_i32_1 = arith.constant 0 : i32
    %c0_i32_2 = arith.constant 0 : i32
    return %c0_i32, %c0_i32_0, %c0_i32_1 : i32, i32, i32
  }
  func.func @transform_9(%arg0: i32) -> (i32, i32) {
    %c0_i32 = arith.constant 0 : i32
    %c0_i32_0 = arith.constant 0 : i32
    %c0_i32_1 = arith.constant 0 : i32
    return %c0_i32, %c0_i32_0 : i32, i32
  }
  func.func @transform_10(%arg0: i32) -> (i32, i32) {
    %c0_i32 = arith.constant 0 : i32
    %c0_i32_0 = arith.constant 0 : i32
    %c0_i32_1 = arith.constant 0 : i32
    return %c0_i32, %c0_i32_0 : i32, i32
  }
  func.func @transform_11(%arg0: i32) -> (i32, i32) {
    %c0_i32 = arith.constant 0 : i32
    %c0_i32_0 = arith.constant 0 : i32
    %c0_i32_1 = arith.constant 0 : i32
    return %c0_i32, %c0_i32_0 : i32, i32
  }
  func.func @transform_12(%arg0: i32) -> (i32, i32) {
    %c0_i32 = arith.constant 0 : i32
    %c0_i32_0 = arith.constant 0 : i32
    %c0_i32_1 = arith.constant 0 : i32
    return %c0_i32, %c0_i32_0 : i32, i32
  }
  func.func @transform_13(%arg0: i32) -> (i32, i32) {
    %c0_i32 = arith.constant 0 : i32
    %c0_i32_0 = arith.constant 0 : i32
    %c0_i32_1 = arith.constant 0 : i32
    return %c0_i32, %c0_i32_0 : i32, i32
  }
  func.func @transform_14(%arg0: i32) -> (i32, i32) {
    %c0_i32 = arith.constant 0 : i32
    %c0_i32_0 = arith.constant 0 : i32
    %c0_i32_1 = arith.constant 0 : i32
    return %c0_i32, %c0_i32_0 : i32, i32
  }
  func.func @transform_15(%arg0: i32) -> (i32, i32) {
    %c0_i32 = arith.constant 0 : i32
    %c0_i32_0 = arith.constant 0 : i32
    %c0_i32_1 = arith.constant 0 : i32
    return %c0_i32, %c0_i32_0 : i32, i32
  }
  func.func @transform_16(%arg0: i32) -> (i32, i32) {
    %c0_i32 = arith.constant 0 : i32
    %c0_i32_0 = arith.constant 0 : i32
    %c0_i32_1 = arith.constant 0 : i32
    return %c0_i32, %c0_i32_0 : i32, i32
  }
  func.func @transform_17(%arg0: i32) -> (i32, i32) {
    %c0_i32 = arith.constant 0 : i32
    %c0_i32_0 = arith.constant 0 : i32
    %c0_i32_1 = arith.constant 0 : i32
    return %c0_i32, %c0_i32_0 : i32, i32
  }
  func.func @transform_18(%arg0: i32) -> (i32, i32) {
    %c0_i32 = arith.constant 0 : i32
    %c0_i32_0 = arith.constant 0 : i32
    %c0_i32_1 = arith.constant 0 : i32
    return %c0_i32, %c0_i32_0 : i32, i32
  }
  func.func @transform_19(%arg0: i32) -> (i32, i32) {
    %c0_i32 = arith.constant 0 : i32
    %c0_i32_0 = arith.constant 0 : i32
    %c0_i32_1 = arith.constant 0 : i32
    return %c0_i32, %c0_i32_0 : i32, i32
  }
  func.func @transform_20(%arg0: i32) -> (i32, i32) {
    %c0_i32 = arith.constant 0 : i32
    %c0_i32_0 = arith.constant 0 : i32
    %c0_i32_1 = arith.constant 0 : i32
    return %c0_i32, %c0_i32_0 : i32, i32
  }
  func.func @transform_21(%arg0: i32) -> (i32, i32) {
    %c0_i32 = arith.constant 0 : i32
    %c0_i32_0 = arith.constant 0 : i32
    %c0_i32_1 = arith.constant 0 : i32
    return %c0_i32, %c0_i32_0 : i32, i32
  }
  func.func @transform_22(%arg0: i32) -> (i32, i32) {
    %c0_i32 = arith.constant 0 : i32
    %c0_i32_0 = arith.constant 0 : i32
    %c0_i32_1 = arith.constant 0 : i32
    return %c0_i32, %c0_i32_0 : i32, i32
  }
  func.func @transform_23(%arg0: i32) -> (i32, i32) {
    %c0_i32 = arith.constant 0 : i32
    %c0_i32_0 = arith.constant 0 : i32
    %c0_i32_1 = arith.constant 0 : i32
    return %c0_i32, %c0_i32_0 : i32, i32
  }
  func.func @transform_24(%arg0: i32) -> (i32, i32) {
    %c0_i32 = arith.constant 0 : i32
    %c0_i32_0 = arith.constant 0 : i32
    %c0_i32_1 = arith.constant 0 : i32
    return %c0_i32, %c0_i32_0 : i32, i32
  }
  func.func @transform_25(%arg0: i32) -> (i32, i32, i32) {
    %c0_i32 = arith.constant 0 : i32
    %c0_i32_0 = arith.constant 0 : i32
    %c0_i32_1 = arith.constant 0 : i32
    return %arg0, %c0_i32, %c0_i32_0 : i32, i32, i32
  }
}

</mosaic_0001>

<llo_original>
// kernel: tpu_custom_call.1
$region0: #{tpu_custom_call.1}
  #allocation0 [shape = 'u32[]', space=smem, size = 0x4, offset = 0x4, fixed_abs, tag = 'smem constant byte address 0x4 - core index']
  #allocation1 [shape = 'u32[72,128]{1,0:T(1,128)}', space=vmem, size = 0x9000, scoped, tag = 'internal scratch']
  #allocation2 [shape = 'f32[32,30]{1,0:T(8,128)}', space=vmem, size = 0x4000, scoped, tag = 'scratch operand']
  #allocation3 [shape = 'f32[1,1]{1,0:T(1,128)S(1)}', space=vmem, size = 0x200, scoped, tag = 'scoped memory for tpu_custom_call.1']
  #allocation4 [shape = 'f32[1,1]{1,0:T(1,128)S(1)}', space=vmem, size = 0x200, scoped, tag = 'scoped memory for tpu_custom_call.1']
  #allocation5 [shape = 'f32[1,1]{1,0:T(1,128)S(1)}', space=vmem, size = 0x200, scoped, tag = 'scoped memory for tpu_custom_call.1']
  %s0 = inlined_call_operand.vmem [shape: f32[2,32,16], index: 0, kind: input, shape index: {}]
  %s1 = inlined_call_operand.vmem [shape: f32[2,16,32], index: 1, kind: input, shape index: {}]
  %s2 = inlined_call_operand.vmem [shape: f32[3,16,16], index: 2, kind: input, shape index: {}]
  %s3 = inlined_call_operand.<no memory space> [shape: f32[1,1], index: 3, kind: input, shape index: {}]
  %s4 = inlined_call_operand.vmem [shape: f32[3,32,64], index: 4, kind: input, shape index: {}]
  %s5 = inlined_call_operand.vmem [shape: f32[3,1,64], index: 5, kind: input, shape index: {}]
  %s6 = inlined_call_operand.vmem [shape: f32[3,64,32], index: 6, kind: input, shape index: {}]
  %s7 = inlined_call_operand.vmem [shape: f32[3,64,1], index: 7, kind: input, shape index: {}]
  %s8 = inlined_call_operand.vmem [shape: f32[3,256,32], index: 8, kind: input, shape index: {}]
  %s9 = inlined_call_operand.vmem [shape: f32[256,1], index: 9, kind: input, shape index: {}]
  %s10 = inlined_call_operand.vmem [shape: f32[256,32], index: 10, kind: input, shape index: {}]
  %s11 = inlined_call_operand.vmem [shape: f32[256,1], index: 11, kind: input, shape index: {}]
  %s12 = inlined_call_operand.vmem [shape: f32[32,256], index: 12, kind: input, shape index: {}]
  %s13 = inlined_call_operand.vmem [shape: f32[32,15], index: 13, kind: input, shape index: {}]
  %s14 = inlined_call_operand.<no memory space> [shape: f32[1,1], index: 14, kind: input, shape index: {}]
  %s15 = inlined_call_operand.vmem [shape: f32[256,256], index: 15, kind: input, shape index: {}]
  %s16 = inlined_call_operand.<no memory space> [shape: f32[1,1], index: 16, kind: input, shape index: {}]
  %s17 = inlined_call_operand.vmem [shape: f32[16,32], index: 17, kind: input, shape index: {}]
  %s18 = inlined_call_operand.vmem [shape: f32[16,1], index: 18, kind: input, shape index: {}]
  %s19 = inlined_call_operand.vmem [shape: f32[256,16], index: 19, kind: input, shape index: {}]
  %s20 = inlined_call_operand.vmem [shape: f32[256,1], index: 20, kind: input, shape index: {}]
  %s21 = inlined_call_operand.vmem [shape: f32[256,256], index: 21, kind: input, shape index: {}]
  %s22 = inlined_call_operand.vmem [shape: f32[256,1], index: 22, kind: input, shape index: {}]
  %s23 = inlined_call_operand.vmem [shape: f32[256,32], index: 23, kind: input, shape index: {}]
  %s24 = inlined_call_operand.vmem [shape: f32[256,1], index: 24, kind: input, shape index: {}]
  %s25 = inlined_call_operand.vmem [shape: f32[2,256,16], index: 25, kind: output, shape index: {}]
  %s26 = sld [smem:[#allocation0]]
  $region133: #{tpu_custom_call.1} parent=0
    _
  %s28 = ssub.s32 1, %s26
  %s29 = scalar_select 0, %s28, %s26
  %v30 = vstv %s3
  %31 = vst [vmem:[#allocation3] sm:$0x1] %v30
  %v32 = vstv %s14
  %33 = vst [vmem:[#allocation4] sm:$0x1] %v32
  %v34 = vstv %s16
  %35 = vst [vmem:[#allocation5] sm:$0x1] %v34
  loop: start=0, step=1, limit=4
  $region2: #{tpu_custom_call.1} parent=0 // loop_pre_header
    _
  $region3: #{tpu_custom_call.1} parent=0 // loop_header
    %s37 = sphi 0, %s41
    %p38 = scmp.ge.s32.totalorder %s37, 4
    %s47 = sphi 0, %s49
    %s50 = sphi 0, %s47
    %s51 = sphi 0, %s50
    %s67 = sphi 0, %s51
    %s73 = sphi 0, %s75
    %s76 = sphi 0, %s73
    %s77 = sphi 0, %s76
    %s93 = sphi 0, %s77
    %s97 = sphi 0, %s97
    %s99 = sphi 0, %s97
    %s100 = sphi 0, %s99
    %s114 = sphi 0, %s100
    %s118 = sphi 0, %s118
    %s120 = sphi 0, %s118
    %s121 = sphi 0, %s120
    %s135 = sphi 0, %s121
    %s139 = sphi 0, %s139
    %s141 = sphi 0, %s139
    %s142 = sphi 0, %s141
    %s156 = sphi 0, %s142
    %s160 = sphi 0, %s160
    %s162 = sphi 0, %s160
    %s163 = sphi 0, %s162
    %s177 = sphi 0, %s163
    %s181 = sphi 0, %s181
    %s183 = sphi 0, %s181
    %s184 = sphi 0, %s183
    %s198 = sphi 0, %s184
    %s202 = sphi 0, %s202
    %s204 = sphi 0, %s202
    %s205 = sphi 0, %s204
    %s219 = sphi 0, %s205
    %s223 = sphi 0, %s223
    %s225 = sphi 0, %s223
    %s226 = sphi 0, %s225
    %s240 = sphi 0, %s226
    %s244 = sphi 0, %s244
    %s246 = sphi 0, %s244
    %s247 = sphi 0, %s246
    %s261 = sphi 0, %s247
    %s265 = sphi 0, %s265
    %s267 = sphi 0, %s265
    %s268 = sphi 0, %s267
    %s282 = sphi 0, %s268
    %s286 = sphi 0, %s286
    %s288 = sphi 0, %s286
    %s289 = sphi 0, %s288
    %s303 = sphi 0, %s289
    %s307 = sphi 0, %s307
    %s309 = sphi 0, %s307
    %s310 = sphi 0, %s309
    %s324 = sphi 0, %s310
    %s328 = sphi 0, %s328
    %s330 = sphi 0, %s328
    %s331 = sphi 0, %s330
    %s345 = sphi 0, %s331
    %s349 = sphi 0, %s349
    %s351 = sphi 0, %s349
    %s352 = sphi 0, %s351
    %s366 = sphi 0, %s352
    %s370 = sphi 0, %s370
    %s372 = sphi 0, %s370
    %s373 = sphi 0, %s372
    %s387 = sphi 0, %s373
    %s391 = sphi 0, %s391
    %s393 = sphi 0, %s391
    %s394 = sphi 0, %s393
    %s408 = sphi 0, %s394
    %s412 = sphi 0, %s412
    %s414 = sphi 0, %s412
    %s415 = sphi 0, %s414
    %s429 = sphi 0, %s415
    %s433 = sphi 0, %s433
    %s435 = sphi 0, %s433
    %s436 = sphi 0, %s435
    %s450 = sphi 0, %s436
    %s454 = sphi 0, %s454
    %s456 = sphi 0, %s454
    %s457 = sphi 0, %s456
    %s471 = sphi 0, %s457
    %s475 = sphi 0, %s475
    %s477 = sphi 0, %s475
    %s478 = sphi 0, %s477
    %s492 = sphi 0, %s478
    %s496 = sphi 0, %s496
    %s498 = sphi 0, %s496
    %s499 = sphi 0, %s498
    %s513 = sphi 0, %s499
    %s517 = sphi 0, %s517
    %s519 = sphi 0, %s517
    %s520 = sphi 0, %s519
    %s534 = sphi 0, %s520
    %s538 = sphi 0, %s538
    %s540 = sphi 0, %s538
    %s541 = sphi 0, %s540
    %s555 = sphi 0, %s541
    %s559 = sphi 0, %s559
    %s561 = sphi 0, %s559
    %s562 = sphi 0, %s561
    %s576 = sphi 0, %s562
    %s582 = sphi 0, %s584
    %s585 = sphi 0, %s582
    %s586 = sphi 0, %s585
    %s602 = sphi 0, %s586
  $region4: #{tpu_custom_call.1} parent=0 // loop_header_branch
    %40 = sbr.rel (%p38) target = $region8
  $region5: #{tpu_custom_call.1} parent=0 // loop_body
    %s42 = ssub.s32 %s37, 1
    %s43 = ssub.s32 %s37, 2
    %s44 = sadd.s32 %s37, 1
    %s45 = ssub.s32 %s37, %s44
    %p46 = scmp.eq.s32.totalorder %s45, 0
    %s48 = sadd.s32 %s47, 1
    %s49 = scalar_select %p46, %s47, %s48
    %p52 = pneg %p46
    %p53 = scmp.eq.s32.totalorder %s37, 1
    %p54 = por %p52, %p53
    %p55 = scmp.ne.s32.totalorder %s47, %s50
    %p56 = scmp.eq.s32.totalorder %s37, 0
    %p57 = por %p55, %p56
    %p58 = scmp.ne.s32.totalorder %s47, %s50
    %p59 = scmp.eq.s32.totalorder %s42, 1
    %p60 = por %p58, %p59
    %p61 = scmp.ne.s32.totalorder %s50, %s51
    %p62 = scmp.eq.s32.totalorder %s42, 0
    %p63 = por %p61, %p62
    %p64 = scmp.ne.s32.totalorder %s50, %s51
    %p65 = scmp.eq.s32.totalorder %s43, 1
    %p66 = por %p64, %p65
    %p68 = scmp.ne.s32.totalorder %s51, %s67
    %p69 = scmp.eq.s32.totalorder %s43, 0
    %p70 = por %p68, %p69
    %s71 = ssub.s32 %s37, %s44
    %p72 = scmp.eq.s32.totalorder %s71, 0
    %s74 = sadd.s32 %s73, 1
    %s75 = scalar_select %p72, %s73, %s74
    %p78 = pneg %p72
    %p79 = scmp.eq.s32.totalorder %s37, 1
    %p80 = por %p78, %p79
    %p81 = scmp.ne.s32.totalorder %s73, %s76
    %p82 = scmp.eq.s32.totalorder %s37, 0
    %p83 = por %p81, %p82
    %p84 = scmp.ne.s32.totalorder %s73, %s76
    %p85 = scmp.eq.s32.totalorder %s42, 1
    %p86 = por %p84, %p85
    %p87 = scmp.ne.s32.totalorder %s76, %s77
    %p88 = scmp.eq.s32.totalorder %s42, 0
    %p89 = por %p87, %p88
    %p90 = scmp.ne.s32.totalorder %s76, %s77
    %p91 = scmp.eq.s32.totalorder %s43, 1
    %p92 = por %p90, %p91
    %p94 = scmp.ne.s32.totalorder %s77, %s93
    %p95 = scmp.eq.s32.totalorder %s43, 0
    %p96 = por %p94, %p95
    %s98 = sadd.s32 %s97, 1
    %p101 = scmp.eq.s32.totalorder %s37, 1
    %p102 = scmp.ne.s32.totalorder %s97, %s99
    %p103 = scmp.eq.s32.totalorder %s37, 0
    %p104 = por %p102, %p103
    %p105 = scmp.ne.s32.totalorder %s97, %s99
    %p106 = scmp.eq.s32.totalorder %s42, 1
    %p107 = por %p105, %p106
    %p108 = scmp.ne.s32.totalorder %s99, %s100
    %p109 = scmp.eq.s32.totalorder %s42, 0
    %p110 = por %p108, %p109
    %p111 = scmp.ne.s32.totalorder %s99, %s100
    %p112 = scmp.eq.s32.totalorder %s43, 1
    %p113 = por %p111, %p112
    %p115 = scmp.ne.s32.totalorder %s100, %s114
    %p116 = scmp.eq.s32.totalorder %s43, 0
    %p117 = por %p115, %p116
    %s119 = sadd.s32 %s118, 1
    %p122 = scmp.eq.s32.totalorder %s37, 1
    %p123 = scmp.ne.s32.totalorder %s118, %s120
    %p124 = scmp.eq.s32.totalorder %s37, 0
    %p125 = por %p123, %p124
    %p126 = scmp.ne.s32.totalorder %s118, %s120
    %p127 = scmp.eq.s32.totalorder %s42, 1
    %p128 = por %p126, %p127
    %p129 = scmp.ne.s32.totalorder %s120, %s121
    %p130 = scmp.eq.s32.totalorder %s42, 0
    %p131 = por %p129, %p130
    %p132 = scmp.ne.s32.totalorder %s120, %s121
    %p133 = scmp.eq.s32.totalorder %s43, 1
    %p134 = por %p132, %p133
    %p136 = scmp.ne.s32.totalorder %s121, %s135
    %p137 = scmp.eq.s32.totalorder %s43, 0
    %p138 = por %p136, %p137
    %s140 = sadd.s32 %s139, 1
    %p143 = scmp.eq.s32.totalorder %s37, 1
    %p144 = scmp.ne.s32.totalorder %s139, %s141
    %p145 = scmp.eq.s32.totalorder %s37, 0
    %p146 = por %p144, %p145
    %p147 = scmp.ne.s32.totalorder %s139, %s141
    %p148 = scmp.eq.s32.totalorder %s42, 1
    %p149 = por %p147, %p148
    %p150 = scmp.ne.s32.totalorder %s141, %s142
    %p151 = scmp.eq.s32.totalorder %s42, 0
    %p152 = por %p150, %p151
    %p153 = scmp.ne.s32.totalorder %s141, %s142
    %p154 = scmp.eq.s32.totalorder %s43, 1
    %p155 = por %p153, %p154
    %p157 = scmp.ne.s32.totalorder %s142, %s156
    %p158 = scmp.eq.s32.totalorder %s43, 0
    %p159 = por %p157, %p158
    %s161 = sadd.s32 %s160, 1
    %p164 = scmp.eq.s32.totalorder %s37, 1
    %p165 = scmp.ne.s32.totalorder %s160, %s162
    %p166 = scmp.eq.s32.totalorder %s37, 0
    %p167 = por %p165, %p166
    %p168 = scmp.ne.s32.totalorder %s160, %s162
    %p169 = scmp.eq.s32.totalorder %s42, 1
    %p170 = por %p168, %p169
    %p171 = scmp.ne.s32.totalorder %s162, %s163
    %p172 = scmp.eq.s32.totalorder %s42, 0
    %p173 = por %p171, %p172
    %p174 = scmp.ne.s32.totalorder %s162, %s163
    %p175 = scmp.eq.s32.totalorder %s43, 1
    %p176 = por %p174, %p175
    %p178 = scmp.ne.s32.totalorder %s163, %s177
    %p179 = scmp.eq.s32.totalorder %s43, 0
    %p180 = por %p178, %p179
    %s182 = sadd.s32 %s181, 1
    %p185 = scmp.eq.s32.totalorder %s37, 1
    %p186 = scmp.ne.s32.totalorder %s181, %s183
    %p187 = scmp.eq.s32.totalorder %s37, 0
    %p188 = por %p186, %p187
    %p189 = scmp.ne.s32.totalorder %s181, %s183
    %p190 = scmp.eq.s32.totalorder %s42, 1
    %p191 = por %p189, %p190
    %p192 = scmp.ne.s32.totalorder %s183, %s184
    %p193 = scmp.eq.s32.totalorder %s42, 0
    %p194 = por %p192, %p193
    %p195 = scmp.ne.s32.totalorder %s183, %s184
    %p196 = scmp.eq.s32.totalorder %s43, 1
    %p197 = por %p195, %p196
    %p199 = scmp.ne.s32.totalorder %s184, %s198
    %p200 = scmp.eq.s32.totalorder %s43, 0
    %p201 = por %p199, %p200
    %s203 = sadd.s32 %s202, 1
    %p206 = scmp.eq.s32.totalorder %s37, 1
    %p207 = scmp.ne.s32.totalorder %s202, %s204
    %p208 = scmp.eq.s32.totalorder %s37, 0
    %p209 = por %p207, %p208
    %p210 = scmp.ne.s32.totalorder %s202, %s204
    %p211 = scmp.eq.s32.totalorder %s42, 1
    %p212 = por %p210, %p211
    %p213 = scmp.ne.s32.totalorder %s204, %s205
    %p214 = scmp.eq.s32.totalorder %s42, 0
    %p215 = por %p213, %p214
    %p216 = scmp.ne.s32.totalorder %s204, %s205
    %p217 = scmp.eq.s32.totalorder %s43, 1
    %p218 = por %p216, %p217
    %p220 = scmp.ne.s32.totalorder %s205, %s219
    %p221 = scmp.eq.s32.totalorder %s43, 0
    %p222 = por %p220, %p221
    %s224 = sadd.s32 %s223, 1
    %p227 = scmp.eq.s32.totalorder %s37, 1
    %p228 = scmp.ne.s32.totalorder %s223, %s225
    %p229 = scmp.eq.s32.totalorder %s37, 0
    %p230 = por %p228, %p229
    %p231 = scmp.ne.s32.totalorder %s223, %s225
    %p232 = scmp.eq.s32.totalorder %s42, 1
    %p233 = por %p231, %p232
    %p234 = scmp.ne.s32.totalorder %s225, %s226
    %p235 = scmp.eq.s32.totalorder %s42, 0
    %p236 = por %p234, %p235
    %p237 = scmp.ne.s32.totalorder %s225, %s226
    %p238 = scmp.eq.s32.totalorder %s43, 1
    %p239 = por %p237, %p238
    %p241 = scmp.ne.s32.totalorder %s226, %s240
    %p242 = scmp.eq.s32.totalorder %s43, 0
    %p243 = por %p241, %p242
    %s245 = sadd.s32 %s244, 1
    %p248 = scmp.eq.s32.totalorder %s37, 1
    %p249 = scmp.ne.s32.totalorder %s244, %s246
    %p250 = scmp.eq.s32.totalorder %s37, 0
    %p251 = por %p249, %p250
    %p252 = scmp.ne.s32.totalorder %s244, %s246
    %p253 = scmp.eq.s32.totalorder %s42, 1
    %p254 = por %p252, %p253
    %p255 = scmp.ne.s32.totalorder %s246, %s247
    %p256 = scmp.eq.s32.totalorder %s42, 0
    %p257 = por %p255, %p256
    %p258 = scmp.ne.s32.totalorder %s246, %s247
    %p259 = scmp.eq.s32.totalorder %s43, 1
    %p260 = por %p258, %p259
    %p262 = scmp.ne.s32.totalorder %s247, %s261
    %p263 = scmp.eq.s32.totalorder %s43, 0
    %p264 = por %p262, %p263
    %s266 = sadd.s32 %s265, 1
    %p269 = scmp.eq.s32.totalorder %s37, 1
    %p270 = scmp.ne.s32.totalorder %s265, %s267
    %p271 = scmp.eq.s32.totalorder %s37, 0
    %p272 = por %p270, %p271
    %p273 = scmp.ne.s32.totalorder %s265, %s267
    %p274 = scmp.eq.s32.totalorder %s42, 1
    %p275 = por %p273, %p274
    %p276 = scmp.ne.s32.totalorder %s267, %s268
    %p277 = scmp.eq.s32.totalorder %s42, 0
    %p278 = por %p276, %p277
    %p279 = scmp.ne.s32.totalorder %s267, %s268
    %p280 = scmp.eq.s32.totalorder %s43, 1
    %p281 = por %p279, %p280
    %p283 = scmp.ne.s32.totalorder %s268, %s282
    %p284 = scmp.eq.s32.totalorder %s43, 0
    %p285 = por %p283, %p284
    %s287 = sadd.s32 %s286, 1
    %p290 = scmp.eq.s32.totalorder %s37, 1
    %p291 = scmp.ne.s32.totalorder %s286, %s288
    %p292 = scmp.eq.s32.totalorder %s37, 0
    %p293 = por %p291, %p292
    %p294 = scmp.ne.s32.totalorder %s286, %s288
    %p295 = scmp.eq.s32.totalorder %s42, 1
    %p296 = por %p294, %p295
    %p297 = scmp.ne.s32.totalorder %s288, %s289
    %p298 = scmp.eq.s32.totalorder %s42, 0
    %p299 = por %p297, %p298
    %p300 = scmp.ne.s32.totalorder %s288, %s289
    %p301 = scmp.eq.s32.totalorder %s43, 1
    %p302 = por %p300, %p301
    %p304 = scmp.ne.s32.totalorder %s289, %s303
    %p305 = scmp.eq.s32.totalorder %s43, 0
    %p306 = por %p304, %p305
    %s308 = sadd.s32 %s307, 1
    %p311 = scmp.eq.s32.totalorder %s37, 1
    %p312 = scmp.ne.s32.totalorder %s307, %s309
    %p313 = scmp.eq.s32.totalorder %s37, 0
    %p314 = por %p312, %p313
    %p315 = scmp.ne.s32.totalorder %s307, %s309
    %p316 = scmp.eq.s32.totalorder %s42, 1
    %p317 = por %p315, %p316
    %p318 = scmp.ne.s32.totalorder %s309, %s310
    %p319 = scmp.eq.s32.totalorder %s42, 0
    %p320 = por %p318, %p319
    %p321 = scmp.ne.s32.totalorder %s309, %s310
    %p322 = scmp.eq.s32.totalorder %s43, 1
    %p323 = por %p321, %p322
    %p325 = scmp.ne.s32.totalorder %s310, %s324
    %p326 = scmp.eq.s32.totalorder %s43, 0
    %p327 = por %p325, %p326
    %s329 = sadd.s32 %s328, 1
    %p332 = scmp.eq.s32.totalorder %s37, 1
    %p333 = scmp.ne.s32.totalorder %s328, %s330
    %p334 = scmp.eq.s32.totalorder %s37, 0
    %p335 = por %p333, %p334
    %p336 = scmp.ne.s32.totalorder %s328, %s330
    %p337 = scmp.eq.s32.totalorder %s42, 1
    %p338 = por %p336, %p337
    %p339 = scmp.ne.s32.totalorder %s330, %s331
    %p340 = scmp.eq.s32.totalorder %s42, 0
    %p341 = por %p339, %p340
    %p342 = scmp.ne.s32.totalorder %s330, %s331
    %p343 = scmp.eq.s32.totalorder %s43, 1
    %p344 = por %p342, %p343
    %p346 = scmp.ne.s32.totalorder %s331, %s345
    %p347 = scmp.eq.s32.totalorder %s43, 0
    %p348 = por %p346, %p347
    %s350 = sadd.s32 %s349, 1
    %p353 = scmp.eq.s32.totalorder %s37, 1
    %p354 = scmp.ne.s32.totalorder %s349, %s351
    %p355 = scmp.eq.s32.totalorder %s37, 0
    %p356 = por %p354, %p355
    %p357 = scmp.ne.s32.totalorder %s349, %s351
    %p358 = scmp.eq.s32.totalorder %s42, 1
    %p359 = por %p357, %p358
    %p360 = scmp.ne.s32.totalorder %s351, %s352
    %p361 = scmp.eq.s32.totalorder %s42, 0
    %p362 = por %p360, %p361
    %p363 = scmp.ne.s32.totalorder %s351, %s352
    %p364 = scmp.eq.s32.totalorder %s43, 1
    %p365 = por %p363, %p364
    %p367 = scmp.ne.s32.totalorder %s352, %s366
    %p368 = scmp.eq.s32.totalorder %s43, 0
    %p369 = por %p367, %p368
    %s371 = sadd.s32 %s370, 1
    %p374 = scmp.eq.s32.totalorder %s37, 1
    %p375 = scmp.ne.s32.totalorder %s370, %s372
    %p376 = scmp.eq.s32.totalorder %s37, 0
    %p377 = por %p375, %p376
    %p378 = scmp.ne.s32.totalorder %s370, %s372
    %p379 = scmp.eq.s32.totalorder %s42, 1
    %p380 = por %p378, %p379
    %p381 = scmp.ne.s32.totalorder %s372, %s373
    %p382 = scmp.eq.s32.totalorder %s42, 0
    %p383 = por %p381, %p382
    %p384 = scmp.ne.s32.totalorder %s372, %s373
    %p385 = scmp.eq.s32.totalorder %s43, 1
    %p386 = por %p384, %p385
    %p388 = scmp.ne.s32.totalorder %s373, %s387
    %p389 = scmp.eq.s32.totalorder %s43, 0
    %p390 = por %p388, %p389
    %s392 = sadd.s32 %s391, 1
    %p395 = scmp.eq.s32.totalorder %s37, 1
    %p396 = scmp.ne.s32.totalorder %s391, %s393
    %p397 = scmp.eq.s32.totalorder %s37, 0
    %p398 = por %p396, %p397
    %p399 = scmp.ne.s32.totalorder %s391, %s393
    %p400 = scmp.eq.s32.totalorder %s42, 1
    %p401 = por %p399, %p400
    %p402 = scmp.ne.s32.totalorder %s393, %s394
    %p403 = scmp.eq.s32.totalorder %s42, 0
    %p404 = por %p402, %p403
    %p405 = scmp.ne.s32.totalorder %s393, %s394
    %p406 = scmp.eq.s32.totalorder %s43, 1
    %p407 = por %p405, %p406
    %p409 = scmp.ne.s32.totalorder %s394, %s408
    %p410 = scmp.eq.s32.totalorder %s43, 0
    %p411 = por %p409, %p410
    %s413 = sadd.s32 %s412, 1
    %p416 = scmp.eq.s32.totalorder %s37, 1
    %p417 = scmp.ne.s32.totalorder %s412, %s414
    %p418 = scmp.eq.s32.totalorder %s37, 0
    %p419 = por %p417, %p418
    %p420 = scmp.ne.s32.totalorder %s412, %s414
    %p421 = scmp.eq.s32.totalorder %s42, 1
    %p422 = por %p420, %p421
    %p423 = scmp.ne.s32.totalorder %s414, %s415
    %p424 = scmp.eq.s32.totalorder %s42, 0
    %p425 = por %p423, %p424
    %p426 = scmp.ne.s32.totalorder %s414, %s415
    %p427 = scmp.eq.s32.totalorder %s43, 1
    %p428 = por %p426, %p427
    %p430 = scmp.ne.s32.totalorder %s415, %s429
    %p431 = scmp.eq.s32.totalorder %s43, 0
    %p432 = por %p430, %p431
    %s434 = sadd.s32 %s433, 1
    %p437 = scmp.eq.s32.totalorder %s37, 1
    %p438 = scmp.ne.s32.totalorder %s433, %s435
    %p439 = scmp.eq.s32.totalorder %s37, 0
    %p440 = por %p438, %p439
    %p441 = scmp.ne.s32.totalorder %s433, %s435
    %p442 = scmp.eq.s32.totalorder %s42, 1
    %p443 = por %p441, %p442
    %p444 = scmp.ne.s32.totalorder %s435, %s436
    %p445 = scmp.eq.s32.totalorder %s42, 0
    %p446 = por %p444, %p445
    %p447 = scmp.ne.s32.totalorder %s435, %s436
    %p448 = scmp.eq.s32.totalorder %s43, 1
    %p449 = por %p447, %p448
    %p451 = scmp.ne.s32.totalorder %s436, %s450
    %p452 = scmp.eq.s32.totalorder %s43, 0
    %p453 = por %p451, %p452
    %s455 = sadd.s32 %s454, 1
    %p458 = scmp.eq.s32.totalorder %s37, 1
    %p459 = scmp.ne.s32.totalorder %s454, %s456
    %p460 = scmp.eq.s32.totalorder %s37, 0
    %p461 = por %p459, %p460
    %p462 = scmp.ne.s32.totalorder %s454, %s456
    %p463 = scmp.eq.s32.totalorder %s42, 1
    %p464 = por %p462, %p463
    %p465 = scmp.ne.s32.totalorder %s456, %s457
    %p466 = scmp.eq.s32.totalorder %s42, 0
    %p467 = por %p465, %p466
    %p468 = scmp.ne.s32.totalorder %s456, %s457
    %p469 = scmp.eq.s32.totalorder %s43, 1
    %p470 = por %p468, %p469
    %p472 = scmp.ne.s32.totalorder %s457, %s471
    %p473 = scmp.eq.s32.totalorder %s43, 0
    %p474 = por %p472, %p473
    %s476 = sadd.s32 %s475, 1
    %p479 = scmp.eq.s32.totalorder %s37, 1
    %p480 = scmp.ne.s32.totalorder %s475, %s477
    %p481 = scmp.eq.s32.totalorder %s37, 0
    %p482 = por %p480, %p481
    %p483 = scmp.ne.s32.totalorder %s475, %s477
    %p484 = scmp.eq.s32.totalorder %s42, 1
    %p485 = por %p483, %p484
    %p486 = scmp.ne.s32.totalorder %s477, %s478
    %p487 = scmp.eq.s32.totalorder %s42, 0
    %p488 = por %p486, %p487
    %p489 = scmp.ne.s32.totalorder %s477, %s478
    %p490 = scmp.eq.s32.totalorder %s43, 1
    %p491 = por %p489, %p490
    %p493 = scmp.ne.s32.totalorder %s478, %s492
    %p494 = scmp.eq.s32.totalorder %s43, 0
    %p495 = por %p493, %p494
    %s497 = sadd.s32 %s496, 1
    %p500 = scmp.eq.s32.totalorder %s37, 1
    %p501 = scmp.ne.s32.totalorder %s496, %s498
    %p502 = scmp.eq.s32.totalorder %s37, 0
    %p503 = por %p501, %p502
    %p504 = scmp.ne.s32.totalorder %s496, %s498
    %p505 = scmp.eq.s32.totalorder %s42, 1
    %p506 = por %p504, %p505
    %p507 = scmp.ne.s32.totalorder %s498, %s499
    %p508 = scmp.eq.s32.totalorder %s42, 0
    %p509 = por %p507, %p508
    %p510 = scmp.ne.s32.totalorder %s498, %s499
    %p511 = scmp.eq.s32.totalorder %s43, 1
    %p512 = por %p510, %p511
    %p514 = scmp.ne.s32.totalorder %s499, %s513
    %p515 = scmp.eq.s32.totalorder %s43, 0
    %p516 = por %p514, %p515
    %s518 = sadd.s32 %s517, 1
    %p521 = scmp.eq.s32.totalorder %s37, 1
    %p522 = scmp.ne.s32.totalorder %s517, %s519
    %p523 = scmp.eq.s32.totalorder %s37, 0
    %p524 = por %p522, %p523
    %p525 = scmp.ne.s32.totalorder %s517, %s519
    %p526 = scmp.eq.s32.totalorder %s42, 1
    %p527 = por %p525, %p526
    %p528 = scmp.ne.s32.totalorder %s519, %s520
    %p529 = scmp.eq.s32.totalorder %s42, 0
    %p530 = por %p528, %p529
    %p531 = scmp.ne.s32.totalorder %s519, %s520
    %p532 = scmp.eq.s32.totalorder %s43, 1
    %p533 = por %p531, %p532
    %p535 = scmp.ne.s32.totalorder %s520, %s534
    %p536 = scmp.eq.s32.totalorder %s43, 0
    %p537 = por %p535, %p536
    %s539 = sadd.s32 %s538, 1
    %p542 = scmp.eq.s32.totalorder %s37, 1
    %p543 = scmp.ne.s32.totalorder %s538, %s540
    %p544 = scmp.eq.s32.totalorder %s37, 0
    %p545 = por %p543, %p544
    %p546 = scmp.ne.s32.totalorder %s538, %s540
    %p547 = scmp.eq.s32.totalorder %s42, 1
    %p548 = por %p546, %p547
    %p549 = scmp.ne.s32.totalorder %s540, %s541
    %p550 = scmp.eq.s32.totalorder %s42, 0
    %p551 = por %p549, %p550
    %p552 = scmp.ne.s32.totalorder %s540, %s541
    %p553 = scmp.eq.s32.totalorder %s43, 1
    %p554 = por %p552, %p553
    %p556 = scmp.ne.s32.totalorder %s541, %s555
    %p557 = scmp.eq.s32.totalorder %s43, 0
    %p558 = por %p556, %p557
    %s560 = sadd.s32 %s559, 1
    %p563 = scmp.eq.s32.totalorder %s37, 1
    %p564 = scmp.ne.s32.totalorder %s559, %s561
    %p565 = scmp.eq.s32.totalorder %s37, 0
    %p566 = por %p564, %p565
    %p567 = scmp.ne.s32.totalorder %s559, %s561
    %p568 = scmp.eq.s32.totalorder %s42, 1
    %p569 = por %p567, %p568
    %p570 = scmp.ne.s32.totalorder %s561, %s562
    %p571 = scmp.eq.s32.totalorder %s42, 0
    %p572 = por %p570, %p571
    %p573 = scmp.ne.s32.totalorder %s561, %s562
    %p574 = scmp.eq.s32.totalorder %s43, 1
    %p575 = por %p573, %p574
    %p577 = scmp.ne.s32.totalorder %s562, %s576
    %p578 = scmp.eq.s32.totalorder %s43, 0
    %p579 = por %p577, %p578
    %s580 = ssub.s32 %s37, %s44
    %p581 = scmp.eq.s32.totalorder %s580, 0
    %s583 = sadd.s32 %s582, 1
    %s584 = scalar_select %p581, %s582, %s583
    %p587 = pneg %p581
    %p588 = scmp.eq.s32.totalorder %s37, 1
    %p589 = por %p587, %p588
    %p590 = scmp.ne.s32.totalorder %s582, %s585
    %p591 = scmp.eq.s32.totalorder %s37, 0
    %p592 = por %p590, %p591
    %p593 = scmp.ne.s32.totalorder %s582, %s585
    %p594 = scmp.eq.s32.totalorder %s42, 1
    %p595 = por %p593, %p594
    %p596 = scmp.ne.s32.totalorder %s585, %s586
    %p597 = scmp.eq.s32.totalorder %s42, 0
    %p598 = por %p596, %p597
    %p599 = scmp.ne.s32.totalorder %s585, %s586
    %p600 = scmp.eq.s32.totalorder %s43, 1
    %p601 = por %p599, %p600
    %p603 = scmp.ne.s32.totalorder %s586, %s602
    %p604 = scmp.eq.s32.totalorder %s43, 0
    %p605 = por %p603, %p604
    %p606 = scmp.le.s32.totalorder 1, %s37
    %p607 = scmp.lt.s32.totalorder %s37, 3
    %p608 = pnand %p606, %p607
    %p609 = pneg %p608
    // Predicated region
    $region9: #{tpu_custom_call.1} parent=5 // pred_check
      _
    $region10: #{tpu_custom_call.1} parent=5 // pred_check_branch
      %611 = sbr.rel (%p608) target = $region12
    $region11: #{tpu_custom_call.1} parent=5 // pred_region
      %s612 = ssub.s32 %s37, 1
      // Predicated region
      $region13: #{tpu_custom_call.1} parent=11 // pred_check
        %p613 = pneg %p110
      $region14: #{tpu_custom_call.1} parent=11 // pred_check_branch
        %615 = sbr.rel (%p613) target = $region16
      $region15: #{tpu_custom_call.1} parent=11 // pred_region
        _
      $region16: #{tpu_custom_call.1} parent=11 // pred_fallthru
        _
      // Predicated region
      $region17: #{tpu_custom_call.1} parent=11 // pred_check
        %p616 = pneg %p131
      $region18: #{tpu_custom_call.1} parent=11 // pred_check_branch
        %618 = sbr.rel (%p616) target = $region20
      $region19: #{tpu_custom_call.1} parent=11 // pred_region
        _
      $region20: #{tpu_custom_call.1} parent=11 // pred_fallthru
        _
      // Predicated region
      $region21: #{tpu_custom_call.1} parent=11 // pred_check
        %p619 = pneg %p152
      $region22: #{tpu_custom_call.1} parent=11 // pred_check_branch
        %621 = sbr.rel (%p619) target = $region24
      $region23: #{tpu_custom_call.1} parent=11 // pred_region
        _
      $region24: #{tpu_custom_call.1} parent=11 // pred_fallthru
        _
      // Predicated region
      $region25: #{tpu_custom_call.1} parent=11 // pred_check
        %p622 = pneg %p173
      $region26: #{tpu_custom_call.1} parent=11 // pred_check_branch
        %624 = sbr.rel (%p622) target = $region28
      $region27: #{tpu_custom_call.1} parent=11 // pred_region
        _
      $region28: #{tpu_custom_call.1} parent=11 // pred_fallthru
        _
      // Predicated region
      $region29: #{tpu_custom_call.1} parent=11 // pred_check
        %p625 = pneg %p194
      $region30: #{tpu_custom_call.1} parent=11 // pred_check_branch
        %627 = sbr.rel (%p625) target = $region32
      $region31: #{tpu_custom_call.1} parent=11 // pred_region
        _
      $region32: #{tpu_custom_call.1} parent=11 // pred_fallthru
        _
      // Predicated region
      $region33: #{tpu_custom_call.1} parent=11 // pred_check
        %p628 = pneg %p215
      $region34: #{tpu_custom_call.1} parent=11 // pred_check_branch
        %630 = sbr.rel (%p628) target = $region36
      $region35: #{tpu_custom_call.1} parent=11 // pred_region
        _
      $region36: #{tpu_custom_call.1} parent=11 // pred_fallthru
        _
      // Predicated region
      $region37: #{tpu_custom_call.1} parent=11 // pred_check
        %p631 = pneg %p236
      $region38: #{tpu_custom_call.1} parent=11 // pred_check_branch
        %633 = sbr.rel (%p631) target = $region40
      $region39: #{tpu_custom_call.1} parent=11 // pred_region
        _
      $region40: #{tpu_custom_call.1} parent=11 // pred_fallthru
        _
      // Predicated region
      $region41: #{tpu_custom_call.1} parent=11 // pred_check
        %p634 = pneg %p257
      $region42: #{tpu_custom_call.1} parent=11 // pred_check_branch
        %636 = sbr.rel (%p634) target = $region44
      $region43: #{tpu_custom_call.1} parent=11 // pred_region
        _
      $region44: #{tpu_custom_call.1} parent=11 // pred_fallthru
        _
      // Predicated region
      $region45: #{tpu_custom_call.1} parent=11 // pred_check
        %p637 = pneg %p278
      $region46: #{tpu_custom_call.1} parent=11 // pred_check_branch
        %639 = sbr.rel (%p637) target = $region48
      $region47: #{tpu_custom_call.1} parent=11 // pred_region
        _
      $region48: #{tpu_custom_call.1} parent=11 // pred_fallthru
        _
      // Predicated region
      $region49: #{tpu_custom_call.1} parent=11 // pred_check
        %p640 = pneg %p299
      $region50: #{tpu_custom_call.1} parent=11 // pred_check_branch
        %642 = sbr.rel (%p640) target = $region52
      $region51: #{tpu_custom_call.1} parent=11 // pred_region
        _
      $region52: #{tpu_custom_call.1} parent=11 // pred_fallthru
        _
      // Predicated region
      $region53: #{tpu_custom_call.1} parent=11 // pred_check
        %p643 = pneg %p320
      $region54: #{tpu_custom_call.1} parent=11 // pred_check_branch
        %645 = sbr.rel (%p643) target = $region56
      $region55: #{tpu_custom_call.1} parent=11 // pred_region
        _
      $region56: #{tpu_custom_call.1} parent=11 // pred_fallthru
        _
      // Predicated region
      $region57: #{tpu_custom_call.1} parent=11 // pred_check
        %p646 = pneg %p341
      $region58: #{tpu_custom_call.1} parent=11 // pred_check_branch
        %648 = sbr.rel (%p646) target = $region60
      $region59: #{tpu_custom_call.1} parent=11 // pred_region
        _
      $region60: #{tpu_custom_call.1} parent=11 // pred_fallthru
        _
      // Predicated region
      $region61: #{tpu_custom_call.1} parent=11 // pred_check
        %p649 = pneg %p362
      $region62: #{tpu_custom_call.1} parent=11 // pred_check_branch
        %651 = sbr.rel (%p649) target = $region64
      $region63: #{tpu_custom_call.1} parent=11 // pred_region
        _
      $region64: #{tpu_custom_call.1} parent=11 // pred_fallthru
        _
      // Predicated region
      $region65: #{tpu_custom_call.1} parent=11 // pred_check
        %p652 = pneg %p383
      $region66: #{tpu_custom_call.1} parent=11 // pred_check_branch
        %654 = sbr.rel (%p652) target = $region68
      $region67: #{tpu_custom_call.1} parent=11 // pred_region
        _
      $region68: #{tpu_custom_call.1} parent=11 // pred_fallthru
        _
      // Predicated region
      $region69: #{tpu_custom_call.1} parent=11 // pred_check
        %p655 = pneg %p404
      $region70: #{tpu_custom_call.1} parent=11 // pred_check_branch
        %657 = sbr.rel (%p655) target = $region72
      $region71: #{tpu_custom_call.1} parent=11 // pred_region
        _
      $region72: #{tpu_custom_call.1} parent=11 // pred_fallthru
        _
      // Predicated region
      $region73: #{tpu_custom_call.1} parent=11 // pred_check
        %p658 = pneg %p425
      $region74: #{tpu_custom_call.1} parent=11 // pred_check_branch
        %660 = sbr.rel (%p658) target = $region76
      $region75: #{tpu_custom_call.1} parent=11 // pred_region
        _
      $region76: #{tpu_custom_call.1} parent=11 // pred_fallthru
        _
      // Predicated region
      $region77: #{tpu_custom_call.1} parent=11 // pred_check
        %p661 = pneg %p446
      $region78: #{tpu_custom_call.1} parent=11 // pred_check_branch
        %663 = sbr.rel (%p661) target = $region80
      $region79: #{tpu_custom_call.1} parent=11 // pred_region
        _
      $region80: #{tpu_custom_call.1} parent=11 // pred_fallthru
        _
      // Predicated region
      $region81: #{tpu_custom_call.1} parent=11 // pred_check
        %p664 = pneg %p467
      $region82: #{tpu_custom_call.1} parent=11 // pred_check_branch
        %666 = sbr.rel (%p664) target = $region84
      $region83: #{tpu_custom_call.1} parent=11 // pred_region
        _
      $region84: #{tpu_custom_call.1} parent=11 // pred_fallthru
        _
      // Predicated region
      $region85: #{tpu_custom_call.1} parent=11 // pred_check
        %p667 = pneg %p488
      $region86: #{tpu_custom_call.1} parent=11 // pred_check_branch
        %669 = sbr.rel (%p667) target = $region88
      $region87: #{tpu_custom_call.1} parent=11 // pred_region
        _
      $region88: #{tpu_custom_call.1} parent=11 // pred_fallthru
        _
      // Predicated region
      $region89: #{tpu_custom_call.1} parent=11 // pred_check
        %p670 = pneg %p509
      $region90: #{tpu_custom_call.1} parent=11 // pred_check_branch
        %672 = sbr.rel (%p670) target = $region92
      $region91: #{tpu_custom_call.1} parent=11 // pred_region
        _
      $region92: #{tpu_custom_call.1} parent=11 // pred_fallthru
        _
      // Predicated region
      $region93: #{tpu_custom_call.1} parent=11 // pred_check
        %p673 = pneg %p530
      $region94: #{tpu_custom_call.1} parent=11 // pred_check_branch
        %675 = sbr.rel (%p673) target = $region96
      $region95: #{tpu_custom_call.1} parent=11 // pred_region
        _
      $region96: #{tpu_custom_call.1} parent=11 // pred_fallthru
        _
      // Predicated region
      $region97: #{tpu_custom_call.1} parent=11 // pred_check
        %p676 = pneg %p551
      $region98: #{tpu_custom_call.1} parent=11 // pred_check_branch
        %678 = sbr.rel (%p676) target = $region100
      $region99: #{tpu_custom_call.1} parent=11 // pred_region
        _
      $region100: #{tpu_custom_call.1} parent=11 // pred_fallthru
        _
      // Predicated region
      $region101: #{tpu_custom_call.1} parent=11 // pred_check
        %p679 = pneg %p572
      $region102: #{tpu_custom_call.1} parent=11 // pred_check_branch
        %681 = sbr.rel (%p679) target = $region104
      $region103: #{tpu_custom_call.1} parent=11 // pred_region
        _
      $region104: #{tpu_custom_call.1} parent=11 // pred_fallthru
        _
    $region12: #{tpu_custom_call.1} parent=5 // pred_fallthru
      _
    %p682 = scmp.lt.s32.totalorder %s37, 2
    // Predicated region
    $region105: #{tpu_custom_call.1} parent=5 // pred_check
      %p683 = pneg %p682
    $region106: #{tpu_custom_call.1} parent=5 // pred_check_branch
      %685 = sbr.rel (%p683) target = $region108
    $region107: #{tpu_custom_call.1} parent=5 // pred_region
      // Predicated region
      $region109: #{tpu_custom_call.1} parent=107 // pred_check
        %p686 = pneg %p57
      $region110: #{tpu_custom_call.1} parent=107 // pred_check_branch
        %688 = sbr.rel (%p686) target = $region112
      $region111: #{tpu_custom_call.1} parent=107 // pred_region
        %p689 = scmp.lt.s32.totalorder %s37, 1
        %s690 = scalar_select %p689, %s37, 1
        %s691 = smul.addr %s690, 4
        %s692 = smul.addr %s691, 8
        %s693 = scalar_lea.vmem %s0, %s692
      $region112: #{tpu_custom_call.1} parent=107 // pred_fallthru
        _
      // Predicated region
      $region113: #{tpu_custom_call.1} parent=107 // pred_check
        %p694 = pneg %p83
      $region114: #{tpu_custom_call.1} parent=107 // pred_check_branch
        %696 = sbr.rel (%p694) target = $region116
      $region115: #{tpu_custom_call.1} parent=107 // pred_region
        %p697 = scmp.lt.s32.totalorder %s37, 1
        %s698 = scalar_select %p697, %s37, 1
        %s699 = smul.addr %s698, 2
        %s700 = smul.addr %s699, 8
        %s701 = scalar_lea.vmem %s1, %s700
      $region116: #{tpu_custom_call.1} parent=107 // pred_fallthru
        _
    $region108: #{tpu_custom_call.1} parent=5 // pred_fallthru
      _
    %p702 = scmp.le.s32.totalorder 1, %s37
    %p703 = scmp.lt.s32.totalorder %s37, 3
    %p704 = pnand %p702, %p703
    %p705 = pneg %p704
    // Predicated region
    $region117: #{tpu_custom_call.1} parent=5 // pred_check
      _
    $region118: #{tpu_custom_call.1} parent=5 // pred_check_branch
      %707 = sbr.rel (%p704) target = $region120
    $region119: #{tpu_custom_call.1} parent=5 // pred_region
      %s708 = ssub.s32 %s37, 1
      %p709 = scmp.lt.s32.totalorder %s42, 1
      %s710 = scalar_select %p709, %s42, 1
      %s711 = smul.addr %s710, 4
      %s712 = smul.addr %s711, 8
      %s713 = scalar_lea.vmem %s0, %s712
      %p714 = pneg %p63
      %p715 = pneg %p60
      %p716 = scmp.lt.s32.totalorder %s42, 1
      %s717 = scalar_select %p716, %s42, 1
      %s718 = smul.addr %s717, 2
      %s719 = smul.addr %s718, 8
      %s720 = scalar_lea.vmem %s1, %s719
      %p721 = pneg %p89
      %p722 = pneg %p86
      %p723 = pneg %p110
      %p724 = pneg %p107
      %p725 = pneg %p131
      %p726 = pneg %p128
      %p727 = pneg %p152
      %p728 = pneg %p149
      %p729 = pneg %p173
      %p730 = pneg %p170
      %p731 = pneg %p194
      %p732 = pneg %p191
      %p733 = pneg %p215
      %p734 = pneg %p212
      %p735 = pneg %p236
      %p736 = pneg %p233
      %p737 = pneg %p257
      %p738 = pneg %p254
      %p739 = pneg %p278
      %p740 = pneg %p275
      %p741 = pneg %p299
      %p742 = pneg %p296
      %p743 = pneg %p320
      %p744 = pneg %p317
      %p745 = pneg %p341
      %p746 = pneg %p338
      %p747 = pneg %p362
      %p748 = pneg %p359
      %p749 = pneg %p383
      %p750 = pneg %p380
      %p751 = pneg %p404
      %p752 = pneg %p401
      %p753 = pneg %p425
      %p754 = pneg %p422
      %p755 = pneg %p446
      %p756 = pneg %p443
      %p757 = pneg %p467
      %p758 = pneg %p464
      %p759 = pneg %p488
      %p760 = pneg %p485
      %p761 = pneg %p509
      %p762 = pneg %p506
      %p763 = pneg %p530
      %p764 = pneg %p527
      %p765 = pneg %p551
      %p766 = pneg %p548
      %p767 = pneg %p572
      %p768 = pneg %p569
      %p769 = pneg %p598
      %p770 = pneg %p595
      %p771 = scmp.lt.s32.totalorder %s42, 1
      %s772 = scalar_select %p771, %s42, 1
      %s773 = smul.addr %s772, 32
      %s774 = smul.addr %s773, 8
      %s775 = scalar_lea.vmem %s25, %s774
      %p776 = scmp.lt.s32.totalorder %s42, 1
      %s777 = scalar_select %p776, %s42, 1
      %s778 = smul.addr %s777, 4
      %s779 = smul.addr %s778, 8
      %s780 = scalar_lea.vmem %s0, %s779
      %p781 = scmp.lt.s32.totalorder %s42, 1
      %s782 = scalar_select %p781, %s42, 1
      %s783 = smul.addr %s782, 2
      %s784 = smul.addr %s783, 8
      %s785 = scalar_lea.vmem %s1, %s784
      %p786 = scmp.lt.s32.totalorder %s42, 1
      %s787 = scalar_select %p786, %s42, 1
      %s788 = smul.addr %s787, 32
      %s789 = smul.addr %s788, 8
      %s790 = scalar_lea.vmem %s25, %s789
      %v791 = vld [vmem:[%s780] sm:$0xff]
      %v792 = vld [vmem:[%s780 + $0x8] sm:$0xff]
      %v793 = vld [vmem:[%s780 + $0x10] sm:$0xff]
      %v794 = vld [vmem:[%s780 + $0x18] sm:$0xff]
      %v795 = vld [vmem:[%s785] sm:$0xff]
      %v796 = vld [vmem:[%s785 + $0x8] sm:$0xff]
      %v797 = vld [vmem:[%s4] sm:$0xff]
      %v798 = vld [vmem:[%s4 + $0x8] sm:$0xff]
      %v799 = vld [vmem:[%s4 + $0x10] sm:$0xff]
      %v800 = vld [vmem:[%s4 + $0x18] sm:$0xff]
      %v801 = vld [vmem:[%s5] sm:$0x1]
      %v803 = vperm.slane %v801, 0
      %vm805 = vcmask 261120
      %v807 = vsel %vm805, %v795, 0
      %v810 = vsel %vm805, %v796, 0
      %812 = vmatpush.msra.mxu0 0.0
      %813 = vmatpush.msra.mxu0 0.0
      %814 = vmatpush.msra.mxu0 0.0
      %815 = vmatpush.msra.mxu0 0.0
      %816 = vmatpush.msra.mxu0 0.0
      %817 = vmatpush.msra.mxu0 0.0
      %818 = vmatpush.msra.mxu0 0.0
      %819 = vmatpush.msra.mxu0 0.0
      %820 = vmatpush.msra.mxu0 0.0
      %821 = vmatpush.msra.mxu0 0.0
      %822 = vmatpush.msra.mxu0 0.0
      %823 = vmatpush.msra.mxu0 0.0
      %824 = vmatpush.msra.mxu0 %v800
      %825 = vmatpush.msra.mxu0 %v799
      %826 = vmatpush.msra.mxu0 %v798
      %827 = vmatpush.msra.mxu0 %v797
      %828 = vmatmul.f32.gmra.mxu0 %v807
      %v829 = vpop.f32.mrf.mxu0
      %v830 = vadd.f32 %v803, %v829
      %831 = vmatmul.f32.gmra.mxu0 %v810
      %v832 = vpop.f32.mrf.mxu0
      %v833 = vadd.f32 %v803, %v832
      %834 = vdwg.mxu0
      %v835 = vld [vmem:[%s6] sm:$0xff]
      %v836 = vld [vmem:[%s6 + $0x8] sm:$0xff]
      %v837 = vld [vmem:[%s6 + $0x10] sm:$0xff]
      %v838 = vld [vmem:[%s6 + $0x18] sm:$0xff]
      %v839 = vld [vmem:[%s6 + $0x20] sm:$0xff]
      %v840 = vld [vmem:[%s6 + $0x28] sm:$0xff]
      %v841 = vld [vmem:[%s6 + $0x30] sm:$0xff]
      %v842 = vld [vmem:[%s6 + $0x38] sm:$0xff]
      %v843 = vld [vmem:[%s7] sm:$0xff]
      %v844 = vld [vmem:[%s7 + $0x8] sm:$0xff]
      %v845 = vld [vmem:[%s7 + $0x10] sm:$0xff]
      %v846 = vld [vmem:[%s7 + $0x18] sm:$0xff]
      %v847 = vld [vmem:[%s7 + $0x20] sm:$0xff]
      %v848 = vld [vmem:[%s7 + $0x28] sm:$0xff]
      %v849 = vld [vmem:[%s7 + $0x30] sm:$0xff]
      %v850 = vld [vmem:[%s7 + $0x38] sm:$0xff]
      %852 = vset.pattern.permute.xlu0 0
      %853 = vperm.xlu0 %852, %v843
      %v854 = vpop.permute.xlu0 %853
      %857 = vset.pattern.permute.xlu0 0
      %858 = vperm.xlu0 %857, %v844
      %v859 = vpop.permute.xlu0 %858
      %862 = vset.pattern.permute.xlu0 0
      %863 = vperm.xlu0 %862, %v845
      %v864 = vpop.permute.xlu0 %863
      %867 = vset.pattern.permute.xlu0 0
      %868 = vperm.xlu0 %867, %v846
      %v869 = vpop.permute.xlu0 %868
      %872 = vset.pattern.permute.xlu0 0
      %873 = vperm.xlu0 %872, %v847
      %v874 = vpop.permute.xlu0 %873
      %877 = vset.pattern.permute.xlu0 0
      %878 = vperm.xlu0 %877, %v848
      %v879 = vpop.permute.xlu0 %878
      %882 = vset.pattern.permute.xlu0 0
      %883 = vperm.xlu0 %882, %v849
      %v884 = vpop.permute.xlu0 %883
      %887 = vset.pattern.permute.xlu0 0
      %888 = vperm.xlu0 %887, %v850
      %v889 = vpop.permute.xlu0 %888
      %v892 = vsel %vm805, %v835, 0
      %v895 = vsel %vm805, %v836, 0
      %v898 = vsel %vm805, %v837, 0
      %v901 = vsel %vm805, %v838, 0
      %v904 = vsel %vm805, %v839, 0
      %v907 = vsel %vm805, %v840, 0
      %v910 = vsel %vm805, %v841, 0
      %v913 = vsel %vm805, %v842, 0
      %915 = vmatpush.msra.mxu0 0.0
      %916 = vmatpush.msra.mxu0 0.0
      %917 = vmatpush.msra.mxu0 0.0
      %918 = vmatpush.msra.mxu0 0.0
      %919 = vmatpush.msra.mxu0 0.0
      %920 = vmatpush.msra.mxu0 0.0
      %921 = vmatpush.msra.mxu0 0.0
      %922 = vmatpush.msra.mxu0 0.0
      %923 = vmatpush.msra.mxu0 0.0
      %924 = vmatpush.msra.mxu0 0.0
      %925 = vmatpush.msra.mxu0 0.0
      %926 = vmatpush.msra.mxu0 0.0
      %927 = vmatpush.msra.mxu0 %v794
      %928 = vmatpush.msra.mxu0 %v793
      %929 = vmatpush.msra.mxu0 %v792
      %930 = vmatpush.msra.mxu0 %v791
      %931 = vmatmul.f32.gmra.mxu0 %v892
      %v932 = vpop.f32.mrf.mxu0
      %v933 = vadd.f32 %v854, %v932
      %934 = vmatmul.f32.gmra.mxu0 %v895
      %v935 = vpop.f32.mrf.mxu0
      %v936 = vadd.f32 %v859, %v935
      %937 = vmatmul.f32.gmra.mxu0 %v898
      %v938 = vpop.f32.mrf.mxu0
      %v939 = vadd.f32 %v864, %v938
      %940 = vmatmul.f32.gmra.mxu0 %v901
      %v941 = vpop.f32.mrf.mxu0
      %v942 = vadd.f32 %v869, %v941
      %943 = vmatmul.f32.gmra.mxu0 %v904
      %v944 = vpop.f32.mrf.mxu0
      %v945 = vadd.f32 %v874, %v944
      %946 = vmatmul.f32.gmra.mxu0 %v907
      %v947 = vpop.f32.mrf.mxu0
      %v948 = vadd.f32 %v879, %v947
      %949 = vmatmul.f32.gmra.mxu0 %v910
      %v950 = vpop.f32.mrf.mxu0
      %v951 = vadd.f32 %v884, %v950
      %952 = vmatmul.f32.gmra.mxu0 %v913
      %v953 = vpop.f32.mrf.mxu0
      %v954 = vadd.f32 %v889, %v953
      %955 = vdwg.mxu0
      %vm956 = vcmask 523264
      %v958 = vsel %vm956, %v830, 0
      %v961 = vsel %vm956, %v833, 0
      %963 = vmatpush.msra.mxu0 0.0
      %964 = vmatpush.msra.mxu0 0.0
      %965 = vmatpush.msra.mxu0 0.0
      %966 = vmatpush.msra.mxu0 0.0
      %967 = vmatpush.msra.mxu0 0.0
      %968 = vmatpush.msra.mxu0 0.0
      %969 = vmatpush.msra.mxu0 0.0
      %970 = vmatpush.msra.mxu0 0.0
      %971 = vmatpush.msra.mxu0 %v954
      %972 = vmatpush.msra.mxu0 %v951
      %973 = vmatpush.msra.mxu0 %v948
      %974 = vmatpush.msra.mxu0 %v945
      %975 = vmatpush.msra.mxu0 %v942
      %976 = vmatpush.msra.mxu0 %v939
      %977 = vmatpush.msra.mxu0 %v936
      %978 = vmatpush.msra.mxu0 %v933
      %979 = vmatmul.f32.gmra.mxu0 %v958
      %v980 = vpop.f32.mrf.mxu0
      %v981 = vadd.f32 0.0, %v980
      %982 = vmatmul.f32.gmra.mxu0 %v961
      %v983 = vpop.f32.mrf.mxu0
      %v984 = vadd.f32 0.0, %v983
      %985 = vdwg.mxu0
      %v986 = vmul.f32 %v981, 0.015625
      %v987 = vmul.f32 %v984, 0.015625
      %v988 = vtanh.pop %v986
      %v989 = vtanh.pop %v987
      %v990 = vld [vmem:[%s2] sm:$0xff]
      %v991 = vld [vmem:[%s2 + $0x8] sm:$0xff]
      %v992 = vld [vmem:[#allocation3] sm:$0x1]
      %v994 = vperm.slane %v992, 0
      %995 = vset.pattern.permute.xlu0 0
      %996 = vperm.xlu0 %995, %v994
      %v997 = vpop.permute.xlu0 %996
      %v999 = vmul.f32 %v997, %v988
      %v1000 = vmul.f32 %v997, %v989
      %v1001 = vadd.f32 %v990, %v999
      %v1002 = vadd.f32 %v991, %v1000
      %vm1003 = vcmask 130048
      %v1005 = vsel %vm1003, %v791, 0
      %v1008 = vsel %vm1003, %v792, 0
      %v1011 = vsel %vm1003, %v793, 0
      %v1014 = vsel %vm1003, %v794, 0
      %1016 = vmatpush.msra.mxu0 0.0
      %1017 = vmatpush.msra.mxu0 0.0
      %1018 = vmatpush.msra.mxu0 0.0
      %1019 = vmatpush.msra.mxu0 0.0
      %1020 = vmatpush.msra.mxu0 0.0
      %1021 = vmatpush.msra.mxu0 0.0
      %1022 = vmatpush.msra.mxu0 0.0
      %1023 = vmatpush.msra.mxu0 0.0
      %1024 = vmatpush.msra.mxu0 0.0
      %1025 = vmatpush.msra.mxu0 0.0
      %1026 = vmatpush.msra.mxu0 0.0
      %1027 = vmatpush.msra.mxu0 0.0
      %1028 = vmatpush.msra.mxu0 0.0
      %1029 = vmatpush.msra.mxu0 0.0
      %1030 = vmatpush.msra.mxu0 %v1002
      %1031 = vmatpush.msra.mxu0 %v1001
      %1032 = vmatmul.f32.gmra.mxu0 %v1005
      %v1033 = vpop.f32.mrf.mxu0
      %v1034 = vadd.f32 0.0, %v1033
      %1035 = vmatmul.f32.gmra.mxu0 %v1008
      %v1036 = vpop.f32.mrf.mxu0
      %v1037 = vadd.f32 0.0, %v1036
      %1038 = vmatmul.f32.gmra.mxu0 %v1011
      %v1039 = vpop.f32.mrf.mxu0
      %v1040 = vadd.f32 0.0, %v1039
      %1041 = vmatmul.f32.gmra.mxu0 %v1014
      %v1042 = vpop.f32.mrf.mxu0
      %v1043 = vadd.f32 0.0, %v1042
      %1044 = vdwg.mxu0
      %v1045 = vld [vmem:[%s8] sm:$0xff]
      %v1046 = vld [vmem:[%s8 + $0x8] sm:$0xff]
      %v1047 = vld [vmem:[%s8 + $0x10] sm:$0xff]
      %v1048 = vld [vmem:[%s8 + $0x18] sm:$0xff]
      %v1049 = vld [vmem:[%s8 + $0x20] sm:$0xff]
      %v1050 = vld [vmem:[%s8 + $0x28] sm:$0xff]
      %v1051 = vld [vmem:[%s8 + $0x30] sm:$0xff]
      %v1052 = vld [vmem:[%s8 + $0x38] sm:$0xff]
      %v1053 = vld [vmem:[%s8 + $0x40] sm:$0xff]
      %v1054 = vld [vmem:[%s8 + $0x48] sm:$0xff]
      %v1055 = vld [vmem:[%s8 + $0x50] sm:$0xff]
      %v1056 = vld [vmem:[%s8 + $0x58] sm:$0xff]
      %v1057 = vld [vmem:[%s8 + $0x60] sm:$0xff]
      %v1058 = vld [vmem:[%s8 + $0x68] sm:$0xff]
      %v1059 = vld [vmem:[%s8 + $0x70] sm:$0xff]
      %v1060 = vld [vmem:[%s8 + $0x78] sm:$0xff]
      %v1061 = vld [vmem:[%s8 + $0x80] sm:$0xff]
      %v1062 = vld [vmem:[%s8 + $0x88] sm:$0xff]
      %v1063 = vld [vmem:[%s8 + $0x90] sm:$0xff]
      %v1064 = vld [vmem:[%s8 + $0x98] sm:$0xff]
      %v1065 = vld [vmem:[%s8 + $0xa0] sm:$0xff]
      %v1066 = vld [vmem:[%s8 + $0xa8] sm:$0xff]
      %v1067 = vld [vmem:[%s8 + $0xb0] sm:$0xff]
      %v1068 = vld [vmem:[%s8 + $0xb8] sm:$0xff]
      %v1069 = vld [vmem:[%s8 + $0xc0] sm:$0xff]
      %v1070 = vld [vmem:[%s8 + $0xc8] sm:$0xff]
      %v1071 = vld [vmem:[%s8 + $0xd0] sm:$0xff]
      %v1072 = vld [vmem:[%s8 + $0xd8] sm:$0xff]
      %v1073 = vld [vmem:[%s8 + $0xe0] sm:$0xff]
      %v1074 = vld [vmem:[%s8 + $0xe8] sm:$0xff]
      %v1075 = vld [vmem:[%s8 + $0xf0] sm:$0xff]
      %v1076 = vld [vmem:[%s8 + $0xf8] sm:$0xff]
      %s1077 = scalar_lea.vmem %s4, 32
      %v1078 = vld [vmem:[%s1077] sm:$0xff]
      %v1079 = vld [vmem:[%s1077 + $0x8] sm:$0xff]
      %v1080 = vld [vmem:[%s1077 + $0x10] sm:$0xff]
      %v1081 = vld [vmem:[%s1077 + $0x18] sm:$0xff]
      %s1082 = scalar_lea.vmem %s5, 1
      %v1083 = vld [vmem:[%s1082] sm:$0x1]
      %v1085 = vperm.slane %v1083, 0
      %1087 = vmatpush.msra.mxu0 0.0
      %1088 = vmatpush.msra.mxu0 0.0
      %1089 = vmatpush.msra.mxu0 0.0
      %1090 = vmatpush.msra.mxu0 0.0
      %1091 = vmatpush.msra.mxu0 0.0
      %1092 = vmatpush.msra.mxu0 0.0
      %1093 = vmatpush.msra.mxu0 0.0
      %1094 = vmatpush.msra.mxu0 0.0
      %1095 = vmatpush.msra.mxu0 0.0
      %1096 = vmatpush.msra.mxu0 0.0
      %1097 = vmatpush.msra.mxu0 0.0
      %1098 = vmatpush.msra.mxu0 0.0
      %1099 = vmatpush.msra.mxu0 %v1081
      %1100 = vmatpush.msra.mxu0 %v1080
      %1101 = vmatpush.msra.mxu0 %v1079
      %1102 = vmatpush.msra.mxu0 %v1078
      %1103 = vmatmul.f32.gmra.mxu0 %v807
      %v1104 = vpop.f32.mrf.mxu0
      %v1105 = vadd.f32 %v1085, %v1104
      %1106 = vmatmul.f32.gmra.mxu0 %v810
      %v1107 = vpop.f32.mrf.mxu0
      %v1108 = vadd.f32 %v1085, %v1107
      %1109 = vdwg.mxu0
      %s1110 = scalar_lea.vmem %s6, 64
      %v1111 = vld [vmem:[%s1110] sm:$0xff]
      %v1112 = vld [vmem:[%s1110 + $0x8] sm:$0xff]
      %v1113 = vld [vmem:[%s1110 + $0x10] sm:$0xff]
      %v1114 = vld [vmem:[%s1110 + $0x18] sm:$0xff]
      %v1115 = vld [vmem:[%s1110 + $0x20] sm:$0xff]
      %v1116 = vld [vmem:[%s1110 + $0x28] sm:$0xff]
      %v1117 = vld [vmem:[%s1110 + $0x30] sm:$0xff]
      %v1118 = vld [vmem:[%s1110 + $0x38] sm:$0xff]
      %s1119 = scalar_lea.vmem %s7, 64
      %v1120 = vld [vmem:[%s1119] sm:$0xff]
      %v1121 = vld [vmem:[%s1119 + $0x8] sm:$0xff]
      %v1122 = vld [vmem:[%s1119 + $0x10] sm:$0xff]
      %v1123 = vld [vmem:[%s1119 + $0x18] sm:$0xff]
      %v1124 = vld [vmem:[%s1119 + $0x20] sm:$0xff]
      %v1125 = vld [vmem:[%s1119 + $0x28] sm:$0xff]
      %v1126 = vld [vmem:[%s1119 + $0x30] sm:$0xff]
      %v1127 = vld [vmem:[%s1119 + $0x38] sm:$0xff]
      %1129 = vset.pattern.permute.xlu0 0
      %1130 = vperm.xlu0 %1129, %v1120
      %v1131 = vpop.permute.xlu0 %1130
      %1134 = vset.pattern.permute.xlu0 0
      %1135 = vperm.xlu0 %1134, %v1121
      %v1136 = vpop.permute.xlu0 %1135
      %1139 = vset.pattern.permute.xlu0 0
      %1140 = vperm.xlu0 %1139, %v1122
      %v1141 = vpop.permute.xlu0 %1140
      %1144 = vset.pattern.permute.xlu0 0
      %1145 = vperm.xlu0 %1144, %v1123
      %v1146 = vpop.permute.xlu0 %1145
      %1149 = vset.pattern.permute.xlu0 0
      %1150 = vperm.xlu0 %1149, %v1124
      %v1151 = vpop.permute.xlu0 %1150
      %1154 = vset.pattern.permute.xlu0 0
      %1155 = vperm.xlu0 %1154, %v1125
      %v1156 = vpop.permute.xlu0 %1155
      %1159 = vset.pattern.permute.xlu0 0
      %1160 = vperm.xlu0 %1159, %v1126
      %v1161 = vpop.permute.xlu0 %1160
      %1164 = vset.pattern.permute.xlu0 0
      %1165 = vperm.xlu0 %1164, %v1127
      %v1166 = vpop.permute.xlu0 %1165
      %v1169 = vsel %vm805, %v1111, 0
      %v1172 = vsel %vm805, %v1112, 0
      %v1175 = vsel %vm805, %v1113, 0
      %v1178 = vsel %vm805, %v1114, 0
      %v1181 = vsel %vm805, %v1115, 0
      %v1184 = vsel %vm805, %v1116, 0
      %v1187 = vsel %vm805, %v1117, 0
      %v1190 = vsel %vm805, %v1118, 0
      %1192 = vmatpush.msra.mxu0 0.0
      %1193 = vmatpush.msra.mxu0 0.0
      %1194 = vmatpush.msra.mxu0 0.0
      %1195 = vmatpush.msra.mxu0 0.0
      %1196 = vmatpush.msra.mxu0 0.0
      %1197 = vmatpush.msra.mxu0 0.0
      %1198 = vmatpush.msra.mxu0 0.0
      %1199 = vmatpush.msra.mxu0 0.0
      %1200 = vmatpush.msra.mxu0 0.0
      %1201 = vmatpush.msra.mxu0 0.0
      %1202 = vmatpush.msra.mxu0 0.0
      %1203 = vmatpush.msra.mxu0 0.0
      %1204 = vmatpush.msra.mxu0 %v794
      %1205 = vmatpush.msra.mxu0 %v793
      %1206 = vmatpush.msra.mxu0 %v792
      %1207 = vmatpush.msra.mxu0 %v791
      %1208 = vmatmul.f32.gmra.mxu0 %v1169
      %v1209 = vpop.f32.mrf.mxu0
      %v1210 = vadd.f32 %v1131, %v1209
      %1211 = vmatmul.f32.gmra.mxu0 %v1172
      %v1212 = vpop.f32.mrf.mxu0
      %v1213 = vadd.f32 %v1136, %v1212
      %1214 = vmatmul.f32.gmra.mxu0 %v1175
      %v1215 = vpop.f32.mrf.mxu0
      %v1216 = vadd.f32 %v1141, %v1215
      %1217 = vmatmul.f32.gmra.mxu0 %v1178
      %v1218 = vpop.f32.mrf.mxu0
      %v1219 = vadd.f32 %v1146, %v1218
      %1220 = vmatmul.f32.gmra.mxu0 %v1181
      %v1221 = vpop.f32.mrf.mxu0
      %v1222 = vadd.f32 %v1151, %v1221
      %1223 = vmatmul.f32.gmra.mxu0 %v1184
      %v1224 = vpop.f32.mrf.mxu0
      %v1225 = vadd.f32 %v1156, %v1224
      %1226 = vmatmul.f32.gmra.mxu0 %v1187
      %v1227 = vpop.f32.mrf.mxu0
      %v1228 = vadd.f32 %v1161, %v1227
      %1229 = vmatmul.f32.gmra.mxu0 %v1190
      %v1230 = vpop.f32.mrf.mxu0
      %v1231 = vadd.f32 %v1166, %v1230
      %1232 = vdwg.mxu0
      %v1234 = vsel %vm956, %v1105, 0
      %v1237 = vsel %vm956, %v1108, 0
      %1239 = vmatpush.msra.mxu0 0.0
      %1240 = vmatpush.msra.mxu0 0.0
      %1241 = vmatpush.msra.mxu0 0.0
      %1242 = vmatpush.msra.mxu0 0.0
      %1243 = vmatpush.msra.mxu0 0.0
      %1244 = vmatpush.msra.mxu0 0.0
      %1245 = vmatpush.msra.mxu0 0.0
      %1246 = vmatpush.msra.mxu0 0.0
      %1247 = vmatpush.msra.mxu0 %v1231
      %1248 = vmatpush.msra.mxu0 %v1228
      %1249 = vmatpush.msra.mxu0 %v1225
      %1250 = vmatpush.msra.mxu0 %v1222
      %1251 = vmatpush.msra.mxu0 %v1219
      %1252 = vmatpush.msra.mxu0 %v1216
      %1253 = vmatpush.msra.mxu0 %v1213
      %1254 = vmatpush.msra.mxu0 %v1210
      %1255 = vmatmul.f32.gmra.mxu0 %v1234
      %v1256 = vpop.f32.mrf.mxu0
      %v1257 = vadd.f32 0.0, %v1256
      %1258 = vmatmul.f32.gmra.mxu0 %v1237
      %v1259 = vpop.f32.mrf.mxu0
      %v1260 = vadd.f32 0.0, %v1259
      %1261 = vdwg.mxu0
      %v1262 = vmul.f32 %v1257, 0.015625
      %v1263 = vmul.f32 %v1260, 0.015625
      %v1264 = vtanh.pop %v1262
      %v1265 = vtanh.pop %v1263
      %s1266 = scalar_lea.vmem %s2, 16
      %v1267 = vld [vmem:[%s1266] sm:$0xff]
      %v1268 = vld [vmem:[%s1266 + $0x8] sm:$0xff]
      %v1269 = vmul.f32 %v997, %v1264
      %v1270 = vmul.f32 %v997, %v1265
      %v1271 = vadd.f32 %v1267, %v1269
      %v1272 = vadd.f32 %v1268, %v1270
      %1273 = vmatpush.msra.mxu0 0.0
      %1274 = vmatpush.msra.mxu0 0.0
      %1275 = vmatpush.msra.mxu0 0.0
      %1276 = vmatpush.msra.mxu0 0.0
      %1277 = vmatpush.msra.mxu0 0.0
      %1278 = vmatpush.msra.mxu0 0.0
      %1279 = vmatpush.msra.mxu0 0.0
      %1280 = vmatpush.msra.mxu0 0.0
      %1281 = vmatpush.msra.mxu0 0.0
      %1282 = vmatpush.msra.mxu0 0.0
      %1283 = vmatpush.msra.mxu0 0.0
      %1284 = vmatpush.msra.mxu0 0.0
      %1285 = vmatpush.msra.mxu0 0.0
      %1286 = vmatpush.msra.mxu0 0.0
      %1287 = vmatpush.msra.mxu0 %v1272
      %1288 = vmatpush.msra.mxu0 %v1271
      %1289 = vmatmul.f32.gmra.mxu0 %v1005
      %v1290 = vpop.f32.mrf.mxu0
      %v1291 = vadd.f32 0.0, %v1290
      %1292 = vmatmul.f32.gmra.mxu0 %v1008
      %v1293 = vpop.f32.mrf.mxu0
      %v1294 = vadd.f32 0.0, %v1293
      %1295 = vmatmul.f32.gmra.mxu0 %v1011
      %v1296 = vpop.f32.mrf.mxu0
      %v1297 = vadd.f32 0.0, %v1296
      %1298 = vmatmul.f32.gmra.mxu0 %v1014
      %v1299 = vpop.f32.mrf.mxu0
      %v1300 = vadd.f32 0.0, %v1299
      %1301 = vdwg.mxu0
      %s1302 = scalar_lea.vmem %s8, 256
      %v1303 = vld [vmem:[%s1302] sm:$0xff]
      %v1304 = vld [vmem:[%s1302 + $0x8] sm:$0xff]
      %v1305 = vld [vmem:[%s1302 + $0x10] sm:$0xff]
      %v1306 = vld [vmem:[%s1302 + $0x18] sm:$0xff]
      %v1307 = vld [vmem:[%s1302 + $0x20] sm:$0xff]
      %v1308 = vld [vmem:[%s1302 + $0x28] sm:$0xff]
      %v1309 = vld [vmem:[%s1302 + $0x30] sm:$0xff]
      %v1310 = vld [vmem:[%s1302 + $0x38] sm:$0xff]
      %v1311 = vld [vmem:[%s1302 + $0x40] sm:$0xff]
      %v1312 = vld [vmem:[%s1302 + $0x48] sm:$0xff]
      %v1313 = vld [vmem:[%s1302 + $0x50] sm:$0xff]
      %v1314 = vld [vmem:[%s1302 + $0x58] sm:$0xff]
      %v1315 = vld [vmem:[%s1302 + $0x60] sm:$0xff]
      %v1316 = vld [vmem:[%s1302 + $0x68] sm:$0xff]
      %v1317 = vld [vmem:[%s1302 + $0x70] sm:$0xff]
      %v1318 = vld [vmem:[%s1302 + $0x78] sm:$0xff]
      %v1319 = vld [vmem:[%s1302 + $0x80] sm:$0xff]
      %v1320 = vld [vmem:[%s1302 + $0x88] sm:$0xff]
      %v1321 = vld [vmem:[%s1302 + $0x90] sm:$0xff]
      %v1322 = vld [vmem:[%s1302 + $0x98] sm:$0xff]
      %v1323 = vld [vmem:[%s1302 + $0xa0] sm:$0xff]
      %v1324 = vld [vmem:[%s1302 + $0xa8] sm:$0xff]
      %v1325 = vld [vmem:[%s1302 + $0xb0] sm:$0xff]
      %v1326 = vld [vmem:[%s1302 + $0xb8] sm:$0xff]
      %v1327 = vld [vmem:[%s1302 + $0xc0] sm:$0xff]
      %v1328 = vld [vmem:[%s1302 + $0xc8] sm:$0xff]
      %v1329 = vld [vmem:[%s1302 + $0xd0] sm:$0xff]
      %v1330 = vld [vmem:[%s1302 + $0xd8] sm:$0xff]
      %v1331 = vld [vmem:[%s1302 + $0xe0] sm:$0xff]
      %v1332 = vld [vmem:[%s1302 + $0xe8] sm:$0xff]
      %v1333 = vld [vmem:[%s1302 + $0xf0] sm:$0xff]
      %v1334 = vld [vmem:[%s1302 + $0xf8] sm:$0xff]
      %v1336 = vsel %vm805, %v1303, 0
      %v1339 = vsel %vm805, %v1304, 0
      %v1342 = vsel %vm805, %v1305, 0
      %v1345 = vsel %vm805, %v1306, 0
      %v1348 = vsel %vm805, %v1307, 0
      %v1351 = vsel %vm805, %v1308, 0
      %v1354 = vsel %vm805, %v1309, 0
      %v1357 = vsel %vm805, %v1310, 0
      %v1360 = vsel %vm805, %v1311, 0
      %v1363 = vsel %vm805, %v1312, 0
      %v1366 = vsel %vm805, %v1313, 0
      %v1369 = vsel %vm805, %v1314, 0
      %v1372 = vsel %vm805, %v1315, 0
      %v1375 = vsel %vm805, %v1316, 0
      %v1378 = vsel %vm805, %v1317, 0
      %v1381 = vsel %vm805, %v1318, 0
      %v1384 = vsel %vm805, %v1319, 0
      %v1387 = vsel %vm805, %v1320, 0
      %v1390 = vsel %vm805, %v1321, 0
      %v1393 = vsel %vm805, %v1322, 0
      %v1396 = vsel %vm805, %v1323, 0
      %v1399 = vsel %vm805, %v1324, 0
      %v1402 = vsel %vm805, %v1325, 0
      %v1405 = vsel %vm805, %v1326, 0
      %v1408 = vsel %vm805, %v1327, 0
      %v1411 = vsel %vm805, %v1328, 0
      %v1414 = vsel %vm805, %v1329, 0
      %v1417 = vsel %vm805, %v1330, 0
      %v1420 = vsel %vm805, %v1331, 0
      %v1423 = vsel %vm805, %v1332, 0
      %v1426 = vsel %vm805, %v1333, 0
      %v1429 = vsel %vm805, %v1334, 0
      %1431 = vmatpush.msra.mxu0 0.0
      %1432 = vmatpush.msra.mxu0 0.0
      %1433 = vmatpush.msra.mxu0 0.0
      %1434 = vmatpush.msra.mxu0 0.0
      %1435 = vmatpush.msra.mxu0 0.0
      %1436 = vmatpush.msra.mxu0 0.0
      %1437 = vmatpush.msra.mxu0 0.0
      %1438 = vmatpush.msra.mxu0 0.0
      %1439 = vmatpush.msra.mxu0 0.0
      %1440 = vmatpush.msra.mxu0 0.0
      %1441 = vmatpush.msra.mxu0 0.0
      %1442 = vmatpush.msra.mxu0 0.0
      %1443 = vmatpush.msra.mxu0 %v1300
      %1444 = vmatpush.msra.mxu0 %v1297
      %1445 = vmatpush.msra.mxu0 %v1294
      %1446 = vmatpush.msra.mxu0 %v1291
      %1447 = vmatmul.f32.gmra.mxu0 %v1336
      %v1448 = vpop.f32.mrf.mxu0
      %v1449 = vadd.f32 0.0, %v1448
      %1450 = vmatmul.f32.gmra.mxu0 %v1339
      %v1451 = vpop.f32.mrf.mxu0
      %v1452 = vadd.f32 0.0, %v1451
      %1453 = vmatmul.f32.gmra.mxu0 %v1342
      %v1454 = vpop.f32.mrf.mxu0
      %v1455 = vadd.f32 0.0, %v1454
      %1456 = vmatmul.f32.gmra.mxu0 %v1345
      %v1457 = vpop.f32.mrf.mxu0
      %v1458 = vadd.f32 0.0, %v1457
      %1459 = vmatmul.f32.gmra.mxu0 %v1348
      %v1460 = vpop.f32.mrf.mxu0
      %v1461 = vadd.f32 0.0, %v1460
      %1462 = vmatmul.f32.gmra.mxu0 %v1351
      %v1463 = vpop.f32.mrf.mxu0
      %v1464 = vadd.f32 0.0, %v1463
      %1465 = vmatmul.f32.gmra.mxu0 %v1354
      %v1466 = vpop.f32.mrf.mxu0
      %v1467 = vadd.f32 0.0, %v1466
      %1468 = vmatmul.f32.gmra.mxu0 %v1357
      %v1469 = vpop.f32.mrf.mxu0
      %v1470 = vadd.f32 0.0, %v1469
      %1471 = vmatmul.f32.gmra.mxu0 %v1360
      %v1472 = vpop.f32.mrf.mxu0
      %v1473 = vadd.f32 0.0, %v1472
      %1474 = vmatmul.f32.gmra.mxu0 %v1363
      %v1475 = vpop.f32.mrf.mxu0
      %v1476 = vadd.f32 0.0, %v1475
      %1477 = vmatmul.f32.gmra.mxu0 %v1366
      %v1478 = vpop.f32.mrf.mxu0
      %v1479 = vadd.f32 0.0, %v1478
      %1480 = vmatmul.f32.gmra.mxu0 %v1369
      %v1481 = vpop.f32.mrf.mxu0
      %v1482 = vadd.f32 0.0, %v1481
      %1483 = vmatmul.f32.gmra.mxu0 %v1372
      %v1484 = vpop.f32.mrf.mxu0
      %v1485 = vadd.f32 0.0, %v1484
      %1486 = vmatmul.f32.gmra.mxu0 %v1375
      %v1487 = vpop.f32.mrf.mxu0
      %v1488 = vadd.f32 0.0, %v1487
      %1489 = vmatmul.f32.gmra.mxu0 %v1378
      %v1490 = vpop.f32.mrf.mxu0
      %v1491 = vadd.f32 0.0, %v1490
      %1492 = vmatmul.f32.gmra.mxu0 %v1381
      %v1493 = vpop.f32.mrf.mxu0
      %v1494 = vadd.f32 0.0, %v1493
      %1495 = vmatmul.f32.gmra.mxu0 %v1384
      %v1496 = vpop.f32.mrf.mxu0
      %v1497 = vadd.f32 0.0, %v1496
      %1498 = vmatmul.f32.gmra.mxu0 %v1387
      %v1499 = vpop.f32.mrf.mxu0
      %v1500 = vadd.f32 0.0, %v1499
      %1501 = vmatmul.f32.gmra.mxu0 %v1390
      %v1502 = vpop.f32.mrf.mxu0
      %v1503 = vadd.f32 0.0, %v1502
      %1504 = vmatmul.f32.gmra.mxu0 %v1393
      %v1505 = vpop.f32.mrf.mxu0
      %v1506 = vadd.f32 0.0, %v1505
      %1507 = vmatmul.f32.gmra.mxu0 %v1396
      %v1508 = vpop.f32.mrf.mxu0
      %v1509 = vadd.f32 0.0, %v1508
      %1510 = vmatmul.f32.gmra.mxu0 %v1399
      %v1511 = vpop.f32.mrf.mxu0
      %v1512 = vadd.f32 0.0, %v1511
      %1513 = vmatmul.f32.gmra.mxu0 %v1402
      %v1514 = vpop.f32.mrf.mxu0
      %v1515 = vadd.f32 0.0, %v1514
      %1516 = vmatmul.f32.gmra.mxu0 %v1405
      %v1517 = vpop.f32.mrf.mxu0
      %v1518 = vadd.f32 0.0, %v1517
      %1519 = vmatmul.f32.gmra.mxu0 %v1408
      %v1520 = vpop.f32.mrf.mxu0
      %v1521 = vadd.f32 0.0, %v1520
      %1522 = vmatmul.f32.gmra.mxu0 %v1411
      %v1523 = vpop.f32.mrf.mxu0
      %v1524 = vadd.f32 0.0, %v1523
      %1525 = vmatmul.f32.gmra.mxu0 %v1414
      %v1526 = vpop.f32.mrf.mxu0
      %v1527 = vadd.f32 0.0, %v1526
      %1528 = vmatmul.f32.gmra.mxu0 %v1417
      %v1529 = vpop.f32.mrf.mxu0
      %v1530 = vadd.f32 0.0, %v1529
      %1531 = vmatmul.f32.gmra.mxu0 %v1420
      %v1532 = vpop.f32.mrf.mxu0
      %v1533 = vadd.f32 0.0, %v1532
      %1534 = vmatmul.f32.gmra.mxu0 %v1423
      %v1535 = vpop.f32.mrf.mxu0
      %v1536 = vadd.f32 0.0, %v1535
      %1537 = vmatmul.f32.gmra.mxu0 %v1426
      %v1538 = vpop.f32.mrf.mxu0
      %v1539 = vadd.f32 0.0, %v1538
      %1540 = vmatmul.f32.gmra.mxu0 %v1429
      %v1541 = vpop.f32.mrf.mxu0
      %v1542 = vadd.f32 0.0, %v1541
      %1543 = vdwg.mxu0
      %v1545 = vsel %vm805, %v1045, 0
      %v1548 = vsel %vm805, %v1046, 0
      %v1551 = vsel %vm805, %v1047, 0
      %v1554 = vsel %vm805, %v1048, 0
      %v1557 = vsel %vm805, %v1049, 0
      %v1560 = vsel %vm805, %v1050, 0
      %v1563 = vsel %vm805, %v1051, 0
      %v1566 = vsel %vm805, %v1052, 0
      %v1569 = vsel %vm805, %v1053, 0
      %v1572 = vsel %vm805, %v1054, 0
      %v1575 = vsel %vm805, %v1055, 0
      %v1578 = vsel %vm805, %v1056, 0
      %v1581 = vsel %vm805, %v1057, 0
      %v1584 = vsel %vm805, %v1058, 0
      %v1587 = vsel %vm805, %v1059, 0
      %v1590 = vsel %vm805, %v1060, 0
      %v1593 = vsel %vm805, %v1061, 0
      %v1596 = vsel %vm805, %v1062, 0
      %v1599 = vsel %vm805, %v1063, 0
      %v1602 = vsel %vm805, %v1064, 0
      %v1605 = vsel %vm805, %v1065, 0
      %v1608 = vsel %vm805, %v1066, 0
      %v1611 = vsel %vm805, %v1067, 0
      %v1614 = vsel %vm805, %v1068, 0
      %v1617 = vsel %vm805, %v1069, 0
      %v1620 = vsel %vm805, %v1070, 0
      %v1623 = vsel %vm805, %v1071, 0
      %v1626 = vsel %vm805, %v1072, 0
      %v1629 = vsel %vm805, %v1073, 0
      %v1632 = vsel %vm805, %v1074, 0
      %v1635 = vsel %vm805, %v1075, 0
      %v1638 = vsel %vm805, %v1076, 0
      %1640 = vmatpush.msra.mxu0 0.0
      %1641 = vmatpush.msra.mxu0 0.0
      %1642 = vmatpush.msra.mxu0 0.0
      %1643 = vmatpush.msra.mxu0 0.0
      %1644 = vmatpush.msra.mxu0 0.0
      %1645 = vmatpush.msra.mxu0 0.0
      %1646 = vmatpush.msra.mxu0 0.0
      %1647 = vmatpush.msra.mxu0 0.0
      %1648 = vmatpush.msra.mxu0 0.0
      %1649 = vmatpush.msra.mxu0 0.0
      %1650 = vmatpush.msra.mxu0 0.0
      %1651 = vmatpush.msra.mxu0 0.0
      %1652 = vmatpush.msra.mxu0 %v1043
      %1653 = vmatpush.msra.mxu0 %v1040
      %1654 = vmatpush.msra.mxu0 %v1037
      %1655 = vmatpush.msra.mxu0 %v1034
      %1656 = vmatmul.f32.gmra.mxu0 %v1545
      %v1657 = vpop.f32.mrf.mxu0
      %v1658 = vadd.f32 %v1449, %v1657
      %1659 = vmatmul.f32.gmra.mxu0 %v1548
      %v1660 = vpop.f32.mrf.mxu0
      %v1661 = vadd.f32 %v1452, %v1660
      %1662 = vmatmul.f32.gmra.mxu0 %v1551
      %v1663 = vpop.f32.mrf.mxu0
      %v1664 = vadd.f32 %v1455, %v1663
      %1665 = vmatmul.f32.gmra.mxu0 %v1554
      %v1666 = vpop.f32.mrf.mxu0
      %v1667 = vadd.f32 %v1458, %v1666
      %1668 = vmatmul.f32.gmra.mxu0 %v1557
      %v1669 = vpop.f32.mrf.mxu0
      %v1670 = vadd.f32 %v1461, %v1669
      %1671 = vmatmul.f32.gmra.mxu0 %v1560
      %v1672 = vpop.f32.mrf.mxu0
      %v1673 = vadd.f32 %v1464, %v1672
      %1674 = vmatmul.f32.gmra.mxu0 %v1563
      %v1675 = vpop.f32.mrf.mxu0
      %v1676 = vadd.f32 %v1467, %v1675
      %1677 = vmatmul.f32.gmra.mxu0 %v1566
      %v1678 = vpop.f32.mrf.mxu0
      %v1679 = vadd.f32 %v1470, %v1678
      %1680 = vmatmul.f32.gmra.mxu0 %v1569
      %v1681 = vpop.f32.mrf.mxu0
      %v1682 = vadd.f32 %v1473, %v1681
      %1683 = vmatmul.f32.gmra.mxu0 %v1572
      %v1684 = vpop.f32.mrf.mxu0
      %v1685 = vadd.f32 %v1476, %v1684
      %1686 = vmatmul.f32.gmra.mxu0 %v1575
      %v1687 = vpop.f32.mrf.mxu0
      %v1688 = vadd.f32 %v1479, %v1687
      %1689 = vmatmul.f32.gmra.mxu0 %v1578
      %v1690 = vpop.f32.mrf.mxu0
      %v1691 = vadd.f32 %v1482, %v1690
      %1692 = vmatmul.f32.gmra.mxu0 %v1581
      %v1693 = vpop.f32.mrf.mxu0
      %v1694 = vadd.f32 %v1485, %v1693
      %1695 = vmatmul.f32.gmra.mxu0 %v1584
      %v1696 = vpop.f32.mrf.mxu0
      %v1697 = vadd.f32 %v1488, %v1696
      %1698 = vmatmul.f32.gmra.mxu0 %v1587
      %v1699 = vpop.f32.mrf.mxu0
      %v1700 = vadd.f32 %v1491, %v1699
      %1701 = vmatmul.f32.gmra.mxu0 %v1590
      %v1702 = vpop.f32.mrf.mxu0
      %v1703 = vadd.f32 %v1494, %v1702
      %1704 = vmatmul.f32.gmra.mxu0 %v1593
      %v1705 = vpop.f32.mrf.mxu0
      %v1706 = vadd.f32 %v1497, %v1705
      %1707 = vmatmul.f32.gmra.mxu0 %v1596
      %v1708 = vpop.f32.mrf.mxu0
      %v1709 = vadd.f32 %v1500, %v1708
      %1710 = vmatmul.f32.gmra.mxu0 %v1599
      %v1711 = vpop.f32.mrf.mxu0
      %v1712 = vadd.f32 %v1503, %v1711
      %1713 = vmatmul.f32.gmra.mxu0 %v1602
      %v1714 = vpop.f32.mrf.mxu0
      %v1715 = vadd.f32 %v1506, %v1714
      %1716 = vmatmul.f32.gmra.mxu0 %v1605
      %v1717 = vpop.f32.mrf.mxu0
      %v1718 = vadd.f32 %v1509, %v1717
      %1719 = vmatmul.f32.gmra.mxu0 %v1608
      %v1720 = vpop.f32.mrf.mxu0
      %v1721 = vadd.f32 %v1512, %v1720
      %1722 = vmatmul.f32.gmra.mxu0 %v1611
      %v1723 = vpop.f32.mrf.mxu0
      %v1724 = vadd.f32 %v1515, %v1723
      %1725 = vmatmul.f32.gmra.mxu0 %v1614
      %v1726 = vpop.f32.mrf.mxu0
      %v1727 = vadd.f32 %v1518, %v1726
      %1728 = vmatmul.f32.gmra.mxu0 %v1617
      %v1729 = vpop.f32.mrf.mxu0
      %v1730 = vadd.f32 %v1521, %v1729
      %1731 = vmatmul.f32.gmra.mxu0 %v1620
      %v1732 = vpop.f32.mrf.mxu0
      %v1733 = vadd.f32 %v1524, %v1732
      %1734 = vmatmul.f32.gmra.mxu0 %v1623
      %v1735 = vpop.f32.mrf.mxu0
      %v1736 = vadd.f32 %v1527, %v1735
      %1737 = vmatmul.f32.gmra.mxu0 %v1626
      %v1738 = vpop.f32.mrf.mxu0
      %v1739 = vadd.f32 %v1530, %v1738
      %1740 = vmatmul.f32.gmra.mxu0 %v1629
      %v1741 = vpop.f32.mrf.mxu0
      %v1742 = vadd.f32 %v1533, %v1741
      %1743 = vmatmul.f32.gmra.mxu0 %v1632
      %v1744 = vpop.f32.mrf.mxu0
      %v1745 = vadd.f32 %v1536, %v1744
      %1746 = vmatmul.f32.gmra.mxu0 %v1635
      %v1747 = vpop.f32.mrf.mxu0
      %v1748 = vadd.f32 %v1539, %v1747
      %1749 = vmatmul.f32.gmra.mxu0 %v1638
      %v1750 = vpop.f32.mrf.mxu0
      %v1751 = vadd.f32 %v1542, %v1750
      %1752 = vdwg.mxu0
      %s1753 = scalar_lea.vmem %s4, 64
      %v1754 = vld [vmem:[%s1753] sm:$0xff]
      %v1755 = vld [vmem:[%s1753 + $0x8] sm:$0xff]
      %v1756 = vld [vmem:[%s1753 + $0x10] sm:$0xff]
      %v1757 = vld [vmem:[%s1753 + $0x18] sm:$0xff]
      %s1758 = scalar_lea.vmem %s5, 2
      %v1759 = vld [vmem:[%s1758] sm:$0x1]
      %v1761 = vperm.slane %v1759, 0
      %1763 = vmatpush.msra.mxu0 0.0
      %1764 = vmatpush.msra.mxu0 0.0
      %1765 = vmatpush.msra.mxu0 0.0
      %1766 = vmatpush.msra.mxu0 0.0
      %1767 = vmatpush.msra.mxu0 0.0
      %1768 = vmatpush.msra.mxu0 0.0
      %1769 = vmatpush.msra.mxu0 0.0
      %1770 = vmatpush.msra.mxu0 0.0
      %1771 = vmatpush.msra.mxu0 0.0
      %1772 = vmatpush.msra.mxu0 0.0
      %1773 = vmatpush.msra.mxu0 0.0
      %1774 = vmatpush.msra.mxu0 0.0
      %1775 = vmatpush.msra.mxu0 %v1757
      %1776 = vmatpush.msra.mxu0 %v1756
      %1777 = vmatpush.msra.mxu0 %v1755
      %1778 = vmatpush.msra.mxu0 %v1754
      %1779 = vmatmul.f32.gmra.mxu0 %v807
      %v1780 = vpop.f32.mrf.mxu0
      %v1781 = vadd.f32 %v1761, %v1780
      %1782 = vmatmul.f32.gmra.mxu0 %v810
      %v1783 = vpop.f32.mrf.mxu0
      %v1784 = vadd.f32 %v1761, %v1783
      %1785 = vdwg.mxu0
      %s1786 = scalar_lea.vmem %s6, 128
      %v1787 = vld [vmem:[%s1786] sm:$0xff]
      %v1788 = vld [vmem:[%s1786 + $0x8] sm:$0xff]
      %v1789 = vld [vmem:[%s1786 + $0x10] sm:$0xff]
      %v1790 = vld [vmem:[%s1786 + $0x18] sm:$0xff]
      %v1791 = vld [vmem:[%s1786 + $0x20] sm:$0xff]
      %v1792 = vld [vmem:[%s1786 + $0x28] sm:$0xff]
      %v1793 = vld [vmem:[%s1786 + $0x30] sm:$0xff]
      %v1794 = vld [vmem:[%s1786 + $0x38] sm:$0xff]
      %s1795 = scalar_lea.vmem %s7, 128
      %v1796 = vld [vmem:[%s1795] sm:$0xff]
      %v1797 = vld [vmem:[%s1795 + $0x8] sm:$0xff]
      %v1798 = vld [vmem:[%s1795 + $0x10] sm:$0xff]
      %v1799 = vld [vmem:[%s1795 + $0x18] sm:$0xff]
      %v1800 = vld [vmem:[%s1795 + $0x20] sm:$0xff]
      %v1801 = vld [vmem:[%s1795 + $0x28] sm:$0xff]
      %v1802 = vld [vmem:[%s1795 + $0x30] sm:$0xff]
      %v1803 = vld [vmem:[%s1795 + $0x38] sm:$0xff]
      %1805 = vset.pattern.permute.xlu0 0
      %1806 = vperm.xlu0 %1805, %v1796
      %v1807 = vpop.permute.xlu0 %1806
      %1810 = vset.pattern.permute.xlu0 0
      %1811 = vperm.xlu0 %1810, %v1797
      %v1812 = vpop.permute.xlu0 %1811
      %1815 = vset.pattern.permute.xlu0 0
      %1816 = vperm.xlu0 %1815, %v1798
      %v1817 = vpop.permute.xlu0 %1816
      %1820 = vset.pattern.permute.xlu0 0
      %1821 = vperm.xlu0 %1820, %v1799
      %v1822 = vpop.permute.xlu0 %1821
      %1825 = vset.pattern.permute.xlu0 0
      %1826 = vperm.xlu0 %1825, %v1800
      %v1827 = vpop.permute.xlu0 %1826
      %1830 = vset.pattern.permute.xlu0 0
      %1831 = vperm.xlu0 %1830, %v1801
      %v1832 = vpop.permute.xlu0 %1831
      %1835 = vset.pattern.permute.xlu0 0
      %1836 = vperm.xlu0 %1835, %v1802
      %v1837 = vpop.permute.xlu0 %1836
      %1840 = vset.pattern.permute.xlu0 0
      %1841 = vperm.xlu0 %1840, %v1803
      %v1842 = vpop.permute.xlu0 %1841
      %v1845 = vsel %vm805, %v1787, 0
      %v1848 = vsel %vm805, %v1788, 0
      %v1851 = vsel %vm805, %v1789, 0
      %v1854 = vsel %vm805, %v1790, 0
      %v1857 = vsel %vm805, %v1791, 0
      %v1860 = vsel %vm805, %v1792, 0
      %v1863 = vsel %vm805, %v1793, 0
      %v1866 = vsel %vm805, %v1794, 0
      %1868 = vmatpush.msra.mxu0 0.0
      %1869 = vmatpush.msra.mxu0 0.0
      %1870 = vmatpush.msra.mxu0 0.0
      %1871 = vmatpush.msra.mxu0 0.0
      %1872 = vmatpush.msra.mxu0 0.0
      %1873 = vmatpush.msra.mxu0 0.0
      %1874 = vmatpush.msra.mxu0 0.0
      %1875 = vmatpush.msra.mxu0 0.0
      %1876 = vmatpush.msra.mxu0 0.0
      %1877 = vmatpush.msra.mxu0 0.0
      %1878 = vmatpush.msra.mxu0 0.0
      %1879 = vmatpush.msra.mxu0 0.0
      %1880 = vmatpush.msra.mxu0 %v794
      %1881 = vmatpush.msra.mxu0 %v793
      %1882 = vmatpush.msra.mxu0 %v792
      %1883 = vmatpush.msra.mxu0 %v791
      %1884 = vmatmul.f32.gmra.mxu0 %v1845
      %v1885 = vpop.f32.mrf.mxu0
      %v1886 = vadd.f32 %v1807, %v1885
      %1887 = vmatmul.f32.gmra.mxu0 %v1848
      %v1888 = vpop.f32.mrf.mxu0
      %v1889 = vadd.f32 %v1812, %v1888
      %1890 = vmatmul.f32.gmra.mxu0 %v1851
      %v1891 = vpop.f32.mrf.mxu0
      %v1892 = vadd.f32 %v1817, %v1891
      %1893 = vmatmul.f32.gmra.mxu0 %v1854
      %v1894 = vpop.f32.mrf.mxu0
      %v1895 = vadd.f32 %v1822, %v1894
      %1896 = vmatmul.f32.gmra.mxu0 %v1857
      %v1897 = vpop.f32.mrf.mxu0
      %v1898 = vadd.f32 %v1827, %v1897
      %1899 = vmatmul.f32.gmra.mxu0 %v1860
      %v1900 = vpop.f32.mrf.mxu0
      %v1901 = vadd.f32 %v1832, %v1900
      %1902 = vmatmul.f32.gmra.mxu0 %v1863
      %v1903 = vpop.f32.mrf.mxu0
      %v1904 = vadd.f32 %v1837, %v1903
      %1905 = vmatmul.f32.gmra.mxu0 %v1866
      %v1906 = vpop.f32.mrf.mxu0
      %v1907 = vadd.f32 %v1842, %v1906
      %1908 = vdwg.mxu0
      %v1910 = vsel %vm956, %v1781, 0
      %v1913 = vsel %vm956, %v1784, 0
      %1915 = vmatpush.msra.mxu0 0.0
      %1916 = vmatpush.msra.mxu0 0.0
      %1917 = vmatpush.msra.mxu0 0.0
      %1918 = vmatpush.msra.mxu0 0.0
      %1919 = vmatpush.msra.mxu0 0.0
      %1920 = vmatpush.msra.mxu0 0.0
      %1921 = vmatpush.msra.mxu0 0.0
      %1922 = vmatpush.msra.mxu0 0.0
      %1923 = vmatpush.msra.mxu0 %v1907
      %1924 = vmatpush.msra.mxu0 %v1904
      %1925 = vmatpush.msra.mxu0 %v1901
      %1926 = vmatpush.msra.mxu0 %v1898
      %1927 = vmatpush.msra.mxu0 %v1895
      %1928 = vmatpush.msra.mxu0 %v1892
      %1929 = vmatpush.msra.mxu0 %v1889
      %1930 = vmatpush.msra.mxu0 %v1886
      %1931 = vmatmul.f32.gmra.mxu0 %v1910
      %v1932 = vpop.f32.mrf.mxu0
      %v1933 = vadd.f32 0.0, %v1932
      %1934 = vmatmul.f32.gmra.mxu0 %v1913
      %v1935 = vpop.f32.mrf.mxu0
      %v1936 = vadd.f32 0.0, %v1935
      %1937 = vdwg.mxu0
      %v1938 = vmul.f32 %v1933, 0.015625
      %v1939 = vmul.f32 %v1936, 0.015625
      %v1940 = vtanh.pop %v1938
      %v1941 = vtanh.pop %v1939
      %s1942 = scalar_lea.vmem %s2, 32
      %v1943 = vld [vmem:[%s1942] sm:$0xff]
      %v1944 = vld [vmem:[%s1942 + $0x8] sm:$0xff]
      %v1945 = vmul.f32 %v997, %v1940
      %v1946 = vmul.f32 %v997, %v1941
      %v1947 = vadd.f32 %v1943, %v1945
      %v1948 = vadd.f32 %v1944, %v1946
      %1949 = vmatpush.msra.mxu0 0.0
      %1950 = vmatpush.msra.mxu0 0.0
      %1951 = vmatpush.msra.mxu0 0.0
      %1952 = vmatpush.msra.mxu0 0.0
      %1953 = vmatpush.msra.mxu0 0.0
      %1954 = vmatpush.msra.mxu0 0.0
      %1955 = vmatpush.msra.mxu0 0.0
      %1956 = vmatpush.msra.mxu0 0.0
      %1957 = vmatpush.msra.mxu0 0.0
      %1958 = vmatpush.msra.mxu0 0.0
      %1959 = vmatpush.msra.mxu0 0.0
      %1960 = vmatpush.msra.mxu0 0.0
      %1961 = vmatpush.msra.mxu0 0.0
      %1962 = vmatpush.msra.mxu0 0.0
      %1963 = vmatpush.msra.mxu0 %v1948
      %1964 = vmatpush.msra.mxu0 %v1947
      %1965 = vmatmul.f32.gmra.mxu0 %v1005
      %v1966 = vpop.f32.mrf.mxu0
      %v1967 = vadd.f32 0.0, %v1966
      %1968 = vmatmul.f32.gmra.mxu0 %v1008
      %v1969 = vpop.f32.mrf.mxu0
      %v1970 = vadd.f32 0.0, %v1969
      %1971 = vmatmul.f32.gmra.mxu0 %v1011
      %v1972 = vpop.f32.mrf.mxu0
      %v1973 = vadd.f32 0.0, %v1972
      %1974 = vmatmul.f32.gmra.mxu0 %v1014
      %v1975 = vpop.f32.mrf.mxu0
      %v1976 = vadd.f32 0.0, %v1975
      %1977 = vdwg.mxu0
      %s1978 = scalar_lea.vmem %s8, 512
      %v1979 = vld [vmem:[%s1978] sm:$0xff]
      %v1980 = vld [vmem:[%s1978 + $0x8] sm:$0xff]
      %v1981 = vld [vmem:[%s1978 + $0x10] sm:$0xff]
      %v1982 = vld [vmem:[%s1978 + $0x18] sm:$0xff]
      %v1983 = vld [vmem:[%s1978 + $0x20] sm:$0xff]
      %v1984 = vld [vmem:[%s1978 + $0x28] sm:$0xff]
      %v1985 = vld [vmem:[%s1978 + $0x30] sm:$0xff]
      %v1986 = vld [vmem:[%s1978 + $0x38] sm:$0xff]
      %v1987 = vld [vmem:[%s1978 + $0x40] sm:$0xff]
      %v1988 = vld [vmem:[%s1978 + $0x48] sm:$0xff]
      %v1989 = vld [vmem:[%s1978 + $0x50] sm:$0xff]
      %v1990 = vld [vmem:[%s1978 + $0x58] sm:$0xff]
      %v1991 = vld [vmem:[%s1978 + $0x60] sm:$0xff]
      %v1992 = vld [vmem:[%s1978 + $0x68] sm:$0xff]
      %v1993 = vld [vmem:[%s1978 + $0x70] sm:$0xff]
      %v1994 = vld [vmem:[%s1978 + $0x78] sm:$0xff]
      %v1995 = vld [vmem:[%s1978 + $0x80] sm:$0xff]
      %v1996 = vld [vmem:[%s1978 + $0x88] sm:$0xff]
      %v1997 = vld [vmem:[%s1978 + $0x90] sm:$0xff]
      %v1998 = vld [vmem:[%s1978 + $0x98] sm:$0xff]
      %v1999 = vld [vmem:[%s1978 + $0xa0] sm:$0xff]
      %v2000 = vld [vmem:[%s1978 + $0xa8] sm:$0xff]
      %v2001 = vld [vmem:[%s1978 + $0xb0] sm:$0xff]
      %v2002 = vld [vmem:[%s1978 + $0xb8] sm:$0xff]
      %v2003 = vld [vmem:[%s1978 + $0xc0] sm:$0xff]
      %v2004 = vld [vmem:[%s1978 + $0xc8] sm:$0xff]
      %v2005 = vld [vmem:[%s1978 + $0xd0] sm:$0xff]
      %v2006 = vld [vmem:[%s1978 + $0xd8] sm:$0xff]
      %v2007 = vld [vmem:[%s1978 + $0xe0] sm:$0xff]
      %v2008 = vld [vmem:[%s1978 + $0xe8] sm:$0xff]
      %v2009 = vld [vmem:[%s1978 + $0xf0] sm:$0xff]
      %v2010 = vld [vmem:[%s1978 + $0xf8] sm:$0xff]
      %v2012 = vsel %vm805, %v1979, 0
      %v2015 = vsel %vm805, %v1980, 0
      %v2018 = vsel %vm805, %v1981, 0
      %v2021 = vsel %vm805, %v1982, 0
      %v2024 = vsel %vm805, %v1983, 0
      %v2027 = vsel %vm805, %v1984, 0
      %v2030 = vsel %vm805, %v1985, 0
      %v2033 = vsel %vm805, %v1986, 0
      %v2036 = vsel %vm805, %v1987, 0
      %v2039 = vsel %vm805, %v1988, 0
      %v2042 = vsel %vm805, %v1989, 0
      %v2045 = vsel %vm805, %v1990, 0
      %v2048 = vsel %vm805, %v1991, 0
      %v2051 = vsel %vm805, %v1992, 0
      %v2054 = vsel %vm805, %v1993, 0
      %v2057 = vsel %vm805, %v1994, 0
      %v2060 = vsel %vm805, %v1995, 0
      %v2063 = vsel %vm805, %v1996, 0
      %v2066 = vsel %vm805, %v1997, 0
      %v2069 = vsel %vm805, %v1998, 0
      %v2072 = vsel %vm805, %v1999, 0
      %v2075 = vsel %vm805, %v2000, 0
      %v2078 = vsel %vm805, %v2001, 0
      %v2081 = vsel %vm805, %v2002, 0
      %v2084 = vsel %vm805, %v2003, 0
      %v2087 = vsel %vm805, %v2004, 0
      %v2090 = vsel %vm805, %v2005, 0
      %v2093 = vsel %vm805, %v2006, 0
      %v2096 = vsel %vm805, %v2007, 0
      %v2099 = vsel %vm805, %v2008, 0
      %v2102 = vsel %vm805, %v2009, 0
      %v2105 = vsel %vm805, %v2010, 0
      %2107 = vmatpush.msra.mxu0 0.0
      %2108 = vmatpush.msra.mxu0 0.0
      %2109 = vmatpush.msra.mxu0 0.0
      %2110 = vmatpush.msra.mxu0 0.0
      %2111 = vmatpush.msra.mxu0 0.0
      %2112 = vmatpush.msra.mxu0 0.0
      %2113 = vmatpush.msra.mxu0 0.0
      %2114 = vmatpush.msra.mxu0 0.0
      %2115 = vmatpush.msra.mxu0 0.0
      %2116 = vmatpush.msra.mxu0 0.0
      %2117 = vmatpush.msra.mxu0 0.0
      %2118 = vmatpush.msra.mxu0 0.0
      %2119 = vmatpush.msra.mxu0 %v1976
      %2120 = vmatpush.msra.mxu0 %v1973
      %2121 = vmatpush.msra.mxu0 %v1970
      %2122 = vmatpush.msra.mxu0 %v1967
      %2123 = vmatmul.f32.gmra.mxu0 %v2012
      %v2124 = vpop.f32.mrf.mxu0
      %v2125 = vadd.f32 0.0, %v2124
      %2126 = vmatmul.f32.gmra.mxu0 %v2015
      %v2127 = vpop.f32.mrf.mxu0
      %v2128 = vadd.f32 0.0, %v2127
      %2129 = vmatmul.f32.gmra.mxu0 %v2018
      %v2130 = vpop.f32.mrf.mxu0
      %v2131 = vadd.f32 0.0, %v2130
      %2132 = vmatmul.f32.gmra.mxu0 %v2021
      %v2133 = vpop.f32.mrf.mxu0
      %v2134 = vadd.f32 0.0, %v2133
      %2135 = vmatmul.f32.gmra.mxu0 %v2024
      %v2136 = vpop.f32.mrf.mxu0
      %v2137 = vadd.f32 0.0, %v2136
      %2138 = vmatmul.f32.gmra.mxu0 %v2027
      %v2139 = vpop.f32.mrf.mxu0
      %v2140 = vadd.f32 0.0, %v2139
      %2141 = vmatmul.f32.gmra.mxu0 %v2030
      %v2142 = vpop.f32.mrf.mxu0
      %v2143 = vadd.f32 0.0, %v2142
      %2144 = vmatmul.f32.gmra.mxu0 %v2033
      %v2145 = vpop.f32.mrf.mxu0
      %v2146 = vadd.f32 0.0, %v2145
      %2147 = vmatmul.f32.gmra.mxu0 %v2036
      %v2148 = vpop.f32.mrf.mxu0
      %v2149 = vadd.f32 0.0, %v2148
      %2150 = vmatmul.f32.gmra.mxu0 %v2039
      %v2151 = vpop.f32.mrf.mxu0
      %v2152 = vadd.f32 0.0, %v2151
      %2153 = vmatmul.f32.gmra.mxu0 %v2042
      %v2154 = vpop.f32.mrf.mxu0
      %v2155 = vadd.f32 0.0, %v2154
      %2156 = vmatmul.f32.gmra.mxu0 %v2045
      %v2157 = vpop.f32.mrf.mxu0
      %v2158 = vadd.f32 0.0, %v2157
      %2159 = vmatmul.f32.gmra.mxu0 %v2048
      %v2160 = vpop.f32.mrf.mxu0
      %v2161 = vadd.f32 0.0, %v2160
      %2162 = vmatmul.f32.gmra.mxu0 %v2051
      %v2163 = vpop.f32.mrf.mxu0
      %v2164 = vadd.f32 0.0, %v2163
      %2165 = vmatmul.f32.gmra.mxu0 %v2054
      %v2166 = vpop.f32.mrf.mxu0
      %v2167 = vadd.f32 0.0, %v2166
      %2168 = vmatmul.f32.gmra.mxu0 %v2057
      %v2169 = vpop.f32.mrf.mxu0
      %v2170 = vadd.f32 0.0, %v2169
      %2171 = vmatmul.f32.gmra.mxu0 %v2060
      %v2172 = vpop.f32.mrf.mxu0
      %v2173 = vadd.f32 0.0, %v2172
      %2174 = vmatmul.f32.gmra.mxu0 %v2063
      %v2175 = vpop.f32.mrf.mxu0
      %v2176 = vadd.f32 0.0, %v2175
      %2177 = vmatmul.f32.gmra.mxu0 %v2066
      %v2178 = vpop.f32.mrf.mxu0
      %v2179 = vadd.f32 0.0, %v2178
      %2180 = vmatmul.f32.gmra.mxu0 %v2069
      %v2181 = vpop.f32.mrf.mxu0
      %v2182 = vadd.f32 0.0, %v2181
      %2183 = vmatmul.f32.gmra.mxu0 %v2072
      %v2184 = vpop.f32.mrf.mxu0
      %v2185 = vadd.f32 0.0, %v2184
      %2186 = vmatmul.f32.gmra.mxu0 %v2075
      %v2187 = vpop.f32.mrf.mxu0
      %v2188 = vadd.f32 0.0, %v2187
      %2189 = vmatmul.f32.gmra.mxu0 %v2078
      %v2190 = vpop.f32.mrf.mxu0
      %v2191 = vadd.f32 0.0, %v2190
      %2192 = vmatmul.f32.gmra.mxu0 %v2081
      %v2193 = vpop.f32.mrf.mxu0
      %v2194 = vadd.f32 0.0, %v2193
      %2195 = vmatmul.f32.gmra.mxu0 %v2084
      %v2196 = vpop.f32.mrf.mxu0
      %v2197 = vadd.f32 0.0, %v2196
      %2198 = vmatmul.f32.gmra.mxu0 %v2087
      %v2199 = vpop.f32.mrf.mxu0
      %v2200 = vadd.f32 0.0, %v2199
      %2201 = vmatmul.f32.gmra.mxu0 %v2090
      %v2202 = vpop.f32.mrf.mxu0
      %v2203 = vadd.f32 0.0, %v2202
      %2204 = vmatmul.f32.gmra.mxu0 %v2093
      %v2205 = vpop.f32.mrf.mxu0
      %v2206 = vadd.f32 0.0, %v2205
      %2207 = vmatmul.f32.gmra.mxu0 %v2096
      %v2208 = vpop.f32.mrf.mxu0
      %v2209 = vadd.f32 0.0, %v2208
      %2210 = vmatmul.f32.gmra.mxu0 %v2099
      %v2211 = vpop.f32.mrf.mxu0
      %v2212 = vadd.f32 0.0, %v2211
      %2213 = vmatmul.f32.gmra.mxu0 %v2102
      %v2214 = vpop.f32.mrf.mxu0
      %v2215 = vadd.f32 0.0, %v2214
      %2216 = vmatmul.f32.gmra.mxu0 %v2105
      %v2217 = vpop.f32.mrf.mxu0
      %v2218 = vadd.f32 0.0, %v2217
      %2219 = vdwg.mxu0
      %v2220 = vadd.f32 %v1658, %v2125
      %v2221 = vadd.f32 %v1661, %v2128
      %v2222 = vadd.f32 %v1664, %v2131
      %v2223 = vadd.f32 %v1667, %v2134
      %v2224 = vadd.f32 %v1670, %v2137
      %v2225 = vadd.f32 %v1673, %v2140
      %v2226 = vadd.f32 %v1676, %v2143
      %v2227 = vadd.f32 %v1679, %v2146
      %v2228 = vadd.f32 %v1682, %v2149
      %v2229 = vadd.f32 %v1685, %v2152
      %v2230 = vadd.f32 %v1688, %v2155
      %v2231 = vadd.f32 %v1691, %v2158
      %v2232 = vadd.f32 %v1694, %v2161
      %v2233 = vadd.f32 %v1697, %v2164
      %v2234 = vadd.f32 %v1700, %v2167
      %v2235 = vadd.f32 %v1703, %v2170
      %v2236 = vadd.f32 %v1706, %v2173
      %v2237 = vadd.f32 %v1709, %v2176
      %v2238 = vadd.f32 %v1712, %v2179
      %v2239 = vadd.f32 %v1715, %v2182
      %v2240 = vadd.f32 %v1718, %v2185
      %v2241 = vadd.f32 %v1721, %v2188
      %v2242 = vadd.f32 %v1724, %v2191
      %v2243 = vadd.f32 %v1727, %v2194
      %v2244 = vadd.f32 %v1730, %v2197
      %v2245 = vadd.f32 %v1733, %v2200
      %v2246 = vadd.f32 %v1736, %v2203
      %v2247 = vadd.f32 %v1739, %v2206
      %v2248 = vadd.f32 %v1742, %v2209
      %v2249 = vadd.f32 %v1745, %v2212
      %v2250 = vadd.f32 %v1748, %v2215
      %v2251 = vadd.f32 %v1751, %v2218
      %v2252 = vld [vmem:[%s9] sm:$0xff]
      %v2253 = vld [vmem:[%s9 + $0x8] sm:$0xff]
      %v2254 = vld [vmem:[%s9 + $0x10] sm:$0xff]
      %v2255 = vld [vmem:[%s9 + $0x18] sm:$0xff]
      %v2256 = vld [vmem:[%s9 + $0x20] sm:$0xff]
      %v2257 = vld [vmem:[%s9 + $0x28] sm:$0xff]
      %v2258 = vld [vmem:[%s9 + $0x30] sm:$0xff]
      %v2259 = vld [vmem:[%s9 + $0x38] sm:$0xff]
      %v2260 = vld [vmem:[%s9 + $0x40] sm:$0xff]
      %v2261 = vld [vmem:[%s9 + $0x48] sm:$0xff]
      %v2262 = vld [vmem:[%s9 + $0x50] sm:$0xff]
      %v2263 = vld [vmem:[%s9 + $0x58] sm:$0xff]
      %v2264 = vld [vmem:[%s9 + $0x60] sm:$0xff]
      %v2265 = vld [vmem:[%s9 + $0x68] sm:$0xff]
      %v2266 = vld [vmem:[%s9 + $0x70] sm:$0xff]
      %v2267 = vld [vmem:[%s9 + $0x78] sm:$0xff]
      %v2268 = vld [vmem:[%s9 + $0x80] sm:$0xff]
      %v2269 = vld [vmem:[%s9 + $0x88] sm:$0xff]
      %v2270 = vld [vmem:[%s9 + $0x90] sm:$0xff]
      %v2271 = vld [vmem:[%s9 + $0x98] sm:$0xff]
      %v2272 = vld [vmem:[%s9 + $0xa0] sm:$0xff]
      %v2273 = vld [vmem:[%s9 + $0xa8] sm:$0xff]
      %v2274 = vld [vmem:[%s9 + $0xb0] sm:$0xff]
      %v2275 = vld [vmem:[%s9 + $0xb8] sm:$0xff]
      %v2276 = vld [vmem:[%s9 + $0xc0] sm:$0xff]
      %v2277 = vld [vmem:[%s9 + $0xc8] sm:$0xff]
      %v2278 = vld [vmem:[%s9 + $0xd0] sm:$0xff]
      %v2279 = vld [vmem:[%s9 + $0xd8] sm:$0xff]
      %v2280 = vld [vmem:[%s9 + $0xe0] sm:$0xff]
      %v2281 = vld [vmem:[%s9 + $0xe8] sm:$0xff]
      %v2282 = vld [vmem:[%s9 + $0xf0] sm:$0xff]
      %v2283 = vld [vmem:[%s9 + $0xf8] sm:$0xff]
      %2285 = vset.pattern.permute.xlu0 0
      %2286 = vperm.xlu0 %2285, %v2252
      %v2287 = vpop.permute.xlu0 %2286
      %2290 = vset.pattern.permute.xlu0 0
      %2291 = vperm.xlu0 %2290, %v2253
      %v2292 = vpop.permute.xlu0 %2291
      %2295 = vset.pattern.permute.xlu0 0
      %2296 = vperm.xlu0 %2295, %v2254
      %v2297 = vpop.permute.xlu0 %2296
      %2300 = vset.pattern.permute.xlu0 0
      %2301 = vperm.xlu0 %2300, %v2255
      %v2302 = vpop.permute.xlu0 %2301
      %2305 = vset.pattern.permute.xlu0 0
      %2306 = vperm.xlu0 %2305, %v2256
      %v2307 = vpop.permute.xlu0 %2306
      %2310 = vset.pattern.permute.xlu0 0
      %2311 = vperm.xlu0 %2310, %v2257
      %v2312 = vpop.permute.xlu0 %2311
      %2315 = vset.pattern.permute.xlu0 0
      %2316 = vperm.xlu0 %2315, %v2258
      %v2317 = vpop.permute.xlu0 %2316
      %2320 = vset.pattern.permute.xlu0 0
      %2321 = vperm.xlu0 %2320, %v2259
      %v2322 = vpop.permute.xlu0 %2321
      %2325 = vset.pattern.permute.xlu0 0
      %2326 = vperm.xlu0 %2325, %v2260
      %v2327 = vpop.permute.xlu0 %2326
      %2330 = vset.pattern.permute.xlu0 0
      %2331 = vperm.xlu0 %2330, %v2261
      %v2332 = vpop.permute.xlu0 %2331
      %2335 = vset.pattern.permute.xlu0 0
      %2336 = vperm.xlu0 %2335, %v2262
      %v2337 = vpop.permute.xlu0 %2336
      %2340 = vset.pattern.permute.xlu0 0
      %2341 = vperm.xlu0 %2340, %v2263
      %v2342 = vpop.permute.xlu0 %2341
      %2345 = vset.pattern.permute.xlu0 0
      %2346 = vperm.xlu0 %2345, %v2264
      %v2347 = vpop.permute.xlu0 %2346
      %2350 = vset.pattern.permute.xlu0 0
      %2351 = vperm.xlu0 %2350, %v2265
      %v2352 = vpop.permute.xlu0 %2351
      %2355 = vset.pattern.permute.xlu0 0
      %2356 = vperm.xlu0 %2355, %v2266
      %v2357 = vpop.permute.xlu0 %2356
      %2360 = vset.pattern.permute.xlu0 0
      %2361 = vperm.xlu0 %2360, %v2267
      %v2362 = vpop.permute.xlu0 %2361
      %2365 = vset.pattern.permute.xlu0 0
      %2366 = vperm.xlu0 %2365, %v2268
      %v2367 = vpop.permute.xlu0 %2366
      %2370 = vset.pattern.permute.xlu0 0
      %2371 = vperm.xlu0 %2370, %v2269
      %v2372 = vpop.permute.xlu0 %2371
      %2375 = vset.pattern.permute.xlu0 0
      %2376 = vperm.xlu0 %2375, %v2270
      %v2377 = vpop.permute.xlu0 %2376
      %2380 = vset.pattern.permute.xlu0 0
      %2381 = vperm.xlu0 %2380, %v2271
      %v2382 = vpop.permute.xlu0 %2381
      %2385 = vset.pattern.permute.xlu0 0
      %2386 = vperm.xlu0 %2385, %v2272
      %v2387 = vpop.permute.xlu0 %2386
      %2390 = vset.pattern.permute.xlu0 0
      %2391 = vperm.xlu0 %2390, %v2273
      %v2392 = vpop.permute.xlu0 %2391
      %2395 = vset.pattern.permute.xlu0 0
      %2396 = vperm.xlu0 %2395, %v2274
      %v2397 = vpop.permute.xlu0 %2396
      %2400 = vset.pattern.permute.xlu0 0
      %2401 = vperm.xlu0 %2400, %v2275
      %v2402 = vpop.permute.xlu0 %2401
      %2405 = vset.pattern.permute.xlu0 0
      %2406 = vperm.xlu0 %2405, %v2276
      %v2407 = vpop.permute.xlu0 %2406
      %2410 = vset.pattern.permute.xlu0 0
      %2411 = vperm.xlu0 %2410, %v2277
      %v2412 = vpop.permute.xlu0 %2411
      %2415 = vset.pattern.permute.xlu0 0
      %2416 = vperm.xlu0 %2415, %v2278
      %v2417 = vpop.permute.xlu0 %2416
      %2420 = vset.pattern.permute.xlu0 0
      %2421 = vperm.xlu0 %2420, %v2279
      %v2422 = vpop.permute.xlu0 %2421
      %2425 = vset.pattern.permute.xlu0 0
      %2426 = vperm.xlu0 %2425, %v2280
      %v2427 = vpop.permute.xlu0 %2426
      %2430 = vset.pattern.permute.xlu0 0
      %2431 = vperm.xlu0 %2430, %v2281
      %v2432 = vpop.permute.xlu0 %2431
      %2435 = vset.pattern.permute.xlu0 0
      %2436 = vperm.xlu0 %2435, %v2282
      %v2437 = vpop.permute.xlu0 %2436
      %2440 = vset.pattern.permute.xlu0 0
      %2441 = vperm.xlu0 %2440, %v2283
      %v2442 = vpop.permute.xlu0 %2441
      %v2444 = vadd.f32 %v2220, %v2287
      %v2445 = vadd.f32 %v2221, %v2292
      %v2446 = vadd.f32 %v2222, %v2297
      %v2447 = vadd.f32 %v2223, %v2302
      %v2448 = vadd.f32 %v2224, %v2307
      %v2449 = vadd.f32 %v2225, %v2312
      %v2450 = vadd.f32 %v2226, %v2317
      %v2451 = vadd.f32 %v2227, %v2322
      %v2452 = vadd.f32 %v2228, %v2327
      %v2453 = vadd.f32 %v2229, %v2332
      %v2454 = vadd.f32 %v2230, %v2337
      %v2455 = vadd.f32 %v2231, %v2342
      %v2456 = vadd.f32 %v2232, %v2347
      %v2457 = vadd.f32 %v2233, %v2352
      %v2458 = vadd.f32 %v2234, %v2357
      %v2459 = vadd.f32 %v2235, %v2362
      %v2460 = vadd.f32 %v2236, %v2367
      %v2461 = vadd.f32 %v2237, %v2372
      %v2462 = vadd.f32 %v2238, %v2377
      %v2463 = vadd.f32 %v2239, %v2382
      %v2464 = vadd.f32 %v2240, %v2387
      %v2465 = vadd.f32 %v2241, %v2392
      %v2466 = vadd.f32 %v2242, %v2397
      %v2467 = vadd.f32 %v2243, %v2402
      %v2468 = vadd.f32 %v2244, %v2407
      %v2469 = vadd.f32 %v2245, %v2412
      %v2470 = vadd.f32 %v2246, %v2417
      %v2471 = vadd.f32 %v2247, %v2422
      %v2472 = vadd.f32 %v2248, %v2427
      %v2473 = vadd.f32 %v2249, %v2432
      %v2474 = vadd.f32 %v2250, %v2437
      %v2475 = vadd.f32 %v2251, %v2442
      %v2476 = vld [vmem:[%s10] sm:$0xff]
      %v2477 = vld [vmem:[%s10 + $0x8] sm:$0xff]
      %v2478 = vld [vmem:[%s10 + $0x10] sm:$0xff]
      %v2479 = vld [vmem:[%s10 + $0x18] sm:$0xff]
      %v2480 = vld [vmem:[%s10 + $0x20] sm:$0xff]
      %v2481 = vld [vmem:[%s10 + $0x28] sm:$0xff]
      %v2482 = vld [vmem:[%s10 + $0x30] sm:$0xff]
      %v2483 = vld [vmem:[%s10 + $0x38] sm:$0xff]
      %v2484 = vld [vmem:[%s10 + $0x40] sm:$0xff]
      %v2485 = vld [vmem:[%s10 + $0x48] sm:$0xff]
      %v2486 = vld [vmem:[%s10 + $0x50] sm:$0xff]
      %v2487 = vld [vmem:[%s10 + $0x58] sm:$0xff]
      %v2488 = vld [vmem:[%s10 + $0x60] sm:$0xff]
      %v2489 = vld [vmem:[%s10 + $0x68] sm:$0xff]
      %v2490 = vld [vmem:[%s10 + $0x70] sm:$0xff]
      %v2491 = vld [vmem:[%s10 + $0x78] sm:$0xff]
      %v2492 = vld [vmem:[%s10 + $0x80] sm:$0xff]
      %v2493 = vld [vmem:[%s10 + $0x88] sm:$0xff]
      %v2494 = vld [vmem:[%s10 + $0x90] sm:$0xff]
      %v2495 = vld [vmem:[%s10 + $0x98] sm:$0xff]
      %v2496 = vld [vmem:[%s10 + $0xa0] sm:$0xff]
      %v2497 = vld [vmem:[%s10 + $0xa8] sm:$0xff]
      %v2498 = vld [vmem:[%s10 + $0xb0] sm:$0xff]
      %v2499 = vld [vmem:[%s10 + $0xb8] sm:$0xff]
      %v2500 = vld [vmem:[%s10 + $0xc0] sm:$0xff]
      %v2501 = vld [vmem:[%s10 + $0xc8] sm:$0xff]
      %v2502 = vld [vmem:[%s10 + $0xd0] sm:$0xff]
      %v2503 = vld [vmem:[%s10 + $0xd8] sm:$0xff]
      %v2504 = vld [vmem:[%s10 + $0xe0] sm:$0xff]
      %v2505 = vld [vmem:[%s10 + $0xe8] sm:$0xff]
      %v2506 = vld [vmem:[%s10 + $0xf0] sm:$0xff]
      %v2507 = vld [vmem:[%s10 + $0xf8] sm:$0xff]
      %v2509 = vsel %vm805, %v2476, 0
      %v2512 = vsel %vm805, %v2477, 0
      %v2515 = vsel %vm805, %v2478, 0
      %v2518 = vsel %vm805, %v2479, 0
      %v2521 = vsel %vm805, %v2480, 0
      %v2524 = vsel %vm805, %v2481, 0
      %v2527 = vsel %vm805, %v2482, 0
      %v2530 = vsel %vm805, %v2483, 0
      %v2533 = vsel %vm805, %v2484, 0
      %v2536 = vsel %vm805, %v2485, 0
      %v2539 = vsel %vm805, %v2486, 0
      %v2542 = vsel %vm805, %v2487, 0
      %v2545 = vsel %vm805, %v2488, 0
      %v2548 = vsel %vm805, %v2489, 0
      %v2551 = vsel %vm805, %v2490, 0
      %v2554 = vsel %vm805, %v2491, 0
      %v2557 = vsel %vm805, %v2492, 0
      %v2560 = vsel %vm805, %v2493, 0
      %v2563 = vsel %vm805, %v2494, 0
      %v2566 = vsel %vm805, %v2495, 0
      %v2569 = vsel %vm805, %v2496, 0
      %v2572 = vsel %vm805, %v2497, 0
      %v2575 = vsel %vm805, %v2498, 0
      %v2578 = vsel %vm805, %v2499, 0
      %v2581 = vsel %vm805, %v2500, 0
      %v2584 = vsel %vm805, %v2501, 0
      %v2587 = vsel %vm805, %v2502, 0
      %v2590 = vsel %vm805, %v2503, 0
      %v2593 = vsel %vm805, %v2504, 0
      %v2596 = vsel %vm805, %v2505, 0
      %v2599 = vsel %vm805, %v2506, 0
      %v2602 = vsel %vm805, %v2507, 0
      %2604 = vmatpush.msra.mxu0 0.0
      %2605 = vmatpush.msra.mxu0 0.0
      %2606 = vmatpush.msra.mxu0 0.0
      %2607 = vmatpush.msra.mxu0 0.0
      %2608 = vmatpush.msra.mxu0 0.0
      %2609 = vmatpush.msra.mxu0 0.0
      %2610 = vmatpush.msra.mxu0 0.0
      %2611 = vmatpush.msra.mxu0 0.0
      %2612 = vmatpush.msra.mxu0 0.0
      %2613 = vmatpush.msra.mxu0 0.0
      %2614 = vmatpush.msra.mxu0 0.0
      %2615 = vmatpush.msra.mxu0 0.0
      %2616 = vmatpush.msra.mxu0 %v794
      %2617 = vmatpush.msra.mxu0 %v793
      %2618 = vmatpush.msra.mxu0 %v792
      %2619 = vmatpush.msra.mxu0 %v791
      %2620 = vmatmul.f32.gmra.mxu0 %v2509
      %v2621 = vpop.f32.mrf.mxu0
      %v2622 = vadd.f32 0.0, %v2621
      %2623 = vmatmul.f32.gmra.mxu0 %v2512
      %v2624 = vpop.f32.mrf.mxu0
      %v2625 = vadd.f32 0.0, %v2624
      %2626 = vmatmul.f32.gmra.mxu0 %v2515
      %v2627 = vpop.f32.mrf.mxu0
      %v2628 = vadd.f32 0.0, %v2627
      %2629 = vmatmul.f32.gmra.mxu0 %v2518
      %v2630 = vpop.f32.mrf.mxu0
      %v2631 = vadd.f32 0.0, %v2630
      %2632 = vmatmul.f32.gmra.mxu0 %v2521
      %v2633 = vpop.f32.mrf.mxu0
      %v2634 = vadd.f32 0.0, %v2633
      %2635 = vmatmul.f32.gmra.mxu0 %v2524
      %v2636 = vpop.f32.mrf.mxu0
      %v2637 = vadd.f32 0.0, %v2636
      %2638 = vmatmul.f32.gmra.mxu0 %v2527
      %v2639 = vpop.f32.mrf.mxu0
      %v2640 = vadd.f32 0.0, %v2639
      %2641 = vmatmul.f32.gmra.mxu0 %v2530
      %v2642 = vpop.f32.mrf.mxu0
      %v2643 = vadd.f32 0.0, %v2642
      %2644 = vmatmul.f32.gmra.mxu0 %v2533
      %v2645 = vpop.f32.mrf.mxu0
      %v2646 = vadd.f32 0.0, %v2645
      %2647 = vmatmul.f32.gmra.mxu0 %v2536
      %v2648 = vpop.f32.mrf.mxu0
      %v2649 = vadd.f32 0.0, %v2648
      %2650 = vmatmul.f32.gmra.mxu0 %v2539
      %v2651 = vpop.f32.mrf.mxu0
      %v2652 = vadd.f32 0.0, %v2651
      %2653 = vmatmul.f32.gmra.mxu0 %v2542
      %v2654 = vpop.f32.mrf.mxu0
      %v2655 = vadd.f32 0.0, %v2654
      %2656 = vmatmul.f32.gmra.mxu0 %v2545
      %v2657 = vpop.f32.mrf.mxu0
      %v2658 = vadd.f32 0.0, %v2657
      %2659 = vmatmul.f32.gmra.mxu0 %v2548
      %v2660 = vpop.f32.mrf.mxu0
      %v2661 = vadd.f32 0.0, %v2660
      %2662 = vmatmul.f32.gmra.mxu0 %v2551
      %v2663 = vpop.f32.mrf.mxu0
      %v2664 = vadd.f32 0.0, %v2663
      %2665 = vmatmul.f32.gmra.mxu0 %v2554
      %v2666 = vpop.f32.mrf.mxu0
      %v2667 = vadd.f32 0.0, %v2666
      %2668 = vmatmul.f32.gmra.mxu0 %v2557
      %v2669 = vpop.f32.mrf.mxu0
      %v2670 = vadd.f32 0.0, %v2669
      %2671 = vmatmul.f32.gmra.mxu0 %v2560
      %v2672 = vpop.f32.mrf.mxu0
      %v2673 = vadd.f32 0.0, %v2672
      %2674 = vmatmul.f32.gmra.mxu0 %v2563
      %v2675 = vpop.f32.mrf.mxu0
      %v2676 = vadd.f32 0.0, %v2675
      %2677 = vmatmul.f32.gmra.mxu0 %v2566
      %v2678 = vpop.f32.mrf.mxu0
      %v2679 = vadd.f32 0.0, %v2678
      %2680 = vmatmul.f32.gmra.mxu0 %v2569
      %v2681 = vpop.f32.mrf.mxu0
      %v2682 = vadd.f32 0.0, %v2681
      %2683 = vmatmul.f32.gmra.mxu0 %v2572
      %v2684 = vpop.f32.mrf.mxu0
      %v2685 = vadd.f32 0.0, %v2684
      %2686 = vmatmul.f32.gmra.mxu0 %v2575
      %v2687 = vpop.f32.mrf.mxu0
      %v2688 = vadd.f32 0.0, %v2687
      %2689 = vmatmul.f32.gmra.mxu0 %v2578
      %v2690 = vpop.f32.mrf.mxu0
      %v2691 = vadd.f32 0.0, %v2690
      %2692 = vmatmul.f32.gmra.mxu0 %v2581
      %v2693 = vpop.f32.mrf.mxu0
      %v2694 = vadd.f32 0.0, %v2693
      %2695 = vmatmul.f32.gmra.mxu0 %v2584
      %v2696 = vpop.f32.mrf.mxu0
      %v2697 = vadd.f32 0.0, %v2696
      %2698 = vmatmul.f32.gmra.mxu0 %v2587
      %v2699 = vpop.f32.mrf.mxu0
      %v2700 = vadd.f32 0.0, %v2699
      %2701 = vmatmul.f32.gmra.mxu0 %v2590
      %v2702 = vpop.f32.mrf.mxu0
      %v2703 = vadd.f32 0.0, %v2702
      %2704 = vmatmul.f32.gmra.mxu0 %v2593
      %v2705 = vpop.f32.mrf.mxu0
      %v2706 = vadd.f32 0.0, %v2705
      %2707 = vmatmul.f32.gmra.mxu0 %v2596
      %v2708 = vpop.f32.mrf.mxu0
      %v2709 = vadd.f32 0.0, %v2708
      %2710 = vmatmul.f32.gmra.mxu0 %v2599
      %v2711 = vpop.f32.mrf.mxu0
      %v2712 = vadd.f32 0.0, %v2711
      %2713 = vmatmul.f32.gmra.mxu0 %v2602
      %v2714 = vpop.f32.mrf.mxu0
      %v2715 = vadd.f32 0.0, %v2714
      %2716 = vdwg.mxu0
      %v2717 = vadd.f32 %v2444, %v2622
      %v2718 = vadd.f32 %v2445, %v2625
      %v2719 = vadd.f32 %v2446, %v2628
      %v2720 = vadd.f32 %v2447, %v2631
      %v2721 = vadd.f32 %v2448, %v2634
      %v2722 = vadd.f32 %v2449, %v2637
      %v2723 = vadd.f32 %v2450, %v2640
      %v2724 = vadd.f32 %v2451, %v2643
      %v2725 = vadd.f32 %v2452, %v2646
      %v2726 = vadd.f32 %v2453, %v2649
      %v2727 = vadd.f32 %v2454, %v2652
      %v2728 = vadd.f32 %v2455, %v2655
      %v2729 = vadd.f32 %v2456, %v2658
      %v2730 = vadd.f32 %v2457, %v2661
      %v2731 = vadd.f32 %v2458, %v2664
      %v2732 = vadd.f32 %v2459, %v2667
      %v2733 = vadd.f32 %v2460, %v2670
      %v2734 = vadd.f32 %v2461, %v2673
      %v2735 = vadd.f32 %v2462, %v2676
      %v2736 = vadd.f32 %v2463, %v2679
      %v2737 = vadd.f32 %v2464, %v2682
      %v2738 = vadd.f32 %v2465, %v2685
      %v2739 = vadd.f32 %v2466, %v2688
      %v2740 = vadd.f32 %v2467, %v2691
      %v2741 = vadd.f32 %v2468, %v2694
      %v2742 = vadd.f32 %v2469, %v2697
      %v2743 = vadd.f32 %v2470, %v2700
      %v2744 = vadd.f32 %v2471, %v2703
      %v2745 = vadd.f32 %v2472, %v2706
      %v2746 = vadd.f32 %v2473, %v2709
      %v2747 = vadd.f32 %v2474, %v2712
      %v2748 = vadd.f32 %v2475, %v2715
      %v2749 = vld [vmem:[%s11] sm:$0xff]
      %v2750 = vld [vmem:[%s11 + $0x8] sm:$0xff]
      %v2751 = vld [vmem:[%s11 + $0x10] sm:$0xff]
      %v2752 = vld [vmem:[%s11 + $0x18] sm:$0xff]
      %v2753 = vld [vmem:[%s11 + $0x20] sm:$0xff]
      %v2754 = vld [vmem:[%s11 + $0x28] sm:$0xff]
      %v2755 = vld [vmem:[%s11 + $0x30] sm:$0xff]
      %v2756 = vld [vmem:[%s11 + $0x38] sm:$0xff]
      %v2757 = vld [vmem:[%s11 + $0x40] sm:$0xff]
      %v2758 = vld [vmem:[%s11 + $0x48] sm:$0xff]
      %v2759 = vld [vmem:[%s11 + $0x50] sm:$0xff]
      %v2760 = vld [vmem:[%s11 + $0x58] sm:$0xff]
      %v2761 = vld [vmem:[%s11 + $0x60] sm:$0xff]
      %v2762 = vld [vmem:[%s11 + $0x68] sm:$0xff]
      %v2763 = vld [vmem:[%s11 + $0x70] sm:$0xff]
      %v2764 = vld [vmem:[%s11 + $0x78] sm:$0xff]
      %v2765 = vld [vmem:[%s11 + $0x80] sm:$0xff]
      %v2766 = vld [vmem:[%s11 + $0x88] sm:$0xff]
      %v2767 = vld [vmem:[%s11 + $0x90] sm:$0xff]
      %v2768 = vld [vmem:[%s11 + $0x98] sm:$0xff]
      %v2769 = vld [vmem:[%s11 + $0xa0] sm:$0xff]
      %v2770 = vld [vmem:[%s11 + $0xa8] sm:$0xff]
      %v2771 = vld [vmem:[%s11 + $0xb0] sm:$0xff]
      %v2772 = vld [vmem:[%s11 + $0xb8] sm:$0xff]
      %v2773 = vld [vmem:[%s11 + $0xc0] sm:$0xff]
      %v2774 = vld [vmem:[%s11 + $0xc8] sm:$0xff]
      %v2775 = vld [vmem:[%s11 + $0xd0] sm:$0xff]
      %v2776 = vld [vmem:[%s11 + $0xd8] sm:$0xff]
      %v2777 = vld [vmem:[%s11 + $0xe0] sm:$0xff]
      %v2778 = vld [vmem:[%s11 + $0xe8] sm:$0xff]
      %v2779 = vld [vmem:[%s11 + $0xf0] sm:$0xff]
      %v2780 = vld [vmem:[%s11 + $0xf8] sm:$0xff]
      %2782 = vset.pattern.permute.xlu0 0
      %2783 = vperm.xlu0 %2782, %v2749
      %v2784 = vpop.permute.xlu0 %2783
      %2787 = vset.pattern.permute.xlu0 0
      %2788 = vperm.xlu0 %2787, %v2750
      %v2789 = vpop.permute.xlu0 %2788
      %2792 = vset.pattern.permute.xlu0 0
      %2793 = vperm.xlu0 %2792, %v2751
      %v2794 = vpop.permute.xlu0 %2793
      %2797 = vset.pattern.permute.xlu0 0
      %2798 = vperm.xlu0 %2797, %v2752
      %v2799 = vpop.permute.xlu0 %2798
      %2802 = vset.pattern.permute.xlu0 0
      %2803 = vperm.xlu0 %2802, %v2753
      %v2804 = vpop.permute.xlu0 %2803
      %2807 = vset.pattern.permute.xlu0 0
      %2808 = vperm.xlu0 %2807, %v2754
      %v2809 = vpop.permute.xlu0 %2808
      %2812 = vset.pattern.permute.xlu0 0
      %2813 = vperm.xlu0 %2812, %v2755
      %v2814 = vpop.permute.xlu0 %2813
      %2817 = vset.pattern.permute.xlu0 0
      %2818 = vperm.xlu0 %2817, %v2756
      %v2819 = vpop.permute.xlu0 %2818
      %2822 = vset.pattern.permute.xlu0 0
      %2823 = vperm.xlu0 %2822, %v2757
      %v2824 = vpop.permute.xlu0 %2823
      %2827 = vset.pattern.permute.xlu0 0
      %2828 = vperm.xlu0 %2827, %v2758
      %v2829 = vpop.permute.xlu0 %2828
      %2832 = vset.pattern.permute.xlu0 0
      %2833 = vperm.xlu0 %2832, %v2759
      %v2834 = vpop.permute.xlu0 %2833
      %2837 = vset.pattern.permute.xlu0 0
      %2838 = vperm.xlu0 %2837, %v2760
      %v2839 = vpop.permute.xlu0 %2838
      %2842 = vset.pattern.permute.xlu0 0
      %2843 = vperm.xlu0 %2842, %v2761
      %v2844 = vpop.permute.xlu0 %2843
      %2847 = vset.pattern.permute.xlu0 0
      %2848 = vperm.xlu0 %2847, %v2762
      %v2849 = vpop.permute.xlu0 %2848
      %2852 = vset.pattern.permute.xlu0 0
      %2853 = vperm.xlu0 %2852, %v2763
      %v2854 = vpop.permute.xlu0 %2853
      %2857 = vset.pattern.permute.xlu0 0
      %2858 = vperm.xlu0 %2857, %v2764
      %v2859 = vpop.permute.xlu0 %2858
      %2862 = vset.pattern.permute.xlu0 0
      %2863 = vperm.xlu0 %2862, %v2765
      %v2864 = vpop.permute.xlu0 %2863
      %2867 = vset.pattern.permute.xlu0 0
      %2868 = vperm.xlu0 %2867, %v2766
      %v2869 = vpop.permute.xlu0 %2868
      %2872 = vset.pattern.permute.xlu0 0
      %2873 = vperm.xlu0 %2872, %v2767
      %v2874 = vpop.permute.xlu0 %2873
      %2877 = vset.pattern.permute.xlu0 0
      %2878 = vperm.xlu0 %2877, %v2768
      %v2879 = vpop.permute.xlu0 %2878
      %2882 = vset.pattern.permute.xlu0 0
      %2883 = vperm.xlu0 %2882, %v2769
      %v2884 = vpop.permute.xlu0 %2883
      %2887 = vset.pattern.permute.xlu0 0
      %2888 = vperm.xlu0 %2887, %v2770
      %v2889 = vpop.permute.xlu0 %2888
      %2892 = vset.pattern.permute.xlu0 0
      %2893 = vperm.xlu0 %2892, %v2771
      %v2894 = vpop.permute.xlu0 %2893
      %2897 = vset.pattern.permute.xlu0 0
      %2898 = vperm.xlu0 %2897, %v2772
      %v2899 = vpop.permute.xlu0 %2898
      %2902 = vset.pattern.permute.xlu0 0
      %2903 = vperm.xlu0 %2902, %v2773
      %v2904 = vpop.permute.xlu0 %2903
      %2907 = vset.pattern.permute.xlu0 0
      %2908 = vperm.xlu0 %2907, %v2774
      %v2909 = vpop.permute.xlu0 %2908
      %2912 = vset.pattern.permute.xlu0 0
      %2913 = vperm.xlu0 %2912, %v2775
      %v2914 = vpop.permute.xlu0 %2913
      %2917 = vset.pattern.permute.xlu0 0
      %2918 = vperm.xlu0 %2917, %v2776
      %v2919 = vpop.permute.xlu0 %2918
      %2922 = vset.pattern.permute.xlu0 0
      %2923 = vperm.xlu0 %2922, %v2777
      %v2924 = vpop.permute.xlu0 %2923
      %2927 = vset.pattern.permute.xlu0 0
      %2928 = vperm.xlu0 %2927, %v2778
      %v2929 = vpop.permute.xlu0 %2928
      %2932 = vset.pattern.permute.xlu0 0
      %2933 = vperm.xlu0 %2932, %v2779
      %v2934 = vpop.permute.xlu0 %2933
      %2937 = vset.pattern.permute.xlu0 0
      %2938 = vperm.xlu0 %2937, %v2780
      %v2939 = vpop.permute.xlu0 %2938
      %v2941 = vadd.f32 %v2717, %v2784
      %v2942 = vadd.f32 %v2718, %v2789
      %v2943 = vadd.f32 %v2719, %v2794
      %v2944 = vadd.f32 %v2720, %v2799
      %v2945 = vadd.f32 %v2721, %v2804
      %v2946 = vadd.f32 %v2722, %v2809
      %v2947 = vadd.f32 %v2723, %v2814
      %v2948 = vadd.f32 %v2724, %v2819
      %v2949 = vadd.f32 %v2725, %v2824
      %v2950 = vadd.f32 %v2726, %v2829
      %v2951 = vadd.f32 %v2727, %v2834
      %v2952 = vadd.f32 %v2728, %v2839
      %v2953 = vadd.f32 %v2729, %v2844
      %v2954 = vadd.f32 %v2730, %v2849
      %v2955 = vadd.f32 %v2731, %v2854
      %v2956 = vadd.f32 %v2732, %v2859
      %v2957 = vadd.f32 %v2733, %v2864
      %v2958 = vadd.f32 %v2734, %v2869
      %v2959 = vadd.f32 %v2735, %v2874
      %v2960 = vadd.f32 %v2736, %v2879
      %v2961 = vadd.f32 %v2737, %v2884
      %v2962 = vadd.f32 %v2738, %v2889
      %v2963 = vadd.f32 %v2739, %v2894
      %v2964 = vadd.f32 %v2740, %v2899
      %v2965 = vadd.f32 %v2741, %v2904
      %v2966 = vadd.f32 %v2742, %v2909
      %v2967 = vadd.f32 %v2743, %v2914
      %v2968 = vadd.f32 %v2744, %v2919
      %v2969 = vadd.f32 %v2745, %v2924
      %v2970 = vadd.f32 %v2746, %v2929
      %v2971 = vadd.f32 %v2747, %v2934
      %v2972 = vadd.f32 %v2748, %v2939
      %v2973 = vmax.f32 %v2941, 0.0
      %v2974 = vmax.f32 %v2942, 0.0
      %v2975 = vmax.f32 %v2943, 0.0
      %v2976 = vmax.f32 %v2944, 0.0
      %v2977 = vmax.f32 %v2945, 0.0
      %v2978 = vmax.f32 %v2946, 0.0
      %v2979 = vmax.f32 %v2947, 0.0
      %v2980 = vmax.f32 %v2948, 0.0
      %v2981 = vmax.f32 %v2949, 0.0
      %v2982 = vmax.f32 %v2950, 0.0
      %v2983 = vmax.f32 %v2951, 0.0
      %v2984 = vmax.f32 %v2952, 0.0
      %v2985 = vmax.f32 %v2953, 0.0
      %v2986 = vmax.f32 %v2954, 0.0
      %v2987 = vmax.f32 %v2955, 0.0
      %v2988 = vmax.f32 %v2956, 0.0
      %v2989 = vmax.f32 %v2957, 0.0
      %v2990 = vmax.f32 %v2958, 0.0
      %v2991 = vmax.f32 %v2959, 0.0
      %v2992 = vmax.f32 %v2960, 0.0
      %v2993 = vmax.f32 %v2961, 0.0
      %v2994 = vmax.f32 %v2962, 0.0
      %v2995 = vmax.f32 %v2963, 0.0
      %v2996 = vmax.f32 %v2964, 0.0
      %v2997 = vmax.f32 %v2965, 0.0
      %v2998 = vmax.f32 %v2966, 0.0
      %v2999 = vmax.f32 %v2967, 0.0
      %v3000 = vmax.f32 %v2968, 0.0
      %v3001 = vmax.f32 %v2969, 0.0
      %v3002 = vmax.f32 %v2970, 0.0
      %v3003 = vmax.f32 %v2971, 0.0
      %v3004 = vmax.f32 %v2972, 0.0
      %v3005 = vld [vmem:[%s12] sm:$0xff]
      %v3006 = vld [vmem:[%s12 + $0x8] sm:$0xff]
      %v3007 = vld [vmem:[%s12 + $0x10] sm:$0xff]
      %v3008 = vld [vmem:[%s12 + $0x18] sm:$0xff]
      %v3009 = vld [vmem:[%s12 + $0x20] sm:$0xff]
      %v3010 = vld [vmem:[%s12 + $0x28] sm:$0xff]
      %v3011 = vld [vmem:[%s12 + $0x30] sm:$0xff]
      %v3012 = vld [vmem:[%s12 + $0x38] sm:$0xff]
      %3013 = vmatpush.msra.mxu0 %v2988
      %3014 = vmatpush.msra.mxu0 %v2987
      %3015 = vmatpush.msra.mxu0 %v2986
      %3016 = vmatpush.msra.mxu0 %v2985
      %3017 = vmatpush.msra.mxu0 %v2984
      %3018 = vmatpush.msra.mxu0 %v2983
      %3019 = vmatpush.msra.mxu0 %v2982
      %3020 = vmatpush.msra.mxu0 %v2981
      %3021 = vmatpush.msra.mxu0 %v2980
      %3022 = vmatpush.msra.mxu0 %v2979
      %3023 = vmatpush.msra.mxu0 %v2978
      %3024 = vmatpush.msra.mxu0 %v2977
      %3025 = vmatpush.msra.mxu0 %v2976
      %3026 = vmatpush.msra.mxu0 %v2975
      %3027 = vmatpush.msra.mxu0 %v2974
      %3028 = vmatpush.msra.mxu0 %v2973
      %3029 = vmatmul.f32.gmra.mxu0 %v3005
      %v3030 = vpop.f32.mrf.mxu0
      %v3031 = vadd.f32 0.0, %v3030
      %3032 = vmatmul.f32.gmra.mxu0 %v3007
      %v3033 = vpop.f32.mrf.mxu0
      %v3034 = vadd.f32 0.0, %v3033
      %3035 = vmatmul.f32.gmra.mxu0 %v3009
      %v3036 = vpop.f32.mrf.mxu0
      %v3037 = vadd.f32 0.0, %v3036
      %3038 = vmatmul.f32.gmra.mxu0 %v3011
      %v3039 = vpop.f32.mrf.mxu0
      %v3040 = vadd.f32 0.0, %v3039
      %3041 = vdwg.mxu0
      %3042 = vmatpush.msra.mxu0 %v3004
      %3043 = vmatpush.msra.mxu0 %v3003
      %3044 = vmatpush.msra.mxu0 %v3002
      %3045 = vmatpush.msra.mxu0 %v3001
      %3046 = vmatpush.msra.mxu0 %v3000
      %3047 = vmatpush.msra.mxu0 %v2999
      %3048 = vmatpush.msra.mxu0 %v2998
      %3049 = vmatpush.msra.mxu0 %v2997
      %3050 = vmatpush.msra.mxu0 %v2996
      %3051 = vmatpush.msra.mxu0 %v2995
      %3052 = vmatpush.msra.mxu0 %v2994
      %3053 = vmatpush.msra.mxu0 %v2993
      %3054 = vmatpush.msra.mxu0 %v2992
      %3055 = vmatpush.msra.mxu0 %v2991
      %3056 = vmatpush.msra.mxu0 %v2990
      %3057 = vmatpush.msra.mxu0 %v2989
      %3058 = vmatmul.f32.gmra.mxu0 %v3006
      %v3059 = vpop.f32.mrf.mxu0
      %v3060 = vadd.f32 %v3031, %v3059
      %3061 = vmatmul.f32.gmra.mxu0 %v3008
      %v3062 = vpop.f32.mrf.mxu0
      %v3063 = vadd.f32 %v3034, %v3062
      %3064 = vmatmul.f32.gmra.mxu0 %v3010
      %v3065 = vpop.f32.mrf.mxu0
      %v3066 = vadd.f32 %v3037, %v3065
      %3067 = vmatmul.f32.gmra.mxu0 %v3012
      %v3068 = vpop.f32.mrf.mxu0
      %v3069 = vadd.f32 %v3040, %v3068
      %3070 = vdwg.mxu0
      %vm3071 = vcmask 244736
      %3072 = vst.msk [vmem:[#allocation2] sm:$0xff] %vm3071, 0.0
      %3073 = vst.msk [vmem:[#allocation2 + $0x8] sm:$0xff] %vm3071, 0.0
      %3074 = vst.msk [vmem:[#allocation2 + $0x10] sm:$0xff] %vm3071, 0.0
      %3075 = vst.msk [vmem:[#allocation2 + $0x18] sm:$0xff] %vm3071, 0.0
      %3080 = vrot.lane.b32.xlu0 %v3060, 7
      %v3081 = vpop.permute.xlu0 %3080
      %3082 = vrot.lane.b32.xlu0 %v3063, 7
      %v3083 = vpop.permute.xlu0 %3082
      %3084 = vrot.lane.b32.xlu0 %v3066, 7
      %v3085 = vpop.permute.xlu0 %3084
      %3086 = vrot.lane.b32.xlu0 %v3069, 7
      %v3087 = vpop.permute.xlu0 %3086
      %vm3092 = vcmask 187448
      %3093 = vst.msk [vmem:[#allocation2] sm:$0xff] %vm3092, %v3081
      %3094 = vst.msk [vmem:[#allocation2 + $0x8] sm:$0xff] %vm3092, %v3083
      %3095 = vst.msk [vmem:[#allocation2 + $0x10] sm:$0xff] %vm3092, %v3085
      %3096 = vst.msk [vmem:[#allocation2 + $0x18] sm:$0xff] %vm3092, %v3087
      %v3097 = vld [vmem:[%s13] sm:$0xff]
      %v3098 = vld [vmem:[%s13 + $0x8] sm:$0xff]
      %v3099 = vld [vmem:[%s13 + $0x10] sm:$0xff]
      %v3100 = vld [vmem:[%s13 + $0x18] sm:$0xff]
      %v3101 = vld [vmem:[#allocation2] sm:$0xff]
      %v3102 = vld [vmem:[#allocation2 + $0x8] sm:$0xff]
      %v3103 = vld [vmem:[#allocation2 + $0x10] sm:$0xff]
      %v3104 = vld [vmem:[#allocation2 + $0x18] sm:$0xff]
      %3106 = vset.pattern.permute.xlu0 0
      %3107 = vperm.xlu0 %3106, %v3097
      %v3108 = vpop.permute.xlu0 %3107
      %3111 = vset.pattern.permute.xlu0 0
      %3112 = vperm.xlu0 %3111, %v3098
      %v3113 = vpop.permute.xlu0 %3112
      %3116 = vset.pattern.permute.xlu0 0
      %3117 = vperm.xlu0 %3116, %v3099
      %v3118 = vpop.permute.xlu0 %3117
      %3121 = vset.pattern.permute.xlu0 0
      %3122 = vperm.xlu0 %3121, %v3100
      %v3123 = vpop.permute.xlu0 %3122
      %v3125 = vmul.f32 %v3108, %v3101
      %v3126 = vmul.f32 %v3113, %v3102
      %v3127 = vmul.f32 %v3118, %v3103
      %v3128 = vmul.f32 %v3123, %v3104
      %v3129 = vadd.f32 %v3125, 0.0
      %v3130 = vadd.f32 %v3126, 0.0
      %v3131 = vadd.f32 %v3127, 0.0
      %v3132 = vadd.f32 %v3128, 0.0
      %3133 = vset.pattern.permute.xlu0 1
      %3134 = vperm.xlu0 %3133, %v3097
      %v3135 = vpop.permute.xlu0 %3134
      %3137 = vset.pattern.permute.xlu0 1
      %3138 = vperm.xlu0 %3137, %v3098
      %v3139 = vpop.permute.xlu0 %3138
      %3141 = vset.pattern.permute.xlu0 1
      %3142 = vperm.xlu0 %3141, %v3099
      %v3143 = vpop.permute.xlu0 %3142
      %3145 = vset.pattern.permute.xlu0 1
      %3146 = vperm.xlu0 %3145, %v3100
      %v3147 = vpop.permute.xlu0 %3146
      %v3149 = vmul.f32 %v3135, %v3101
      %v3150 = vmul.f32 %v3139, %v3102
      %v3151 = vmul.f32 %v3143, %v3103
      %v3152 = vmul.f32 %v3147, %v3104
      %3157 = vrot.lane.b32.xlu0 %v3149, 127
      %v3158 = vpop.permute.xlu0 %3157
      %3159 = vrot.lane.b32.xlu0 %v3150, 127
      %v3160 = vpop.permute.xlu0 %3159
      %3161 = vrot.lane.b32.xlu0 %v3151, 127
      %v3162 = vpop.permute.xlu0 %3161
      %3163 = vrot.lane.b32.xlu0 %v3152, 127
      %v3164 = vpop.permute.xlu0 %3163
      %v3169 = vadd.f32 %v3129, %v3158
      %v3170 = vadd.f32 %v3130, %v3160
      %v3171 = vadd.f32 %v3131, %v3162
      %v3172 = vadd.f32 %v3132, %v3164
      %3173 = vset.pattern.permute.xlu0 2
      %3174 = vperm.xlu0 %3173, %v3097
      %v3175 = vpop.permute.xlu0 %3174
      %3177 = vset.pattern.permute.xlu0 2
      %3178 = vperm.xlu0 %3177, %v3098
      %v3179 = vpop.permute.xlu0 %3178
      %3181 = vset.pattern.permute.xlu0 2
      %3182 = vperm.xlu0 %3181, %v3099
      %v3183 = vpop.permute.xlu0 %3182
      %3185 = vset.pattern.permute.xlu0 2
      %3186 = vperm.xlu0 %3185, %v3100
      %v3187 = vpop.permute.xlu0 %3186
      %v3189 = vmul.f32 %v3175, %v3101
      %v3190 = vmul.f32 %v3179, %v3102
      %v3191 = vmul.f32 %v3183, %v3103
      %v3192 = vmul.f32 %v3187, %v3104
      %3197 = vrot.lane.b32.xlu0 %v3189, 126
      %v3198 = vpop.permute.xlu0 %3197
      %3199 = vrot.lane.b32.xlu0 %v3190, 126
      %v3200 = vpop.permute.xlu0 %3199
      %3201 = vrot.lane.b32.xlu0 %v3191, 126
      %v3202 = vpop.permute.xlu0 %3201
      %3203 = vrot.lane.b32.xlu0 %v3192, 126
      %v3204 = vpop.permute.xlu0 %3203
      %v3209 = vadd.f32 %v3169, %v3198
      %v3210 = vadd.f32 %v3170, %v3200
      %v3211 = vadd.f32 %v3171, %v3202
      %v3212 = vadd.f32 %v3172, %v3204
      %3213 = vset.pattern.permute.xlu0 3
      %3214 = vperm.xlu0 %3213, %v3097
      %v3215 = vpop.permute.xlu0 %3214
      %3217 = vset.pattern.permute.xlu0 3
      %3218 = vperm.xlu0 %3217, %v3098
      %v3219 = vpop.permute.xlu0 %3218
      %3221 = vset.pattern.permute.xlu0 3
      %3222 = vperm.xlu0 %3221, %v3099
      %v3223 = vpop.permute.xlu0 %3222
      %3225 = vset.pattern.permute.xlu0 3
      %3226 = vperm.xlu0 %3225, %v3100
      %v3227 = vpop.permute.xlu0 %3226
      %v3229 = vmul.f32 %v3215, %v3101
      %v3230 = vmul.f32 %v3219, %v3102
      %v3231 = vmul.f32 %v3223, %v3103
      %v3232 = vmul.f32 %v3227, %v3104
      %3237 = vrot.lane.b32.xlu0 %v3229, 125
      %v3238 = vpop.permute.xlu0 %3237
      %3239 = vrot.lane.b32.xlu0 %v3230, 125
      %v3240 = vpop.permute.xlu0 %3239
      %3241 = vrot.lane.b32.xlu0 %v3231, 125
      %v3242 = vpop.permute.xlu0 %3241
      %3243 = vrot.lane.b32.xlu0 %v3232, 125
      %v3244 = vpop.permute.xlu0 %3243
      %v3249 = vadd.f32 %v3209, %v3238
      %v3250 = vadd.f32 %v3210, %v3240
      %v3251 = vadd.f32 %v3211, %v3242
      %v3252 = vadd.f32 %v3212, %v3244
      %3253 = vset.pattern.permute.xlu0 4
      %3254 = vperm.xlu0 %3253, %v3097
      %v3255 = vpop.permute.xlu0 %3254
      %3257 = vset.pattern.permute.xlu0 4
      %3258 = vperm.xlu0 %3257, %v3098
      %v3259 = vpop.permute.xlu0 %3258
      %3261 = vset.pattern.permute.xlu0 4
      %3262 = vperm.xlu0 %3261, %v3099
      %v3263 = vpop.permute.xlu0 %3262
      %3265 = vset.pattern.permute.xlu0 4
      %3266 = vperm.xlu0 %3265, %v3100
      %v3267 = vpop.permute.xlu0 %3266
      %v3269 = vmul.f32 %v3255, %v3101
      %v3270 = vmul.f32 %v3259, %v3102
      %v3271 = vmul.f32 %v3263, %v3103
      %v3272 = vmul.f32 %v3267, %v3104
      %3277 = vrot.lane.b32.xlu0 %v3269, 124
      %v3278 = vpop.permute.xlu0 %3277
      %3279 = vrot.lane.b32.xlu0 %v3270, 124
      %v3280 = vpop.permute.xlu0 %3279
      %3281 = vrot.lane.b32.xlu0 %v3271, 124
      %v3282 = vpop.permute.xlu0 %3281
      %3283 = vrot.lane.b32.xlu0 %v3272, 124
      %v3284 = vpop.permute.xlu0 %3283
      %v3289 = vadd.f32 %v3249, %v3278
      %v3290 = vadd.f32 %v3250, %v3280
      %v3291 = vadd.f32 %v3251, %v3282
      %v3292 = vadd.f32 %v3252, %v3284
      %3293 = vset.pattern.permute.xlu0 5
      %3294 = vperm.xlu0 %3293, %v3097
      %v3295 = vpop.permute.xlu0 %3294
      %3297 = vset.pattern.permute.xlu0 5
      %3298 = vperm.xlu0 %3297, %v3098
      %v3299 = vpop.permute.xlu0 %3298
      %3301 = vset.pattern.permute.xlu0 5
      %3302 = vperm.xlu0 %3301, %v3099
      %v3303 = vpop.permute.xlu0 %3302
      %3305 = vset.pattern.permute.xlu0 5
      %3306 = vperm.xlu0 %3305, %v3100
      %v3307 = vpop.permute.xlu0 %3306
      %v3309 = vmul.f32 %v3295, %v3101
      %v3310 = vmul.f32 %v3299, %v3102
      %v3311 = vmul.f32 %v3303, %v3103
      %v3312 = vmul.f32 %v3307, %v3104
      %3317 = vrot.lane.b32.xlu0 %v3309, 123
      %v3318 = vpop.permute.xlu0 %3317
      %3319 = vrot.lane.b32.xlu0 %v3310, 123
      %v3320 = vpop.permute.xlu0 %3319
      %3321 = vrot.lane.b32.xlu0 %v3311, 123
      %v3322 = vpop.permute.xlu0 %3321
      %3323 = vrot.lane.b32.xlu0 %v3312, 123
      %v3324 = vpop.permute.xlu0 %3323
      %v3329 = vadd.f32 %v3289, %v3318
      %v3330 = vadd.f32 %v3290, %v3320
      %v3331 = vadd.f32 %v3291, %v3322
      %v3332 = vadd.f32 %v3292, %v3324
      %3333 = vset.pattern.permute.xlu0 6
      %3334 = vperm.xlu0 %3333, %v3097
      %v3335 = vpop.permute.xlu0 %3334
      %3337 = vset.pattern.permute.xlu0 6
      %3338 = vperm.xlu0 %3337, %v3098
      %v3339 = vpop.permute.xlu0 %3338
      %3341 = vset.pattern.permute.xlu0 6
      %3342 = vperm.xlu0 %3341, %v3099
      %v3343 = vpop.permute.xlu0 %3342
      %3345 = vset.pattern.permute.xlu0 6
      %3346 = vperm.xlu0 %3345, %v3100
      %v3347 = vpop.permute.xlu0 %3346
      %v3349 = vmul.f32 %v3335, %v3101
      %v3350 = vmul.f32 %v3339, %v3102
      %v3351 = vmul.f32 %v3343, %v3103
      %v3352 = vmul.f32 %v3347, %v3104
      %3357 = vrot.lane.b32.xlu0 %v3349, 122
      %v3358 = vpop.permute.xlu0 %3357
      %3359 = vrot.lane.b32.xlu0 %v3350, 122
      %v3360 = vpop.permute.xlu0 %3359
      %3361 = vrot.lane.b32.xlu0 %v3351, 122
      %v3362 = vpop.permute.xlu0 %3361
      %3363 = vrot.lane.b32.xlu0 %v3352, 122
      %v3364 = vpop.permute.xlu0 %3363
      %v3369 = vadd.f32 %v3329, %v3358
      %v3370 = vadd.f32 %v3330, %v3360
      %v3371 = vadd.f32 %v3331, %v3362
      %v3372 = vadd.f32 %v3332, %v3364
      %3373 = vset.pattern.permute.xlu0 7
      %3374 = vperm.xlu0 %3373, %v3097
      %v3375 = vpop.permute.xlu0 %3374
      %3377 = vset.pattern.permute.xlu0 7
      %3378 = vperm.xlu0 %3377, %v3098
      %v3379 = vpop.permute.xlu0 %3378
      %3381 = vset.pattern.permute.xlu0 7
      %3382 = vperm.xlu0 %3381, %v3099
      %v3383 = vpop.permute.xlu0 %3382
      %3385 = vset.pattern.permute.xlu0 7
      %3386 = vperm.xlu0 %3385, %v3100
      %v3387 = vpop.permute.xlu0 %3386
      %v3389 = vmul.f32 %v3375, %v3101
      %v3390 = vmul.f32 %v3379, %v3102
      %v3391 = vmul.f32 %v3383, %v3103
      %v3392 = vmul.f32 %v3387, %v3104
      %3397 = vrot.lane.b32.xlu0 %v3389, 121
      %v3398 = vpop.permute.xlu0 %3397
      %3399 = vrot.lane.b32.xlu0 %v3390, 121
      %v3400 = vpop.permute.xlu0 %3399
      %3401 = vrot.lane.b32.xlu0 %v3391, 121
      %v3402 = vpop.permute.xlu0 %3401
      %3403 = vrot.lane.b32.xlu0 %v3392, 121
      %v3404 = vpop.permute.xlu0 %3403
      %v3409 = vadd.f32 %v3369, %v3398
      %v3410 = vadd.f32 %v3370, %v3400
      %v3411 = vadd.f32 %v3371, %v3402
      %v3412 = vadd.f32 %v3372, %v3404
      %3413 = vset.pattern.permute.xlu0 8
      %3414 = vperm.xlu0 %3413, %v3097
      %v3415 = vpop.permute.xlu0 %3414
      %3417 = vset.pattern.permute.xlu0 8
      %3418 = vperm.xlu0 %3417, %v3098
      %v3419 = vpop.permute.xlu0 %3418
      %3421 = vset.pattern.permute.xlu0 8
      %3422 = vperm.xlu0 %3421, %v3099
      %v3423 = vpop.permute.xlu0 %3422
      %3425 = vset.pattern.permute.xlu0 8
      %3426 = vperm.xlu0 %3425, %v3100
      %v3427 = vpop.permute.xlu0 %3426
      %v3429 = vmul.f32 %v3415, %v3101
      %v3430 = vmul.f32 %v3419, %v3102
      %v3431 = vmul.f32 %v3423, %v3103
      %v3432 = vmul.f32 %v3427, %v3104
      %3437 = vrot.lane.b32.xlu0 %v3429, 120
      %v3438 = vpop.permute.xlu0 %3437
      %3439 = vrot.lane.b32.xlu0 %v3430, 120
      %v3440 = vpop.permute.xlu0 %3439
      %3441 = vrot.lane.b32.xlu0 %v3431, 120
      %v3442 = vpop.permute.xlu0 %3441
      %3443 = vrot.lane.b32.xlu0 %v3432, 120
      %v3444 = vpop.permute.xlu0 %3443
      %v3449 = vadd.f32 %v3409, %v3438
      %v3450 = vadd.f32 %v3410, %v3440
      %v3451 = vadd.f32 %v3411, %v3442
      %v3452 = vadd.f32 %v3412, %v3444
      %3453 = vset.pattern.permute.xlu0 9
      %3454 = vperm.xlu0 %3453, %v3097
      %v3455 = vpop.permute.xlu0 %3454
      %3457 = vset.pattern.permute.xlu0 9
      %3458 = vperm.xlu0 %3457, %v3098
      %v3459 = vpop.permute.xlu0 %3458
      %3461 = vset.pattern.permute.xlu0 9
      %3462 = vperm.xlu0 %3461, %v3099
      %v3463 = vpop.permute.xlu0 %3462
      %3465 = vset.pattern.permute.xlu0 9
      %3466 = vperm.xlu0 %3465, %v3100
      %v3467 = vpop.permute.xlu0 %3466
      %v3469 = vmul.f32 %v3455, %v3101
      %v3470 = vmul.f32 %v3459, %v3102
      %v3471 = vmul.f32 %v3463, %v3103
      %v3472 = vmul.f32 %v3467, %v3104
      %3477 = vrot.lane.b32.xlu0 %v3469, 119
      %v3478 = vpop.permute.xlu0 %3477
      %3479 = vrot.lane.b32.xlu0 %v3470, 119
      %v3480 = vpop.permute.xlu0 %3479
      %3481 = vrot.lane.b32.xlu0 %v3471, 119
      %v3482 = vpop.permute.xlu0 %3481
      %3483 = vrot.lane.b32.xlu0 %v3472, 119
      %v3484 = vpop.permute.xlu0 %3483
      %v3489 = vadd.f32 %v3449, %v3478
      %v3490 = vadd.f32 %v3450, %v3480
      %v3491 = vadd.f32 %v3451, %v3482
      %v3492 = vadd.f32 %v3452, %v3484
      %3493 = vset.pattern.permute.xlu0 10
      %3494 = vperm.xlu0 %3493, %v3097
      %v3495 = vpop.permute.xlu0 %3494
      %3497 = vset.pattern.permute.xlu0 10
      %3498 = vperm.xlu0 %3497, %v3098
      %v3499 = vpop.permute.xlu0 %3498
      %3501 = vset.pattern.permute.xlu0 10
      %3502 = vperm.xlu0 %3501, %v3099
      %v3503 = vpop.permute.xlu0 %3502
      %3505 = vset.pattern.permute.xlu0 10
      %3506 = vperm.xlu0 %3505, %v3100
      %v3507 = vpop.permute.xlu0 %3506
      %v3509 = vmul.f32 %v3495, %v3101
      %v3510 = vmul.f32 %v3499, %v3102
      %v3511 = vmul.f32 %v3503, %v3103
      %v3512 = vmul.f32 %v3507, %v3104
      %3517 = vrot.lane.b32.xlu0 %v3509, 118
      %v3518 = vpop.permute.xlu0 %3517
      %3519 = vrot.lane.b32.xlu0 %v3510, 118
      %v3520 = vpop.permute.xlu0 %3519
      %3521 = vrot.lane.b32.xlu0 %v3511, 118
      %v3522 = vpop.permute.xlu0 %3521
      %3523 = vrot.lane.b32.xlu0 %v3512, 118
      %v3524 = vpop.permute.xlu0 %3523
      %v3529 = vadd.f32 %v3489, %v3518
      %v3530 = vadd.f32 %v3490, %v3520
      %v3531 = vadd.f32 %v3491, %v3522
      %v3532 = vadd.f32 %v3492, %v3524
      %3533 = vset.pattern.permute.xlu0 11
      %3534 = vperm.xlu0 %3533, %v3097
      %v3535 = vpop.permute.xlu0 %3534
      %3537 = vset.pattern.permute.xlu0 11
      %3538 = vperm.xlu0 %3537, %v3098
      %v3539 = vpop.permute.xlu0 %3538
      %3541 = vset.pattern.permute.xlu0 11
      %3542 = vperm.xlu0 %3541, %v3099
      %v3543 = vpop.permute.xlu0 %3542
      %3545 = vset.pattern.permute.xlu0 11
      %3546 = vperm.xlu0 %3545, %v3100
      %v3547 = vpop.permute.xlu0 %3546
      %v3549 = vmul.f32 %v3535, %v3101
      %v3550 = vmul.f32 %v3539, %v3102
      %v3551 = vmul.f32 %v3543, %v3103
      %v3552 = vmul.f32 %v3547, %v3104
      %3557 = vrot.lane.b32.xlu0 %v3549, 117
      %v3558 = vpop.permute.xlu0 %3557
      %3559 = vrot.lane.b32.xlu0 %v3550, 117
      %v3560 = vpop.permute.xlu0 %3559
      %3561 = vrot.lane.b32.xlu0 %v3551, 117
      %v3562 = vpop.permute.xlu0 %3561
      %3563 = vrot.lane.b32.xlu0 %v3552, 117
      %v3564 = vpop.permute.xlu0 %3563
      %v3569 = vadd.f32 %v3529, %v3558
      %v3570 = vadd.f32 %v3530, %v3560
      %v3571 = vadd.f32 %v3531, %v3562
      %v3572 = vadd.f32 %v3532, %v3564
      %3573 = vset.pattern.permute.xlu0 12
      %3574 = vperm.xlu0 %3573, %v3097
      %v3575 = vpop.permute.xlu0 %3574
      %3577 = vset.pattern.permute.xlu0 12
      %3578 = vperm.xlu0 %3577, %v3098
      %v3579 = vpop.permute.xlu0 %3578
      %3581 = vset.pattern.permute.xlu0 12
      %3582 = vperm.xlu0 %3581, %v3099
      %v3583 = vpop.permute.xlu0 %3582
      %3585 = vset.pattern.permute.xlu0 12
      %3586 = vperm.xlu0 %3585, %v3100
      %v3587 = vpop.permute.xlu0 %3586
      %v3589 = vmul.f32 %v3575, %v3101
      %v3590 = vmul.f32 %v3579, %v3102
      %v3591 = vmul.f32 %v3583, %v3103
      %v3592 = vmul.f32 %v3587, %v3104
      %3597 = vrot.lane.b32.xlu0 %v3589, 116
      %v3598 = vpop.permute.xlu0 %3597
      %3599 = vrot.lane.b32.xlu0 %v3590, 116
      %v3600 = vpop.permute.xlu0 %3599
      %3601 = vrot.lane.b32.xlu0 %v3591, 116
      %v3602 = vpop.permute.xlu0 %3601
      %3603 = vrot.lane.b32.xlu0 %v3592, 116
      %v3604 = vpop.permute.xlu0 %3603
      %v3609 = vadd.f32 %v3569, %v3598
      %v3610 = vadd.f32 %v3570, %v3600
      %v3611 = vadd.f32 %v3571, %v3602
      %v3612 = vadd.f32 %v3572, %v3604
      %3613 = vset.pattern.permute.xlu0 13
      %3614 = vperm.xlu0 %3613, %v3097
      %v3615 = vpop.permute.xlu0 %3614
      %3617 = vset.pattern.permute.xlu0 13
      %3618 = vperm.xlu0 %3617, %v3098
      %v3619 = vpop.permute.xlu0 %3618
      %3621 = vset.pattern.permute.xlu0 13
      %3622 = vperm.xlu0 %3621, %v3099
      %v3623 = vpop.permute.xlu0 %3622
      %3625 = vset.pattern.permute.xlu0 13
      %3626 = vperm.xlu0 %3625, %v3100
      %v3627 = vpop.permute.xlu0 %3626
      %v3629 = vmul.f32 %v3615, %v3101
      %v3630 = vmul.f32 %v3619, %v3102
      %v3631 = vmul.f32 %v3623, %v3103
      %v3632 = vmul.f32 %v3627, %v3104
      %3637 = vrot.lane.b32.xlu0 %v3629, 115
      %v3638 = vpop.permute.xlu0 %3637
      %3639 = vrot.lane.b32.xlu0 %v3630, 115
      %v3640 = vpop.permute.xlu0 %3639
      %3641 = vrot.lane.b32.xlu0 %v3631, 115
      %v3642 = vpop.permute.xlu0 %3641
      %3643 = vrot.lane.b32.xlu0 %v3632, 115
      %v3644 = vpop.permute.xlu0 %3643
      %v3649 = vadd.f32 %v3609, %v3638
      %v3650 = vadd.f32 %v3610, %v3640
      %v3651 = vadd.f32 %v3611, %v3642
      %v3652 = vadd.f32 %v3612, %v3644
      %3653 = vset.pattern.permute.xlu0 14
      %3654 = vperm.xlu0 %3653, %v3097
      %v3655 = vpop.permute.xlu0 %3654
      %3657 = vset.pattern.permute.xlu0 14
      %3658 = vperm.xlu0 %3657, %v3098
      %v3659 = vpop.permute.xlu0 %3658
      %3661 = vset.pattern.permute.xlu0 14
      %3662 = vperm.xlu0 %3661, %v3099
      %v3663 = vpop.permute.xlu0 %3662
      %3665 = vset.pattern.permute.xlu0 14
      %3666 = vperm.xlu0 %3665, %v3100
      %v3667 = vpop.permute.xlu0 %3666
      %v3669 = vmul.f32 %v3655, %v3101
      %v3670 = vmul.f32 %v3659, %v3102
      %v3671 = vmul.f32 %v3663, %v3103
      %v3672 = vmul.f32 %v3667, %v3104
      %3677 = vrot.lane.b32.xlu0 %v3669, 114
      %v3678 = vpop.permute.xlu0 %3677
      %3679 = vrot.lane.b32.xlu0 %v3670, 114
      %v3680 = vpop.permute.xlu0 %3679
      %3681 = vrot.lane.b32.xlu0 %v3671, 114
      %v3682 = vpop.permute.xlu0 %3681
      %3683 = vrot.lane.b32.xlu0 %v3672, 114
      %v3684 = vpop.permute.xlu0 %3683
      %v3689 = vadd.f32 %v3649, %v3678
      %v3690 = vadd.f32 %v3650, %v3680
      %v3691 = vadd.f32 %v3651, %v3682
      %v3692 = vadd.f32 %v3652, %v3684
      %v3693 = vsel %vm1003, %v3689, 0.0
      %v3694 = vsel %vm1003, %v3690, 0.0
      %v3695 = vadd.f32 %v3693, %v3694
      %v3696 = vsel %vm1003, %v3691, 0.0
      %v3697 = vadd.f32 %v3695, %v3696
      %v3698 = vsel %vm1003, %v3692, 0.0
      %v3699 = vadd.f32 %v3697, %v3698
      %v3700 = vrot.slane %v3699, 4
      %v3701 = vadd.f32 %v3699, %v3700
      %v3702 = vrot.slane %v3701, 2
      %v3703 = vadd.f32 %v3701, %v3702
      %v3704 = vrot.slane %v3703, 1
      %v3705 = vadd.f32 %v3703, %v3704
      %v3706 = vld [vmem:[#allocation4] sm:$0x1]
      %3708 = vset.pattern.permute.xlu0 0
      %3709 = vperm.xlu0 %3708, %v3706
      %v3710 = vpop.permute.xlu0 %3709
      %v3712 = vperm.slane %v3710, 0
      %v3713 = vadd.f32 %v3705, %v3712
      %v3714 = vsub.f32 0.0, %v3713
      %v3715 = vmul.f32 %v3714, 1.442695
      %v3716 = vpow.pop %v3715
      %v3717 = vadd.f32 %v3716, 1.0
      %v3718 = vrcp.pop %v3717
      %v3719 = vmul.f32 %v3717, %v3718
      %v3720 = vsub.f32 1.0, %v3719
      %v3721 = vmul.f32 %v3718, %v3720
      %v3722 = vadd.f32 %v3718, %v3721
      %vm3723 = vweird.f32 %v3717
      %vm3724 = vweird.f32 %v3718
      %vm3725 = vmor %vm3723, %vm3724
      %v3726 = vsel %vm3725, %v3718, %v3722
      %v3727 = vand.u32 2147483647, %v3717
      %vm3728 = vcmp.eq.f32.partialorder %v3727, 8.507059e+37
      %v3729 = vand.u32 %v3717, 2147483648
      %v3730 = vor.u32 1.1754944e-38, %v3729
      %v3731 = vsel %vm3728, %v3730, %v3726
      %v3732 = vmul.f32 1.0, %v3731
      %v3733 = vadd.f32 %v3732, 1.0
      %v3734 = vmul.f32 %v2973, %v3733
      %v3735 = vmul.f32 %v2974, %v3733
      %v3736 = vmul.f32 %v2975, %v3733
      %v3737 = vmul.f32 %v2976, %v3733
      %v3738 = vmul.f32 %v2977, %v3733
      %v3739 = vmul.f32 %v2978, %v3733
      %v3740 = vmul.f32 %v2979, %v3733
      %v3741 = vmul.f32 %v2980, %v3733
      %v3742 = vmul.f32 %v2981, %v3733
      %v3743 = vmul.f32 %v2982, %v3733
      %v3744 = vmul.f32 %v2983, %v3733
      %v3745 = vmul.f32 %v2984, %v3733
      %v3746 = vmul.f32 %v2985, %v3733
      %v3747 = vmul.f32 %v2986, %v3733
      %v3748 = vmul.f32 %v2987, %v3733
      %v3749 = vmul.f32 %v2988, %v3733
      %v3750 = vmul.f32 %v2989, %v3733
      %v3751 = vmul.f32 %v2990, %v3733
      %v3752 = vmul.f32 %v2991, %v3733
      %v3753 = vmul.f32 %v2992, %v3733
      %v3754 = vmul.f32 %v2993, %v3733
      %v3755 = vmul.f32 %v2994, %v3733
      %v3756 = vmul.f32 %v2995, %v3733
      %v3757 = vmul.f32 %v2996, %v3733
      %v3758 = vmul.f32 %v2997, %v3733
      %v3759 = vmul.f32 %v2998, %v3733
      %v3760 = vmul.f32 %v2999, %v3733
      %v3761 = vmul.f32 %v3000, %v3733
      %v3762 = vmul.f32 %v3001, %v3733
      %v3763 = vmul.f32 %v3002, %v3733
      %v3764 = vmul.f32 %v3003, %v3733
      %v3765 = vmul.f32 %v3004, %v3733
      %v3766 = vld [vmem:[%s15] sm:$0xff]
      %v3767 = vld [vmem:[%s15 + $0x8] sm:$0xff]
      %v3768 = vld [vmem:[%s15 + $0x10] sm:$0xff]
      %v3769 = vld [vmem:[%s15 + $0x18] sm:$0xff]
      %v3770 = vld [vmem:[%s15 + $0x20] sm:$0xff]
      %v3771 = vld [vmem:[%s15 + $0x28] sm:$0xff]
      %v3772 = vld [vmem:[%s15 + $0x30] sm:$0xff]
      %v3773 = vld [vmem:[%s15 + $0x38] sm:$0xff]
      %v3774 = vld [vmem:[%s15 + $0x40] sm:$0xff]
      %v3775 = vld [vmem:[%s15 + $0x48] sm:$0xff]
      %v3776 = vld [vmem:[%s15 + $0x50] sm:$0xff]
      %v3777 = vld [vmem:[%s15 + $0x58] sm:$0xff]
      %v3778 = vld [vmem:[%s15 + $0x60] sm:$0xff]
      %v3779 = vld [vmem:[%s15 + $0x68] sm:$0xff]
      %v3780 = vld [vmem:[%s15 + $0x70] sm:$0xff]
      %v3781 = vld [vmem:[%s15 + $0x78] sm:$0xff]
      %v3782 = vld [vmem:[%s15 + $0x80] sm:$0xff]
      %v3783 = vld [vmem:[%s15 + $0x88] sm:$0xff]
      %v3784 = vld [vmem:[%s15 + $0x90] sm:$0xff]
      %v3785 = vld [vmem:[%s15 + $0x98] sm:$0xff]
      %v3786 = vld [vmem:[%s15 + $0xa0] sm:$0xff]
      %v3787 = vld [vmem:[%s15 + $0xa8] sm:$0xff]
      %v3788 = vld [vmem:[%s15 + $0xb0] sm:$0xff]
      %v3789 = vld [vmem:[%s15 + $0xb8] sm:$0xff]
      %v3790 = vld [vmem:[%s15 + $0xc0] sm:$0xff]
      %v3791 = vld [vmem:[%s15 + $0xc8] sm:$0xff]
      %v3792 = vld [vmem:[%s15 + $0xd0] sm:$0xff]
      %v3793 = vld [vmem:[%s15 + $0xd8] sm:$0xff]
      %v3794 = vld [vmem:[%s15 + $0xe0] sm:$0xff]
      %v3795 = vld [vmem:[%s15 + $0xe8] sm:$0xff]
      %v3796 = vld [vmem:[%s15 + $0xf0] sm:$0xff]
      %v3797 = vld [vmem:[%s15 + $0xf8] sm:$0xff]
      %v3798 = vld [vmem:[%s15 + $0x100] sm:$0xff]
      %v3799 = vld [vmem:[%s15 + $0x108] sm:$0xff]
      %v3800 = vld [vmem:[%s15 + $0x110] sm:$0xff]
      %v3801 = vld [vmem:[%s15 + $0x118] sm:$0xff]
      %v3802 = vld [vmem:[%s15 + $0x120] sm:$0xff]
      %v3803 = vld [vmem:[%s15 + $0x128] sm:$0xff]
      %v3804 = vld [vmem:[%s15 + $0x130] sm:$0xff]
      %v3805 = vld [vmem:[%s15 + $0x138] sm:$0xff]
      %v3806 = vld [vmem:[%s15 + $0x140] sm:$0xff]
      %v3807 = vld [vmem:[%s15 + $0x148] sm:$0xff]
      %v3808 = vld [vmem:[%s15 + $0x150] sm:$0xff]
      %v3809 = vld [vmem:[%s15 + $0x158] sm:$0xff]
      %v3810 = vld [vmem:[%s15 + $0x160] sm:$0xff]
      %v3811 = vld [vmem:[%s15 + $0x168] sm:$0xff]
      %v3812 = vld [vmem:[%s15 + $0x170] sm:$0xff]
      %v3813 = vld [vmem:[%s15 + $0x178] sm:$0xff]
      %v3814 = vld [vmem:[%s15 + $0x180] sm:$0xff]
      %v3815 = vld [vmem:[%s15 + $0x188] sm:$0xff]
      %v3816 = vld [vmem:[%s15 + $0x190] sm:$0xff]
      %v3817 = vld [vmem:[%s15 + $0x198] sm:$0xff]
      %v3818 = vld [vmem:[%s15 + $0x1a0] sm:$0xff]
      %v3819 = vld [vmem:[%s15 + $0x1a8] sm:$0xff]
      %v3820 = vld [vmem:[%s15 + $0x1b0] sm:$0xff]
      %v3821 = vld [vmem:[%s15 + $0x1b8] sm:$0xff]
      %v3822 = vld [vmem:[%s15 + $0x1c0] sm:$0xff]
      %v3823 = vld [vmem:[%s15 + $0x1c8] sm:$0xff]
      %v3824 = vld [vmem:[%s15 + $0x1d0] sm:$0xff]
      %v3825 = vld [vmem:[%s15 + $0x1d8] sm:$0xff]
      %v3826 = vld [vmem:[%s15 + $0x1e0] sm:$0xff]
      %v3827 = vld [vmem:[%s15 + $0x1e8] sm:$0xff]
      %v3828 = vld [vmem:[%s15 + $0x1f0] sm:$0xff]
      %v3829 = vld [vmem:[%s15 + $0x1f8] sm:$0xff]
      %3830 = vmatpush.msra.mxu0 %v3749
      %3831 = vmatpush.msra.mxu0 %v3748
      %3832 = vmatpush.msra.mxu0 %v3747
      %3833 = vmatpush.msra.mxu0 %v3746
      %3834 = vmatpush.msra.mxu0 %v3745
      %3835 = vmatpush.msra.mxu0 %v3744
      %3836 = vmatpush.msra.mxu0 %v3743
      %3837 = vmatpush.msra.mxu0 %v3742
      %3838 = vmatpush.msra.mxu0 %v3741
      %3839 = vmatpush.msra.mxu0 %v3740
      %3840 = vmatpush.msra.mxu0 %v3739
      %3841 = vmatpush.msra.mxu0 %v3738
      %3842 = vmatpush.msra.mxu0 %v3737
      %3843 = vmatpush.msra.mxu0 %v3736
      %3844 = vmatpush.msra.mxu0 %v3735
      %3845 = vmatpush.msra.mxu0 %v3734
      %3846 = vmatmul.f32.gmra.mxu0 %v3766
      %v3847 = vpop.f32.mrf.mxu0
      %v3848 = vadd.f32 0.0, %v3847
      %3849 = vmatmul.f32.gmra.mxu0 %v3768
      %v3850 = vpop.f32.mrf.mxu0
      %v3851 = vadd.f32 0.0, %v3850
      %3852 = vmatmul.f32.gmra.mxu0 %v3770
      %v3853 = vpop.f32.mrf.mxu0
      %v3854 = vadd.f32 0.0, %v3853
      %3855 = vmatmul.f32.gmra.mxu0 %v3772
      %v3856 = vpop.f32.mrf.mxu0
      %v3857 = vadd.f32 0.0, %v3856
      %3858 = vmatmul.f32.gmra.mxu0 %v3774
      %v3859 = vpop.f32.mrf.mxu0
      %v3860 = vadd.f32 0.0, %v3859
      %3861 = vmatmul.f32.gmra.mxu0 %v3776
      %v3862 = vpop.f32.mrf.mxu0
      %v3863 = vadd.f32 0.0, %v3862
      %3864 = vmatmul.f32.gmra.mxu0 %v3778
      %v3865 = vpop.f32.mrf.mxu0
      %v3866 = vadd.f32 0.0, %v3865
      %3867 = vmatmul.f32.gmra.mxu0 %v3780
      %v3868 = vpop.f32.mrf.mxu0
      %v3869 = vadd.f32 0.0, %v3868
      %3870 = vmatmul.f32.gmra.mxu0 %v3782
      %v3871 = vpop.f32.mrf.mxu0
      %v3872 = vadd.f32 0.0, %v3871
      %3873 = vmatmul.f32.gmra.mxu0 %v3784
      %v3874 = vpop.f32.mrf.mxu0
      %v3875 = vadd.f32 0.0, %v3874
      %3876 = vmatmul.f32.gmra.mxu0 %v3786
      %v3877 = vpop.f32.mrf.mxu0
      %v3878 = vadd.f32 0.0, %v3877
      %3879 = vmatmul.f32.gmra.mxu0 %v3788
      %v3880 = vpop.f32.mrf.mxu0
      %v3881 = vadd.f32 0.0, %v3880
      %3882 = vmatmul.f32.gmra.mxu0 %v3790
      %v3883 = vpop.f32.mrf.mxu0
      %v3884 = vadd.f32 0.0, %v3883
      %3885 = vmatmul.f32.gmra.mxu0 %v3792
      %v3886 = vpop.f32.mrf.mxu0
      %v3887 = vadd.f32 0.0, %v3886
      %3888 = vmatmul.f32.gmra.mxu0 %v3794
      %v3889 = vpop.f32.mrf.mxu0
      %v3890 = vadd.f32 0.0, %v3889
      %3891 = vmatmul.f32.gmra.mxu0 %v3796
      %v3892 = vpop.f32.mrf.mxu0
      %v3893 = vadd.f32 0.0, %v3892
      %3894 = vmatmul.f32.gmra.mxu0 %v3798
      %v3895 = vpop.f32.mrf.mxu0
      %v3896 = vadd.f32 0.0, %v3895
      %3897 = vmatmul.f32.gmra.mxu0 %v3800
      %v3898 = vpop.f32.mrf.mxu0
      %v3899 = vadd.f32 0.0, %v3898
      %3900 = vmatmul.f32.gmra.mxu0 %v3802
      %v3901 = vpop.f32.mrf.mxu0
      %v3902 = vadd.f32 0.0, %v3901
      %3903 = vmatmul.f32.gmra.mxu0 %v3804
      %v3904 = vpop.f32.mrf.mxu0
      %v3905 = vadd.f32 0.0, %v3904
      %3906 = vmatmul.f32.gmra.mxu0 %v3806
      %v3907 = vpop.f32.mrf.mxu0
      %v3908 = vadd.f32 0.0, %v3907
      %3909 = vmatmul.f32.gmra.mxu0 %v3808
      %v3910 = vpop.f32.mrf.mxu0
      %v3911 = vadd.f32 0.0, %v3910
      %3912 = vmatmul.f32.gmra.mxu0 %v3810
      %v3913 = vpop.f32.mrf.mxu0
      %v3914 = vadd.f32 0.0, %v3913
      %3915 = vmatmul.f32.gmra.mxu0 %v3812
      %v3916 = vpop.f32.mrf.mxu0
      %v3917 = vadd.f32 0.0, %v3916
      %3918 = vmatmul.f32.gmra.mxu0 %v3814
      %v3919 = vpop.f32.mrf.mxu0
      %v3920 = vadd.f32 0.0, %v3919
      %3921 = vmatmul.f32.gmra.mxu0 %v3816
      %v3922 = vpop.f32.mrf.mxu0
      %v3923 = vadd.f32 0.0, %v3922
      %3924 = vmatmul.f32.gmra.mxu0 %v3818
      %v3925 = vpop.f32.mrf.mxu0
      %v3926 = vadd.f32 0.0, %v3925
      %3927 = vmatmul.f32.gmra.mxu0 %v3820
      %v3928 = vpop.f32.mrf.mxu0
      %v3929 = vadd.f32 0.0, %v3928
      %3930 = vmatmul.f32.gmra.mxu0 %v3822
      %v3931 = vpop.f32.mrf.mxu0
      %v3932 = vadd.f32 0.0, %v3931
      %3933 = vmatmul.f32.gmra.mxu0 %v3824
      %v3934 = vpop.f32.mrf.mxu0
      %v3935 = vadd.f32 0.0, %v3934
      %3936 = vmatmul.f32.gmra.mxu0 %v3826
      %v3937 = vpop.f32.mrf.mxu0
      %v3938 = vadd.f32 0.0, %v3937
      %3939 = vmatmul.f32.gmra.mxu0 %v3828
      %v3940 = vpop.f32.mrf.mxu0
      %v3941 = vadd.f32 0.0, %v3940
      %3942 = vdwg.mxu0
      %3943 = vmatpush.msra.mxu0 %v3765
      %3944 = vmatpush.msra.mxu0 %v3764
      %3945 = vmatpush.msra.mxu0 %v3763
      %3946 = vmatpush.msra.mxu0 %v3762
      %3947 = vmatpush.msra.mxu0 %v3761
      %3948 = vmatpush.msra.mxu0 %v3760
      %3949 = vmatpush.msra.mxu0 %v3759
      %3950 = vmatpush.msra.mxu0 %v3758
      %3951 = vmatpush.msra.mxu0 %v3757
      %3952 = vmatpush.msra.mxu0 %v3756
      %3953 = vmatpush.msra.mxu0 %v3755
      %3954 = vmatpush.msra.mxu0 %v3754
      %3955 = vmatpush.msra.mxu0 %v3753
      %3956 = vmatpush.msra.mxu0 %v3752
      %3957 = vmatpush.msra.mxu0 %v3751
      %3958 = vmatpush.msra.mxu0 %v3750
      %3959 = vmatmul.f32.gmra.mxu0 %v3767
      %v3960 = vpop.f32.mrf.mxu0
      %v3961 = vadd.f32 %v3848, %v3960
      %3962 = vmatmul.f32.gmra.mxu0 %v3769
      %v3963 = vpop.f32.mrf.mxu0
      %v3964 = vadd.f32 %v3851, %v3963
      %3965 = vmatmul.f32.gmra.mxu0 %v3771
      %v3966 = vpop.f32.mrf.mxu0
      %v3967 = vadd.f32 %v3854, %v3966
      %3968 = vmatmul.f32.gmra.mxu0 %v3773
      %v3969 = vpop.f32.mrf.mxu0
      %v3970 = vadd.f32 %v3857, %v3969
      %3971 = vmatmul.f32.gmra.mxu0 %v3775
      %v3972 = vpop.f32.mrf.mxu0
      %v3973 = vadd.f32 %v3860, %v3972
      %3974 = vmatmul.f32.gmra.mxu0 %v3777
      %v3975 = vpop.f32.mrf.mxu0
      %v3976 = vadd.f32 %v3863, %v3975
      %3977 = vmatmul.f32.gmra.mxu0 %v3779
      %v3978 = vpop.f32.mrf.mxu0
      %v3979 = vadd.f32 %v3866, %v3978
      %3980 = vmatmul.f32.gmra.mxu0 %v3781
      %v3981 = vpop.f32.mrf.mxu0
      %v3982 = vadd.f32 %v3869, %v3981
      %3983 = vmatmul.f32.gmra.mxu0 %v3783
      %v3984 = vpop.f32.mrf.mxu0
      %v3985 = vadd.f32 %v3872, %v3984
      %3986 = vmatmul.f32.gmra.mxu0 %v3785
      %v3987 = vpop.f32.mrf.mxu0
      %v3988 = vadd.f32 %v3875, %v3987
      %3989 = vmatmul.f32.gmra.mxu0 %v3787
      %v3990 = vpop.f32.mrf.mxu0
      %v3991 = vadd.f32 %v3878, %v3990
      %3992 = vmatmul.f32.gmra.mxu0 %v3789
      %v3993 = vpop.f32.mrf.mxu0
      %v3994 = vadd.f32 %v3881, %v3993
      %3995 = vmatmul.f32.gmra.mxu0 %v3791
      %v3996 = vpop.f32.mrf.mxu0
      %v3997 = vadd.f32 %v3884, %v3996
      %3998 = vmatmul.f32.gmra.mxu0 %v3793
      %v3999 = vpop.f32.mrf.mxu0
      %v4000 = vadd.f32 %v3887, %v3999
      %4001 = vmatmul.f32.gmra.mxu0 %v3795
      %v4002 = vpop.f32.mrf.mxu0
      %v4003 = vadd.f32 %v3890, %v4002
      %4004 = vmatmul.f32.gmra.mxu0 %v3797
      %v4005 = vpop.f32.mrf.mxu0
      %v4006 = vadd.f32 %v3893, %v4005
      %4007 = vmatmul.f32.gmra.mxu0 %v3799
      %v4008 = vpop.f32.mrf.mxu0
      %v4009 = vadd.f32 %v3896, %v4008
      %4010 = vmatmul.f32.gmra.mxu0 %v3801
      %v4011 = vpop.f32.mrf.mxu0
      %v4012 = vadd.f32 %v3899, %v4011
      %4013 = vmatmul.f32.gmra.mxu0 %v3803
      %v4014 = vpop.f32.mrf.mxu0
      %v4015 = vadd.f32 %v3902, %v4014
      %4016 = vmatmul.f32.gmra.mxu0 %v3805
      %v4017 = vpop.f32.mrf.mxu0
      %v4018 = vadd.f32 %v3905, %v4017
      %4019 = vmatmul.f32.gmra.mxu0 %v3807
      %v4020 = vpop.f32.mrf.mxu0
      %v4021 = vadd.f32 %v3908, %v4020
      %4022 = vmatmul.f32.gmra.mxu0 %v3809
      %v4023 = vpop.f32.mrf.mxu0
      %v4024 = vadd.f32 %v3911, %v4023
      %4025 = vmatmul.f32.gmra.mxu0 %v3811
      %v4026 = vpop.f32.mrf.mxu0
      %v4027 = vadd.f32 %v3914, %v4026
      %4028 = vmatmul.f32.gmra.mxu0 %v3813
      %v4029 = vpop.f32.mrf.mxu0
      %v4030 = vadd.f32 %v3917, %v4029
      %4031 = vmatmul.f32.gmra.mxu0 %v3815
      %v4032 = vpop.f32.mrf.mxu0
      %v4033 = vadd.f32 %v3920, %v4032
      %4034 = vmatmul.f32.gmra.mxu0 %v3817
      %v4035 = vpop.f32.mrf.mxu0
      %v4036 = vadd.f32 %v3923, %v4035
      %4037 = vmatmul.f32.gmra.mxu0 %v3819
      %v4038 = vpop.f32.mrf.mxu0
      %v4039 = vadd.f32 %v3926, %v4038
      %4040 = vmatmul.f32.gmra.mxu0 %v3821
      %v4041 = vpop.f32.mrf.mxu0
      %v4042 = vadd.f32 %v3929, %v4041
      %4043 = vmatmul.f32.gmra.mxu0 %v3823
      %v4044 = vpop.f32.mrf.mxu0
      %v4045 = vadd.f32 %v3932, %v4044
      %4046 = vmatmul.f32.gmra.mxu0 %v3825
      %v4047 = vpop.f32.mrf.mxu0
      %v4048 = vadd.f32 %v3935, %v4047
      %4049 = vmatmul.f32.gmra.mxu0 %v3827
      %v4050 = vpop.f32.mrf.mxu0
      %v4051 = vadd.f32 %v3938, %v4050
      %4052 = vmatmul.f32.gmra.mxu0 %v3829
      %v4053 = vpop.f32.mrf.mxu0
      %v4054 = vadd.f32 %v3941, %v4053
      %4055 = vdwg.mxu0
      %v4056 = vsel %vm1003, %v3961, 0.0
      %4057 = vadd.xlane.f32.xlu0 %v4056
      %v4058 = vpop.xlane.xlu0 %4057
      %v4059 = vsel %vm1003, %v3964, 0.0
      %4060 = vadd.xlane.f32.xlu0 %v4059
      %v4061 = vpop.xlane.xlu0 %4060
      %v4062 = vsel %vm1003, %v3967, 0.0
      %4063 = vadd.xlane.f32.xlu0 %v4062
      %v4064 = vpop.xlane.xlu0 %4063
      %v4065 = vsel %vm1003, %v3970, 0.0
      %4066 = vadd.xlane.f32.xlu0 %v4065
      %v4067 = vpop.xlane.xlu0 %4066
      %v4068 = vsel %vm1003, %v3973, 0.0
      %4069 = vadd.xlane.f32.xlu0 %v4068
      %v4070 = vpop.xlane.xlu0 %4069
      %v4071 = vsel %vm1003, %v3976, 0.0
      %4072 = vadd.xlane.f32.xlu0 %v4071
      %v4073 = vpop.xlane.xlu0 %4072
      %v4074 = vsel %vm1003, %v3979, 0.0
      %4075 = vadd.xlane.f32.xlu0 %v4074
      %v4076 = vpop.xlane.xlu0 %4075
      %v4077 = vsel %vm1003, %v3982, 0.0
      %4078 = vadd.xlane.f32.xlu0 %v4077
      %v4079 = vpop.xlane.xlu0 %4078
      %v4080 = vsel %vm1003, %v3985, 0.0
      %4081 = vadd.xlane.f32.xlu0 %v4080
      %v4082 = vpop.xlane.xlu0 %4081
      %v4083 = vsel %vm1003, %v3988, 0.0
      %4084 = vadd.xlane.f32.xlu0 %v4083
      %v4085 = vpop.xlane.xlu0 %4084
      %v4086 = vsel %vm1003, %v3991, 0.0
      %4087 = vadd.xlane.f32.xlu0 %v4086
      %v4088 = vpop.xlane.xlu0 %4087
      %v4089 = vsel %vm1003, %v3994, 0.0
      %4090 = vadd.xlane.f32.xlu0 %v4089
      %v4091 = vpop.xlane.xlu0 %4090
      %v4092 = vsel %vm1003, %v3997, 0.0
      %4093 = vadd.xlane.f32.xlu0 %v4092
      %v4094 = vpop.xlane.xlu0 %4093
      %v4095 = vsel %vm1003, %v4000, 0.0
      %4096 = vadd.xlane.f32.xlu0 %v4095
      %v4097 = vpop.xlane.xlu0 %4096
      %v4098 = vsel %vm1003, %v4003, 0.0
      %4099 = vadd.xlane.f32.xlu0 %v4098
      %v4100 = vpop.xlane.xlu0 %4099
      %v4101 = vsel %vm1003, %v4006, 0.0
      %4102 = vadd.xlane.f32.xlu0 %v4101
      %v4103 = vpop.xlane.xlu0 %4102
      %v4104 = vsel %vm1003, %v4009, 0.0
      %4105 = vadd.xlane.f32.xlu0 %v4104
      %v4106 = vpop.xlane.xlu0 %4105
      %v4107 = vsel %vm1003, %v4012, 0.0
      %4108 = vadd.xlane.f32.xlu0 %v4107
      %v4109 = vpop.xlane.xlu0 %4108
      %v4110 = vsel %vm1003, %v4015, 0.0
      %4111 = vadd.xlane.f32.xlu0 %v4110
      %v4112 = vpop.xlane.xlu0 %4111
      %v4113 = vsel %vm1003, %v4018, 0.0
      %4114 = vadd.xlane.f32.xlu0 %v4113
      %v4115 = vpop.xlane.xlu0 %4114
      %v4116 = vsel %vm1003, %v4021, 0.0
      %4117 = vadd.xlane.f32.xlu0 %v4116
      %v4118 = vpop.xlane.xlu0 %4117
      %v4119 = vsel %vm1003, %v4024, 0.0
      %4120 = vadd.xlane.f32.xlu0 %v4119
      %v4121 = vpop.xlane.xlu0 %4120
      %v4122 = vsel %vm1003, %v4027, 0.0
      %4123 = vadd.xlane.f32.xlu0 %v4122
      %v4124 = vpop.xlane.xlu0 %4123
      %v4125 = vsel %vm1003, %v4030, 0.0
      %4126 = vadd.xlane.f32.xlu0 %v4125
      %v4127 = vpop.xlane.xlu0 %4126
      %v4128 = vsel %vm1003, %v4033, 0.0
      %4129 = vadd.xlane.f32.xlu0 %v4128
      %v4130 = vpop.xlane.xlu0 %4129
      %v4131 = vsel %vm1003, %v4036, 0.0
      %4132 = vadd.xlane.f32.xlu0 %v4131
      %v4133 = vpop.xlane.xlu0 %4132
      %v4134 = vsel %vm1003, %v4039, 0.0
      %4135 = vadd.xlane.f32.xlu0 %v4134
      %v4136 = vpop.xlane.xlu0 %4135
      %v4137 = vsel %vm1003, %v4042, 0.0
      %4138 = vadd.xlane.f32.xlu0 %v4137
      %v4139 = vpop.xlane.xlu0 %4138
      %v4140 = vsel %vm1003, %v4045, 0.0
      %4141 = vadd.xlane.f32.xlu0 %v4140
      %v4142 = vpop.xlane.xlu0 %4141
      %v4143 = vsel %vm1003, %v4048, 0.0
      %4144 = vadd.xlane.f32.xlu0 %v4143
      %v4145 = vpop.xlane.xlu0 %4144
      %v4146 = vsel %vm1003, %v4051, 0.0
      %4147 = vadd.xlane.f32.xlu0 %v4146
      %v4148 = vpop.xlane.xlu0 %4147
      %v4149 = vsel %vm1003, %v4054, 0.0
      %4150 = vadd.xlane.f32.xlu0 %v4149
      %v4151 = vpop.xlane.xlu0 %4150
      %v4152 = vmul.f32 %v4058, 0.0625
      %v4153 = vmul.f32 %v4061, 0.0625
      %v4154 = vmul.f32 %v4064, 0.0625
      %v4155 = vmul.f32 %v4067, 0.0625
      %v4156 = vmul.f32 %v4070, 0.0625
      %v4157 = vmul.f32 %v4073, 0.0625
      %v4158 = vmul.f32 %v4076, 0.0625
      %v4159 = vmul.f32 %v4079, 0.0625
      %v4160 = vmul.f32 %v4082, 0.0625
      %v4161 = vmul.f32 %v4085, 0.0625
      %v4162 = vmul.f32 %v4088, 0.0625
      %v4163 = vmul.f32 %v4091, 0.0625
      %v4164 = vmul.f32 %v4094, 0.0625
      %v4165 = vmul.f32 %v4097, 0.0625
      %v4166 = vmul.f32 %v4100, 0.0625
      %v4167 = vmul.f32 %v4103, 0.0625
      %v4168 = vmul.f32 %v4106, 0.0625
      %v4169 = vmul.f32 %v4109, 0.0625
      %v4170 = vmul.f32 %v4112, 0.0625
      %v4171 = vmul.f32 %v4115, 0.0625
      %v4172 = vmul.f32 %v4118, 0.0625
      %v4173 = vmul.f32 %v4121, 0.0625
      %v4174 = vmul.f32 %v4124, 0.0625
      %v4175 = vmul.f32 %v4127, 0.0625
      %v4176 = vmul.f32 %v4130, 0.0625
      %v4177 = vmul.f32 %v4133, 0.0625
      %v4178 = vmul.f32 %v4136, 0.0625
      %v4179 = vmul.f32 %v4139, 0.0625
      %v4180 = vmul.f32 %v4142, 0.0625
      %v4181 = vmul.f32 %v4145, 0.0625
      %v4182 = vmul.f32 %v4148, 0.0625
      %v4183 = vmul.f32 %v4151, 0.0625
      %v4184 = vld [vmem:[#allocation5] sm:$0x1]
      %v4186 = vperm.slane %v4184, 0
      %v4188 = vadd.f32 %v4152, %v4186
      %v4189 = vadd.f32 %v4153, %v4186
      %v4190 = vadd.f32 %v4154, %v4186
      %v4191 = vadd.f32 %v4155, %v4186
      %v4192 = vadd.f32 %v4156, %v4186
      %v4193 = vadd.f32 %v4157, %v4186
      %v4194 = vadd.f32 %v4158, %v4186
      %v4195 = vadd.f32 %v4159, %v4186
      %v4196 = vadd.f32 %v4160, %v4186
      %v4197 = vadd.f32 %v4161, %v4186
      %v4198 = vadd.f32 %v4162, %v4186
      %v4199 = vadd.f32 %v4163, %v4186
      %v4200 = vadd.f32 %v4164, %v4186
      %v4201 = vadd.f32 %v4165, %v4186
      %v4202 = vadd.f32 %v4166, %v4186
      %v4203 = vadd.f32 %v4167, %v4186
      %v4204 = vadd.f32 %v4168, %v4186
      %v4205 = vadd.f32 %v4169, %v4186
      %v4206 = vadd.f32 %v4170, %v4186
      %v4207 = vadd.f32 %v4171, %v4186
      %v4208 = vadd.f32 %v4172, %v4186
      %v4209 = vadd.f32 %v4173, %v4186
      %v4210 = vadd.f32 %v4174, %v4186
      %v4211 = vadd.f32 %v4175, %v4186
      %v4212 = vadd.f32 %v4176, %v4186
      %v4213 = vadd.f32 %v4177, %v4186
      %v4214 = vadd.f32 %v4178, %v4186
      %v4215 = vadd.f32 %v4179, %v4186
      %v4216 = vadd.f32 %v4180, %v4186
      %v4217 = vadd.f32 %v4181, %v4186
      %v4218 = vadd.f32 %v4182, %v4186
      %v4219 = vadd.f32 %v4183, %v4186
      %v4220 = vsub.f32 0.0, %v4188
      %v4221 = vsub.f32 0.0, %v4189
      %v4222 = vsub.f32 0.0, %v4190
      %v4223 = vsub.f32 0.0, %v4191
      %v4224 = vsub.f32 0.0, %v4192
      %v4225 = vsub.f32 0.0, %v4193
      %v4226 = vsub.f32 0.0, %v4194
      %v4227 = vsub.f32 0.0, %v4195
      %v4228 = vsub.f32 0.0, %v4196
      %v4229 = vsub.f32 0.0, %v4197
      %v4230 = vsub.f32 0.0, %v4198
      %v4231 = vsub.f32 0.0, %v4199
      %v4232 = vsub.f32 0.0, %v4200
      %v4233 = vsub.f32 0.0, %v4201
      %v4234 = vsub.f32 0.0, %v4202
      %v4235 = vsub.f32 0.0, %v4203
      %v4236 = vsub.f32 0.0, %v4204
      %v4237 = vsub.f32 0.0, %v4205
      %v4238 = vsub.f32 0.0, %v4206
      %v4239 = vsub.f32 0.0, %v4207
      %v4240 = vsub.f32 0.0, %v4208
      %v4241 = vsub.f32 0.0, %v4209
      %v4242 = vsub.f32 0.0, %v4210
      %v4243 = vsub.f32 0.0, %v4211
      %v4244 = vsub.f32 0.0, %v4212
      %v4245 = vsub.f32 0.0, %v4213
      %v4246 = vsub.f32 0.0, %v4214
      %v4247 = vsub.f32 0.0, %v4215
      %v4248 = vsub.f32 0.0, %v4216
      %v4249 = vsub.f32 0.0, %v4217
      %v4250 = vsub.f32 0.0, %v4218
      %v4251 = vsub.f32 0.0, %v4219
      %v4252 = vmul.f32 %v4220, 1.442695
      %v4253 = vpow.pop %v4252
      %v4254 = vmul.f32 %v4221, 1.442695
      %v4255 = vpow.pop %v4254
      %v4256 = vmul.f32 %v4222, 1.442695
      %v4257 = vpow.pop %v4256
      %v4258 = vmul.f32 %v4223, 1.442695
      %v4259 = vpow.pop %v4258
      %v4260 = vmul.f32 %v4224, 1.442695
      %v4261 = vpow.pop %v4260
      %v4262 = vmul.f32 %v4225, 1.442695
      %v4263 = vpow.pop %v4262
      %v4264 = vmul.f32 %v4226, 1.442695
      %v4265 = vpow.pop %v4264
      %v4266 = vmul.f32 %v4227, 1.442695
      %v4267 = vpow.pop %v4266
      %v4268 = vmul.f32 %v4228, 1.442695
      %v4269 = vpow.pop %v4268
      %v4270 = vmul.f32 %v4229, 1.442695
      %v4271 = vpow.pop %v4270
      %v4272 = vmul.f32 %v4230, 1.442695
      %v4273 = vpow.pop %v4272
      %v4274 = vmul.f32 %v4231, 1.442695
      %v4275 = vpow.pop %v4274
      %v4276 = vmul.f32 %v4232, 1.442695
      %v4277 = vpow.pop %v4276
      %v4278 = vmul.f32 %v4233, 1.442695
      %v4279 = vpow.pop %v4278
      %v4280 = vmul.f32 %v4234, 1.442695
      %v4281 = vpow.pop %v4280
      %v4282 = vmul.f32 %v4235, 1.442695
      %v4283 = vpow.pop %v4282
      %v4284 = vmul.f32 %v4236, 1.442695
      %v4285 = vpow.pop %v4284
      %v4286 = vmul.f32 %v4237, 1.442695
      %v4287 = vpow.pop %v4286
      %v4288 = vmul.f32 %v4238, 1.442695
      %v4289 = vpow.pop %v4288
      %v4290 = vmul.f32 %v4239, 1.442695
      %v4291 = vpow.pop %v4290
      %v4292 = vmul.f32 %v4240, 1.442695
      %v4293 = vpow.pop %v4292
      %v4294 = vmul.f32 %v4241, 1.442695
      %v4295 = vpow.pop %v4294
      %v4296 = vmul.f32 %v4242, 1.442695
      %v4297 = vpow.pop %v4296
      %v4298 = vmul.f32 %v4243, 1.442695
      %v4299 = vpow.pop %v4298
      %v4300 = vmul.f32 %v4244, 1.442695
      %v4301 = vpow.pop %v4300
      %v4302 = vmul.f32 %v4245, 1.442695
      %v4303 = vpow.pop %v4302
      %v4304 = vmul.f32 %v4246, 1.442695
      %v4305 = vpow.pop %v4304
      %v4306 = vmul.f32 %v4247, 1.442695
      %v4307 = vpow.pop %v4306
      %v4308 = vmul.f32 %v4248, 1.442695
      %v4309 = vpow.pop %v4308
      %v4310 = vmul.f32 %v4249, 1.442695
      %v4311 = vpow.pop %v4310
      %v4312 = vmul.f32 %v4250, 1.442695
      %v4313 = vpow.pop %v4312
      %v4314 = vmul.f32 %v4251, 1.442695
      %v4315 = vpow.pop %v4314
      %v4316 = vadd.f32 %v4253, 1.0
      %v4317 = vadd.f32 %v4255, 1.0
      %v4318 = vadd.f32 %v4257, 1.0
      %v4319 = vadd.f32 %v4259, 1.0
      %v4320 = vadd.f32 %v4261, 1.0
      %v4321 = vadd.f32 %v4263, 1.0
      %v4322 = vadd.f32 %v4265, 1.0
      %v4323 = vadd.f32 %v4267, 1.0
      %v4324 = vadd.f32 %v4269, 1.0
      %v4325 = vadd.f32 %v4271, 1.0
      %v4326 = vadd.f32 %v4273, 1.0
      %v4327 = vadd.f32 %v4275, 1.0
      %v4328 = vadd.f32 %v4277, 1.0
      %v4329 = vadd.f32 %v4279, 1.0
      %v4330 = vadd.f32 %v4281, 1.0
      %v4331 = vadd.f32 %v4283, 1.0
      %v4332 = vadd.f32 %v4285, 1.0
      %v4333 = vadd.f32 %v4287, 1.0
      %v4334 = vadd.f32 %v4289, 1.0
      %v4335 = vadd.f32 %v4291, 1.0
      %v4336 = vadd.f32 %v4293, 1.0
      %v4337 = vadd.f32 %v4295, 1.0
      %v4338 = vadd.f32 %v4297, 1.0
      %v4339 = vadd.f32 %v4299, 1.0
      %v4340 = vadd.f32 %v4301, 1.0
      %v4341 = vadd.f32 %v4303, 1.0
      %v4342 = vadd.f32 %v4305, 1.0
      %v4343 = vadd.f32 %v4307, 1.0
      %v4344 = vadd.f32 %v4309, 1.0
      %v4345 = vadd.f32 %v4311, 1.0
      %v4346 = vadd.f32 %v4313, 1.0
      %v4347 = vadd.f32 %v4315, 1.0
      %v4348 = vrcp.pop %v4316
      %v4349 = vmul.f32 %v4316, %v4348
      %v4350 = vsub.f32 1.0, %v4349
      %v4351 = vmul.f32 %v4348, %v4350
      %v4352 = vadd.f32 %v4348, %v4351
      %vm4353 = vweird.f32 %v4316
      %vm4354 = vweird.f32 %v4348
      %vm4355 = vmor %vm4353, %vm4354
      %v4356 = vsel %vm4355, %v4348, %v4352
      %v4357 = vand.u32 2147483647, %v4316
      %vm4358 = vcmp.eq.f32.partialorder %v4357, 8.507059e+37
      %v4359 = vand.u32 %v4316, 2147483648
      %v4360 = vor.u32 1.1754944e-38, %v4359
      %v4361 = vsel %vm4358, %v4360, %v4356
      %v4362 = vmul.f32 1.0, %v4361
      %v4363 = vrcp.pop %v4317
      %v4364 = vmul.f32 %v4317, %v4363
      %v4365 = vsub.f32 1.0, %v4364
      %v4366 = vmul.f32 %v4363, %v4365
      %v4367 = vadd.f32 %v4363, %v4366
      %vm4368 = vweird.f32 %v4317
      %vm4369 = vweird.f32 %v4363
      %vm4370 = vmor %vm4368, %vm4369
      %v4371 = vsel %vm4370, %v4363, %v4367
      %v4372 = vand.u32 2147483647, %v4317
      %vm4373 = vcmp.eq.f32.partialorder %v4372, 8.507059e+37
      %v4374 = vand.u32 %v4317, 2147483648
      %v4375 = vor.u32 1.1754944e-38, %v4374
      %v4376 = vsel %vm4373, %v4375, %v4371
      %v4377 = vmul.f32 1.0, %v4376
      %v4378 = vrcp.pop %v4318
      %v4379 = vmul.f32 %v4318, %v4378
      %v4380 = vsub.f32 1.0, %v4379
      %v4381 = vmul.f32 %v4378, %v4380
      %v4382 = vadd.f32 %v4378, %v4381
      %vm4383 = vweird.f32 %v4318
      %vm4384 = vweird.f32 %v4378
      %vm4385 = vmor %vm4383, %vm4384
      %v4386 = vsel %vm4385, %v4378, %v4382
      %v4387 = vand.u32 2147483647, %v4318
      %vm4388 = vcmp.eq.f32.partialorder %v4387, 8.507059e+37
      %v4389 = vand.u32 %v4318, 2147483648
      %v4390 = vor.u32 1.1754944e-38, %v4389
      %v4391 = vsel %vm4388, %v4390, %v4386
      %v4392 = vmul.f32 1.0, %v4391
      %v4393 = vrcp.pop %v4319
      %v4394 = vmul.f32 %v4319, %v4393
      %v4395 = vsub.f32 1.0, %v4394
      %v4396 = vmul.f32 %v4393, %v4395
      %v4397 = vadd.f32 %v4393, %v4396
      %vm4398 = vweird.f32 %v4319
      %vm4399 = vweird.f32 %v4393
      %vm4400 = vmor %vm4398, %vm4399
      %v4401 = vsel %vm4400, %v4393, %v4397
      %v4402 = vand.u32 2147483647, %v4319
      %vm4403 = vcmp.eq.f32.partialorder %v4402, 8.507059e+37
      %v4404 = vand.u32 %v4319, 2147483648
      %v4405 = vor.u32 1.1754944e-38, %v4404
      %v4406 = vsel %vm4403, %v4405, %v4401
      %v4407 = vmul.f32 1.0, %v4406
      %v4408 = vrcp.pop %v4320
      %v4409 = vmul.f32 %v4320, %v4408
      %v4410 = vsub.f32 1.0, %v4409
      %v4411 = vmul.f32 %v4408, %v4410
      %v4412 = vadd.f32 %v4408, %v4411
      %vm4413 = vweird.f32 %v4320
      %vm4414 = vweird.f32 %v4408
      %vm4415 = vmor %vm4413, %vm4414
      %v4416 = vsel %vm4415, %v4408, %v4412
      %v4417 = vand.u32 2147483647, %v4320
      %vm4418 = vcmp.eq.f32.partialorder %v4417, 8.507059e+37
      %v4419 = vand.u32 %v4320, 2147483648
      %v4420 = vor.u32 1.1754944e-38, %v4419
      %v4421 = vsel %vm4418, %v4420, %v4416
      %v4422 = vmul.f32 1.0, %v4421
      %v4423 = vrcp.pop %v4321
      %v4424 = vmul.f32 %v4321, %v4423
      %v4425 = vsub.f32 1.0, %v4424
      %v4426 = vmul.f32 %v4423, %v4425
      %v4427 = vadd.f32 %v4423, %v4426
      %vm4428 = vweird.f32 %v4321
      %vm4429 = vweird.f32 %v4423
      %vm4430 = vmor %vm4428, %vm4429
      %v4431 = vsel %vm4430, %v4423, %v4427
      %v4432 = vand.u32 2147483647, %v4321
      %vm4433 = vcmp.eq.f32.partialorder %v4432, 8.507059e+37
      %v4434 = vand.u32 %v4321, 2147483648
      %v4435 = vor.u32 1.1754944e-38, %v4434
      %v4436 = vsel %vm4433, %v4435, %v4431
      %v4437 = vmul.f32 1.0, %v4436
      %v4438 = vrcp.pop %v4322
      %v4439 = vmul.f32 %v4322, %v4438
      %v4440 = vsub.f32 1.0, %v4439
      %v4441 = vmul.f32 %v4438, %v4440
      %v4442 = vadd.f32 %v4438, %v4441
      %vm4443 = vweird.f32 %v4322
      %vm4444 = vweird.f32 %v4438
      %vm4445 = vmor %vm4443, %vm4444
      %v4446 = vsel %vm4445, %v4438, %v4442
      %v4447 = vand.u32 2147483647, %v4322
      %vm4448 = vcmp.eq.f32.partialorder %v4447, 8.507059e+37
      %v4449 = vand.u32 %v4322, 2147483648
      %v4450 = vor.u32 1.1754944e-38, %v4449
      %v4451 = vsel %vm4448, %v4450, %v4446
      %v4452 = vmul.f32 1.0, %v4451
      %v4453 = vrcp.pop %v4323
      %v4454 = vmul.f32 %v4323, %v4453
      %v4455 = vsub.f32 1.0, %v4454
      %v4456 = vmul.f32 %v4453, %v4455
      %v4457 = vadd.f32 %v4453, %v4456
      %vm4458 = vweird.f32 %v4323
      %vm4459 = vweird.f32 %v4453
      %vm4460 = vmor %vm4458, %vm4459
      %v4461 = vsel %vm4460, %v4453, %v4457
      %v4462 = vand.u32 2147483647, %v4323
      %vm4463 = vcmp.eq.f32.partialorder %v4462, 8.507059e+37
      %v4464 = vand.u32 %v4323, 2147483648
      %v4465 = vor.u32 1.1754944e-38, %v4464
      %v4466 = vsel %vm4463, %v4465, %v4461
      %v4467 = vmul.f32 1.0, %v4466
      %v4468 = vrcp.pop %v4324
      %v4469 = vmul.f32 %v4324, %v4468
      %v4470 = vsub.f32 1.0, %v4469
      %v4471 = vmul.f32 %v4468, %v4470
      %v4472 = vadd.f32 %v4468, %v4471
      %vm4473 = vweird.f32 %v4324
      %vm4474 = vweird.f32 %v4468
      %vm4475 = vmor %vm4473, %vm4474
      %v4476 = vsel %vm4475, %v4468, %v4472
      %v4477 = vand.u32 2147483647, %v4324
      %vm4478 = vcmp.eq.f32.partialorder %v4477, 8.507059e+37
      %v4479 = vand.u32 %v4324, 2147483648
      %v4480 = vor.u32 1.1754944e-38, %v4479
      %v4481 = vsel %vm4478, %v4480, %v4476
      %v4482 = vmul.f32 1.0, %v4481
      %v4483 = vrcp.pop %v4325
      %v4484 = vmul.f32 %v4325, %v4483
      %v4485 = vsub.f32 1.0, %v4484
      %v4486 = vmul.f32 %v4483, %v4485
      %v4487 = vadd.f32 %v4483, %v4486
      %vm4488 = vweird.f32 %v4325
      %vm4489 = vweird.f32 %v4483
      %vm4490 = vmor %vm4488, %vm4489
      %v4491 = vsel %vm4490, %v4483, %v4487
      %v4492 = vand.u32 2147483647, %v4325
      %vm4493 = vcmp.eq.f32.partialorder %v4492, 8.507059e+37
      %v4494 = vand.u32 %v4325, 2147483648
      %v4495 = vor.u32 1.1754944e-38, %v4494
      %v4496 = vsel %vm4493, %v4495, %v4491
      %v4497 = vmul.f32 1.0, %v4496
      %v4498 = vrcp.pop %v4326
      %v4499 = vmul.f32 %v4326, %v4498
      %v4500 = vsub.f32 1.0, %v4499
      %v4501 = vmul.f32 %v4498, %v4500
      %v4502 = vadd.f32 %v4498, %v4501
      %vm4503 = vweird.f32 %v4326
      %vm4504 = vweird.f32 %v4498
      %vm4505 = vmor %vm4503, %vm4504
      %v4506 = vsel %vm4505, %v4498, %v4502
      %v4507 = vand.u32 2147483647, %v4326
      %vm4508 = vcmp.eq.f32.partialorder %v4507, 8.507059e+37
      %v4509 = vand.u32 %v4326, 2147483648
      %v4510 = vor.u32 1.1754944e-38, %v4509
      %v4511 = vsel %vm4508, %v4510, %v4506
      %v4512 = vmul.f32 1.0, %v4511
      %v4513 = vrcp.pop %v4327
      %v4514 = vmul.f32 %v4327, %v4513
      %v4515 = vsub.f32 1.0, %v4514
      %v4516 = vmul.f32 %v4513, %v4515
      %v4517 = vadd.f32 %v4513, %v4516
      %vm4518 = vweird.f32 %v4327
      %vm4519 = vweird.f32 %v4513
      %vm4520 = vmor %vm4518, %vm4519
      %v4521 = vsel %vm4520, %v4513, %v4517
      %v4522 = vand.u32 2147483647, %v4327
      %vm4523 = vcmp.eq.f32.partialorder %v4522, 8.507059e+37
      %v4524 = vand.u32 %v4327, 2147483648
      %v4525 = vor.u32 1.1754944e-38, %v4524
      %v4526 = vsel %vm4523, %v4525, %v4521
      %v4527 = vmul.f32 1.0, %v4526
      %v4528 = vrcp.pop %v4328
      %v4529 = vmul.f32 %v4328, %v4528
      %v4530 = vsub.f32 1.0, %v4529
      %v4531 = vmul.f32 %v4528, %v4530
      %v4532 = vadd.f32 %v4528, %v4531
      %vm4533 = vweird.f32 %v4328
      %vm4534 = vweird.f32 %v4528
      %vm4535 = vmor %vm4533, %vm4534
      %v4536 = vsel %vm4535, %v4528, %v4532
      %v4537 = vand.u32 2147483647, %v4328
      %vm4538 = vcmp.eq.f32.partialorder %v4537, 8.507059e+37
      %v4539 = vand.u32 %v4328, 2147483648
      %v4540 = vor.u32 1.1754944e-38, %v4539
      %v4541 = vsel %vm4538, %v4540, %v4536
      %v4542 = vmul.f32 1.0, %v4541
      %v4543 = vrcp.pop %v4329
      %v4544 = vmul.f32 %v4329, %v4543
      %v4545 = vsub.f32 1.0, %v4544
      %v4546 = vmul.f32 %v4543, %v4545
      %v4547 = vadd.f32 %v4543, %v4546
      %vm4548 = vweird.f32 %v4329
      %vm4549 = vweird.f32 %v4543
      %vm4550 = vmor %vm4548, %vm4549
      %v4551 = vsel %vm4550, %v4543, %v4547
      %v4552 = vand.u32 2147483647, %v4329
      %vm4553 = vcmp.eq.f32.partialorder %v4552, 8.507059e+37
      %v4554 = vand.u32 %v4329, 2147483648
      %v4555 = vor.u32 1.1754944e-38, %v4554
      %v4556 = vsel %vm4553, %v4555, %v4551
      %v4557 = vmul.f32 1.0, %v4556
      %v4558 = vrcp.pop %v4330
      %v4559 = vmul.f32 %v4330, %v4558
      %v4560 = vsub.f32 1.0, %v4559
      %v4561 = vmul.f32 %v4558, %v4560
      %v4562 = vadd.f32 %v4558, %v4561
      %vm4563 = vweird.f32 %v4330
      %vm4564 = vweird.f32 %v4558
      %vm4565 = vmor %vm4563, %vm4564
      %v4566 = vsel %vm4565, %v4558, %v4562
      %v4567 = vand.u32 2147483647, %v4330
      %vm4568 = vcmp.eq.f32.partialorder %v4567, 8.507059e+37
      %v4569 = vand.u32 %v4330, 2147483648
      %v4570 = vor.u32 1.1754944e-38, %v4569
      %v4571 = vsel %vm4568, %v4570, %v4566
      %v4572 = vmul.f32 1.0, %v4571
      %v4573 = vrcp.pop %v4331
      %v4574 = vmul.f32 %v4331, %v4573
      %v4575 = vsub.f32 1.0, %v4574
      %v4576 = vmul.f32 %v4573, %v4575
      %v4577 = vadd.f32 %v4573, %v4576
      %vm4578 = vweird.f32 %v4331
      %vm4579 = vweird.f32 %v4573
      %vm4580 = vmor %vm4578, %vm4579
      %v4581 = vsel %vm4580, %v4573, %v4577
      %v4582 = vand.u32 2147483647, %v4331
      %vm4583 = vcmp.eq.f32.partialorder %v4582, 8.507059e+37
      %v4584 = vand.u32 %v4331, 2147483648
      %v4585 = vor.u32 1.1754944e-38, %v4584
      %v4586 = vsel %vm4583, %v4585, %v4581
      %v4587 = vmul.f32 1.0, %v4586
      %v4588 = vrcp.pop %v4332
      %v4589 = vmul.f32 %v4332, %v4588
      %v4590 = vsub.f32 1.0, %v4589
      %v4591 = vmul.f32 %v4588, %v4590
      %v4592 = vadd.f32 %v4588, %v4591
      %vm4593 = vweird.f32 %v4332
      %vm4594 = vweird.f32 %v4588
      %vm4595 = vmor %vm4593, %vm4594
      %v4596 = vsel %vm4595, %v4588, %v4592
      %v4597 = vand.u32 2147483647, %v4332
      %vm4598 = vcmp.eq.f32.partialorder %v4597, 8.507059e+37
      %v4599 = vand.u32 %v4332, 2147483648
      %v4600 = vor.u32 1.1754944e-38, %v4599
      %v4601 = vsel %vm4598, %v4600, %v4596
      %v4602 = vmul.f32 1.0, %v4601
      %v4603 = vrcp.pop %v4333
      %v4604 = vmul.f32 %v4333, %v4603
      %v4605 = vsub.f32 1.0, %v4604
      %v4606 = vmul.f32 %v4603, %v4605
      %v4607 = vadd.f32 %v4603, %v4606
      %vm4608 = vweird.f32 %v4333
      %vm4609 = vweird.f32 %v4603
      %vm4610 = vmor %vm4608, %vm4609
      %v4611 = vsel %vm4610, %v4603, %v4607
      %v4612 = vand.u32 2147483647, %v4333
      %vm4613 = vcmp.eq.f32.partialorder %v4612, 8.507059e+37
      %v4614 = vand.u32 %v4333, 2147483648
      %v4615 = vor.u32 1.1754944e-38, %v4614
      %v4616 = vsel %vm4613, %v4615, %v4611
      %v4617 = vmul.f32 1.0, %v4616
      %v4618 = vrcp.pop %v4334
      %v4619 = vmul.f32 %v4334, %v4618
      %v4620 = vsub.f32 1.0, %v4619
      %v4621 = vmul.f32 %v4618, %v4620
      %v4622 = vadd.f32 %v4618, %v4621
      %vm4623 = vweird.f32 %v4334
      %vm4624 = vweird.f32 %v4618
      %vm4625 = vmor %vm4623, %vm4624
      %v4626 = vsel %vm4625, %v4618, %v4622
      %v4627 = vand.u32 2147483647, %v4334
      %vm4628 = vcmp.eq.f32.partialorder %v4627, 8.507059e+37
      %v4629 = vand.u32 %v4334, 2147483648
      %v4630 = vor.u32 1.1754944e-38, %v4629
      %v4631 = vsel %vm4628, %v4630, %v4626
      %v4632 = vmul.f32 1.0, %v4631
      %v4633 = vrcp.pop %v4335
      %v4634 = vmul.f32 %v4335, %v4633
      %v4635 = vsub.f32 1.0, %v4634
      %v4636 = vmul.f32 %v4633, %v4635
      %v4637 = vadd.f32 %v4633, %v4636
      %vm4638 = vweird.f32 %v4335
      %vm4639 = vweird.f32 %v4633
      %vm4640 = vmor %vm4638, %vm4639
      %v4641 = vsel %vm4640, %v4633, %v4637
      %v4642 = vand.u32 2147483647, %v4335
      %vm4643 = vcmp.eq.f32.partialorder %v4642, 8.507059e+37
      %v4644 = vand.u32 %v4335, 2147483648
      %v4645 = vor.u32 1.1754944e-38, %v4644
      %v4646 = vsel %vm4643, %v4645, %v4641
      %v4647 = vmul.f32 1.0, %v4646
      %v4648 = vrcp.pop %v4336
      %v4649 = vmul.f32 %v4336, %v4648
      %v4650 = vsub.f32 1.0, %v4649
      %v4651 = vmul.f32 %v4648, %v4650
      %v4652 = vadd.f32 %v4648, %v4651
      %vm4653 = vweird.f32 %v4336
      %vm4654 = vweird.f32 %v4648
      %vm4655 = vmor %vm4653, %vm4654
      %v4656 = vsel %vm4655, %v4648, %v4652
      %v4657 = vand.u32 2147483647, %v4336
      %vm4658 = vcmp.eq.f32.partialorder %v4657, 8.507059e+37
      %v4659 = vand.u32 %v4336, 2147483648
      %v4660 = vor.u32 1.1754944e-38, %v4659
      %v4661 = vsel %vm4658, %v4660, %v4656
      %v4662 = vmul.f32 1.0, %v4661
      %v4663 = vrcp.pop %v4337
      %v4664 = vmul.f32 %v4337, %v4663
      %v4665 = vsub.f32 1.0, %v4664
      %v4666 = vmul.f32 %v4663, %v4665
      %v4667 = vadd.f32 %v4663, %v4666
      %vm4668 = vweird.f32 %v4337
      %vm4669 = vweird.f32 %v4663
      %vm4670 = vmor %vm4668, %vm4669
      %v4671 = vsel %vm4670, %v4663, %v4667
      %v4672 = vand.u32 2147483647, %v4337
      %vm4673 = vcmp.eq.f32.partialorder %v4672, 8.507059e+37
      %v4674 = vand.u32 %v4337, 2147483648
      %v4675 = vor.u32 1.1754944e-38, %v4674
      %v4676 = vsel %vm4673, %v4675, %v4671
      %v4677 = vmul.f32 1.0, %v4676
      %v4678 = vrcp.pop %v4338
      %v4679 = vmul.f32 %v4338, %v4678
      %v4680 = vsub.f32 1.0, %v4679
      %v4681 = vmul.f32 %v4678, %v4680
      %v4682 = vadd.f32 %v4678, %v4681
      %vm4683 = vweird.f32 %v4338
      %vm4684 = vweird.f32 %v4678
      %vm4685 = vmor %vm4683, %vm4684
      %v4686 = vsel %vm4685, %v4678, %v4682
      %v4687 = vand.u32 2147483647, %v4338
      %vm4688 = vcmp.eq.f32.partialorder %v4687, 8.507059e+37
      %v4689 = vand.u32 %v4338, 2147483648
      %v4690 = vor.u32 1.1754944e-38, %v4689
      %v4691 = vsel %vm4688, %v4690, %v4686
      %v4692 = vmul.f32 1.0, %v4691
      %v4693 = vrcp.pop %v4339
      %v4694 = vmul.f32 %v4339, %v4693
      %v4695 = vsub.f32 1.0, %v4694
      %v4696 = vmul.f32 %v4693, %v4695
      %v4697 = vadd.f32 %v4693, %v4696
      %vm4698 = vweird.f32 %v4339
      %vm4699 = vweird.f32 %v4693
      %vm4700 = vmor %vm4698, %vm4699
      %v4701 = vsel %vm4700, %v4693, %v4697
      %v4702 = vand.u32 2147483647, %v4339
      %vm4703 = vcmp.eq.f32.partialorder %v4702, 8.507059e+37
      %v4704 = vand.u32 %v4339, 2147483648
      %v4705 = vor.u32 1.1754944e-38, %v4704
      %v4706 = vsel %vm4703, %v4705, %v4701
      %v4707 = vmul.f32 1.0, %v4706
      %v4708 = vrcp.pop %v4340
      %v4709 = vmul.f32 %v4340, %v4708
      %v4710 = vsub.f32 1.0, %v4709
      %v4711 = vmul.f32 %v4708, %v4710
      %v4712 = vadd.f32 %v4708, %v4711
      %vm4713 = vweird.f32 %v4340
      %vm4714 = vweird.f32 %v4708
      %vm4715 = vmor %vm4713, %vm4714
      %v4716 = vsel %vm4715, %v4708, %v4712
      %v4717 = vand.u32 2147483647, %v4340
      %vm4718 = vcmp.eq.f32.partialorder %v4717, 8.507059e+37
      %v4719 = vand.u32 %v4340, 2147483648
      %v4720 = vor.u32 1.1754944e-38, %v4719
      %v4721 = vsel %vm4718, %v4720, %v4716
      %v4722 = vmul.f32 1.0, %v4721
      %v4723 = vrcp.pop %v4341
      %v4724 = vmul.f32 %v4341, %v4723
      %v4725 = vsub.f32 1.0, %v4724
      %v4726 = vmul.f32 %v4723, %v4725
      %v4727 = vadd.f32 %v4723, %v4726
      %vm4728 = vweird.f32 %v4341
      %vm4729 = vweird.f32 %v4723
      %vm4730 = vmor %vm4728, %vm4729
      %v4731 = vsel %vm4730, %v4723, %v4727
      %v4732 = vand.u32 2147483647, %v4341
      %vm4733 = vcmp.eq.f32.partialorder %v4732, 8.507059e+37
      %v4734 = vand.u32 %v4341, 2147483648
      %v4735 = vor.u32 1.1754944e-38, %v4734
      %v4736 = vsel %vm4733, %v4735, %v4731
      %v4737 = vmul.f32 1.0, %v4736
      %v4738 = vrcp.pop %v4342
      %v4739 = vmul.f32 %v4342, %v4738
      %v4740 = vsub.f32 1.0, %v4739
      %v4741 = vmul.f32 %v4738, %v4740
      %v4742 = vadd.f32 %v4738, %v4741
      %vm4743 = vweird.f32 %v4342
      %vm4744 = vweird.f32 %v4738
      %vm4745 = vmor %vm4743, %vm4744
      %v4746 = vsel %vm4745, %v4738, %v4742
      %v4747 = vand.u32 2147483647, %v4342
      %vm4748 = vcmp.eq.f32.partialorder %v4747, 8.507059e+37
      %v4749 = vand.u32 %v4342, 2147483648
      %v4750 = vor.u32 1.1754944e-38, %v4749
      %v4751 = vsel %vm4748, %v4750, %v4746
      %v4752 = vmul.f32 1.0, %v4751
      %v4753 = vrcp.pop %v4343
      %v4754 = vmul.f32 %v4343, %v4753
      %v4755 = vsub.f32 1.0, %v4754
      %v4756 = vmul.f32 %v4753, %v4755
      %v4757 = vadd.f32 %v4753, %v4756
      %vm4758 = vweird.f32 %v4343
      %vm4759 = vweird.f32 %v4753
      %vm4760 = vmor %vm4758, %vm4759
      %v4761 = vsel %vm4760, %v4753, %v4757
      %v4762 = vand.u32 2147483647, %v4343
      %vm4763 = vcmp.eq.f32.partialorder %v4762, 8.507059e+37
      %v4764 = vand.u32 %v4343, 2147483648
      %v4765 = vor.u32 1.1754944e-38, %v4764
      %v4766 = vsel %vm4763, %v4765, %v4761
      %v4767 = vmul.f32 1.0, %v4766
      %v4768 = vrcp.pop %v4344
      %v4769 = vmul.f32 %v4344, %v4768
      %v4770 = vsub.f32 1.0, %v4769
      %v4771 = vmul.f32 %v4768, %v4770
      %v4772 = vadd.f32 %v4768, %v4771
      %vm4773 = vweird.f32 %v4344
      %vm4774 = vweird.f32 %v4768
      %vm4775 = vmor %vm4773, %vm4774
      %v4776 = vsel %vm4775, %v4768, %v4772
      %v4777 = vand.u32 2147483647, %v4344
      %vm4778 = vcmp.eq.f32.partialorder %v4777, 8.507059e+37
      %v4779 = vand.u32 %v4344, 2147483648
      %v4780 = vor.u32 1.1754944e-38, %v4779
      %v4781 = vsel %vm4778, %v4780, %v4776
      %v4782 = vmul.f32 1.0, %v4781
      %v4783 = vrcp.pop %v4345
      %v4784 = vmul.f32 %v4345, %v4783
      %v4785 = vsub.f32 1.0, %v4784
      %v4786 = vmul.f32 %v4783, %v4785
      %v4787 = vadd.f32 %v4783, %v4786
      %vm4788 = vweird.f32 %v4345
      %vm4789 = vweird.f32 %v4783
      %vm4790 = vmor %vm4788, %vm4789
      %v4791 = vsel %vm4790, %v4783, %v4787
      %v4792 = vand.u32 2147483647, %v4345
      %vm4793 = vcmp.eq.f32.partialorder %v4792, 8.507059e+37
      %v4794 = vand.u32 %v4345, 2147483648
      %v4795 = vor.u32 1.1754944e-38, %v4794
      %v4796 = vsel %vm4793, %v4795, %v4791
      %v4797 = vmul.f32 1.0, %v4796
      %v4798 = vrcp.pop %v4346
      %v4799 = vmul.f32 %v4346, %v4798
      %v4800 = vsub.f32 1.0, %v4799
      %v4801 = vmul.f32 %v4798, %v4800
      %v4802 = vadd.f32 %v4798, %v4801
      %vm4803 = vweird.f32 %v4346
      %vm4804 = vweird.f32 %v4798
      %vm4805 = vmor %vm4803, %vm4804
      %v4806 = vsel %vm4805, %v4798, %v4802
      %v4807 = vand.u32 2147483647, %v4346
      %vm4808 = vcmp.eq.f32.partialorder %v4807, 8.507059e+37
      %v4809 = vand.u32 %v4346, 2147483648
      %v4810 = vor.u32 1.1754944e-38, %v4809
      %v4811 = vsel %vm4808, %v4810, %v4806
      %v4812 = vmul.f32 1.0, %v4811
      %v4813 = vrcp.pop %v4347
      %v4814 = vmul.f32 %v4347, %v4813
      %v4815 = vsub.f32 1.0, %v4814
      %v4816 = vmul.f32 %v4813, %v4815
      %v4817 = vadd.f32 %v4813, %v4816
      %vm4818 = vweird.f32 %v4347
      %vm4819 = vweird.f32 %v4813
      %vm4820 = vmor %vm4818, %vm4819
      %v4821 = vsel %vm4820, %v4813, %v4817
      %v4822 = vand.u32 2147483647, %v4347
      %vm4823 = vcmp.eq.f32.partialorder %v4822, 8.507059e+37
      %v4824 = vand.u32 %v4347, 2147483648
      %v4825 = vor.u32 1.1754944e-38, %v4824
      %v4826 = vsel %vm4823, %v4825, %v4821
      %v4827 = vmul.f32 1.0, %v4826
      %v4828 = vadd.f32 %v4362, 1.0
      %v4829 = vadd.f32 %v4377, 1.0
      %v4830 = vadd.f32 %v4392, 1.0
      %v4831 = vadd.f32 %v4407, 1.0
      %v4832 = vadd.f32 %v4422, 1.0
      %v4833 = vadd.f32 %v4437, 1.0
      %v4834 = vadd.f32 %v4452, 1.0
      %v4835 = vadd.f32 %v4467, 1.0
      %v4836 = vadd.f32 %v4482, 1.0
      %v4837 = vadd.f32 %v4497, 1.0
      %v4838 = vadd.f32 %v4512, 1.0
      %v4839 = vadd.f32 %v4527, 1.0
      %v4840 = vadd.f32 %v4542, 1.0
      %v4841 = vadd.f32 %v4557, 1.0
      %v4842 = vadd.f32 %v4572, 1.0
      %v4843 = vadd.f32 %v4587, 1.0
      %v4844 = vadd.f32 %v4602, 1.0
      %v4845 = vadd.f32 %v4617, 1.0
      %v4846 = vadd.f32 %v4632, 1.0
      %v4847 = vadd.f32 %v4647, 1.0
      %v4848 = vadd.f32 %v4662, 1.0
      %v4849 = vadd.f32 %v4677, 1.0
      %v4850 = vadd.f32 %v4692, 1.0
      %v4851 = vadd.f32 %v4707, 1.0
      %v4852 = vadd.f32 %v4722, 1.0
      %v4853 = vadd.f32 %v4737, 1.0
      %v4854 = vadd.f32 %v4752, 1.0
      %v4855 = vadd.f32 %v4767, 1.0
      %v4856 = vadd.f32 %v4782, 1.0
      %v4857 = vadd.f32 %v4797, 1.0
      %v4858 = vadd.f32 %v4812, 1.0
      %v4859 = vadd.f32 %v4827, 1.0
      %4861 = vset.pattern.permute.xlu0 0
      %4862 = vperm.xlu0 %4861, %v4828
      %v4863 = vpop.permute.xlu0 %4862
      %4866 = vset.pattern.permute.xlu0 0
      %4867 = vperm.xlu0 %4866, %v4829
      %v4868 = vpop.permute.xlu0 %4867
      %4871 = vset.pattern.permute.xlu0 0
      %4872 = vperm.xlu0 %4871, %v4830
      %v4873 = vpop.permute.xlu0 %4872
      %4876 = vset.pattern.permute.xlu0 0
      %4877 = vperm.xlu0 %4876, %v4831
      %v4878 = vpop.permute.xlu0 %4877
      %4881 = vset.pattern.permute.xlu0 0
      %4882 = vperm.xlu0 %4881, %v4832
      %v4883 = vpop.permute.xlu0 %4882
      %4886 = vset.pattern.permute.xlu0 0
      %4887 = vperm.xlu0 %4886, %v4833
      %v4888 = vpop.permute.xlu0 %4887
      %4891 = vset.pattern.permute.xlu0 0
      %4892 = vperm.xlu0 %4891, %v4834
      %v4893 = vpop.permute.xlu0 %4892
      %4896 = vset.pattern.permute.xlu0 0
      %4897 = vperm.xlu0 %4896, %v4835
      %v4898 = vpop.permute.xlu0 %4897
      %4901 = vset.pattern.permute.xlu0 0
      %4902 = vperm.xlu0 %4901, %v4836
      %v4903 = vpop.permute.xlu0 %4902
      %4906 = vset.pattern.permute.xlu0 0
      %4907 = vperm.xlu0 %4906, %v4837
      %v4908 = vpop.permute.xlu0 %4907
      %4911 = vset.pattern.permute.xlu0 0
      %4912 = vperm.xlu0 %4911, %v4838
      %v4913 = vpop.permute.xlu0 %4912
      %4916 = vset.pattern.permute.xlu0 0
      %4917 = vperm.xlu0 %4916, %v4839
      %v4918 = vpop.permute.xlu0 %4917
      %4921 = vset.pattern.permute.xlu0 0
      %4922 = vperm.xlu0 %4921, %v4840
      %v4923 = vpop.permute.xlu0 %4922
      %4926 = vset.pattern.permute.xlu0 0
      %4927 = vperm.xlu0 %4926, %v4841
      %v4928 = vpop.permute.xlu0 %4927
      %4931 = vset.pattern.permute.xlu0 0
      %4932 = vperm.xlu0 %4931, %v4842
      %v4933 = vpop.permute.xlu0 %4932
      %4936 = vset.pattern.permute.xlu0 0
      %4937 = vperm.xlu0 %4936, %v4843
      %v4938 = vpop.permute.xlu0 %4937
      %4941 = vset.pattern.permute.xlu0 0
      %4942 = vperm.xlu0 %4941, %v4844
      %v4943 = vpop.permute.xlu0 %4942
      %4946 = vset.pattern.permute.xlu0 0
      %4947 = vperm.xlu0 %4946, %v4845
      %v4948 = vpop.permute.xlu0 %4947
      %4951 = vset.pattern.permute.xlu0 0
      %4952 = vperm.xlu0 %4951, %v4846
      %v4953 = vpop.permute.xlu0 %4952
      %4956 = vset.pattern.permute.xlu0 0
      %4957 = vperm.xlu0 %4956, %v4847
      %v4958 = vpop.permute.xlu0 %4957
      %4961 = vset.pattern.permute.xlu0 0
      %4962 = vperm.xlu0 %4961, %v4848
      %v4963 = vpop.permute.xlu0 %4962
      %4966 = vset.pattern.permute.xlu0 0
      %4967 = vperm.xlu0 %4966, %v4849
      %v4968 = vpop.permute.xlu0 %4967
      %4971 = vset.pattern.permute.xlu0 0
      %4972 = vperm.xlu0 %4971, %v4850
      %v4973 = vpop.permute.xlu0 %4972
      %4976 = vset.pattern.permute.xlu0 0
      %4977 = vperm.xlu0 %4976, %v4851
      %v4978 = vpop.permute.xlu0 %4977
      %4981 = vset.pattern.permute.xlu0 0
      %4982 = vperm.xlu0 %4981, %v4852
      %v4983 = vpop.permute.xlu0 %4982
      %4986 = vset.pattern.permute.xlu0 0
      %4987 = vperm.xlu0 %4986, %v4853
      %v4988 = vpop.permute.xlu0 %4987
      %4991 = vset.pattern.permute.xlu0 0
      %4992 = vperm.xlu0 %4991, %v4854
      %v4993 = vpop.permute.xlu0 %4992
      %4996 = vset.pattern.permute.xlu0 0
      %4997 = vperm.xlu0 %4996, %v4855
      %v4998 = vpop.permute.xlu0 %4997
      %5001 = vset.pattern.permute.xlu0 0
      %5002 = vperm.xlu0 %5001, %v4856
      %v5003 = vpop.permute.xlu0 %5002
      %5006 = vset.pattern.permute.xlu0 0
      %5007 = vperm.xlu0 %5006, %v4857
      %v5008 = vpop.permute.xlu0 %5007
      %5011 = vset.pattern.permute.xlu0 0
      %5012 = vperm.xlu0 %5011, %v4858
      %v5013 = vpop.permute.xlu0 %5012
      %5016 = vset.pattern.permute.xlu0 0
      %5017 = vperm.xlu0 %5016, %v4859
      %v5018 = vpop.permute.xlu0 %5017
      %v5020 = vmul.f32 %v3734, %v4863
      %v5021 = vmul.f32 %v3735, %v4868
      %v5022 = vmul.f32 %v3736, %v4873
      %v5023 = vmul.f32 %v3737, %v4878
      %v5024 = vmul.f32 %v3738, %v4883
      %v5025 = vmul.f32 %v3739, %v4888
      %v5026 = vmul.f32 %v3740, %v4893
      %v5027 = vmul.f32 %v3741, %v4898
      %v5028 = vmul.f32 %v3742, %v4903
      %v5029 = vmul.f32 %v3743, %v4908
      %v5030 = vmul.f32 %v3744, %v4913
      %v5031 = vmul.f32 %v3745, %v4918
      %v5032 = vmul.f32 %v3746, %v4923
      %v5033 = vmul.f32 %v3747, %v4928
      %v5034 = vmul.f32 %v3748, %v4933
      %v5035 = vmul.f32 %v3749, %v4938
      %v5036 = vmul.f32 %v3750, %v4943
      %v5037 = vmul.f32 %v3751, %v4948
      %v5038 = vmul.f32 %v3752, %v4953
      %v5039 = vmul.f32 %v3753, %v4958
      %v5040 = vmul.f32 %v3754, %v4963
      %v5041 = vmul.f32 %v3755, %v4968
      %v5042 = vmul.f32 %v3756, %v4973
      %v5043 = vmul.f32 %v3757, %v4978
      %v5044 = vmul.f32 %v3758, %v4983
      %v5045 = vmul.f32 %v3759, %v4988
      %v5046 = vmul.f32 %v3760, %v4993
      %v5047 = vmul.f32 %v3761, %v4998
      %v5048 = vmul.f32 %v3762, %v5003
      %v5049 = vmul.f32 %v3763, %v5008
      %v5050 = vmul.f32 %v3764, %v5013
      %v5051 = vmul.f32 %v3765, %v5018
      %v5052 = vld [vmem:[%s12] sm:$0xff]
      %v5053 = vld [vmem:[%s12 + $0x8] sm:$0xff]
      %v5054 = vld [vmem:[%s12 + $0x10] sm:$0xff]
      %v5055 = vld [vmem:[%s12 + $0x18] sm:$0xff]
      %v5056 = vld [vmem:[%s12 + $0x20] sm:$0xff]
      %v5057 = vld [vmem:[%s12 + $0x28] sm:$0xff]
      %v5058 = vld [vmem:[%s12 + $0x30] sm:$0xff]
      %v5059 = vld [vmem:[%s12 + $0x38] sm:$0xff]
      %5060 = vmatpush.msra.mxu0 %v5035
      %5061 = vmatpush.msra.mxu0 %v5034
      %5062 = vmatpush.msra.mxu0 %v5033
      %5063 = vmatpush.msra.mxu0 %v5032
      %5064 = vmatpush.msra.mxu0 %v5031
      %5065 = vmatpush.msra.mxu0 %v5030
      %5066 = vmatpush.msra.mxu0 %v5029
      %5067 = vmatpush.msra.mxu0 %v5028
      %5068 = vmatpush.msra.mxu0 %v5027
      %5069 = vmatpush.msra.mxu0 %v5026
      %5070 = vmatpush.msra.mxu0 %v5025
      %5071 = vmatpush.msra.mxu0 %v5024
      %5072 = vmatpush.msra.mxu0 %v5023
      %5073 = vmatpush.msra.mxu0 %v5022
      %5074 = vmatpush.msra.mxu0 %v5021
      %5075 = vmatpush.msra.mxu0 %v5020
      %5076 = vmatmul.f32.gmra.mxu0 %v5052
      %v5077 = vpop.f32.mrf.mxu0
      %v5078 = vadd.f32 0.0, %v5077
      %5079 = vmatmul.f32.gmra.mxu0 %v5054
      %v5080 = vpop.f32.mrf.mxu0
      %v5081 = vadd.f32 0.0, %v5080
      %5082 = vmatmul.f32.gmra.mxu0 %v5056
      %v5083 = vpop.f32.mrf.mxu0
      %v5084 = vadd.f32 0.0, %v5083
      %5085 = vmatmul.f32.gmra.mxu0 %v5058
      %v5086 = vpop.f32.mrf.mxu0
      %v5087 = vadd.f32 0.0, %v5086
      %5088 = vdwg.mxu0
      %5089 = vmatpush.msra.mxu0 %v5051
      %5090 = vmatpush.msra.mxu0 %v5050
      %5091 = vmatpush.msra.mxu0 %v5049
      %5092 = vmatpush.msra.mxu0 %v5048
      %5093 = vmatpush.msra.mxu0 %v5047
      %5094 = vmatpush.msra.mxu0 %v5046
      %5095 = vmatpush.msra.mxu0 %v5045
      %5096 = vmatpush.msra.mxu0 %v5044
      %5097 = vmatpush.msra.mxu0 %v5043
      %5098 = vmatpush.msra.mxu0 %v5042
      %5099 = vmatpush.msra.mxu0 %v5041
      %5100 = vmatpush.msra.mxu0 %v5040
      %5101 = vmatpush.msra.mxu0 %v5039
      %5102 = vmatpush.msra.mxu0 %v5038
      %5103 = vmatpush.msra.mxu0 %v5037
      %5104 = vmatpush.msra.mxu0 %v5036
      %5105 = vmatmul.f32.gmra.mxu0 %v5053
      %v5106 = vpop.f32.mrf.mxu0
      %v5107 = vadd.f32 %v5078, %v5106
      %5108 = vmatmul.f32.gmra.mxu0 %v5055
      %v5109 = vpop.f32.mrf.mxu0
      %v5110 = vadd.f32 %v5081, %v5109
      %5111 = vmatmul.f32.gmra.mxu0 %v5057
      %v5112 = vpop.f32.mrf.mxu0
      %v5113 = vadd.f32 %v5084, %v5112
      %5114 = vmatmul.f32.gmra.mxu0 %v5059
      %v5115 = vpop.f32.mrf.mxu0
      %v5116 = vadd.f32 %v5087, %v5115
      %5117 = vdwg.mxu0
      %v5118 = vld [vmem:[%s17] sm:$0xff]
      %v5119 = vld [vmem:[%s17 + $0x8] sm:$0xff]
      %v5121 = vsel %vm805, %v5118, 0
      %v5124 = vsel %vm805, %v5119, 0
      %5126 = vmatpush.msra.mxu0 0.0
      %5127 = vmatpush.msra.mxu0 0.0
      %5128 = vmatpush.msra.mxu0 0.0
      %5129 = vmatpush.msra.mxu0 0.0
      %5130 = vmatpush.msra.mxu0 0.0
      %5131 = vmatpush.msra.mxu0 0.0
      %5132 = vmatpush.msra.mxu0 0.0
      %5133 = vmatpush.msra.mxu0 0.0
      %5134 = vmatpush.msra.mxu0 0.0
      %5135 = vmatpush.msra.mxu0 0.0
      %5136 = vmatpush.msra.mxu0 0.0
      %5137 = vmatpush.msra.mxu0 0.0
      %5138 = vmatpush.msra.mxu0 %v5116
      %5139 = vmatpush.msra.mxu0 %v5113
      %5140 = vmatpush.msra.mxu0 %v5110
      %5141 = vmatpush.msra.mxu0 %v5107
      %5142 = vmatmul.f32.gmra.mxu0 %v5121
      %v5143 = vpop.f32.mrf.mxu0
      %v5144 = vadd.f32 0.0, %v5143
      %5145 = vmatmul.f32.gmra.mxu0 %v5124
      %v5146 = vpop.f32.mrf.mxu0
      %v5147 = vadd.f32 0.0, %v5146
      %5148 = vdwg.mxu0
      %v5149 = vsel %vm1003, %v5144, 0.0
      %5150 = vadd.xlane.f32.xlu0 %v5149
      %v5151 = vpop.xlane.xlu0 %5150
      %v5152 = vsel %vm1003, %v5147, 0.0
      %5153 = vadd.xlane.f32.xlu0 %v5152
      %v5154 = vpop.xlane.xlu0 %5153
      %v5155 = vmul.f32 %v5151, 0.0625
      %v5156 = vmul.f32 %v5154, 0.0625
      %v5157 = vld [vmem:[%s18] sm:$0xff]
      %v5158 = vld [vmem:[%s18 + $0x8] sm:$0xff]
      %v5159 = vadd.f32 %v5155, %v5157
      %v5160 = vadd.f32 %v5156, %v5158
      %v5161 = vmax.f32 %v5159, 0.0
      %v5162 = vmax.f32 %v5160, 0.0
      %5164 = vset.pattern.permute.xlu0 0
      %5165 = vperm.xlu0 %5164, %v5161
      %v5166 = vpop.permute.xlu0 %5165
      %5169 = vset.pattern.permute.xlu0 0
      %5170 = vperm.xlu0 %5169, %v5162
      %v5171 = vpop.permute.xlu0 %5170
      %v5173 = vld [vmem:[%s19] sm:$0xff]
      %v5174 = vld [vmem:[%s19 + $0x8] sm:$0xff]
      %v5175 = vld [vmem:[%s19 + $0x10] sm:$0xff]
      %v5176 = vld [vmem:[%s19 + $0x18] sm:$0xff]
      %v5177 = vld [vmem:[%s19 + $0x20] sm:$0xff]
      %v5178 = vld [vmem:[%s19 + $0x28] sm:$0xff]
      %v5179 = vld [vmem:[%s19 + $0x30] sm:$0xff]
      %v5180 = vld [vmem:[%s19 + $0x38] sm:$0xff]
      %v5181 = vld [vmem:[%s19 + $0x40] sm:$0xff]
      %v5182 = vld [vmem:[%s19 + $0x48] sm:$0xff]
      %v5183 = vld [vmem:[%s19 + $0x50] sm:$0xff]
      %v5184 = vld [vmem:[%s19 + $0x58] sm:$0xff]
      %v5185 = vld [vmem:[%s19 + $0x60] sm:$0xff]
      %v5186 = vld [vmem:[%s19 + $0x68] sm:$0xff]
      %v5187 = vld [vmem:[%s19 + $0x70] sm:$0xff]
      %v5188 = vld [vmem:[%s19 + $0x78] sm:$0xff]
      %v5189 = vld [vmem:[%s19 + $0x80] sm:$0xff]
      %v5190 = vld [vmem:[%s19 + $0x88] sm:$0xff]
      %v5191 = vld [vmem:[%s19 + $0x90] sm:$0xff]
      %v5192 = vld [vmem:[%s19 + $0x98] sm:$0xff]
      %v5193 = vld [vmem:[%s19 + $0xa0] sm:$0xff]
      %v5194 = vld [vmem:[%s19 + $0xa8] sm:$0xff]
      %v5195 = vld [vmem:[%s19 + $0xb0] sm:$0xff]
      %v5196 = vld [vmem:[%s19 + $0xb8] sm:$0xff]
      %v5197 = vld [vmem:[%s19 + $0xc0] sm:$0xff]
      %v5198 = vld [vmem:[%s19 + $0xc8] sm:$0xff]
      %v5199 = vld [vmem:[%s19 + $0xd0] sm:$0xff]
      %v5200 = vld [vmem:[%s19 + $0xd8] sm:$0xff]
      %v5201 = vld [vmem:[%s19 + $0xe0] sm:$0xff]
      %v5202 = vld [vmem:[%s19 + $0xe8] sm:$0xff]
      %v5203 = vld [vmem:[%s19 + $0xf0] sm:$0xff]
      %v5204 = vld [vmem:[%s19 + $0xf8] sm:$0xff]
      %v5205 = vld [vmem:[%s20] sm:$0xff]
      %v5206 = vld [vmem:[%s20 + $0x8] sm:$0xff]
      %v5207 = vld [vmem:[%s20 + $0x10] sm:$0xff]
      %v5208 = vld [vmem:[%s20 + $0x18] sm:$0xff]
      %v5209 = vld [vmem:[%s20 + $0x20] sm:$0xff]
      %v5210 = vld [vmem:[%s20 + $0x28] sm:$0xff]
      %v5211 = vld [vmem:[%s20 + $0x30] sm:$0xff]
      %v5212 = vld [vmem:[%s20 + $0x38] sm:$0xff]
      %v5213 = vld [vmem:[%s20 + $0x40] sm:$0xff]
      %v5214 = vld [vmem:[%s20 + $0x48] sm:$0xff]
      %v5215 = vld [vmem:[%s20 + $0x50] sm:$0xff]
      %v5216 = vld [vmem:[%s20 + $0x58] sm:$0xff]
      %v5217 = vld [vmem:[%s20 + $0x60] sm:$0xff]
      %v5218 = vld [vmem:[%s20 + $0x68] sm:$0xff]
      %v5219 = vld [vmem:[%s20 + $0x70] sm:$0xff]
      %v5220 = vld [vmem:[%s20 + $0x78] sm:$0xff]
      %v5221 = vld [vmem:[%s20 + $0x80] sm:$0xff]
      %v5222 = vld [vmem:[%s20 + $0x88] sm:$0xff]
      %v5223 = vld [vmem:[%s20 + $0x90] sm:$0xff]
      %v5224 = vld [vmem:[%s20 + $0x98] sm:$0xff]
      %v5225 = vld [vmem:[%s20 + $0xa0] sm:$0xff]
      %v5226 = vld [vmem:[%s20 + $0xa8] sm:$0xff]
      %v5227 = vld [vmem:[%s20 + $0xb0] sm:$0xff]
      %v5228 = vld [vmem:[%s20 + $0xb8] sm:$0xff]
      %v5229 = vld [vmem:[%s20 + $0xc0] sm:$0xff]
      %v5230 = vld [vmem:[%s20 + $0xc8] sm:$0xff]
      %v5231 = vld [vmem:[%s20 + $0xd0] sm:$0xff]
      %v5232 = vld [vmem:[%s20 + $0xd8] sm:$0xff]
      %v5233 = vld [vmem:[%s20 + $0xe0] sm:$0xff]
      %v5234 = vld [vmem:[%s20 + $0xe8] sm:$0xff]
      %v5235 = vld [vmem:[%s20 + $0xf0] sm:$0xff]
      %v5236 = vld [vmem:[%s20 + $0xf8] sm:$0xff]
      %5238 = vset.pattern.permute.xlu0 0
      %5239 = vperm.xlu0 %5238, %v5205
      %v5240 = vpop.permute.xlu0 %5239
      %5243 = vset.pattern.permute.xlu0 0
      %5244 = vperm.xlu0 %5243, %v5206
      %v5245 = vpop.permute.xlu0 %5244
      %5248 = vset.pattern.permute.xlu0 0
      %5249 = vperm.xlu0 %5248, %v5207
      %v5250 = vpop.permute.xlu0 %5249
      %5253 = vset.pattern.permute.xlu0 0
      %5254 = vperm.xlu0 %5253, %v5208
      %v5255 = vpop.permute.xlu0 %5254
      %5258 = vset.pattern.permute.xlu0 0
      %5259 = vperm.xlu0 %5258, %v5209
      %v5260 = vpop.permute.xlu0 %5259
      %5263 = vset.pattern.permute.xlu0 0
      %5264 = vperm.xlu0 %5263, %v5210
      %v5265 = vpop.permute.xlu0 %5264
      %5268 = vset.pattern.permute.xlu0 0
      %5269 = vperm.xlu0 %5268, %v5211
      %v5270 = vpop.permute.xlu0 %5269
      %5273 = vset.pattern.permute.xlu0 0
      %5274 = vperm.xlu0 %5273, %v5212
      %v5275 = vpop.permute.xlu0 %5274
      %5278 = vset.pattern.permute.xlu0 0
      %5279 = vperm.xlu0 %5278, %v5213
      %v5280 = vpop.permute.xlu0 %5279
      %5283 = vset.pattern.permute.xlu0 0
      %5284 = vperm.xlu0 %5283, %v5214
      %v5285 = vpop.permute.xlu0 %5284
      %5288 = vset.pattern.permute.xlu0 0
      %5289 = vperm.xlu0 %5288, %v5215
      %v5290 = vpop.permute.xlu0 %5289
      %5293 = vset.pattern.permute.xlu0 0
      %5294 = vperm.xlu0 %5293, %v5216
      %v5295 = vpop.permute.xlu0 %5294
      %5298 = vset.pattern.permute.xlu0 0
      %5299 = vperm.xlu0 %5298, %v5217
      %v5300 = vpop.permute.xlu0 %5299
      %5303 = vset.pattern.permute.xlu0 0
      %5304 = vperm.xlu0 %5303, %v5218
      %v5305 = vpop.permute.xlu0 %5304
      %5308 = vset.pattern.permute.xlu0 0
      %5309 = vperm.xlu0 %5308, %v5219
      %v5310 = vpop.permute.xlu0 %5309
      %5313 = vset.pattern.permute.xlu0 0
      %5314 = vperm.xlu0 %5313, %v5220
      %v5315 = vpop.permute.xlu0 %5314
      %5318 = vset.pattern.permute.xlu0 0
      %5319 = vperm.xlu0 %5318, %v5221
      %v5320 = vpop.permute.xlu0 %5319
      %5323 = vset.pattern.permute.xlu0 0
      %5324 = vperm.xlu0 %5323, %v5222
      %v5325 = vpop.permute.xlu0 %5324
      %5328 = vset.pattern.permute.xlu0 0
      %5329 = vperm.xlu0 %5328, %v5223
      %v5330 = vpop.permute.xlu0 %5329
      %5333 = vset.pattern.permute.xlu0 0
      %5334 = vperm.xlu0 %5333, %v5224
      %v5335 = vpop.permute.xlu0 %5334
      %5338 = vset.pattern.permute.xlu0 0
      %5339 = vperm.xlu0 %5338, %v5225
      %v5340 = vpop.permute.xlu0 %5339
      %5343 = vset.pattern.permute.xlu0 0
      %5344 = vperm.xlu0 %5343, %v5226
      %v5345 = vpop.permute.xlu0 %5344
      %5348 = vset.pattern.permute.xlu0 0
      %5349 = vperm.xlu0 %5348, %v5227
      %v5350 = vpop.permute.xlu0 %5349
      %5353 = vset.pattern.permute.xlu0 0
      %5354 = vperm.xlu0 %5353, %v5228
      %v5355 = vpop.permute.xlu0 %5354
      %5358 = vset.pattern.permute.xlu0 0
      %5359 = vperm.xlu0 %5358, %v5229
      %v5360 = vpop.permute.xlu0 %5359
      %5363 = vset.pattern.permute.xlu0 0
      %5364 = vperm.xlu0 %5363, %v5230
      %v5365 = vpop.permute.xlu0 %5364
      %5368 = vset.pattern.permute.xlu0 0
      %5369 = vperm.xlu0 %5368, %v5231
      %v5370 = vpop.permute.xlu0 %5369
      %5373 = vset.pattern.permute.xlu0 0
      %5374 = vperm.xlu0 %5373, %v5232
      %v5375 = vpop.permute.xlu0 %5374
      %5378 = vset.pattern.permute.xlu0 0
      %5379 = vperm.xlu0 %5378, %v5233
      %v5380 = vpop.permute.xlu0 %5379
      %5383 = vset.pattern.permute.xlu0 0
      %5384 = vperm.xlu0 %5383, %v5234
      %v5385 = vpop.permute.xlu0 %5384
      %5388 = vset.pattern.permute.xlu0 0
      %5389 = vperm.xlu0 %5388, %v5235
      %v5390 = vpop.permute.xlu0 %5389
      %5393 = vset.pattern.permute.xlu0 0
      %5394 = vperm.xlu0 %5393, %v5236
      %v5395 = vpop.permute.xlu0 %5394
      %v5398 = vsel %vm1003, %v5173, 0
      %v5401 = vsel %vm1003, %v5174, 0
      %v5404 = vsel %vm1003, %v5175, 0
      %v5407 = vsel %vm1003, %v5176, 0
      %v5410 = vsel %vm1003, %v5177, 0
      %v5413 = vsel %vm1003, %v5178, 0
      %v5416 = vsel %vm1003, %v5179, 0
      %v5419 = vsel %vm1003, %v5180, 0
      %v5422 = vsel %vm1003, %v5181, 0
      %v5425 = vsel %vm1003, %v5182, 0
      %v5428 = vsel %vm1003, %v5183, 0
      %v5431 = vsel %vm1003, %v5184, 0
      %v5434 = vsel %vm1003, %v5185, 0
      %v5437 = vsel %vm1003, %v5186, 0
      %v5440 = vsel %vm1003, %v5187, 0
      %v5443 = vsel %vm1003, %v5188, 0
      %v5446 = vsel %vm1003, %v5189, 0
      %v5449 = vsel %vm1003, %v5190, 0
      %v5452 = vsel %vm1003, %v5191, 0
      %v5455 = vsel %vm1003, %v5192, 0
      %v5458 = vsel %vm1003, %v5193, 0
      %v5461 = vsel %vm1003, %v5194, 0
      %v5464 = vsel %vm1003, %v5195, 0
      %v5467 = vsel %vm1003, %v5196, 0
      %v5470 = vsel %vm1003, %v5197, 0
      %v5473 = vsel %vm1003, %v5198, 0
      %v5476 = vsel %vm1003, %v5199, 0
      %v5479 = vsel %vm1003, %v5200, 0
      %v5482 = vsel %vm1003, %v5201, 0
      %v5485 = vsel %vm1003, %v5202, 0
      %v5488 = vsel %vm1003, %v5203, 0
      %v5491 = vsel %vm1003, %v5204, 0
      %5493 = vmatpush.msra.mxu0 0.0
      %5494 = vmatpush.msra.mxu0 0.0
      %5495 = vmatpush.msra.mxu0 0.0
      %5496 = vmatpush.msra.mxu0 0.0
      %5497 = vmatpush.msra.mxu0 0.0
      %5498 = vmatpush.msra.mxu0 0.0
      %5499 = vmatpush.msra.mxu0 0.0
      %5500 = vmatpush.msra.mxu0 0.0
      %5501 = vmatpush.msra.mxu0 0.0
      %5502 = vmatpush.msra.mxu0 0.0
      %5503 = vmatpush.msra.mxu0 0.0
      %5504 = vmatpush.msra.mxu0 0.0
      %5505 = vmatpush.msra.mxu0 0.0
      %5506 = vmatpush.msra.mxu0 0.0
      %5507 = vmatpush.msra.mxu0 %v5171
      %5508 = vmatpush.msra.mxu0 %v5166
      %5509 = vmatmul.f32.gmra.mxu0 %v5398
      %v5510 = vpop.f32.mrf.mxu0
      %v5511 = vadd.f32 %v5240, %v5510
      %5512 = vmatmul.f32.gmra.mxu0 %v5401
      %v5513 = vpop.f32.mrf.mxu0
      %v5514 = vadd.f32 %v5245, %v5513
      %5515 = vmatmul.f32.gmra.mxu0 %v5404
      %v5516 = vpop.f32.mrf.mxu0
      %v5517 = vadd.f32 %v5250, %v5516
      %5518 = vmatmul.f32.gmra.mxu0 %v5407
      %v5519 = vpop.f32.mrf.mxu0
      %v5520 = vadd.f32 %v5255, %v5519
      %5521 = vmatmul.f32.gmra.mxu0 %v5410
      %v5522 = vpop.f32.mrf.mxu0
      %v5523 = vadd.f32 %v5260, %v5522
      %5524 = vmatmul.f32.gmra.mxu0 %v5413
      %v5525 = vpop.f32.mrf.mxu0
      %v5526 = vadd.f32 %v5265, %v5525
      %5527 = vmatmul.f32.gmra.mxu0 %v5416
      %v5528 = vpop.f32.mrf.mxu0
      %v5529 = vadd.f32 %v5270, %v5528
      %5530 = vmatmul.f32.gmra.mxu0 %v5419
      %v5531 = vpop.f32.mrf.mxu0
      %v5532 = vadd.f32 %v5275, %v5531
      %5533 = vmatmul.f32.gmra.mxu0 %v5422
      %v5534 = vpop.f32.mrf.mxu0
      %v5535 = vadd.f32 %v5280, %v5534
      %5536 = vmatmul.f32.gmra.mxu0 %v5425
      %v5537 = vpop.f32.mrf.mxu0
      %v5538 = vadd.f32 %v5285, %v5537
      %5539 = vmatmul.f32.gmra.mxu0 %v5428
      %v5540 = vpop.f32.mrf.mxu0
      %v5541 = vadd.f32 %v5290, %v5540
      %5542 = vmatmul.f32.gmra.mxu0 %v5431
      %v5543 = vpop.f32.mrf.mxu0
      %v5544 = vadd.f32 %v5295, %v5543
      %5545 = vmatmul.f32.gmra.mxu0 %v5434
      %v5546 = vpop.f32.mrf.mxu0
      %v5547 = vadd.f32 %v5300, %v5546
      %5548 = vmatmul.f32.gmra.mxu0 %v5437
      %v5549 = vpop.f32.mrf.mxu0
      %v5550 = vadd.f32 %v5305, %v5549
      %5551 = vmatmul.f32.gmra.mxu0 %v5440
      %v5552 = vpop.f32.mrf.mxu0
      %v5553 = vadd.f32 %v5310, %v5552
      %5554 = vmatmul.f32.gmra.mxu0 %v5443
      %v5555 = vpop.f32.mrf.mxu0
      %v5556 = vadd.f32 %v5315, %v5555
      %5557 = vmatmul.f32.gmra.mxu0 %v5446
      %v5558 = vpop.f32.mrf.mxu0
      %v5559 = vadd.f32 %v5320, %v5558
      %5560 = vmatmul.f32.gmra.mxu0 %v5449
      %v5561 = vpop.f32.mrf.mxu0
      %v5562 = vadd.f32 %v5325, %v5561
      %5563 = vmatmul.f32.gmra.mxu0 %v5452
      %v5564 = vpop.f32.mrf.mxu0
      %v5565 = vadd.f32 %v5330, %v5564
      %5566 = vmatmul.f32.gmra.mxu0 %v5455
      %v5567 = vpop.f32.mrf.mxu0
      %v5568 = vadd.f32 %v5335, %v5567
      %5569 = vmatmul.f32.gmra.mxu0 %v5458
      %v5570 = vpop.f32.mrf.mxu0
      %v5571 = vadd.f32 %v5340, %v5570
      %5572 = vmatmul.f32.gmra.mxu0 %v5461
      %v5573 = vpop.f32.mrf.mxu0
      %v5574 = vadd.f32 %v5345, %v5573
      %5575 = vmatmul.f32.gmra.mxu0 %v5464
      %v5576 = vpop.f32.mrf.mxu0
      %v5577 = vadd.f32 %v5350, %v5576
      %5578 = vmatmul.f32.gmra.mxu0 %v5467
      %v5579 = vpop.f32.mrf.mxu0
      %v5580 = vadd.f32 %v5355, %v5579
      %5581 = vmatmul.f32.gmra.mxu0 %v5470
      %v5582 = vpop.f32.mrf.mxu0
      %v5583 = vadd.f32 %v5360, %v5582
      %5584 = vmatmul.f32.gmra.mxu0 %v5473
      %v5585 = vpop.f32.mrf.mxu0
      %v5586 = vadd.f32 %v5365, %v5585
      %5587 = vmatmul.f32.gmra.mxu0 %v5476
      %v5588 = vpop.f32.mrf.mxu0
      %v5589 = vadd.f32 %v5370, %v5588
      %5590 = vmatmul.f32.gmra.mxu0 %v5479
      %v5591 = vpop.f32.mrf.mxu0
      %v5592 = vadd.f32 %v5375, %v5591
      %5593 = vmatmul.f32.gmra.mxu0 %v5482
      %v5594 = vpop.f32.mrf.mxu0
      %v5595 = vadd.f32 %v5380, %v5594
      %5596 = vmatmul.f32.gmra.mxu0 %v5485
      %v5597 = vpop.f32.mrf.mxu0
      %v5598 = vadd.f32 %v5385, %v5597
      %5599 = vmatmul.f32.gmra.mxu0 %v5488
      %v5600 = vpop.f32.mrf.mxu0
      %v5601 = vadd.f32 %v5390, %v5600
      %5602 = vmatmul.f32.gmra.mxu0 %v5491
      %v5603 = vpop.f32.mrf.mxu0
      %v5604 = vadd.f32 %v5395, %v5603
      %5605 = vdwg.mxu0
      %v5606 = vsub.f32 0.0, %v5511
      %v5607 = vsub.f32 0.0, %v5514
      %v5608 = vsub.f32 0.0, %v5517
      %v5609 = vsub.f32 0.0, %v5520
      %v5610 = vsub.f32 0.0, %v5523
      %v5611 = vsub.f32 0.0, %v5526
      %v5612 = vsub.f32 0.0, %v5529
      %v5613 = vsub.f32 0.0, %v5532
      %v5614 = vsub.f32 0.0, %v5535
      %v5615 = vsub.f32 0.0, %v5538
      %v5616 = vsub.f32 0.0, %v5541
      %v5617 = vsub.f32 0.0, %v5544
      %v5618 = vsub.f32 0.0, %v5547
      %v5619 = vsub.f32 0.0, %v5550
      %v5620 = vsub.f32 0.0, %v5553
      %v5621 = vsub.f32 0.0, %v5556
      %v5622 = vsub.f32 0.0, %v5559
      %v5623 = vsub.f32 0.0, %v5562
      %v5624 = vsub.f32 0.0, %v5565
      %v5625 = vsub.f32 0.0, %v5568
      %v5626 = vsub.f32 0.0, %v5571
      %v5627 = vsub.f32 0.0, %v5574
      %v5628 = vsub.f32 0.0, %v5577
      %v5629 = vsub.f32 0.0, %v5580
      %v5630 = vsub.f32 0.0, %v5583
      %v5631 = vsub.f32 0.0, %v5586
      %v5632 = vsub.f32 0.0, %v5589
      %v5633 = vsub.f32 0.0, %v5592
      %v5634 = vsub.f32 0.0, %v5595
      %v5635 = vsub.f32 0.0, %v5598
      %v5636 = vsub.f32 0.0, %v5601
      %v5637 = vsub.f32 0.0, %v5604
      %v5638 = vmul.f32 %v5606, 1.442695
      %v5639 = vpow.pop %v5638
      %v5640 = vmul.f32 %v5607, 1.442695
      %v5641 = vpow.pop %v5640
      %v5642 = vmul.f32 %v5608, 1.442695
      %v5643 = vpow.pop %v5642
      %v5644 = vmul.f32 %v5609, 1.442695
      %v5645 = vpow.pop %v5644
      %v5646 = vmul.f32 %v5610, 1.442695
      %v5647 = vpow.pop %v5646
      %v5648 = vmul.f32 %v5611, 1.442695
      %v5649 = vpow.pop %v5648
      %v5650 = vmul.f32 %v5612, 1.442695
      %v5651 = vpow.pop %v5650
      %v5652 = vmul.f32 %v5613, 1.442695
      %v5653 = vpow.pop %v5652
      %v5654 = vmul.f32 %v5614, 1.442695
      %v5655 = vpow.pop %v5654
      %v5656 = vmul.f32 %v5615, 1.442695
      %v5657 = vpow.pop %v5656
      %v5658 = vmul.f32 %v5616, 1.442695
      %v5659 = vpow.pop %v5658
      %v5660 = vmul.f32 %v5617, 1.442695
      %v5661 = vpow.pop %v5660
      %v5662 = vmul.f32 %v5618, 1.442695
      %v5663 = vpow.pop %v5662
      %v5664 = vmul.f32 %v5619, 1.442695
      %v5665 = vpow.pop %v5664
      %v5666 = vmul.f32 %v5620, 1.442695
      %v5667 = vpow.pop %v5666
      %v5668 = vmul.f32 %v5621, 1.442695
      %v5669 = vpow.pop %v5668
      %v5670 = vmul.f32 %v5622, 1.442695
      %v5671 = vpow.pop %v5670
      %v5672 = vmul.f32 %v5623, 1.442695
      %v5673 = vpow.pop %v5672
      %v5674 = vmul.f32 %v5624, 1.442695
      %v5675 = vpow.pop %v5674
      %v5676 = vmul.f32 %v5625, 1.442695
      %v5677 = vpow.pop %v5676
      %v5678 = vmul.f32 %v5626, 1.442695
      %v5679 = vpow.pop %v5678
      %v5680 = vmul.f32 %v5627, 1.442695
      %v5681 = vpow.pop %v5680
      %v5682 = vmul.f32 %v5628, 1.442695
      %v5683 = vpow.pop %v5682
      %v5684 = vmul.f32 %v5629, 1.442695
      %v5685 = vpow.pop %v5684
      %v5686 = vmul.f32 %v5630, 1.442695
      %v5687 = vpow.pop %v5686
      %v5688 = vmul.f32 %v5631, 1.442695
      %v5689 = vpow.pop %v5688
      %v5690 = vmul.f32 %v5632, 1.442695
      %v5691 = vpow.pop %v5690
      %v5692 = vmul.f32 %v5633, 1.442695
      %v5693 = vpow.pop %v5692
      %v5694 = vmul.f32 %v5634, 1.442695
      %v5695 = vpow.pop %v5694
      %v5696 = vmul.f32 %v5635, 1.442695
      %v5697 = vpow.pop %v5696
      %v5698 = vmul.f32 %v5636, 1.442695
      %v5699 = vpow.pop %v5698
      %v5700 = vmul.f32 %v5637, 1.442695
      %v5701 = vpow.pop %v5700
      %v5702 = vadd.f32 %v5639, 1.0
      %v5703 = vadd.f32 %v5641, 1.0
      %v5704 = vadd.f32 %v5643, 1.0
      %v5705 = vadd.f32 %v5645, 1.0
      %v5706 = vadd.f32 %v5647, 1.0
      %v5707 = vadd.f32 %v5649, 1.0
      %v5708 = vadd.f32 %v5651, 1.0
      %v5709 = vadd.f32 %v5653, 1.0
      %v5710 = vadd.f32 %v5655, 1.0
      %v5711 = vadd.f32 %v5657, 1.0
      %v5712 = vadd.f32 %v5659, 1.0
      %v5713 = vadd.f32 %v5661, 1.0
      %v5714 = vadd.f32 %v5663, 1.0
      %v5715 = vadd.f32 %v5665, 1.0
      %v5716 = vadd.f32 %v5667, 1.0
      %v5717 = vadd.f32 %v5669, 1.0
      %v5718 = vadd.f32 %v5671, 1.0
      %v5719 = vadd.f32 %v5673, 1.0
      %v5720 = vadd.f32 %v5675, 1.0
      %v5721 = vadd.f32 %v5677, 1.0
      %v5722 = vadd.f32 %v5679, 1.0
      %v5723 = vadd.f32 %v5681, 1.0
      %v5724 = vadd.f32 %v5683, 1.0
      %v5725 = vadd.f32 %v5685, 1.0
      %v5726 = vadd.f32 %v5687, 1.0
      %v5727 = vadd.f32 %v5689, 1.0
      %v5728 = vadd.f32 %v5691, 1.0
      %v5729 = vadd.f32 %v5693, 1.0
      %v5730 = vadd.f32 %v5695, 1.0
      %v5731 = vadd.f32 %v5697, 1.0
      %v5732 = vadd.f32 %v5699, 1.0
      %v5733 = vadd.f32 %v5701, 1.0
      %v5734 = vrcp.pop %v5702
      %v5735 = vmul.f32 %v5702, %v5734
      %v5736 = vsub.f32 1.0, %v5735
      %v5737 = vmul.f32 %v5734, %v5736
      %v5738 = vadd.f32 %v5734, %v5737
      %vm5739 = vweird.f32 %v5702
      %vm5740 = vweird.f32 %v5734
      %vm5741 = vmor %vm5739, %vm5740
      %v5742 = vsel %vm5741, %v5734, %v5738
      %v5743 = vand.u32 2147483647, %v5702
      %vm5744 = vcmp.eq.f32.partialorder %v5743, 8.507059e+37
      %v5745 = vand.u32 %v5702, 2147483648
      %v5746 = vor.u32 1.1754944e-38, %v5745
      %v5747 = vsel %vm5744, %v5746, %v5742
      %v5748 = vmul.f32 1.0, %v5747
      %v5749 = vrcp.pop %v5703
      %v5750 = vmul.f32 %v5703, %v5749
      %v5751 = vsub.f32 1.0, %v5750
      %v5752 = vmul.f32 %v5749, %v5751
      %v5753 = vadd.f32 %v5749, %v5752
      %vm5754 = vweird.f32 %v5703
      %vm5755 = vweird.f32 %v5749
      %vm5756 = vmor %vm5754, %vm5755
      %v5757 = vsel %vm5756, %v5749, %v5753
      %v5758 = vand.u32 2147483647, %v5703
      %vm5759 = vcmp.eq.f32.partialorder %v5758, 8.507059e+37
      %v5760 = vand.u32 %v5703, 2147483648
      %v5761 = vor.u32 1.1754944e-38, %v5760
      %v5762 = vsel %vm5759, %v5761, %v5757
      %v5763 = vmul.f32 1.0, %v5762
      %v5764 = vrcp.pop %v5704
      %v5765 = vmul.f32 %v5704, %v5764
      %v5766 = vsub.f32 1.0, %v5765
      %v5767 = vmul.f32 %v5764, %v5766
      %v5768 = vadd.f32 %v5764, %v5767
      %vm5769 = vweird.f32 %v5704
      %vm5770 = vweird.f32 %v5764
      %vm5771 = vmor %vm5769, %vm5770
      %v5772 = vsel %vm5771, %v5764, %v5768
      %v5773 = vand.u32 2147483647, %v5704
      %vm5774 = vcmp.eq.f32.partialorder %v5773, 8.507059e+37
      %v5775 = vand.u32 %v5704, 2147483648
      %v5776 = vor.u32 1.1754944e-38, %v5775
      %v5777 = vsel %vm5774, %v5776, %v5772
      %v5778 = vmul.f32 1.0, %v5777
      %v5779 = vrcp.pop %v5705
      %v5780 = vmul.f32 %v5705, %v5779
      %v5781 = vsub.f32 1.0, %v5780
      %v5782 = vmul.f32 %v5779, %v5781
      %v5783 = vadd.f32 %v5779, %v5782
      %vm5784 = vweird.f32 %v5705
      %vm5785 = vweird.f32 %v5779
      %vm5786 = vmor %vm5784, %vm5785
      %v5787 = vsel %vm5786, %v5779, %v5783
      %v5788 = vand.u32 2147483647, %v5705
      %vm5789 = vcmp.eq.f32.partialorder %v5788, 8.507059e+37
      %v5790 = vand.u32 %v5705, 2147483648
      %v5791 = vor.u32 1.1754944e-38, %v5790
      %v5792 = vsel %vm5789, %v5791, %v5787
      %v5793 = vmul.f32 1.0, %v5792
      %v5794 = vrcp.pop %v5706
      %v5795 = vmul.f32 %v5706, %v5794
      %v5796 = vsub.f32 1.0, %v5795
      %v5797 = vmul.f32 %v5794, %v5796
      %v5798 = vadd.f32 %v5794, %v5797
      %vm5799 = vweird.f32 %v5706
      %vm5800 = vweird.f32 %v5794
      %vm5801 = vmor %vm5799, %vm5800
      %v5802 = vsel %vm5801, %v5794, %v5798
      %v5803 = vand.u32 2147483647, %v5706
      %vm5804 = vcmp.eq.f32.partialorder %v5803, 8.507059e+37
      %v5805 = vand.u32 %v5706, 2147483648
      %v5806 = vor.u32 1.1754944e-38, %v5805
      %v5807 = vsel %vm5804, %v5806, %v5802
      %v5808 = vmul.f32 1.0, %v5807
      %v5809 = vrcp.pop %v5707
      %v5810 = vmul.f32 %v5707, %v5809
      %v5811 = vsub.f32 1.0, %v5810
      %v5812 = vmul.f32 %v5809, %v5811
      %v5813 = vadd.f32 %v5809, %v5812
      %vm5814 = vweird.f32 %v5707
      %vm5815 = vweird.f32 %v5809
      %vm5816 = vmor %vm5814, %vm5815
      %v5817 = vsel %vm5816, %v5809, %v5813
      %v5818 = vand.u32 2147483647, %v5707
      %vm5819 = vcmp.eq.f32.partialorder %v5818, 8.507059e+37
      %v5820 = vand.u32 %v5707, 2147483648
      %v5821 = vor.u32 1.1754944e-38, %v5820
      %v5822 = vsel %vm5819, %v5821, %v5817
      %v5823 = vmul.f32 1.0, %v5822
      %v5824 = vrcp.pop %v5708
      %v5825 = vmul.f32 %v5708, %v5824
      %v5826 = vsub.f32 1.0, %v5825
      %v5827 = vmul.f32 %v5824, %v5826
      %v5828 = vadd.f32 %v5824, %v5827
      %vm5829 = vweird.f32 %v5708
      %vm5830 = vweird.f32 %v5824
      %vm5831 = vmor %vm5829, %vm5830
      %v5832 = vsel %vm5831, %v5824, %v5828
      %v5833 = vand.u32 2147483647, %v5708
      %vm5834 = vcmp.eq.f32.partialorder %v5833, 8.507059e+37
      %v5835 = vand.u32 %v5708, 2147483648
      %v5836 = vor.u32 1.1754944e-38, %v5835
      %v5837 = vsel %vm5834, %v5836, %v5832
      %v5838 = vmul.f32 1.0, %v5837
      %v5839 = vrcp.pop %v5709
      %v5840 = vmul.f32 %v5709, %v5839
      %v5841 = vsub.f32 1.0, %v5840
      %v5842 = vmul.f32 %v5839, %v5841
      %v5843 = vadd.f32 %v5839, %v5842
      %vm5844 = vweird.f32 %v5709
      %vm5845 = vweird.f32 %v5839
      %vm5846 = vmor %vm5844, %vm5845
      %v5847 = vsel %vm5846, %v5839, %v5843
      %v5848 = vand.u32 2147483647, %v5709
      %vm5849 = vcmp.eq.f32.partialorder %v5848, 8.507059e+37
      %v5850 = vand.u32 %v5709, 2147483648
      %v5851 = vor.u32 1.1754944e-38, %v5850
      %v5852 = vsel %vm5849, %v5851, %v5847
      %v5853 = vmul.f32 1.0, %v5852
      %v5854 = vrcp.pop %v5710
      %v5855 = vmul.f32 %v5710, %v5854
      %v5856 = vsub.f32 1.0, %v5855
      %v5857 = vmul.f32 %v5854, %v5856
      %v5858 = vadd.f32 %v5854, %v5857
      %vm5859 = vweird.f32 %v5710
      %vm5860 = vweird.f32 %v5854
      %vm5861 = vmor %vm5859, %vm5860
      %v5862 = vsel %vm5861, %v5854, %v5858
      %v5863 = vand.u32 2147483647, %v5710
      %vm5864 = vcmp.eq.f32.partialorder %v5863, 8.507059e+37
      %v5865 = vand.u32 %v5710, 2147483648
      %v5866 = vor.u32 1.1754944e-38, %v5865
      %v5867 = vsel %vm5864, %v5866, %v5862
      %v5868 = vmul.f32 1.0, %v5867
      %v5869 = vrcp.pop %v5711
      %v5870 = vmul.f32 %v5711, %v5869
      %v5871 = vsub.f32 1.0, %v5870
      %v5872 = vmul.f32 %v5869, %v5871
      %v5873 = vadd.f32 %v5869, %v5872
      %vm5874 = vweird.f32 %v5711
      %vm5875 = vweird.f32 %v5869
      %vm5876 = vmor %vm5874, %vm5875
      %v5877 = vsel %vm5876, %v5869, %v5873
      %v5878 = vand.u32 2147483647, %v5711
      %vm5879 = vcmp.eq.f32.partialorder %v5878, 8.507059e+37
      %v5880 = vand.u32 %v5711, 2147483648
      %v5881 = vor.u32 1.1754944e-38, %v5880
      %v5882 = vsel %vm5879, %v5881, %v5877
      %v5883 = vmul.f32 1.0, %v5882
      %v5884 = vrcp.pop %v5712
      %v5885 = vmul.f32 %v5712, %v5884
      %v5886 = vsub.f32 1.0, %v5885
      %v5887 = vmul.f32 %v5884, %v5886
      %v5888 = vadd.f32 %v5884, %v5887
      %vm5889 = vweird.f32 %v5712
      %vm5890 = vweird.f32 %v5884
      %vm5891 = vmor %vm5889, %vm5890
      %v5892 = vsel %vm5891, %v5884, %v5888
      %v5893 = vand.u32 2147483647, %v5712
      %vm5894 = vcmp.eq.f32.partialorder %v5893, 8.507059e+37
      %v5895 = vand.u32 %v5712, 2147483648
      %v5896 = vor.u32 1.1754944e-38, %v5895
      %v5897 = vsel %vm5894, %v5896, %v5892
      %v5898 = vmul.f32 1.0, %v5897
      %v5899 = vrcp.pop %v5713
      %v5900 = vmul.f32 %v5713, %v5899
      %v5901 = vsub.f32 1.0, %v5900
      %v5902 = vmul.f32 %v5899, %v5901
      %v5903 = vadd.f32 %v5899, %v5902
      %vm5904 = vweird.f32 %v5713
      %vm5905 = vweird.f32 %v5899
      %vm5906 = vmor %vm5904, %vm5905
      %v5907 = vsel %vm5906, %v5899, %v5903
      %v5908 = vand.u32 2147483647, %v5713
      %vm5909 = vcmp.eq.f32.partialorder %v5908, 8.507059e+37
      %v5910 = vand.u32 %v5713, 2147483648
      %v5911 = vor.u32 1.1754944e-38, %v5910
      %v5912 = vsel %vm5909, %v5911, %v5907
      %v5913 = vmul.f32 1.0, %v5912
      %v5914 = vrcp.pop %v5714
      %v5915 = vmul.f32 %v5714, %v5914
      %v5916 = vsub.f32 1.0, %v5915
      %v5917 = vmul.f32 %v5914, %v5916
      %v5918 = vadd.f32 %v5914, %v5917
      %vm5919 = vweird.f32 %v5714
      %vm5920 = vweird.f32 %v5914
      %vm5921 = vmor %vm5919, %vm5920
      %v5922 = vsel %vm5921, %v5914, %v5918
      %v5923 = vand.u32 2147483647, %v5714
      %vm5924 = vcmp.eq.f32.partialorder %v5923, 8.507059e+37
      %v5925 = vand.u32 %v5714, 2147483648
      %v5926 = vor.u32 1.1754944e-38, %v5925
      %v5927 = vsel %vm5924, %v5926, %v5922
      %v5928 = vmul.f32 1.0, %v5927
      %v5929 = vrcp.pop %v5715
      %v5930 = vmul.f32 %v5715, %v5929
      %v5931 = vsub.f32 1.0, %v5930
      %v5932 = vmul.f32 %v5929, %v5931
      %v5933 = vadd.f32 %v5929, %v5932
      %vm5934 = vweird.f32 %v5715
      %vm5935 = vweird.f32 %v5929
      %vm5936 = vmor %vm5934, %vm5935
      %v5937 = vsel %vm5936, %v5929, %v5933
      %v5938 = vand.u32 2147483647, %v5715
      %vm5939 = vcmp.eq.f32.partialorder %v5938, 8.507059e+37
      %v5940 = vand.u32 %v5715, 2147483648
      %v5941 = vor.u32 1.1754944e-38, %v5940
      %v5942 = vsel %vm5939, %v5941, %v5937
      %v5943 = vmul.f32 1.0, %v5942
      %v5944 = vrcp.pop %v5716
      %v5945 = vmul.f32 %v5716, %v5944
      %v5946 = vsub.f32 1.0, %v5945
      %v5947 = vmul.f32 %v5944, %v5946
      %v5948 = vadd.f32 %v5944, %v5947
      %vm5949 = vweird.f32 %v5716
      %vm5950 = vweird.f32 %v5944
      %vm5951 = vmor %vm5949, %vm5950
      %v5952 = vsel %vm5951, %v5944, %v5948
      %v5953 = vand.u32 2147483647, %v5716
      %vm5954 = vcmp.eq.f32.partialorder %v5953, 8.507059e+37
      %v5955 = vand.u32 %v5716, 2147483648
      %v5956 = vor.u32 1.1754944e-38, %v5955
      %v5957 = vsel %vm5954, %v5956, %v5952
      %v5958 = vmul.f32 1.0, %v5957
      %v5959 = vrcp.pop %v5717
      %v5960 = vmul.f32 %v5717, %v5959
      %v5961 = vsub.f32 1.0, %v5960
      %v5962 = vmul.f32 %v5959, %v5961
      %v5963 = vadd.f32 %v5959, %v5962
      %vm5964 = vweird.f32 %v5717
      %vm5965 = vweird.f32 %v5959
      %vm5966 = vmor %vm5964, %vm5965
      %v5967 = vsel %vm5966, %v5959, %v5963
      %v5968 = vand.u32 2147483647, %v5717
      %vm5969 = vcmp.eq.f32.partialorder %v5968, 8.507059e+37
      %v5970 = vand.u32 %v5717, 2147483648
      %v5971 = vor.u32 1.1754944e-38, %v5970
      %v5972 = vsel %vm5969, %v5971, %v5967
      %v5973 = vmul.f32 1.0, %v5972
      %v5974 = vrcp.pop %v5718
      %v5975 = vmul.f32 %v5718, %v5974
      %v5976 = vsub.f32 1.0, %v5975
      %v5977 = vmul.f32 %v5974, %v5976
      %v5978 = vadd.f32 %v5974, %v5977
      %vm5979 = vweird.f32 %v5718
      %vm5980 = vweird.f32 %v5974
      %vm5981 = vmor %vm5979, %vm5980
      %v5982 = vsel %vm5981, %v5974, %v5978
      %v5983 = vand.u32 2147483647, %v5718
      %vm5984 = vcmp.eq.f32.partialorder %v5983, 8.507059e+37
      %v5985 = vand.u32 %v5718, 2147483648
      %v5986 = vor.u32 1.1754944e-38, %v5985
      %v5987 = vsel %vm5984, %v5986, %v5982
      %v5988 = vmul.f32 1.0, %v5987
      %v5989 = vrcp.pop %v5719
      %v5990 = vmul.f32 %v5719, %v5989
      %v5991 = vsub.f32 1.0, %v5990
      %v5992 = vmul.f32 %v5989, %v5991
      %v5993 = vadd.f32 %v5989, %v5992
      %vm5994 = vweird.f32 %v5719
      %vm5995 = vweird.f32 %v5989
      %vm5996 = vmor %vm5994, %vm5995
      %v5997 = vsel %vm5996, %v5989, %v5993
      %v5998 = vand.u32 2147483647, %v5719
      %vm5999 = vcmp.eq.f32.partialorder %v5998, 8.507059e+37
      %v6000 = vand.u32 %v5719, 2147483648
      %v6001 = vor.u32 1.1754944e-38, %v6000
      %v6002 = vsel %vm5999, %v6001, %v5997
      %v6003 = vmul.f32 1.0, %v6002
      %v6004 = vrcp.pop %v5720
      %v6005 = vmul.f32 %v5720, %v6004
      %v6006 = vsub.f32 1.0, %v6005
      %v6007 = vmul.f32 %v6004, %v6006
      %v6008 = vadd.f32 %v6004, %v6007
      %vm6009 = vweird.f32 %v5720
      %vm6010 = vweird.f32 %v6004
      %vm6011 = vmor %vm6009, %vm6010
      %v6012 = vsel %vm6011, %v6004, %v6008
      %v6013 = vand.u32 2147483647, %v5720
      %vm6014 = vcmp.eq.f32.partialorder %v6013, 8.507059e+37
      %v6015 = vand.u32 %v5720, 2147483648
      %v6016 = vor.u32 1.1754944e-38, %v6015
      %v6017 = vsel %vm6014, %v6016, %v6012
      %v6018 = vmul.f32 1.0, %v6017
      %v6019 = vrcp.pop %v5721
      %v6020 = vmul.f32 %v5721, %v6019
      %v6021 = vsub.f32 1.0, %v6020
      %v6022 = vmul.f32 %v6019, %v6021
      %v6023 = vadd.f32 %v6019, %v6022
      %vm6024 = vweird.f32 %v5721
      %vm6025 = vweird.f32 %v6019
      %vm6026 = vmor %vm6024, %vm6025
      %v6027 = vsel %vm6026, %v6019, %v6023
      %v6028 = vand.u32 2147483647, %v5721
      %vm6029 = vcmp.eq.f32.partialorder %v6028, 8.507059e+37
      %v6030 = vand.u32 %v5721, 2147483648
      %v6031 = vor.u32 1.1754944e-38, %v6030
      %v6032 = vsel %vm6029, %v6031, %v6027
      %v6033 = vmul.f32 1.0, %v6032
      %v6034 = vrcp.pop %v5722
      %v6035 = vmul.f32 %v5722, %v6034
      %v6036 = vsub.f32 1.0, %v6035
      %v6037 = vmul.f32 %v6034, %v6036
      %v6038 = vadd.f32 %v6034, %v6037
      %vm6039 = vweird.f32 %v5722
      %vm6040 = vweird.f32 %v6034
      %vm6041 = vmor %vm6039, %vm6040
      %v6042 = vsel %vm6041, %v6034, %v6038
      %v6043 = vand.u32 2147483647, %v5722
      %vm6044 = vcmp.eq.f32.partialorder %v6043, 8.507059e+37
      %v6045 = vand.u32 %v5722, 2147483648
      %v6046 = vor.u32 1.1754944e-38, %v6045
      %v6047 = vsel %vm6044, %v6046, %v6042
      %v6048 = vmul.f32 1.0, %v6047
      %v6049 = vrcp.pop %v5723
      %v6050 = vmul.f32 %v5723, %v6049
      %v6051 = vsub.f32 1.0, %v6050
      %v6052 = vmul.f32 %v6049, %v6051
      %v6053 = vadd.f32 %v6049, %v6052
      %vm6054 = vweird.f32 %v5723
      %vm6055 = vweird.f32 %v6049
      %vm6056 = vmor %vm6054, %vm6055
      %v6057 = vsel %vm6056, %v6049, %v6053
      %v6058 = vand.u32 2147483647, %v5723
      %vm6059 = vcmp.eq.f32.partialorder %v6058, 8.507059e+37
      %v6060 = vand.u32 %v5723, 2147483648
      %v6061 = vor.u32 1.1754944e-38, %v6060
      %v6062 = vsel %vm6059, %v6061, %v6057
      %v6063 = vmul.f32 1.0, %v6062
      %v6064 = vrcp.pop %v5724
      %v6065 = vmul.f32 %v5724, %v6064
      %v6066 = vsub.f32 1.0, %v6065
      %v6067 = vmul.f32 %v6064, %v6066
      %v6068 = vadd.f32 %v6064, %v6067
      %vm6069 = vweird.f32 %v5724
      %vm6070 = vweird.f32 %v6064
      %vm6071 = vmor %vm6069, %vm6070
      %v6072 = vsel %vm6071, %v6064, %v6068
      %v6073 = vand.u32 2147483647, %v5724
      %vm6074 = vcmp.eq.f32.partialorder %v6073, 8.507059e+37
      %v6075 = vand.u32 %v5724, 2147483648
      %v6076 = vor.u32 1.1754944e-38, %v6075
      %v6077 = vsel %vm6074, %v6076, %v6072
      %v6078 = vmul.f32 1.0, %v6077
      %v6079 = vrcp.pop %v5725
      %v6080 = vmul.f32 %v5725, %v6079
      %v6081 = vsub.f32 1.0, %v6080
      %v6082 = vmul.f32 %v6079, %v6081
      %v6083 = vadd.f32 %v6079, %v6082
      %vm6084 = vweird.f32 %v5725
      %vm6085 = vweird.f32 %v6079
      %vm6086 = vmor %vm6084, %vm6085
      %v6087 = vsel %vm6086, %v6079, %v6083
      %v6088 = vand.u32 2147483647, %v5725
      %vm6089 = vcmp.eq.f32.partialorder %v6088, 8.507059e+37
      %v6090 = vand.u32 %v5725, 2147483648
      %v6091 = vor.u32 1.1754944e-38, %v6090
      %v6092 = vsel %vm6089, %v6091, %v6087
      %v6093 = vmul.f32 1.0, %v6092
      %v6094 = vrcp.pop %v5726
      %v6095 = vmul.f32 %v5726, %v6094
      %v6096 = vsub.f32 1.0, %v6095
      %v6097 = vmul.f32 %v6094, %v6096
      %v6098 = vadd.f32 %v6094, %v6097
      %vm6099 = vweird.f32 %v5726
      %vm6100 = vweird.f32 %v6094
      %vm6101 = vmor %vm6099, %vm6100
      %v6102 = vsel %vm6101, %v6094, %v6098
      %v6103 = vand.u32 2147483647, %v5726
      %vm6104 = vcmp.eq.f32.partialorder %v6103, 8.507059e+37
      %v6105 = vand.u32 %v5726, 2147483648
      %v6106 = vor.u32 1.1754944e-38, %v6105
      %v6107 = vsel %vm6104, %v6106, %v6102
      %v6108 = vmul.f32 1.0, %v6107
      %v6109 = vrcp.pop %v5727
      %v6110 = vmul.f32 %v5727, %v6109
      %v6111 = vsub.f32 1.0, %v6110
      %v6112 = vmul.f32 %v6109, %v6111
      %v6113 = vadd.f32 %v6109, %v6112
      %vm6114 = vweird.f32 %v5727
      %vm6115 = vweird.f32 %v6109
      %vm6116 = vmor %vm6114, %vm6115
      %v6117 = vsel %vm6116, %v6109, %v6113
      %v6118 = vand.u32 2147483647, %v5727
      %vm6119 = vcmp.eq.f32.partialorder %v6118, 8.507059e+37
      %v6120 = vand.u32 %v5727, 2147483648
      %v6121 = vor.u32 1.1754944e-38, %v6120
      %v6122 = vsel %vm6119, %v6121, %v6117
      %v6123 = vmul.f32 1.0, %v6122
      %v6124 = vrcp.pop %v5728
      %v6125 = vmul.f32 %v5728, %v6124
      %v6126 = vsub.f32 1.0, %v6125
      %v6127 = vmul.f32 %v6124, %v6126
      %v6128 = vadd.f32 %v6124, %v6127
      %vm6129 = vweird.f32 %v5728
      %vm6130 = vweird.f32 %v6124
      %vm6131 = vmor %vm6129, %vm6130
      %v6132 = vsel %vm6131, %v6124, %v6128
      %v6133 = vand.u32 2147483647, %v5728
      %vm6134 = vcmp.eq.f32.partialorder %v6133, 8.507059e+37
      %v6135 = vand.u32 %v5728, 2147483648
      %v6136 = vor.u32 1.1754944e-38, %v6135
      %v6137 = vsel %vm6134, %v6136, %v6132
      %v6138 = vmul.f32 1.0, %v6137
      %v6139 = vrcp.pop %v5729
      %v6140 = vmul.f32 %v5729, %v6139
      %v6141 = vsub.f32 1.0, %v6140
      %v6142 = vmul.f32 %v6139, %v6141
      %v6143 = vadd.f32 %v6139, %v6142
      %vm6144 = vweird.f32 %v5729
      %vm6145 = vweird.f32 %v6139
      %vm6146 = vmor %vm6144, %vm6145
      %v6147 = vsel %vm6146, %v6139, %v6143
      %v6148 = vand.u32 2147483647, %v5729
      %vm6149 = vcmp.eq.f32.partialorder %v6148, 8.507059e+37
      %v6150 = vand.u32 %v5729, 2147483648
      %v6151 = vor.u32 1.1754944e-38, %v6150
      %v6152 = vsel %vm6149, %v6151, %v6147
      %v6153 = vmul.f32 1.0, %v6152
      %v6154 = vrcp.pop %v5730
      %v6155 = vmul.f32 %v5730, %v6154
      %v6156 = vsub.f32 1.0, %v6155
      %v6157 = vmul.f32 %v6154, %v6156
      %v6158 = vadd.f32 %v6154, %v6157
      %vm6159 = vweird.f32 %v5730
      %vm6160 = vweird.f32 %v6154
      %vm6161 = vmor %vm6159, %vm6160
      %v6162 = vsel %vm6161, %v6154, %v6158
      %v6163 = vand.u32 2147483647, %v5730
      %vm6164 = vcmp.eq.f32.partialorder %v6163, 8.507059e+37
      %v6165 = vand.u32 %v5730, 2147483648
      %v6166 = vor.u32 1.1754944e-38, %v6165
      %v6167 = vsel %vm6164, %v6166, %v6162
      %v6168 = vmul.f32 1.0, %v6167
      %v6169 = vrcp.pop %v5731
      %v6170 = vmul.f32 %v5731, %v6169
      %v6171 = vsub.f32 1.0, %v6170
      %v6172 = vmul.f32 %v6169, %v6171
      %v6173 = vadd.f32 %v6169, %v6172
      %vm6174 = vweird.f32 %v5731
      %vm6175 = vweird.f32 %v6169
      %vm6176 = vmor %vm6174, %vm6175
      %v6177 = vsel %vm6176, %v6169, %v6173
      %v6178 = vand.u32 2147483647, %v5731
      %vm6179 = vcmp.eq.f32.partialorder %v6178, 8.507059e+37
      %v6180 = vand.u32 %v5731, 2147483648
      %v6181 = vor.u32 1.1754944e-38, %v6180
      %v6182 = vsel %vm6179, %v6181, %v6177
      %v6183 = vmul.f32 1.0, %v6182
      %v6184 = vrcp.pop %v5732
      %v6185 = vmul.f32 %v5732, %v6184
      %v6186 = vsub.f32 1.0, %v6185
      %v6187 = vmul.f32 %v6184, %v6186
      %v6188 = vadd.f32 %v6184, %v6187
      %vm6189 = vweird.f32 %v5732
      %vm6190 = vweird.f32 %v6184
      %vm6191 = vmor %vm6189, %vm6190
      %v6192 = vsel %vm6191, %v6184, %v6188
      %v6193 = vand.u32 2147483647, %v5732
      %vm6194 = vcmp.eq.f32.partialorder %v6193, 8.507059e+37
      %v6195 = vand.u32 %v5732, 2147483648
      %v6196 = vor.u32 1.1754944e-38, %v6195
      %v6197 = vsel %vm6194, %v6196, %v6192
      %v6198 = vmul.f32 1.0, %v6197
      %v6199 = vrcp.pop %v5733
      %v6200 = vmul.f32 %v5733, %v6199
      %v6201 = vsub.f32 1.0, %v6200
      %v6202 = vmul.f32 %v6199, %v6201
      %v6203 = vadd.f32 %v6199, %v6202
      %vm6204 = vweird.f32 %v5733
      %vm6205 = vweird.f32 %v6199
      %vm6206 = vmor %vm6204, %vm6205
      %v6207 = vsel %vm6206, %v6199, %v6203
      %v6208 = vand.u32 2147483647, %v5733
      %vm6209 = vcmp.eq.f32.partialorder %v6208, 8.507059e+37
      %v6210 = vand.u32 %v5733, 2147483648
      %v6211 = vor.u32 1.1754944e-38, %v6210
      %v6212 = vsel %vm6209, %v6211, %v6207
      %v6213 = vmul.f32 1.0, %v6212
      %v6214 = vadd.f32 %v5748, 1.0
      %v6215 = vadd.f32 %v5763, 1.0
      %v6216 = vadd.f32 %v5778, 1.0
      %v6217 = vadd.f32 %v5793, 1.0
      %v6218 = vadd.f32 %v5808, 1.0
      %v6219 = vadd.f32 %v5823, 1.0
      %v6220 = vadd.f32 %v5838, 1.0
      %v6221 = vadd.f32 %v5853, 1.0
      %v6222 = vadd.f32 %v5868, 1.0
      %v6223 = vadd.f32 %v5883, 1.0
      %v6224 = vadd.f32 %v5898, 1.0
      %v6225 = vadd.f32 %v5913, 1.0
      %v6226 = vadd.f32 %v5928, 1.0
      %v6227 = vadd.f32 %v5943, 1.0
      %v6228 = vadd.f32 %v5958, 1.0
      %v6229 = vadd.f32 %v5973, 1.0
      %v6230 = vadd.f32 %v5988, 1.0
      %v6231 = vadd.f32 %v6003, 1.0
      %v6232 = vadd.f32 %v6018, 1.0
      %v6233 = vadd.f32 %v6033, 1.0
      %v6234 = vadd.f32 %v6048, 1.0
      %v6235 = vadd.f32 %v6063, 1.0
      %v6236 = vadd.f32 %v6078, 1.0
      %v6237 = vadd.f32 %v6093, 1.0
      %v6238 = vadd.f32 %v6108, 1.0
      %v6239 = vadd.f32 %v6123, 1.0
      %v6240 = vadd.f32 %v6138, 1.0
      %v6241 = vadd.f32 %v6153, 1.0
      %v6242 = vadd.f32 %v6168, 1.0
      %v6243 = vadd.f32 %v6183, 1.0
      %v6244 = vadd.f32 %v6198, 1.0
      %v6245 = vadd.f32 %v6213, 1.0
      %v6246 = vmul.f32 %v5020, %v6214
      %v6247 = vmul.f32 %v5021, %v6215
      %v6248 = vmul.f32 %v5022, %v6216
      %v6249 = vmul.f32 %v5023, %v6217
      %v6250 = vmul.f32 %v5024, %v6218
      %v6251 = vmul.f32 %v5025, %v6219
      %v6252 = vmul.f32 %v5026, %v6220
      %v6253 = vmul.f32 %v5027, %v6221
      %v6254 = vmul.f32 %v5028, %v6222
      %v6255 = vmul.f32 %v5029, %v6223
      %v6256 = vmul.f32 %v5030, %v6224
      %v6257 = vmul.f32 %v5031, %v6225
      %v6258 = vmul.f32 %v5032, %v6226
      %v6259 = vmul.f32 %v5033, %v6227
      %v6260 = vmul.f32 %v5034, %v6228
      %v6261 = vmul.f32 %v5035, %v6229
      %v6262 = vmul.f32 %v5036, %v6230
      %v6263 = vmul.f32 %v5037, %v6231
      %v6264 = vmul.f32 %v5038, %v6232
      %v6265 = vmul.f32 %v5039, %v6233
      %v6266 = vmul.f32 %v5040, %v6234
      %v6267 = vmul.f32 %v5041, %v6235
      %v6268 = vmul.f32 %v5042, %v6236
      %v6269 = vmul.f32 %v5043, %v6237
      %v6270 = vmul.f32 %v5044, %v6238
      %v6271 = vmul.f32 %v5045, %v6239
      %v6272 = vmul.f32 %v5046, %v6240
      %v6273 = vmul.f32 %v5047, %v6241
      %v6274 = vmul.f32 %v5048, %v6242
      %v6275 = vmul.f32 %v5049, %v6243
      %v6276 = vmul.f32 %v5050, %v6244
      %v6277 = vmul.f32 %v5051, %v6245
      %v6278 = vld [vmem:[%s21] sm:$0xff]
      %v6279 = vld [vmem:[%s21 + $0x8] sm:$0xff]
      %v6280 = vld [vmem:[%s21 + $0x10] sm:$0xff]
      %v6281 = vld [vmem:[%s21 + $0x18] sm:$0xff]
      %v6282 = vld [vmem:[%s21 + $0x20] sm:$0xff]
      %v6283 = vld [vmem:[%s21 + $0x28] sm:$0xff]
      %v6284 = vld [vmem:[%s21 + $0x30] sm:$0xff]
      %v6285 = vld [vmem:[%s21 + $0x38] sm:$0xff]
      %v6286 = vld [vmem:[%s21 + $0x40] sm:$0xff]
      %v6287 = vld [vmem:[%s21 + $0x48] sm:$0xff]
      %v6288 = vld [vmem:[%s21 + $0x50] sm:$0xff]
      %v6289 = vld [vmem:[%s21 + $0x58] sm:$0xff]
      %v6290 = vld [vmem:[%s21 + $0x60] sm:$0xff]
      %v6291 = vld [vmem:[%s21 + $0x68] sm:$0xff]
      %v6292 = vld [vmem:[%s21 + $0x70] sm:$0xff]
      %v6293 = vld [vmem:[%s21 + $0x78] sm:$0xff]
      %v6294 = vld [vmem:[%s21 + $0x80] sm:$0xff]
      %v6295 = vld [vmem:[%s21 + $0x88] sm:$0xff]
      %v6296 = vld [vmem:[%s21 + $0x90] sm:$0xff]
      %v6297 = vld [vmem:[%s21 + $0x98] sm:$0xff]
      %v6298 = vld [vmem:[%s21 + $0xa0] sm:$0xff]
      %v6299 = vld [vmem:[%s21 + $0xa8] sm:$0xff]
      %v6300 = vld [vmem:[%s21 + $0xb0] sm:$0xff]
      %v6301 = vld [vmem:[%s21 + $0xb8] sm:$0xff]
      %v6302 = vld [vmem:[%s21 + $0xc0] sm:$0xff]
      %v6303 = vld [vmem:[%s21 + $0xc8] sm:$0xff]
      %v6304 = vld [vmem:[%s21 + $0xd0] sm:$0xff]
      %v6305 = vld [vmem:[%s21 + $0xd8] sm:$0xff]
      %v6306 = vld [vmem:[%s21 + $0xe0] sm:$0xff]
      %v6307 = vld [vmem:[%s21 + $0xe8] sm:$0xff]
      %v6308 = vld [vmem:[%s21 + $0xf0] sm:$0xff]
      %v6309 = vld [vmem:[%s21 + $0xf8] sm:$0xff]
      %v6310 = vld [vmem:[%s21 + $0x100] sm:$0xff]
      %v6311 = vld [vmem:[%s21 + $0x108] sm:$0xff]
      %v6312 = vld [vmem:[%s21 + $0x110] sm:$0xff]
      %v6313 = vld [vmem:[%s21 + $0x118] sm:$0xff]
      %v6314 = vld [vmem:[%s21 + $0x120] sm:$0xff]
      %v6315 = vld [vmem:[%s21 + $0x128] sm:$0xff]
      %v6316 = vld [vmem:[%s21 + $0x130] sm:$0xff]
      %v6317 = vld [vmem:[%s21 + $0x138] sm:$0xff]
      %v6318 = vld [vmem:[%s21 + $0x140] sm:$0xff]
      %v6319 = vld [vmem:[%s21 + $0x148] sm:$0xff]
      %v6320 = vld [vmem:[%s21 + $0x150] sm:$0xff]
      %v6321 = vld [vmem:[%s21 + $0x158] sm:$0xff]
      %v6322 = vld [vmem:[%s21 + $0x160] sm:$0xff]
      %v6323 = vld [vmem:[%s21 + $0x168] sm:$0xff]
      %v6324 = vld [vmem:[%s21 + $0x170] sm:$0xff]
      %v6325 = vld [vmem:[%s21 + $0x178] sm:$0xff]
      %v6326 = vld [vmem:[%s21 + $0x180] sm:$0xff]
      %v6327 = vld [vmem:[%s21 + $0x188] sm:$0xff]
      %v6328 = vld [vmem:[%s21 + $0x190] sm:$0xff]
      %v6329 = vld [vmem:[%s21 + $0x198] sm:$0xff]
      %v6330 = vld [vmem:[%s21 + $0x1a0] sm:$0xff]
      %v6331 = vld [vmem:[%s21 + $0x1a8] sm:$0xff]
      %v6332 = vld [vmem:[%s21 + $0x1b0] sm:$0xff]
      %v6333 = vld [vmem:[%s21 + $0x1b8] sm:$0xff]
      %v6334 = vld [vmem:[%s21 + $0x1c0] sm:$0xff]
      %v6335 = vld [vmem:[%s21 + $0x1c8] sm:$0xff]
      %v6336 = vld [vmem:[%s21 + $0x1d0] sm:$0xff]
      %v6337 = vld [vmem:[%s21 + $0x1d8] sm:$0xff]
      %v6338 = vld [vmem:[%s21 + $0x1e0] sm:$0xff]
      %v6339 = vld [vmem:[%s21 + $0x1e8] sm:$0xff]
      %v6340 = vld [vmem:[%s21 + $0x1f0] sm:$0xff]
      %v6341 = vld [vmem:[%s21 + $0x1f8] sm:$0xff]
      %v6342 = vld [vmem:[%s22] sm:$0xff]
      %v6343 = vld [vmem:[%s22 + $0x8] sm:$0xff]
      %v6344 = vld [vmem:[%s22 + $0x10] sm:$0xff]
      %v6345 = vld [vmem:[%s22 + $0x18] sm:$0xff]
      %v6346 = vld [vmem:[%s22 + $0x20] sm:$0xff]
      %v6347 = vld [vmem:[%s22 + $0x28] sm:$0xff]
      %v6348 = vld [vmem:[%s22 + $0x30] sm:$0xff]
      %v6349 = vld [vmem:[%s22 + $0x38] sm:$0xff]
      %v6350 = vld [vmem:[%s22 + $0x40] sm:$0xff]
      %v6351 = vld [vmem:[%s22 + $0x48] sm:$0xff]
      %v6352 = vld [vmem:[%s22 + $0x50] sm:$0xff]
      %v6353 = vld [vmem:[%s22 + $0x58] sm:$0xff]
      %v6354 = vld [vmem:[%s22 + $0x60] sm:$0xff]
      %v6355 = vld [vmem:[%s22 + $0x68] sm:$0xff]
      %v6356 = vld [vmem:[%s22 + $0x70] sm:$0xff]
      %v6357 = vld [vmem:[%s22 + $0x78] sm:$0xff]
      %v6358 = vld [vmem:[%s22 + $0x80] sm:$0xff]
      %v6359 = vld [vmem:[%s22 + $0x88] sm:$0xff]
      %v6360 = vld [vmem:[%s22 + $0x90] sm:$0xff]
      %v6361 = vld [vmem:[%s22 + $0x98] sm:$0xff]
      %v6362 = vld [vmem:[%s22 + $0xa0] sm:$0xff]
      %v6363 = vld [vmem:[%s22 + $0xa8] sm:$0xff]
      %v6364 = vld [vmem:[%s22 + $0xb0] sm:$0xff]
      %v6365 = vld [vmem:[%s22 + $0xb8] sm:$0xff]
      %v6366 = vld [vmem:[%s22 + $0xc0] sm:$0xff]
      %v6367 = vld [vmem:[%s22 + $0xc8] sm:$0xff]
      %v6368 = vld [vmem:[%s22 + $0xd0] sm:$0xff]
      %v6369 = vld [vmem:[%s22 + $0xd8] sm:$0xff]
      %v6370 = vld [vmem:[%s22 + $0xe0] sm:$0xff]
      %v6371 = vld [vmem:[%s22 + $0xe8] sm:$0xff]
      %v6372 = vld [vmem:[%s22 + $0xf0] sm:$0xff]
      %v6373 = vld [vmem:[%s22 + $0xf8] sm:$0xff]
      %6375 = vset.pattern.permute.xlu0 0
      %6376 = vperm.xlu0 %6375, %v6342
      %v6377 = vpop.permute.xlu0 %6376
      %6380 = vset.pattern.permute.xlu0 0
      %6381 = vperm.xlu0 %6380, %v6343
      %v6382 = vpop.permute.xlu0 %6381
      %6385 = vset.pattern.permute.xlu0 0
      %6386 = vperm.xlu0 %6385, %v6344
      %v6387 = vpop.permute.xlu0 %6386
      %6390 = vset.pattern.permute.xlu0 0
      %6391 = vperm.xlu0 %6390, %v6345
      %v6392 = vpop.permute.xlu0 %6391
      %6395 = vset.pattern.permute.xlu0 0
      %6396 = vperm.xlu0 %6395, %v6346
      %v6397 = vpop.permute.xlu0 %6396
      %6400 = vset.pattern.permute.xlu0 0
      %6401 = vperm.xlu0 %6400, %v6347
      %v6402 = vpop.permute.xlu0 %6401
      %6405 = vset.pattern.permute.xlu0 0
      %6406 = vperm.xlu0 %6405, %v6348
      %v6407 = vpop.permute.xlu0 %6406
      %6410 = vset.pattern.permute.xlu0 0
      %6411 = vperm.xlu0 %6410, %v6349
      %v6412 = vpop.permute.xlu0 %6411
      %6415 = vset.pattern.permute.xlu0 0
      %6416 = vperm.xlu0 %6415, %v6350
      %v6417 = vpop.permute.xlu0 %6416
      %6420 = vset.pattern.permute.xlu0 0
      %6421 = vperm.xlu0 %6420, %v6351
      %v6422 = vpop.permute.xlu0 %6421
      %6425 = vset.pattern.permute.xlu0 0
      %6426 = vperm.xlu0 %6425, %v6352
      %v6427 = vpop.permute.xlu0 %6426
      %6430 = vset.pattern.permute.xlu0 0
      %6431 = vperm.xlu0 %6430, %v6353
      %v6432 = vpop.permute.xlu0 %6431
      %6435 = vset.pattern.permute.xlu0 0
      %6436 = vperm.xlu0 %6435, %v6354
      %v6437 = vpop.permute.xlu0 %6436
      %6440 = vset.pattern.permute.xlu0 0
      %6441 = vperm.xlu0 %6440, %v6355
      %v6442 = vpop.permute.xlu0 %6441
      %6445 = vset.pattern.permute.xlu0 0
      %6446 = vperm.xlu0 %6445, %v6356
      %v6447 = vpop.permute.xlu0 %6446
      %6450 = vset.pattern.permute.xlu0 0
      %6451 = vperm.xlu0 %6450, %v6357
      %v6452 = vpop.permute.xlu0 %6451
      %6455 = vset.pattern.permute.xlu0 0
      %6456 = vperm.xlu0 %6455, %v6358
      %v6457 = vpop.permute.xlu0 %6456
      %6460 = vset.pattern.permute.xlu0 0
      %6461 = vperm.xlu0 %6460, %v6359
      %v6462 = vpop.permute.xlu0 %6461
      %6465 = vset.pattern.permute.xlu0 0
      %6466 = vperm.xlu0 %6465, %v6360
      %v6467 = vpop.permute.xlu0 %6466
      %6470 = vset.pattern.permute.xlu0 0
      %6471 = vperm.xlu0 %6470, %v6361
      %v6472 = vpop.permute.xlu0 %6471
      %6475 = vset.pattern.permute.xlu0 0
      %6476 = vperm.xlu0 %6475, %v6362
      %v6477 = vpop.permute.xlu0 %6476
      %6480 = vset.pattern.permute.xlu0 0
      %6481 = vperm.xlu0 %6480, %v6363
      %v6482 = vpop.permute.xlu0 %6481
      %6485 = vset.pattern.permute.xlu0 0
      %6486 = vperm.xlu0 %6485, %v6364
      %v6487 = vpop.permute.xlu0 %6486
      %6490 = vset.pattern.permute.xlu0 0
      %6491 = vperm.xlu0 %6490, %v6365
      %v6492 = vpop.permute.xlu0 %6491
      %6495 = vset.pattern.permute.xlu0 0
      %6496 = vperm.xlu0 %6495, %v6366
      %v6497 = vpop.permute.xlu0 %6496
      %6500 = vset.pattern.permute.xlu0 0
      %6501 = vperm.xlu0 %6500, %v6367
      %v6502 = vpop.permute.xlu0 %6501
      %6505 = vset.pattern.permute.xlu0 0
      %6506 = vperm.xlu0 %6505, %v6368
      %v6507 = vpop.permute.xlu0 %6506
      %6510 = vset.pattern.permute.xlu0 0
      %6511 = vperm.xlu0 %6510, %v6369
      %v6512 = vpop.permute.xlu0 %6511
      %6515 = vset.pattern.permute.xlu0 0
      %6516 = vperm.xlu0 %6515, %v6370
      %v6517 = vpop.permute.xlu0 %6516
      %6520 = vset.pattern.permute.xlu0 0
      %6521 = vperm.xlu0 %6520, %v6371
      %v6522 = vpop.permute.xlu0 %6521
      %6525 = vset.pattern.permute.xlu0 0
      %6526 = vperm.xlu0 %6525, %v6372
      %v6527 = vpop.permute.xlu0 %6526
      %6530 = vset.pattern.permute.xlu0 0
      %6531 = vperm.xlu0 %6530, %v6373
      %v6532 = vpop.permute.xlu0 %6531
      %6534 = vmatpush.msra.mxu0 %v6261
      %6535 = vmatpush.msra.mxu0 %v6260
      %6536 = vmatpush.msra.mxu0 %v6259
      %6537 = vmatpush.msra.mxu0 %v6258
      %6538 = vmatpush.msra.mxu0 %v6257
      %6539 = vmatpush.msra.mxu0 %v6256
      %6540 = vmatpush.msra.mxu0 %v6255
      %6541 = vmatpush.msra.mxu0 %v6254
      %6542 = vmatpush.msra.mxu0 %v6253
      %6543 = vmatpush.msra.mxu0 %v6252
      %6544 = vmatpush.msra.mxu0 %v6251
      %6545 = vmatpush.msra.mxu0 %v6250
      %6546 = vmatpush.msra.mxu0 %v6249
      %6547 = vmatpush.msra.mxu0 %v6248
      %6548 = vmatpush.msra.mxu0 %v6247
      %6549 = vmatpush.msra.mxu0 %v6246
      %6550 = vmatmul.f32.gmra.mxu0 %v6278
      %v6551 = vpop.f32.mrf.mxu0
      %v6552 = vadd.f32 %v6377, %v6551
      %6553 = vmatmul.f32.gmra.mxu0 %v6280
      %v6554 = vpop.f32.mrf.mxu0
      %v6555 = vadd.f32 %v6382, %v6554
      %6556 = vmatmul.f32.gmra.mxu0 %v6282
      %v6557 = vpop.f32.mrf.mxu0
      %v6558 = vadd.f32 %v6387, %v6557
      %6559 = vmatmul.f32.gmra.mxu0 %v6284
      %v6560 = vpop.f32.mrf.mxu0
      %v6561 = vadd.f32 %v6392, %v6560
      %6562 = vmatmul.f32.gmra.mxu0 %v6286
      %v6563 = vpop.f32.mrf.mxu0
      %v6564 = vadd.f32 %v6397, %v6563
      %6565 = vmatmul.f32.gmra.mxu0 %v6288
      %v6566 = vpop.f32.mrf.mxu0
      %v6567 = vadd.f32 %v6402, %v6566
      %6568 = vmatmul.f32.gmra.mxu0 %v6290
      %v6569 = vpop.f32.mrf.mxu0
      %v6570 = vadd.f32 %v6407, %v6569
      %6571 = vmatmul.f32.gmra.mxu0 %v6292
      %v6572 = vpop.f32.mrf.mxu0
      %v6573 = vadd.f32 %v6412, %v6572
      %6574 = vmatmul.f32.gmra.mxu0 %v6294
      %v6575 = vpop.f32.mrf.mxu0
      %v6576 = vadd.f32 %v6417, %v6575
      %6577 = vmatmul.f32.gmra.mxu0 %v6296
      %v6578 = vpop.f32.mrf.mxu0
      %v6579 = vadd.f32 %v6422, %v6578
      %6580 = vmatmul.f32.gmra.mxu0 %v6298
      %v6581 = vpop.f32.mrf.mxu0
      %v6582 = vadd.f32 %v6427, %v6581
      %6583 = vmatmul.f32.gmra.mxu0 %v6300
      %v6584 = vpop.f32.mrf.mxu0
      %v6585 = vadd.f32 %v6432, %v6584
      %6586 = vmatmul.f32.gmra.mxu0 %v6302
      %v6587 = vpop.f32.mrf.mxu0
      %v6588 = vadd.f32 %v6437, %v6587
      %6589 = vmatmul.f32.gmra.mxu0 %v6304
      %v6590 = vpop.f32.mrf.mxu0
      %v6591 = vadd.f32 %v6442, %v6590
      %6592 = vmatmul.f32.gmra.mxu0 %v6306
      %v6593 = vpop.f32.mrf.mxu0
      %v6594 = vadd.f32 %v6447, %v6593
      %6595 = vmatmul.f32.gmra.mxu0 %v6308
      %v6596 = vpop.f32.mrf.mxu0
      %v6597 = vadd.f32 %v6452, %v6596
      %6598 = vmatmul.f32.gmra.mxu0 %v6310
      %v6599 = vpop.f32.mrf.mxu0
      %v6600 = vadd.f32 %v6457, %v6599
      %6601 = vmatmul.f32.gmra.mxu0 %v6312
      %v6602 = vpop.f32.mrf.mxu0
      %v6603 = vadd.f32 %v6462, %v6602
      %6604 = vmatmul.f32.gmra.mxu0 %v6314
      %v6605 = vpop.f32.mrf.mxu0
      %v6606 = vadd.f32 %v6467, %v6605
      %6607 = vmatmul.f32.gmra.mxu0 %v6316
      %v6608 = vpop.f32.mrf.mxu0
      %v6609 = vadd.f32 %v6472, %v6608
      %6610 = vmatmul.f32.gmra.mxu0 %v6318
      %v6611 = vpop.f32.mrf.mxu0
      %v6612 = vadd.f32 %v6477, %v6611
      %6613 = vmatmul.f32.gmra.mxu0 %v6320
      %v6614 = vpop.f32.mrf.mxu0
      %v6615 = vadd.f32 %v6482, %v6614
      %6616 = vmatmul.f32.gmra.mxu0 %v6322
      %v6617 = vpop.f32.mrf.mxu0
      %v6618 = vadd.f32 %v6487, %v6617
      %6619 = vmatmul.f32.gmra.mxu0 %v6324
      %v6620 = vpop.f32.mrf.mxu0
      %v6621 = vadd.f32 %v6492, %v6620
      %6622 = vmatmul.f32.gmra.mxu0 %v6326
      %v6623 = vpop.f32.mrf.mxu0
      %v6624 = vadd.f32 %v6497, %v6623
      %6625 = vmatmul.f32.gmra.mxu0 %v6328
      %v6626 = vpop.f32.mrf.mxu0
      %v6627 = vadd.f32 %v6502, %v6626
      %6628 = vmatmul.f32.gmra.mxu0 %v6330
      %v6629 = vpop.f32.mrf.mxu0
      %v6630 = vadd.f32 %v6507, %v6629
      %6631 = vmatmul.f32.gmra.mxu0 %v6332
      %v6632 = vpop.f32.mrf.mxu0
      %v6633 = vadd.f32 %v6512, %v6632
      %6634 = vmatmul.f32.gmra.mxu0 %v6334
      %v6635 = vpop.f32.mrf.mxu0
      %v6636 = vadd.f32 %v6517, %v6635
      %6637 = vmatmul.f32.gmra.mxu0 %v6336
      %v6638 = vpop.f32.mrf.mxu0
      %v6639 = vadd.f32 %v6522, %v6638
      %6640 = vmatmul.f32.gmra.mxu0 %v6338
      %v6641 = vpop.f32.mrf.mxu0
      %v6642 = vadd.f32 %v6527, %v6641
      %6643 = vmatmul.f32.gmra.mxu0 %v6340
      %v6644 = vpop.f32.mrf.mxu0
      %v6645 = vadd.f32 %v6532, %v6644
      %6646 = vdwg.mxu0
      %6647 = vmatpush.msra.mxu0 %v6277
      %6648 = vmatpush.msra.mxu0 %v6276
      %6649 = vmatpush.msra.mxu0 %v6275
      %6650 = vmatpush.msra.mxu0 %v6274
      %6651 = vmatpush.msra.mxu0 %v6273
      %6652 = vmatpush.msra.mxu0 %v6272
      %6653 = vmatpush.msra.mxu0 %v6271
      %6654 = vmatpush.msra.mxu0 %v6270
      %6655 = vmatpush.msra.mxu0 %v6269
      %6656 = vmatpush.msra.mxu0 %v6268
      %6657 = vmatpush.msra.mxu0 %v6267
      %6658 = vmatpush.msra.mxu0 %v6266
      %6659 = vmatpush.msra.mxu0 %v6265
      %6660 = vmatpush.msra.mxu0 %v6264
      %6661 = vmatpush.msra.mxu0 %v6263
      %6662 = vmatpush.msra.mxu0 %v6262
      %6663 = vmatmul.f32.gmra.mxu0 %v6279
      %v6664 = vpop.f32.mrf.mxu0
      %v6665 = vadd.f32 %v6552, %v6664
      %6666 = vmatmul.f32.gmra.mxu0 %v6281
      %v6667 = vpop.f32.mrf.mxu0
      %v6668 = vadd.f32 %v6555, %v6667
      %6669 = vmatmul.f32.gmra.mxu0 %v6283
      %v6670 = vpop.f32.mrf.mxu0
      %v6671 = vadd.f32 %v6558, %v6670
      %6672 = vmatmul.f32.gmra.mxu0 %v6285
      %v6673 = vpop.f32.mrf.mxu0
      %v6674 = vadd.f32 %v6561, %v6673
      %6675 = vmatmul.f32.gmra.mxu0 %v6287
      %v6676 = vpop.f32.mrf.mxu0
      %v6677 = vadd.f32 %v6564, %v6676
      %6678 = vmatmul.f32.gmra.mxu0 %v6289
      %v6679 = vpop.f32.mrf.mxu0
      %v6680 = vadd.f32 %v6567, %v6679
      %6681 = vmatmul.f32.gmra.mxu0 %v6291
      %v6682 = vpop.f32.mrf.mxu0
      %v6683 = vadd.f32 %v6570, %v6682
      %6684 = vmatmul.f32.gmra.mxu0 %v6293
      %v6685 = vpop.f32.mrf.mxu0
      %v6686 = vadd.f32 %v6573, %v6685
      %6687 = vmatmul.f32.gmra.mxu0 %v6295
      %v6688 = vpop.f32.mrf.mxu0
      %v6689 = vadd.f32 %v6576, %v6688
      %6690 = vmatmul.f32.gmra.mxu0 %v6297
      %v6691 = vpop.f32.mrf.mxu0
      %v6692 = vadd.f32 %v6579, %v6691
      %6693 = vmatmul.f32.gmra.mxu0 %v6299
      %v6694 = vpop.f32.mrf.mxu0
      %v6695 = vadd.f32 %v6582, %v6694
      %6696 = vmatmul.f32.gmra.mxu0 %v6301
      %v6697 = vpop.f32.mrf.mxu0
      %v6698 = vadd.f32 %v6585, %v6697
      %6699 = vmatmul.f32.gmra.mxu0 %v6303
      %v6700 = vpop.f32.mrf.mxu0
      %v6701 = vadd.f32 %v6588, %v6700
      %6702 = vmatmul.f32.gmra.mxu0 %v6305
      %v6703 = vpop.f32.mrf.mxu0
      %v6704 = vadd.f32 %v6591, %v6703
      %6705 = vmatmul.f32.gmra.mxu0 %v6307
      %v6706 = vpop.f32.mrf.mxu0
      %v6707 = vadd.f32 %v6594, %v6706
      %6708 = vmatmul.f32.gmra.mxu0 %v6309
      %v6709 = vpop.f32.mrf.mxu0
      %v6710 = vadd.f32 %v6597, %v6709
      %6711 = vmatmul.f32.gmra.mxu0 %v6311
      %v6712 = vpop.f32.mrf.mxu0
      %v6713 = vadd.f32 %v6600, %v6712
      %6714 = vmatmul.f32.gmra.mxu0 %v6313
      %v6715 = vpop.f32.mrf.mxu0
      %v6716 = vadd.f32 %v6603, %v6715
      %6717 = vmatmul.f32.gmra.mxu0 %v6315
      %v6718 = vpop.f32.mrf.mxu0
      %v6719 = vadd.f32 %v6606, %v6718
      %6720 = vmatmul.f32.gmra.mxu0 %v6317
      %v6721 = vpop.f32.mrf.mxu0
      %v6722 = vadd.f32 %v6609, %v6721
      %6723 = vmatmul.f32.gmra.mxu0 %v6319
      %v6724 = vpop.f32.mrf.mxu0
      %v6725 = vadd.f32 %v6612, %v6724
      %6726 = vmatmul.f32.gmra.mxu0 %v6321
      %v6727 = vpop.f32.mrf.mxu0
      %v6728 = vadd.f32 %v6615, %v6727
      %6729 = vmatmul.f32.gmra.mxu0 %v6323
      %v6730 = vpop.f32.mrf.mxu0
      %v6731 = vadd.f32 %v6618, %v6730
      %6732 = vmatmul.f32.gmra.mxu0 %v6325
      %v6733 = vpop.f32.mrf.mxu0
      %v6734 = vadd.f32 %v6621, %v6733
      %6735 = vmatmul.f32.gmra.mxu0 %v6327
      %v6736 = vpop.f32.mrf.mxu0
      %v6737 = vadd.f32 %v6624, %v6736
      %6738 = vmatmul.f32.gmra.mxu0 %v6329
      %v6739 = vpop.f32.mrf.mxu0
      %v6740 = vadd.f32 %v6627, %v6739
      %6741 = vmatmul.f32.gmra.mxu0 %v6331
      %v6742 = vpop.f32.mrf.mxu0
      %v6743 = vadd.f32 %v6630, %v6742
      %6744 = vmatmul.f32.gmra.mxu0 %v6333
      %v6745 = vpop.f32.mrf.mxu0
      %v6746 = vadd.f32 %v6633, %v6745
      %6747 = vmatmul.f32.gmra.mxu0 %v6335
      %v6748 = vpop.f32.mrf.mxu0
      %v6749 = vadd.f32 %v6636, %v6748
      %6750 = vmatmul.f32.gmra.mxu0 %v6337
      %v6751 = vpop.f32.mrf.mxu0
      %v6752 = vadd.f32 %v6639, %v6751
      %6753 = vmatmul.f32.gmra.mxu0 %v6339
      %v6754 = vpop.f32.mrf.mxu0
      %v6755 = vadd.f32 %v6642, %v6754
      %6756 = vmatmul.f32.gmra.mxu0 %v6341
      %v6757 = vpop.f32.mrf.mxu0
      %v6758 = vadd.f32 %v6645, %v6757
      %6759 = vdwg.mxu0
      %v6760 = vld [vmem:[%s23] sm:$0xff]
      %v6761 = vld [vmem:[%s23 + $0x8] sm:$0xff]
      %v6762 = vld [vmem:[%s23 + $0x10] sm:$0xff]
      %v6763 = vld [vmem:[%s23 + $0x18] sm:$0xff]
      %v6764 = vld [vmem:[%s23 + $0x20] sm:$0xff]
      %v6765 = vld [vmem:[%s23 + $0x28] sm:$0xff]
      %v6766 = vld [vmem:[%s23 + $0x30] sm:$0xff]
      %v6767 = vld [vmem:[%s23 + $0x38] sm:$0xff]
      %v6768 = vld [vmem:[%s23 + $0x40] sm:$0xff]
      %v6769 = vld [vmem:[%s23 + $0x48] sm:$0xff]
      %v6770 = vld [vmem:[%s23 + $0x50] sm:$0xff]
      %v6771 = vld [vmem:[%s23 + $0x58] sm:$0xff]
      %v6772 = vld [vmem:[%s23 + $0x60] sm:$0xff]
      %v6773 = vld [vmem:[%s23 + $0x68] sm:$0xff]
      %v6774 = vld [vmem:[%s23 + $0x70] sm:$0xff]
      %v6775 = vld [vmem:[%s23 + $0x78] sm:$0xff]
      %v6776 = vld [vmem:[%s23 + $0x80] sm:$0xff]
      %v6777 = vld [vmem:[%s23 + $0x88] sm:$0xff]
      %v6778 = vld [vmem:[%s23 + $0x90] sm:$0xff]
      %v6779 = vld [vmem:[%s23 + $0x98] sm:$0xff]
      %v6780 = vld [vmem:[%s23 + $0xa0] sm:$0xff]
      %v6781 = vld [vmem:[%s23 + $0xa8] sm:$0xff]
      %v6782 = vld [vmem:[%s23 + $0xb0] sm:$0xff]
      %v6783 = vld [vmem:[%s23 + $0xb8] sm:$0xff]
      %v6784 = vld [vmem:[%s23 + $0xc0] sm:$0xff]
      %v6785 = vld [vmem:[%s23 + $0xc8] sm:$0xff]
      %v6786 = vld [vmem:[%s23 + $0xd0] sm:$0xff]
      %v6787 = vld [vmem:[%s23 + $0xd8] sm:$0xff]
      %v6788 = vld [vmem:[%s23 + $0xe0] sm:$0xff]
      %v6789 = vld [vmem:[%s23 + $0xe8] sm:$0xff]
      %v6790 = vld [vmem:[%s23 + $0xf0] sm:$0xff]
      %v6791 = vld [vmem:[%s23 + $0xf8] sm:$0xff]
      %v6792 = vld [vmem:[%s24] sm:$0xff]
      %v6793 = vld [vmem:[%s24 + $0x8] sm:$0xff]
      %v6794 = vld [vmem:[%s24 + $0x10] sm:$0xff]
      %v6795 = vld [vmem:[%s24 + $0x18] sm:$0xff]
      %v6796 = vld [vmem:[%s24 + $0x20] sm:$0xff]
      %v6797 = vld [vmem:[%s24 + $0x28] sm:$0xff]
      %v6798 = vld [vmem:[%s24 + $0x30] sm:$0xff]
      %v6799 = vld [vmem:[%s24 + $0x38] sm:$0xff]
      %v6800 = vld [vmem:[%s24 + $0x40] sm:$0xff]
      %v6801 = vld [vmem:[%s24 + $0x48] sm:$0xff]
      %v6802 = vld [vmem:[%s24 + $0x50] sm:$0xff]
      %v6803 = vld [vmem:[%s24 + $0x58] sm:$0xff]
      %v6804 = vld [vmem:[%s24 + $0x60] sm:$0xff]
      %v6805 = vld [vmem:[%s24 + $0x68] sm:$0xff]
      %v6806 = vld [vmem:[%s24 + $0x70] sm:$0xff]
      %v6807 = vld [vmem:[%s24 + $0x78] sm:$0xff]
      %v6808 = vld [vmem:[%s24 + $0x80] sm:$0xff]
      %v6809 = vld [vmem:[%s24 + $0x88] sm:$0xff]
      %v6810 = vld [vmem:[%s24 + $0x90] sm:$0xff]
      %v6811 = vld [vmem:[%s24 + $0x98] sm:$0xff]
      %v6812 = vld [vmem:[%s24 + $0xa0] sm:$0xff]
      %v6813 = vld [vmem:[%s24 + $0xa8] sm:$0xff]
      %v6814 = vld [vmem:[%s24 + $0xb0] sm:$0xff]
      %v6815 = vld [vmem:[%s24 + $0xb8] sm:$0xff]
      %v6816 = vld [vmem:[%s24 + $0xc0] sm:$0xff]
      %v6817 = vld [vmem:[%s24 + $0xc8] sm:$0xff]
      %v6818 = vld [vmem:[%s24 + $0xd0] sm:$0xff]
      %v6819 = vld [vmem:[%s24 + $0xd8] sm:$0xff]
      %v6820 = vld [vmem:[%s24 + $0xe0] sm:$0xff]
      %v6821 = vld [vmem:[%s24 + $0xe8] sm:$0xff]
      %v6822 = vld [vmem:[%s24 + $0xf0] sm:$0xff]
      %v6823 = vld [vmem:[%s24 + $0xf8] sm:$0xff]
      %6825 = vset.pattern.permute.xlu0 0
      %6826 = vperm.xlu0 %6825, %v6792
      %v6827 = vpop.permute.xlu0 %6826
      %6830 = vset.pattern.permute.xlu0 0
      %6831 = vperm.xlu0 %6830, %v6793
      %v6832 = vpop.permute.xlu0 %6831
      %6835 = vset.pattern.permute.xlu0 0
      %6836 = vperm.xlu0 %6835, %v6794
      %v6837 = vpop.permute.xlu0 %6836
      %6840 = vset.pattern.permute.xlu0 0
      %6841 = vperm.xlu0 %6840, %v6795
      %v6842 = vpop.permute.xlu0 %6841
      %6845 = vset.pattern.permute.xlu0 0
      %6846 = vperm.xlu0 %6845, %v6796
      %v6847 = vpop.permute.xlu0 %6846
      %6850 = vset.pattern.permute.xlu0 0
      %6851 = vperm.xlu0 %6850, %v6797
      %v6852 = vpop.permute.xlu0 %6851
      %6855 = vset.pattern.permute.xlu0 0
      %6856 = vperm.xlu0 %6855, %v6798
      %v6857 = vpop.permute.xlu0 %6856
      %6860 = vset.pattern.permute.xlu0 0
      %6861 = vperm.xlu0 %6860, %v6799
      %v6862 = vpop.permute.xlu0 %6861
      %6865 = vset.pattern.permute.xlu0 0
      %6866 = vperm.xlu0 %6865, %v6800
      %v6867 = vpop.permute.xlu0 %6866
      %6870 = vset.pattern.permute.xlu0 0
      %6871 = vperm.xlu0 %6870, %v6801
      %v6872 = vpop.permute.xlu0 %6871
      %6875 = vset.pattern.permute.xlu0 0
      %6876 = vperm.xlu0 %6875, %v6802
      %v6877 = vpop.permute.xlu0 %6876
      %6880 = vset.pattern.permute.xlu0 0
      %6881 = vperm.xlu0 %6880, %v6803
      %v6882 = vpop.permute.xlu0 %6881
      %6885 = vset.pattern.permute.xlu0 0
      %6886 = vperm.xlu0 %6885, %v6804
      %v6887 = vpop.permute.xlu0 %6886
      %6890 = vset.pattern.permute.xlu0 0
      %6891 = vperm.xlu0 %6890, %v6805
      %v6892 = vpop.permute.xlu0 %6891
      %6895 = vset.pattern.permute.xlu0 0
      %6896 = vperm.xlu0 %6895, %v6806
      %v6897 = vpop.permute.xlu0 %6896
      %6900 = vset.pattern.permute.xlu0 0
      %6901 = vperm.xlu0 %6900, %v6807
      %v6902 = vpop.permute.xlu0 %6901
      %6905 = vset.pattern.permute.xlu0 0
      %6906 = vperm.xlu0 %6905, %v6808
      %v6907 = vpop.permute.xlu0 %6906
      %6910 = vset.pattern.permute.xlu0 0
      %6911 = vperm.xlu0 %6910, %v6809
      %v6912 = vpop.permute.xlu0 %6911
      %6915 = vset.pattern.permute.xlu0 0
      %6916 = vperm.xlu0 %6915, %v6810
      %v6917 = vpop.permute.xlu0 %6916
      %6920 = vset.pattern.permute.xlu0 0
      %6921 = vperm.xlu0 %6920, %v6811
      %v6922 = vpop.permute.xlu0 %6921
      %6925 = vset.pattern.permute.xlu0 0
      %6926 = vperm.xlu0 %6925, %v6812
      %v6927 = vpop.permute.xlu0 %6926
      %6930 = vset.pattern.permute.xlu0 0
      %6931 = vperm.xlu0 %6930, %v6813
      %v6932 = vpop.permute.xlu0 %6931
      %6935 = vset.pattern.permute.xlu0 0
      %6936 = vperm.xlu0 %6935, %v6814
      %v6937 = vpop.permute.xlu0 %6936
      %6940 = vset.pattern.permute.xlu0 0
      %6941 = vperm.xlu0 %6940, %v6815
      %v6942 = vpop.permute.xlu0 %6941
      %6945 = vset.pattern.permute.xlu0 0
      %6946 = vperm.xlu0 %6945, %v6816
      %v6947 = vpop.permute.xlu0 %6946
      %6950 = vset.pattern.permute.xlu0 0
      %6951 = vperm.xlu0 %6950, %v6817
      %v6952 = vpop.permute.xlu0 %6951
      %6955 = vset.pattern.permute.xlu0 0
      %6956 = vperm.xlu0 %6955, %v6818
      %v6957 = vpop.permute.xlu0 %6956
      %6960 = vset.pattern.permute.xlu0 0
      %6961 = vperm.xlu0 %6960, %v6819
      %v6962 = vpop.permute.xlu0 %6961
      %6965 = vset.pattern.permute.xlu0 0
      %6966 = vperm.xlu0 %6965, %v6820
      %v6967 = vpop.permute.xlu0 %6966
      %6970 = vset.pattern.permute.xlu0 0
      %6971 = vperm.xlu0 %6970, %v6821
      %v6972 = vpop.permute.xlu0 %6971
      %6975 = vset.pattern.permute.xlu0 0
      %6976 = vperm.xlu0 %6975, %v6822
      %v6977 = vpop.permute.xlu0 %6976
      %6980 = vset.pattern.permute.xlu0 0
      %6981 = vperm.xlu0 %6980, %v6823
      %v6982 = vpop.permute.xlu0 %6981
      %v6985 = vsel %vm805, %v6760, 0
      %v6988 = vsel %vm805, %v6761, 0
      %v6991 = vsel %vm805, %v6762, 0
      %v6994 = vsel %vm805, %v6763, 0
      %v6997 = vsel %vm805, %v6764, 0
      %v7000 = vsel %vm805, %v6765, 0
      %v7003 = vsel %vm805, %v6766, 0
      %v7006 = vsel %vm805, %v6767, 0
      %v7009 = vsel %vm805, %v6768, 0
      %v7012 = vsel %vm805, %v6769, 0
      %v7015 = vsel %vm805, %v6770, 0
      %v7018 = vsel %vm805, %v6771, 0
      %v7021 = vsel %vm805, %v6772, 0
      %v7024 = vsel %vm805, %v6773, 0
      %v7027 = vsel %vm805, %v6774, 0
      %v7030 = vsel %vm805, %v6775, 0
      %v7033 = vsel %vm805, %v6776, 0
      %v7036 = vsel %vm805, %v6777, 0
      %v7039 = vsel %vm805, %v6778, 0
      %v7042 = vsel %vm805, %v6779, 0
      %v7045 = vsel %vm805, %v6780, 0
      %v7048 = vsel %vm805, %v6781, 0
      %v7051 = vsel %vm805, %v6782, 0
      %v7054 = vsel %vm805, %v6783, 0
      %v7057 = vsel %vm805, %v6784, 0
      %v7060 = vsel %vm805, %v6785, 0
      %v7063 = vsel %vm805, %v6786, 0
      %v7066 = vsel %vm805, %v6787, 0
      %v7069 = vsel %vm805, %v6788, 0
      %v7072 = vsel %vm805, %v6789, 0
      %v7075 = vsel %vm805, %v6790, 0
      %v7078 = vsel %vm805, %v6791, 0
      %7080 = vmatpush.msra.mxu0 0.0
      %7081 = vmatpush.msra.mxu0 0.0
      %7082 = vmatpush.msra.mxu0 0.0
      %7083 = vmatpush.msra.mxu0 0.0
      %7084 = vmatpush.msra.mxu0 0.0
      %7085 = vmatpush.msra.mxu0 0.0
      %7086 = vmatpush.msra.mxu0 0.0
      %7087 = vmatpush.msra.mxu0 0.0
      %7088 = vmatpush.msra.mxu0 0.0
      %7089 = vmatpush.msra.mxu0 0.0
      %7090 = vmatpush.msra.mxu0 0.0
      %7091 = vmatpush.msra.mxu0 0.0
      %7092 = vmatpush.msra.mxu0 %v794
      %7093 = vmatpush.msra.mxu0 %v793
      %7094 = vmatpush.msra.mxu0 %v792
      %7095 = vmatpush.msra.mxu0 %v791
      %7096 = vmatmul.f32.gmra.mxu0 %v6985
      %v7097 = vpop.f32.mrf.mxu0
      %v7098 = vadd.f32 %v6827, %v7097
      %7099 = vmatmul.f32.gmra.mxu0 %v6988
      %v7100 = vpop.f32.mrf.mxu0
      %v7101 = vadd.f32 %v6832, %v7100
      %7102 = vmatmul.f32.gmra.mxu0 %v6991
      %v7103 = vpop.f32.mrf.mxu0
      %v7104 = vadd.f32 %v6837, %v7103
      %7105 = vmatmul.f32.gmra.mxu0 %v6994
      %v7106 = vpop.f32.mrf.mxu0
      %v7107 = vadd.f32 %v6842, %v7106
      %7108 = vmatmul.f32.gmra.mxu0 %v6997
      %v7109 = vpop.f32.mrf.mxu0
      %v7110 = vadd.f32 %v6847, %v7109
      %7111 = vmatmul.f32.gmra.mxu0 %v7000
      %v7112 = vpop.f32.mrf.mxu0
      %v7113 = vadd.f32 %v6852, %v7112
      %7114 = vmatmul.f32.gmra.mxu0 %v7003
      %v7115 = vpop.f32.mrf.mxu0
      %v7116 = vadd.f32 %v6857, %v7115
      %7117 = vmatmul.f32.gmra.mxu0 %v7006
      %v7118 = vpop.f32.mrf.mxu0
      %v7119 = vadd.f32 %v6862, %v7118
      %7120 = vmatmul.f32.gmra.mxu0 %v7009
      %v7121 = vpop.f32.mrf.mxu0
      %v7122 = vadd.f32 %v6867, %v7121
      %7123 = vmatmul.f32.gmra.mxu0 %v7012
      %v7124 = vpop.f32.mrf.mxu0
      %v7125 = vadd.f32 %v6872, %v7124
      %7126 = vmatmul.f32.gmra.mxu0 %v7015
      %v7127 = vpop.f32.mrf.mxu0
      %v7128 = vadd.f32 %v6877, %v7127
      %7129 = vmatmul.f32.gmra.mxu0 %v7018
      %v7130 = vpop.f32.mrf.mxu0
      %v7131 = vadd.f32 %v6882, %v7130
      %7132 = vmatmul.f32.gmra.mxu0 %v7021
      %v7133 = vpop.f32.mrf.mxu0
      %v7134 = vadd.f32 %v6887, %v7133
      %7135 = vmatmul.f32.gmra.mxu0 %v7024
      %v7136 = vpop.f32.mrf.mxu0
      %v7137 = vadd.f32 %v6892, %v7136
      %7138 = vmatmul.f32.gmra.mxu0 %v7027
      %v7139 = vpop.f32.mrf.mxu0
      %v7140 = vadd.f32 %v6897, %v7139
      %7141 = vmatmul.f32.gmra.mxu0 %v7030
      %v7142 = vpop.f32.mrf.mxu0
      %v7143 = vadd.f32 %v6902, %v7142
      %7144 = vmatmul.f32.gmra.mxu0 %v7033
      %v7145 = vpop.f32.mrf.mxu0
      %v7146 = vadd.f32 %v6907, %v7145
      %7147 = vmatmul.f32.gmra.mxu0 %v7036
      %v7148 = vpop.f32.mrf.mxu0
      %v7149 = vadd.f32 %v6912, %v7148
      %7150 = vmatmul.f32.gmra.mxu0 %v7039
      %v7151 = vpop.f32.mrf.mxu0
      %v7152 = vadd.f32 %v6917, %v7151
      %7153 = vmatmul.f32.gmra.mxu0 %v7042
      %v7154 = vpop.f32.mrf.mxu0
      %v7155 = vadd.f32 %v6922, %v7154
      %7156 = vmatmul.f32.gmra.mxu0 %v7045
      %v7157 = vpop.f32.mrf.mxu0
      %v7158 = vadd.f32 %v6927, %v7157
      %7159 = vmatmul.f32.gmra.mxu0 %v7048
      %v7160 = vpop.f32.mrf.mxu0
      %v7161 = vadd.f32 %v6932, %v7160
      %7162 = vmatmul.f32.gmra.mxu0 %v7051
      %v7163 = vpop.f32.mrf.mxu0
      %v7164 = vadd.f32 %v6937, %v7163
      %7165 = vmatmul.f32.gmra.mxu0 %v7054
      %v7166 = vpop.f32.mrf.mxu0
      %v7167 = vadd.f32 %v6942, %v7166
      %7168 = vmatmul.f32.gmra.mxu0 %v7057
      %v7169 = vpop.f32.mrf.mxu0
      %v7170 = vadd.f32 %v6947, %v7169
      %7171 = vmatmul.f32.gmra.mxu0 %v7060
      %v7172 = vpop.f32.mrf.mxu0
      %v7173 = vadd.f32 %v6952, %v7172
      %7174 = vmatmul.f32.gmra.mxu0 %v7063
      %v7175 = vpop.f32.mrf.mxu0
      %v7176 = vadd.f32 %v6957, %v7175
      %7177 = vmatmul.f32.gmra.mxu0 %v7066
      %v7178 = vpop.f32.mrf.mxu0
      %v7179 = vadd.f32 %v6962, %v7178
      %7180 = vmatmul.f32.gmra.mxu0 %v7069
      %v7181 = vpop.f32.mrf.mxu0
      %v7182 = vadd.f32 %v6967, %v7181
      %7183 = vmatmul.f32.gmra.mxu0 %v7072
      %v7184 = vpop.f32.mrf.mxu0
      %v7185 = vadd.f32 %v6972, %v7184
      %7186 = vmatmul.f32.gmra.mxu0 %v7075
      %v7187 = vpop.f32.mrf.mxu0
      %v7188 = vadd.f32 %v6977, %v7187
      %7189 = vmatmul.f32.gmra.mxu0 %v7078
      %v7190 = vpop.f32.mrf.mxu0
      %v7191 = vadd.f32 %v6982, %v7190
      %7192 = vdwg.mxu0
      %v7193 = vadd.f32 %v6665, %v7098
      %v7194 = vadd.f32 %v6668, %v7101
      %v7195 = vadd.f32 %v6671, %v7104
      %v7196 = vadd.f32 %v6674, %v7107
      %v7197 = vadd.f32 %v6677, %v7110
      %v7198 = vadd.f32 %v6680, %v7113
      %v7199 = vadd.f32 %v6683, %v7116
      %v7200 = vadd.f32 %v6686, %v7119
      %v7201 = vadd.f32 %v6689, %v7122
      %v7202 = vadd.f32 %v6692, %v7125
      %v7203 = vadd.f32 %v6695, %v7128
      %v7204 = vadd.f32 %v6698, %v7131
      %v7205 = vadd.f32 %v6701, %v7134
      %v7206 = vadd.f32 %v6704, %v7137
      %v7207 = vadd.f32 %v6707, %v7140
      %v7208 = vadd.f32 %v6710, %v7143
      %v7209 = vadd.f32 %v6713, %v7146
      %v7210 = vadd.f32 %v6716, %v7149
      %v7211 = vadd.f32 %v6719, %v7152
      %v7212 = vadd.f32 %v6722, %v7155
      %v7213 = vadd.f32 %v6725, %v7158
      %v7214 = vadd.f32 %v6728, %v7161
      %v7215 = vadd.f32 %v6731, %v7164
      %v7216 = vadd.f32 %v6734, %v7167
      %v7217 = vadd.f32 %v6737, %v7170
      %v7218 = vadd.f32 %v6740, %v7173
      %v7219 = vadd.f32 %v6743, %v7176
      %v7220 = vadd.f32 %v6746, %v7179
      %v7221 = vadd.f32 %v6749, %v7182
      %v7222 = vadd.f32 %v6752, %v7185
      %v7223 = vadd.f32 %v6755, %v7188
      %v7224 = vadd.f32 %v6758, %v7191
      %v7225 = vmax.f32 %v7193, 0.0
      %v7226 = vmax.f32 %v7194, 0.0
      %v7227 = vmax.f32 %v7195, 0.0
      %v7228 = vmax.f32 %v7196, 0.0
      %v7229 = vmax.f32 %v7197, 0.0
      %v7230 = vmax.f32 %v7198, 0.0
      %v7231 = vmax.f32 %v7199, 0.0
      %v7232 = vmax.f32 %v7200, 0.0
      %v7233 = vmax.f32 %v7201, 0.0
      %v7234 = vmax.f32 %v7202, 0.0
      %v7235 = vmax.f32 %v7203, 0.0
      %v7236 = vmax.f32 %v7204, 0.0
      %v7237 = vmax.f32 %v7205, 0.0
      %v7238 = vmax.f32 %v7206, 0.0
      %v7239 = vmax.f32 %v7207, 0.0
      %v7240 = vmax.f32 %v7208, 0.0
      %v7241 = vmax.f32 %v7209, 0.0
      %v7242 = vmax.f32 %v7210, 0.0
      %v7243 = vmax.f32 %v7211, 0.0
      %v7244 = vmax.f32 %v7212, 0.0
      %v7245 = vmax.f32 %v7213, 0.0
      %v7246 = vmax.f32 %v7214, 0.0
      %v7247 = vmax.f32 %v7215, 0.0
      %v7248 = vmax.f32 %v7216, 0.0
      %v7249 = vmax.f32 %v7217, 0.0
      %v7250 = vmax.f32 %v7218, 0.0
      %v7251 = vmax.f32 %v7219, 0.0
      %v7252 = vmax.f32 %v7220, 0.0
      %v7253 = vmax.f32 %v7221, 0.0
      %v7254 = vmax.f32 %v7222, 0.0
      %v7255 = vmax.f32 %v7223, 0.0
      %v7256 = vmax.f32 %v7224, 0.0
      %7257 = vst.msk [vmem:[%s790] sm:$0xff] %vm1003, %v7225
      %7258 = vst.msk [vmem:[%s790 + $0x8] sm:$0xff] %vm1003, %v7226
      %7259 = vst.msk [vmem:[%s790 + $0x10] sm:$0xff] %vm1003, %v7227
      %7260 = vst.msk [vmem:[%s790 + $0x18] sm:$0xff] %vm1003, %v7228
      %7261 = vst.msk [vmem:[%s790 + $0x20] sm:$0xff] %vm1003, %v7229
      %7262 = vst.msk [vmem:[%s790 + $0x28] sm:$0xff] %vm1003, %v7230
      %7263 = vst.msk [vmem:[%s790 + $0x30] sm:$0xff] %vm1003, %v7231
      %7264 = vst.msk [vmem:[%s790 + $0x38] sm:$0xff] %vm1003, %v7232
      %7265 = vst.msk [vmem:[%s790 + $0x40] sm:$0xff] %vm1003, %v7233
      %7266 = vst.msk [vmem:[%s790 + $0x48] sm:$0xff] %vm1003, %v7234
      %7267 = vst.msk [vmem:[%s790 + $0x50] sm:$0xff] %vm1003, %v7235
      %7268 = vst.msk [vmem:[%s790 + $0x58] sm:$0xff] %vm1003, %v7236
      %7269 = vst.msk [vmem:[%s790 + $0x60] sm:$0xff] %vm1003, %v7237
      %7270 = vst.msk [vmem:[%s790 + $0x68] sm:$0xff] %vm1003, %v7238
      %7271 = vst.msk [vmem:[%s790 + $0x70] sm:$0xff] %vm1003, %v7239
      %7272 = vst.msk [vmem:[%s790 + $0x78] sm:$0xff] %vm1003, %v7240
      %7273 = vst.msk [vmem:[%s790 + $0x80] sm:$0xff] %vm1003, %v7241
      %7274 = vst.msk [vmem:[%s790 + $0x88] sm:$0xff] %vm1003, %v7242
      %7275 = vst.msk [vmem:[%s790 + $0x90] sm:$0xff] %vm1003, %v7243
      %7276 = vst.msk [vmem:[%s790 + $0x98] sm:$0xff] %vm1003, %v7244
      %7277 = vst.msk [vmem:[%s790 + $0xa0] sm:$0xff] %vm1003, %v7245
      %7278 = vst.msk [vmem:[%s790 + $0xa8] sm:$0xff] %vm1003, %v7246
      %7279 = vst.msk [vmem:[%s790 + $0xb0] sm:$0xff] %vm1003, %v7247
      %7280 = vst.msk [vmem:[%s790 + $0xb8] sm:$0xff] %vm1003, %v7248
      %7281 = vst.msk [vmem:[%s790 + $0xc0] sm:$0xff] %vm1003, %v7249
      %7282 = vst.msk [vmem:[%s790 + $0xc8] sm:$0xff] %vm1003, %v7250
      %7283 = vst.msk [vmem:[%s790 + $0xd0] sm:$0xff] %vm1003, %v7251
      %7284 = vst.msk [vmem:[%s790 + $0xd8] sm:$0xff] %vm1003, %v7252
      %7285 = vst.msk [vmem:[%s790 + $0xe0] sm:$0xff] %vm1003, %v7253
      %7286 = vst.msk [vmem:[%s790 + $0xe8] sm:$0xff] %vm1003, %v7254
      %7287 = vst.msk [vmem:[%s790 + $0xf0] sm:$0xff] %vm1003, %v7255
      %7288 = vst.msk [vmem:[%s790 + $0xf8] sm:$0xff] %vm1003, %v7256
      %p7289 = scmp.lt.s32.totalorder %s42, 1
      %s7290 = scalar_select %p7289, %s42, 1
      %s7291 = smul.addr %s7290, 32
      %s7292 = smul.addr %s7291, 8
      %s7293 = scalar_lea.vmem %s25, %s7292
      // Predicated region
      $region121: #{tpu_custom_call.1} parent=119 // pred_check
        %p7294 = pneg %p595
      $region122: #{tpu_custom_call.1} parent=119 // pred_check_branch
        %7296 = sbr.rel (%p7294) target = $region124
      $region123: #{tpu_custom_call.1} parent=119 // pred_region
        _
      $region124: #{tpu_custom_call.1} parent=119 // pred_fallthru
        _
    $region120: #{tpu_custom_call.1} parent=5 // pred_fallthru
      _
    %p7297 = scmp.le.s32.totalorder 2, %s37
    // Predicated region
    $region125: #{tpu_custom_call.1} parent=5 // pred_check
      %p7298 = pneg %p7297
    $region126: #{tpu_custom_call.1} parent=5 // pred_check_branch
      %7300 = sbr.rel (%p7298) target = $region128
    $region127: #{tpu_custom_call.1} parent=5 // pred_region
      %s7301 = ssub.s32 %s37, 2
      // Predicated region
      $region129: #{tpu_custom_call.1} parent=127 // pred_check
        %p7302 = pneg %p601
      $region130: #{tpu_custom_call.1} parent=127 // pred_check_branch
        %7304 = sbr.rel (%p7302) target = $region132
      $region131: #{tpu_custom_call.1} parent=127 // pred_region
        %p7305 = scmp.lt.s32.totalorder %s43, 1
        %s7306 = scalar_select %p7305, %s43, 1
        %s7307 = smul.addr %s7306, 32
        %s7308 = smul.addr %s7307, 8
        %s7309 = scalar_lea.vmem %s25, %s7308
      $region132: #{tpu_custom_call.1} parent=127 // pred_fallthru
        _
    $region128: #{tpu_custom_call.1} parent=5 // pred_fallthru
      _
  $region6: #{tpu_custom_call.1} parent=0 // loop_footer
    %s41 = sadd.s32 1, %s37
  $region7: #{tpu_custom_call.1} parent=0 // loop_footer_branch
    %36 = sbr.rel target = $region3
  $region8: #{tpu_custom_call.1} parent=0 // loop_exit
    _

</llo_original>
